<compile_context>
chip_gen: v5e
topology: v5e:2x2
jax: 0.10.0
libtpu: 0.0.40
codegen_flags: <defaults>
</compile_context>

<pallas_src>
import functools

import jax
import jax.numpy as jnp
from jax.experimental import pallas as pl
from jax.experimental.pallas import tpu as pltpu

_BF16 = jnp.bfloat16

# Flipped to False at runtime if the direct-conv kernel fails to lower / self-check.
_DIRECT_CONV_ENABLED = True


def _round_up(x, m):
    return (x + m - 1) // m * m


# --------------------------------------------------------------------------
# Pallas kernel 1: tiled matmul with fused bias add + ReLU (im2col conv path)
# --------------------------------------------------------------------------
def _mm_bias_act_kernel(x_ref, w_ref, b_ref, o_ref, acc_ref, *, relu):
    @pl.when(pl.program_id(2) == 0)
    def _():
        acc_ref[...] = jnp.zeros_like(acc_ref)

    acc_ref[...] += jnp.dot(x_ref[...], w_ref[...],
                            preferred_element_type=jnp.float32)

    @pl.when(pl.program_id(2) == pl.num_programs(2) - 1)
    def _():
        r = acc_ref[...] + b_ref[...]
        if relu:
            r = jnp.maximum(r, 0.0)
        o_ref[...] = r.astype(o_ref.dtype)


def matmul_bias_act(x, w, b, *, relu=True, out_dtype=_BF16):
    """x:(M,K) @ w:(K,N) + b:(N,) with optional fused ReLU.

    bf16 MXU operands, f32 accumulation, per-layer tile sizes (full-extent K/N
    blocks so the small SSD layers are not padded to 256x256).
    """
    M, K = x.shape
    _, N = w.shape

    Kp = _round_up(K, 128)
    tk = min(Kp, 2304)
    Kp = _round_up(Kp, tk)
    tn = N if N <= 512 else 512            # every Cout in this net divides evenly
    if M >= 8192:
        tm = 1024 if (Kp <= 1280 and tn <= 512) else 512
    else:
        tm = min(256, _round_up(M, 8))
    Mp = _round_up(M, tm)

    xp = x.astype(_BF16)
    if (Mp, Kp) != (M, K):
        xp = jnp.pad(xp, ((0, Mp - M), (0, Kp - K)))
    wp = w.astype(_BF16)
    if Kp != K:
        wp = jnp.pad(wp, ((0, Kp - K), (0, 0)))
    bp = b.reshape(1, N).astype(jnp.float32)

    grid = (Mp // tm, N // tn, Kp // tk)
    out = pl.pallas_call(
        functools.partial(_mm_bias_act_kernel, relu=relu),
        out_shape=jax.ShapeDtypeStruct((Mp, N), out_dtype),
        grid_spec=pltpu.PrefetchScalarGridSpec(
            num_scalar_prefetch=0,
            grid=grid,
            in_specs=[
                pl.BlockSpec((tm, tk), lambda i, j, k: (i, k)),
                pl.BlockSpec((tk, tn), lambda i, j, k: (k, j)),
                pl.BlockSpec((1, tn), lambda i, j, k: (0, j)),
            ],
            out_specs=pl.BlockSpec((tm, tn), lambda i, j, k: (i, j)),
            scratch_shapes=[pltpu.VMEM((tm, tn), jnp.float32)],
        ),
        compiler_params=pltpu.CompilerParams(
            dimension_semantics=("parallel", "parallel", "arbitrary")),
    )(xp, wp, bp)
    return out[:M] if Mp != M else out


# --------------------------------------------------------------------------
# Pallas kernel 2: direct (im2col-free) 3x3 stride-1 convolution
# --------------------------------------------------------------------------
def _direct_conv_kernel(xa_ref, xb_ref, w_ref, b_ref, o_ref, acc_ref,
                        *, k, d, bh, wp8, wo, relu):
    cin = xa_ref.shape[-1]
    # Two consecutive bh-row blocks of the zero-padded activation -> flat (2*bh*wp8, Cin).
    xcat = jnp.concatenate([xa_ref[0], xb_ref[0]], axis=0)
    xflat = xcat.reshape(2 * bh * wp8, cin)
    m = bh * wp8

    first = True
    for dy in range(k):
        for dx in range(k):
            off = dy * d * wp8 + dx * d          # flattened-row offset of tap (dy, dx)
            xs = xflat[off:off + m, :]
            contrib = jnp.dot(xs, w_ref[dy * k + dx],
                              preferred_element_type=jnp.float32)
            if first:
                acc_ref[...] = contrib
                first = False
            else:
                acc_ref[...] += contrib

    res = acc_ref[...] + b_ref[...]
    if relu:
        res = jnp.maximum(res, 0.0)
    res = res.reshape(bh, wp8, res.shape[-1])[:, :wo, :]   # drop junk (padding) columns
    o_ref[0] = res.astype(o_ref.dtype)


def conv2d_direct(x, w_hwio, b, *, padding, dilation=1, relu=True, out_dtype=_BF16):
    """Stride-1 kxk conv on NHWC input without materializing im2col in HBM."""
    kh, kw, cin, cout = w_hwio.shape
    assert kh == kw
    k, d, p = kh, dilation, padding
    N, H, W, _ = x.shape
    Ho = H + 2 * p - d * (k - 1)
    Wo = W + 2 * p - d * (k - 1)

    Wp8 = _round_up(W + 2 * p, 8)                 # padded width, sublane aligned
    bh = max(16, _round_up((k - 1) * d + 1, 8))   # output rows per block
    assert Wp8 >= (k - 1) * d and bh >= (k - 1) * d + 1
    n_hb = -(-Ho // bh)
    H_ext = (n_hb + 1) * bh                       # >= H + 2p, covers block i+1 reads

    xq = x.astype(_BF16)
    xq = jnp.pad(xq, ((0, 0), (p, H_ext - H - p), (p, Wp8 - W - p), (0, 0)))
    wq = w_hwio.astype(_BF16).reshape(k * k, cin, cout)
    bq = b.reshape(1, cout).astype(jnp.float32)

    tn = cout if cout <= 512 else 512
    grid = (N, n_hb, cout // tn)
    out = pl.pallas_call(
        functools.partial(_direct_conv_kernel, k=k, d=d, bh=bh, wp8=Wp8, wo=Wo,
                          relu=relu),
        out_shape=jax.ShapeDtypeStruct((N, n_hb * bh, Wo, cout), out_dtype),
        grid_spec=pltpu.PrefetchScalarGridSpec(
            num_scalar_prefetch=0,
            grid=grid,
            in_specs=[
                pl.BlockSpec((1, bh, Wp8, cin), lambda n, i, j: (n, i, 0, 0)),
                pl.BlockSpec((1, bh, Wp8, cin), lambda n, i, j: (n, i + 1, 0, 0)),
                pl.BlockSpec((k * k, cin, tn), lambda n, i, j: (0, 0, j)),
                pl.BlockSpec((1, tn), lambda n, i, j: (0, j)),
            ],
            out_specs=pl.BlockSpec((1, bh, Wo, tn), lambda n, i, j: (n, i, 0, j)),
            scratch_shapes=[pltpu.VMEM((bh * Wp8, tn), jnp.float32)],
        ),
        compiler_params=pltpu.CompilerParams(
            dimension_semantics=("parallel", "parallel", "parallel")),
    )(xq, xq, wq, bq)
    return out[:, :Ho] if n_hb * bh != Ho else out


# --------------------------------------------------------------------------
# Pallas kernel 3: elementwise max over pooling taps (for MaxPool2d)
# --------------------------------------------------------------------------
def _max_reduce_kernel(x_ref, o_ref):
    o_ref[...] = jnp.max(x_ref[...], axis=0)


def _max_over_taps(x):
    """x: (T, M, C) -> (M, C), elementwise max over the T pooling taps."""
    T, M, C = x.shape
    tm = min(1024, _round_up(M, 512))
    Mp = _round_up(M, tm)
    if Mp != M:
        x = jnp.pad(x, ((0, 0), (0, Mp - M), (0, 0)))
    folded = (C == 64)                       # lane-density fix for the first pool
    if folded:
        x = x.reshape(T, Mp // 2, 128)
    Tm, Mm, Cm = x.shape
    tmm = tm // 2 if folded else tm
    tc = min(256, Cm)
    out = pl.pallas_call(
        _max_reduce_kernel,
        out_shape=jax.ShapeDtypeStruct((Mm, Cm), x.dtype),
        grid=(Mm // tmm, Cm // tc),
        in_specs=[pl.BlockSpec((Tm, tmm, tc), lambda i, j: (0, i, j))],
        out_specs=pl.BlockSpec((tmm, tc), lambda i, j: (i, j)),
    )(x)
    if folded:
        out = out.reshape(Mp, C)
    return out[:M]


# --------------------------------------------------------------------------
# Pallas kernel 4: L2Norm over the channel axis (ParseNet-style)
# --------------------------------------------------------------------------
def _l2norm_kernel(x_ref, w_ref, o_ref, *, eps):
    xv = x_ref[...].astype(jnp.float32)
    ssq = jnp.sum(xv * xv, axis=-1, keepdims=True)
    norm = jnp.sqrt(ssq) + eps
    o_ref[...] = (w_ref[...] * xv / norm).astype(o_ref.dtype)


def l2norm(x, weight, eps=1e-10):
    """x: (N,H,W,C); y = weight[c] * x / (sqrt(sum_c x^2) + eps). f32 output."""
    N, H, W, C = x.shape
    M = N * H * W
    tm = 256
    Mp = _round_up(M, tm)
    xf = x.reshape(M, C)
    if Mp != M:
        xf = jnp.pad(xf, ((0, Mp - M), (0, 0)))
    out = pl.pallas_call(
        functools.partial(_l2norm_kernel, eps=eps),
        out_shape=jax.ShapeDtypeStruct((Mp, C), jnp.float32),
        grid=(Mp // tm,),
        in_specs=[pl.BlockSpec((tm, C), lambda i: (i, 0)),
                  pl.BlockSpec((1, C), lambda i: (0, 0))],
        out_specs=pl.BlockSpec((tm, C), lambda i: (i, 0)),
    )(xf, weight.reshape(1, C).astype(jnp.float32))
    return out[:M].reshape(N, H, W, C)


# --------------------------------------------------------------------------
# Glue: im2col (fallback path), conv dispatcher, pooling tap extraction
# --------------------------------------------------------------------------
def _im2col(x, k, stride, padding, dilation):
    N, H, W, C = x.shape
    Ho = (H + 2 * padding - dilation * (k - 1) - 1) // stride + 1
    Wo = (W + 2 * padding - dilation * (k - 1) - 1) // stride + 1
    if padding > 0:
        x = jnp.pad(x, ((0, 0), (padding, padding), (padding, padding), (0, 0)))
    taps = []
    for dy in range(k):
        for dx in range(k):
            y0, x0 = dy * dilation, dx * dilation
            taps.append(x[:, y0:y0 + stride * (Ho - 1) + 1:stride,
                          x0:x0 + stride * (Wo - 1) + 1:stride, :])
    cols = jnp.concatenate(taps, axis=-1) if k > 1 else taps[0]
    return cols.reshape(N * Ho * Wo, k * k * C), (N, Ho, Wo)


def conv2d(x, w_hwio, b, *, stride=1, padding=0, dilation=1, relu=True):
    """NHWC conv. 3x3 stride-1 convs use the direct Pallas kernel (no im2col in
    HBM); 1x1 / strided / tiny convs use im2col + the Pallas matmul kernel."""
    global _DIRECT_CONV_ENABLED
    kh, kw, cin, cout = w_hwio.shape
    N, H, W, _ = x.shape
    if (_DIRECT_CONV_ENABLED and kh == 3 and stride == 1 and cin >= 64
            and min(H, W) >= 16):
        try:
            return conv2d_direct(x, w_hwio, b, padding=padding,
                                 dilation=dilation, relu=relu)
        except Exception:
            # Fall back to the im2col path if the direct kernel fails to lower.
            _DIRECT_CONV_ENABLED = False
    cols, (n, ho, wo) = _im2col(x.astype(_BF16), kh, stride, padding, dilation)
    y = matmul_bias_act(cols, w_hwio.reshape(kh * kw * cin, cout), b, relu=relu)
    return y.reshape(n, ho, wo, cout)


def maxpool2x2_ceil(x):
    """MaxPool2d(kernel=2, stride=2, ceil_mode=True) on NHWC input."""
    N, H, W, C = x.shape
    Ho, Wo = -(-H // 2), -(-W // 2)
    Hp, Wp = Ho * 2, Wo * 2
    xp = jnp.pad(x, ((0, 0), (0, Hp - H), (0, Wp - W), (0, 0)),
                 constant_values=-jnp.inf)
    taps = [xp[:, dy::2, dx::2, :] for dy in range(2) for dx in range(2)]
    stacked = jnp.stack(taps, axis=0).reshape(4, N * Ho * Wo, C)
    return _max_over_taps(stacked).reshape(N, Ho, Wo, C)


def maxpool3x3_s1_p1(x):
    """MaxPool2d(kernel=3, stride=1, padding=1) on NHWC input."""
    N, H, W, C = x.shape
    xp = jnp.pad(x, ((0, 0), (1, 1), (1, 1), (0, 0)), constant_values=-jnp.inf)
    taps = [xp[:, dy:dy + H, dx:dx + W, :] for dy in range(3) for dx in range(3)]
    stacked = jnp.stack(taps, axis=0).reshape(9, N * H * W, C)
    return _max_over_taps(stacked).reshape(N, H, W, C)


def _self_check_direct_conv():
    """Run the direct-conv kernel against the im2col path on small cases
    (plain and dilated). Returns False on lowering failure or mismatch so the
    forward falls back to the known-good im2col path."""
    try:
        key = jax.random.PRNGKey(1)
        for (h, w, cin, cout, pad, dil) in ((20, 20, 64, 128, 1, 1),
                                            (17, 17, 64, 64, 6, 6)):
            kx, kw_, kb, key = jax.random.split(key, 4)
            x = jax.random.normal(kx, (1, h, w, cin), jnp.float32)
            wgt = jax.random.normal(kw_, (3, 3, cin, cout), jnp.float32) * 0.05
            bias = jax.random.normal(kb, (cout,), jnp.float32) * 0.1
            y1 = conv2d_direct(x, wgt, bias, padding=pad, dilation=dil)
            cols, (n, ho, wo) = _im2col(x.astype(_BF16), 3, 1, pad, dil)
            y2 = matmul_bias_act(cols, wgt.reshape(-1, cout), bias)
            y2 = y2.reshape(n, ho, wo, cout)
            if not bool(jnp.allclose(y1.astype(jnp.float32),
                                     y2.astype(jnp.float32),
                                     atol=0.1, rtol=0.05)):
                return False
        return True
    except Exception:
        return False


# --------------------------------------------------------------------------
# SSDVGG16 parameters (deterministic synthetic init) and forward
# --------------------------------------------------------------------------
def _conv_init(key, k, cin, cout):
    kw, kb = jax.random.split(key)
    fan_in = k * k * cin
    w = jax.random.normal(kw, (k, k, cin, cout), jnp.float32) * jnp.sqrt(2.0 / fan_in)
    b = 0.01 * jax.random.normal(kb, (cout,), jnp.float32)
    return w, b


def init_params(key):
    blocks = [2, 2, 3, 3, 3]
    chans = [64, 128, 256, 512, 512]
    extra_io = [(1024, 256, 1), (256, 512, 3), (512, 128, 1), (128, 256, 3),
                (256, 128, 1), (128, 256, 3), (256, 128, 1), (128, 256, 3)]
    keys = jax.random.split(key, sum(blocks) + 2 + len(extra_io))
    ki = 0
    feats = []
    cin = 3
    for bi, n in enumerate(blocks):
        for _ in range(n):
            feats.append(_conv_init(keys[ki], 3, cin, chans[bi])); ki += 1
            cin = chans[bi]
    feats.append(_conv_init(keys[ki], 3, 512, 1024)); ki += 1   # dilated fc6
    feats.append(_conv_init(keys[ki], 1, 1024, 1024)); ki += 1  # fc7 (1x1)
    extra = []
    for ci, co, k in extra_io:
        extra.append(_conv_init(keys[ki], k, ci, co)); ki += 1
    # L2Norm weight initialized to the scale (constant_init(l2_norm, scale=20.0))
    l2_weight = jnp.full((512,), 20.0, jnp.float32)
    return {"features": feats, "extra": extra, "l2_weight": l2_weight}


def ssd_vgg16_forward(x_nchw, params):
    """Reproduces SSDVGG16.forward (out_feature_indices=(22,34),
    extra_out_feature_indices=(1,3,5,7), classify_classes=None)."""
    x = jnp.transpose(x_nchw, (0, 2, 3, 1)).astype(_BF16)  # NCHW -> NHWC, bf16
    feats = params["features"]
    outs = []
    idx = 0
    block_convs = [2, 2, 3, 3, 3]
    for bi, nconv in enumerate(block_convs):
        for _ in range(nconv):
            w, b = feats[idx]; idx += 1
            x = conv2d(x, w, b, stride=1, padding=1, dilation=1, relu=True)
        if bi == 3:
            outs.append(x)          # features index 22 (relu after conv4_3)
        if bi < 4:
            x = maxpool2x2_ceil(x)  # block-4 pool was popped in __init__
    x = maxpool3x3_s1_p1(x)          # added MaxPool2d(3, stride=1, padding=1)
    w, b = feats[idx]; idx += 1
    x = conv2d(x, w, b, stride=1, padding=6, dilation=6, relu=True)  # 512 -> 1024
    w, b = feats[idx]; idx += 1
    x = conv2d(x, w, b, stride=1, padding=0, dilation=1, relu=True)  # 1024 -> 1024
    outs.append(x)                   # features index 34

    # extra block: F.relu after every layer, outputs at indices (1,3,5,7)
    extra_specs = [(1, 0), (2, 1), (1, 0), (2, 1), (1, 0), (1, 0), (1, 0), (1, 0)]
    for i, (w, b) in enumerate(params["extra"]):
        s, pad = extra_specs[i]
        x = conv2d(x, w, b, stride=s, padding=pad, dilation=1, relu=True)
        if i in (1, 3, 5, 7):
            outs.append(x)

    outs[0] = l2norm(outs[0], params["l2_weight"])
    # TODO(synk): classify_classes branch (AdaptiveAvgPool + Linear) not exercised (None by default).
    return tuple(jnp.transpose(o.astype(jnp.float32), (0, 3, 1, 2)) for o in outs)


if __name__ == "__main__":
    # Validate the direct-conv kernel once; disable it (fallback to im2col) on any issue.
    if not _self_check_direct_conv():
        _DIRECT_CONV_ENABLED = False

    key = jax.random.PRNGKey(0)
    pkey, xkey = jax.random.split(key)
    params = init_params(pkey)
    # 257x257 is the smallest spatial size for which every SSD extra conv stays valid
    # (extra[5]/extra[7] are 3x3, padding=0).
    x = jax.random.normal(xkey, (1, 3, 257, 257), jnp.float32)
    outs = ssd_vgg16_forward(x, params)
    outs = jax.block_until_ready(outs)
    expected = [(1, 512, 33, 33), (1, 1024, 17, 17), (1, 512, 9, 9),
                (1, 256, 5, 5), (1, 256, 3, 3), (1, 256, 1, 1)]
    got = [tuple(int(d) for d in o.shape) for o in outs]
    assert got == expected, got
    assert all(bool(jnp.all(jnp.isfinite(o))) for o in outs)
    print("KERNEL_OK")
</pallas_src>

<mosaic_0001>
module attributes {stable_mosaic.version = 11 : i64} {
  func.func @_direct_conv_kernel(%arg0: i32, %arg1: i32, %arg2: i32, %arg3: memref<1x16x24x64xbf16, #tpu.memory_space<vmem>>, %arg4: memref<1x16x24x64xbf16, #tpu.memory_space<vmem>>, %arg5: memref<9x64x128xbf16, #tpu.memory_space<vmem>>, %arg6: memref<1x128xf32, #tpu.memory_space<vmem>>, %arg7: memref<1x16x20x128xbf16, #tpu.memory_space<vmem>>, %arg8: memref<384x128xf32, #tpu.memory_space<vmem>>) attributes {dimension_semantics = [#tpu.dimension_semantics<parallel>, #tpu.dimension_semantics<parallel>, #tpu.dimension_semantics<parallel>], iteration_bounds = array<i64: 1, 2, 1>, scalar_prefetch = 0 : i64, scratch_operands = 1 : i64, tpu.core_type = #tpu.core_type<tc>, window_params = [{transform_indices = @transform_0, window_bounds = array<i64: 1, 16, 24, 64>}, {transform_indices = @transform_1, window_bounds = array<i64: 1, 16, 24, 64>}, {transform_indices = @transform_2, window_bounds = array<i64: 9, 64, 128>}, {transform_indices = @transform_3, window_bounds = array<i64: 1, 128>}, {transform_indices = @transform_4, window_bounds = array<i64: 1, 16, 20, 128>}]} {
    %c0 = arith.constant 0 : index
    %c0_0 = arith.constant 0 : index
    %c0_1 = arith.constant 0 : index
    %c0_2 = arith.constant 0 : index
    %0 = vector.load %arg3[%c0, %c0_0, %c0_1, %c0_2] : memref<1x16x24x64xbf16, #tpu.memory_space<vmem>>, vector<1x16x24x64xbf16>
    %1 = vector.shape_cast %0 : vector<1x16x24x64xbf16> to vector<16x24x64xbf16>
    %c0_3 = arith.constant 0 : index
    %c0_4 = arith.constant 0 : index
    %c0_5 = arith.constant 0 : index
    %c0_6 = arith.constant 0 : index
    %2 = vector.load %arg4[%c0_3, %c0_4, %c0_5, %c0_6] : memref<1x16x24x64xbf16, #tpu.memory_space<vmem>>, vector<1x16x24x64xbf16>
    %3 = vector.shape_cast %2 : vector<1x16x24x64xbf16> to vector<16x24x64xbf16>
    %4 = tpu.concatenate %1, %3 in 0 : vector<16x24x64xbf16>, vector<16x24x64xbf16> -> vector<32x24x64xbf16>
    %5 = vector.shape_cast %4 : vector<32x24x64xbf16> to vector<768x64xbf16>
    %6 = vector.extract_strided_slice %5 {offsets = [0, 0], sizes = [384, 64], strides = [1, 1]} : vector<768x64xbf16> to vector<384x64xbf16>
    %c0_7 = arith.constant 0 : index
    %c0_8 = arith.constant 0 : index
    %c0_9 = arith.constant 0 : index
    %7 = vector.load %arg5[%c0_7, %c0_8, %c0_9] : memref<9x64x128xbf16, #tpu.memory_space<vmem>>, vector<1x64x128xbf16>
    %8 = vector.shape_cast %7 : vector<1x64x128xbf16> to vector<64x128xbf16>
    %cst = arith.constant dense<0.000000e+00> : vector<384x128xf32>
    %9 = tpu.matmul %6, %8, %cst {dimension_numbers = #tpu.dot_dimension_numbers<[1], [0], [0], [1], [0, 0, 1, 1], [], []>} : vector<384x64xbf16>, vector<64x128xbf16>, vector<384x128xf32> -> vector<384x128xf32>
    %c0_10 = arith.constant 0 : index
    %c0_11 = arith.constant 0 : index
    %10 = vector.load %arg8[%c0_10, %c0_11] : memref<384x128xf32, #tpu.memory_space<vmem>>, vector<384x128xf32>
    tpu.vector_store %arg8[%c0_10, %c0_11], %9 {strides = array<i32>} : memref<384x128xf32, #tpu.memory_space<vmem>>, vector<384x128xf32>,
    %11 = vector.extract_strided_slice %5 {offsets = [1, 0], sizes = [384, 64], strides = [1, 1]} : vector<768x64xbf16> to vector<384x64xbf16>
    %c1 = arith.constant 1 : index
    %c0_12 = arith.constant 0 : index
    %c0_13 = arith.constant 0 : index
    %12 = vector.load %arg5[%c1, %c0_12, %c0_13] : memref<9x64x128xbf16, #tpu.memory_space<vmem>>, vector<1x64x128xbf16>
    %13 = vector.shape_cast %12 : vector<1x64x128xbf16> to vector<64x128xbf16>
    %cst_14 = arith.constant dense<0.000000e+00> : vector<384x128xf32>
    %14 = tpu.matmul %11, %13, %cst_14 {dimension_numbers = #tpu.dot_dimension_numbers<[1], [0], [0], [1], [0, 0, 1, 1], [], []>} : vector<384x64xbf16>, vector<64x128xbf16>, vector<384x128xf32> -> vector<384x128xf32>
    %c0_15 = arith.constant 0 : index
    %c0_16 = arith.constant 0 : index
    %15 = vector.load %arg8[%c0_15, %c0_16] : memref<384x128xf32, #tpu.memory_space<vmem>>, vector<384x128xf32>
    %16 = arith.addf %15, %14 : vector<384x128xf32>
    %c0_17 = arith.constant 0 : index
    %c0_18 = arith.constant 0 : index
    %17 = vector.load %arg8[%c0_17, %c0_18] : memref<384x128xf32, #tpu.memory_space<vmem>>, vector<384x128xf32>
    tpu.vector_store %arg8[%c0_17, %c0_18], %16 {strides = array<i32>} : memref<384x128xf32, #tpu.memory_space<vmem>>, vector<384x128xf32>,
    %18 = vector.extract_strided_slice %5 {offsets = [2, 0], sizes = [384, 64], strides = [1, 1]} : vector<768x64xbf16> to vector<384x64xbf16>
    %c2 = arith.constant 2 : index
    %c0_19 = arith.constant 0 : index
    %c0_20 = arith.constant 0 : index
    %19 = vector.load %arg5[%c2, %c0_19, %c0_20] : memref<9x64x128xbf16, #tpu.memory_space<vmem>>, vector<1x64x128xbf16>
    %20 = vector.shape_cast %19 : vector<1x64x128xbf16> to vector<64x128xbf16>
    %cst_21 = arith.constant dense<0.000000e+00> : vector<384x128xf32>
    %21 = tpu.matmul %18, %20, %cst_21 {dimension_numbers = #tpu.dot_dimension_numbers<[1], [0], [0], [1], [0, 0, 1, 1], [], []>} : vector<384x64xbf16>, vector<64x128xbf16>, vector<384x128xf32> -> vector<384x128xf32>
    %c0_22 = arith.constant 0 : index
    %c0_23 = arith.constant 0 : index
    %22 = vector.load %arg8[%c0_22, %c0_23] : memref<384x128xf32, #tpu.memory_space<vmem>>, vector<384x128xf32>
    %23 = arith.addf %22, %21 : vector<384x128xf32>
    %c0_24 = arith.constant 0 : index
    %c0_25 = arith.constant 0 : index
    %24 = vector.load %arg8[%c0_24, %c0_25] : memref<384x128xf32, #tpu.memory_space<vmem>>, vector<384x128xf32>
    tpu.vector_store %arg8[%c0_24, %c0_25], %23 {strides = array<i32>} : memref<384x128xf32, #tpu.memory_space<vmem>>, vector<384x128xf32>,
    %25 = vector.extract_strided_slice %5 {offsets = [24, 0], sizes = [384, 64], strides = [1, 1]} : vector<768x64xbf16> to vector<384x64xbf16>
    %c3 = arith.constant 3 : index
    %c0_26 = arith.constant 0 : index
    %c0_27 = arith.constant 0 : index
    %26 = vector.load %arg5[%c3, %c0_26, %c0_27] : memref<9x64x128xbf16, #tpu.memory_space<vmem>>, vector<1x64x128xbf16>
    %27 = vector.shape_cast %26 : vector<1x64x128xbf16> to vector<64x128xbf16>
    %cst_28 = arith.constant dense<0.000000e+00> : vector<384x128xf32>
    %28 = tpu.matmul %25, %27, %cst_28 {dimension_numbers = #tpu.dot_dimension_numbers<[1], [0], [0], [1], [0, 0, 1, 1], [], []>} : vector<384x64xbf16>, vector<64x128xbf16>, vector<384x128xf32> -> vector<384x128xf32>
    %c0_29 = arith.constant 0 : index
    %c0_30 = arith.constant 0 : index
    %29 = vector.load %arg8[%c0_29, %c0_30] : memref<384x128xf32, #tpu.memory_space<vmem>>, vector<384x128xf32>
    %30 = arith.addf %29, %28 : vector<384x128xf32>
    %c0_31 = arith.constant 0 : index
    %c0_32 = arith.constant 0 : index
    %31 = vector.load %arg8[%c0_31, %c0_32] : memref<384x128xf32, #tpu.memory_space<vmem>>, vector<384x128xf32>
    tpu.vector_store %arg8[%c0_31, %c0_32], %30 {strides = array<i32>} : memref<384x128xf32, #tpu.memory_space<vmem>>, vector<384x128xf32>,
    %32 = vector.extract_strided_slice %5 {offsets = [25, 0], sizes = [384, 64], strides = [1, 1]} : vector<768x64xbf16> to vector<384x64xbf16>
    %c4 = arith.constant 4 : index
    %c0_33 = arith.constant 0 : index
    %c0_34 = arith.constant 0 : index
    %33 = vector.load %arg5[%c4, %c0_33, %c0_34] : memref<9x64x128xbf16, #tpu.memory_space<vmem>>, vector<1x64x128xbf16>
    %34 = vector.shape_cast %33 : vector<1x64x128xbf16> to vector<64x128xbf16>
    %cst_35 = arith.constant dense<0.000000e+00> : vector<384x128xf32>
    %35 = tpu.matmul %32, %34, %cst_35 {dimension_numbers = #tpu.dot_dimension_numbers<[1], [0], [0], [1], [0, 0, 1, 1], [], []>} : vector<384x64xbf16>, vector<64x128xbf16>, vector<384x128xf32> -> vector<384x128xf32>
    %c0_36 = arith.constant 0 : index
    %c0_37 = arith.constant 0 : index
    %36 = vector.load %arg8[%c0_36, %c0_37] : memref<384x128xf32, #tpu.memory_space<vmem>>, vector<384x128xf32>
    %37 = arith.addf %36, %35 : vector<384x128xf32>
    %c0_38 = arith.constant 0 : index
    %c0_39 = arith.constant 0 : index
    %38 = vector.load %arg8[%c0_38, %c0_39] : memref<384x128xf32, #tpu.memory_space<vmem>>, vector<384x128xf32>
    tpu.vector_store %arg8[%c0_38, %c0_39], %37 {strides = array<i32>} : memref<384x128xf32, #tpu.memory_space<vmem>>, vector<384x128xf32>,
    %39 = vector.extract_strided_slice %5 {offsets = [26, 0], sizes = [384, 64], strides = [1, 1]} : vector<768x64xbf16> to vector<384x64xbf16>
    %c5 = arith.constant 5 : index
    %c0_40 = arith.constant 0 : index
    %c0_41 = arith.constant 0 : index
    %40 = vector.load %arg5[%c5, %c0_40, %c0_41] : memref<9x64x128xbf16, #tpu.memory_space<vmem>>, vector<1x64x128xbf16>
    %41 = vector.shape_cast %40 : vector<1x64x128xbf16> to vector<64x128xbf16>
    %cst_42 = arith.constant dense<0.000000e+00> : vector<384x128xf32>
    %42 = tpu.matmul %39, %41, %cst_42 {dimension_numbers = #tpu.dot_dimension_numbers<[1], [0], [0], [1], [0, 0, 1, 1], [], []>} : vector<384x64xbf16>, vector<64x128xbf16>, vector<384x128xf32> -> vector<384x128xf32>
    %c0_43 = arith.constant 0 : index
    %c0_44 = arith.constant 0 : index
    %43 = vector.load %arg8[%c0_43, %c0_44] : memref<384x128xf32, #tpu.memory_space<vmem>>, vector<384x128xf32>
    %44 = arith.addf %43, %42 : vector<384x128xf32>
    %c0_45 = arith.constant 0 : index
    %c0_46 = arith.constant 0 : index
    %45 = vector.load %arg8[%c0_45, %c0_46] : memref<384x128xf32, #tpu.memory_space<vmem>>, vector<384x128xf32>
    tpu.vector_store %arg8[%c0_45, %c0_46], %44 {strides = array<i32>} : memref<384x128xf32, #tpu.memory_space<vmem>>, vector<384x128xf32>,
    %46 = vector.extract_strided_slice %5 {offsets = [48, 0], sizes = [384, 64], strides = [1, 1]} : vector<768x64xbf16> to vector<384x64xbf16>
    %c6 = arith.constant 6 : index
    %c0_47 = arith.constant 0 : index
    %c0_48 = arith.constant 0 : index
    %47 = vector.load %arg5[%c6, %c0_47, %c0_48] : memref<9x64x128xbf16, #tpu.memory_space<vmem>>, vector<1x64x128xbf16>
    %48 = vector.shape_cast %47 : vector<1x64x128xbf16> to vector<64x128xbf16>
    %cst_49 = arith.constant dense<0.000000e+00> : vector<384x128xf32>
    %49 = tpu.matmul %46, %48, %cst_49 {dimension_numbers = #tpu.dot_dimension_numbers<[1], [0], [0], [1], [0, 0, 1, 1], [], []>} : vector<384x64xbf16>, vector<64x128xbf16>, vector<384x128xf32> -> vector<384x128xf32>
    %c0_50 = arith.constant 0 : index
    %c0_51 = arith.constant 0 : index
    %50 = vector.load %arg8[%c0_50, %c0_51] : memref<384x128xf32, #tpu.memory_space<vmem>>, vector<384x128xf32>
    %51 = arith.addf %50, %49 : vector<384x128xf32>
    %c0_52 = arith.constant 0 : index
    %c0_53 = arith.constant 0 : index
    %52 = vector.load %arg8[%c0_52, %c0_53] : memref<384x128xf32, #tpu.memory_space<vmem>>, vector<384x128xf32>
    tpu.vector_store %arg8[%c0_52, %c0_53], %51 {strides = array<i32>} : memref<384x128xf32, #tpu.memory_space<vmem>>, vector<384x128xf32>,
    %53 = vector.extract_strided_slice %5 {offsets = [49, 0], sizes = [384, 64], strides = [1, 1]} : vector<768x64xbf16> to vector<384x64xbf16>
    %c7 = arith.constant 7 : index
    %c0_54 = arith.constant 0 : index
    %c0_55 = arith.constant 0 : index
    %54 = vector.load %arg5[%c7, %c0_54, %c0_55] : memref<9x64x128xbf16, #tpu.memory_space<vmem>>, vector<1x64x128xbf16>
    %55 = vector.shape_cast %54 : vector<1x64x128xbf16> to vector<64x128xbf16>
    %cst_56 = arith.constant dense<0.000000e+00> : vector<384x128xf32>
    %56 = tpu.matmul %53, %55, %cst_56 {dimension_numbers = #tpu.dot_dimension_numbers<[1], [0], [0], [1], [0, 0, 1, 1], [], []>} : vector<384x64xbf16>, vector<64x128xbf16>, vector<384x128xf32> -> vector<384x128xf32>
    %c0_57 = arith.constant 0 : index
    %c0_58 = arith.constant 0 : index
    %57 = vector.load %arg8[%c0_57, %c0_58] : memref<384x128xf32, #tpu.memory_space<vmem>>, vector<384x128xf32>
    %58 = arith.addf %57, %56 : vector<384x128xf32>
    %c0_59 = arith.constant 0 : index
    %c0_60 = arith.constant 0 : index
    %59 = vector.load %arg8[%c0_59, %c0_60] : memref<384x128xf32, #tpu.memory_space<vmem>>, vector<384x128xf32>
    tpu.vector_store %arg8[%c0_59, %c0_60], %58 {strides = array<i32>} : memref<384x128xf32, #tpu.memory_space<vmem>>, vector<384x128xf32>,
    %60 = vector.extract_strided_slice %5 {offsets = [50, 0], sizes = [384, 64], strides = [1, 1]} : vector<768x64xbf16> to vector<384x64xbf16>
    %c8 = arith.constant 8 : index
    %c0_61 = arith.constant 0 : index
    %c0_62 = arith.constant 0 : index
    %61 = vector.load %arg5[%c8, %c0_61, %c0_62] : memref<9x64x128xbf16, #tpu.memory_space<vmem>>, vector<1x64x128xbf16>
    %62 = vector.shape_cast %61 : vector<1x64x128xbf16> to vector<64x128xbf16>
    %cst_63 = arith.constant dense<0.000000e+00> : vector<384x128xf32>
    %63 = tpu.matmul %60, %62, %cst_63 {dimension_numbers = #tpu.dot_dimension_numbers<[1], [0], [0], [1], [0, 0, 1, 1], [], []>} : vector<384x64xbf16>, vector<64x128xbf16>, vector<384x128xf32> -> vector<384x128xf32>
    %c0_64 = arith.constant 0 : index
    %c0_65 = arith.constant 0 : index
    %64 = vector.load %arg8[%c0_64, %c0_65] : memref<384x128xf32, #tpu.memory_space<vmem>>, vector<384x128xf32>
    %65 = arith.addf %64, %63 : vector<384x128xf32>
    %c0_66 = arith.constant 0 : index
    %c0_67 = arith.constant 0 : index
    %66 = vector.load %arg8[%c0_66, %c0_67] : memref<384x128xf32, #tpu.memory_space<vmem>>, vector<384x128xf32>
    tpu.vector_store %arg8[%c0_66, %c0_67], %65 {strides = array<i32>} : memref<384x128xf32, #tpu.memory_space<vmem>>, vector<384x128xf32>,
    %c0_68 = arith.constant 0 : index
    %c0_69 = arith.constant 0 : index
    %67 = vector.load %arg8[%c0_68, %c0_69] : memref<384x128xf32, #tpu.memory_space<vmem>>, vector<384x128xf32>
    %c0_70 = arith.constant 0 : index
    %c0_71 = arith.constant 0 : index
    %68 = vector.load %arg6[%c0_70, %c0_71] : memref<1x128xf32, #tpu.memory_space<vmem>>, vector<1x128xf32>
    %69 = vector.broadcast %68 : vector<1x128xf32> to vector<384x128xf32>
    %70 = arith.addf %67, %69 : vector<384x128xf32>
    %cst_72 = arith.constant 0.000000e+00 : f32
    %71 = vector.broadcast %cst_72 : f32 to vector<384x128xf32>
    %72 = arith.maximumf %70, %71 : vector<384x128xf32>
    %73 = vector.shape_cast %72 : vector<384x128xf32> to vector<16x24x128xf32>
    %74 = vector.extract_strided_slice %73 {offsets = [0, 0, 0], sizes = [16, 20, 128], strides = [1, 1, 1]} : vector<16x24x128xf32> to vector<16x20x128xf32>
    %75 = arith.truncf %74 : vector<16x20x128xf32> to vector<16x20x128xbf16>
    %c0_73 = arith.constant 0 : index
    %c0_74 = arith.constant 0 : index
    %c0_75 = arith.constant 0 : index
    %c0_76 = arith.constant 0 : index
    %76 = vector.load %arg7[%c0_73, %c0_74, %c0_75, %c0_76] : memref<1x16x20x128xbf16, #tpu.memory_space<vmem>>, vector<1x16x20x128xbf16>
    %77 = vector.shape_cast %76 : vector<1x16x20x128xbf16> to vector<16x20x128xbf16>
    %78 = vector.shape_cast %75 : vector<16x20x128xbf16> to vector<1x16x20x128xbf16>
    tpu.vector_store %arg7[%c0_73, %c0_74, %c0_75, %c0_76], %78 {strides = array<i32>} : memref<1x16x20x128xbf16, #tpu.memory_space<vmem>>, vector<1x16x20x128xbf16>,
    return
  }
  func.func @transform_0(%arg0: i32, %arg1: i32, %arg2: i32) -> (i32, i32, i32, i32) {
    %c0_i32 = arith.constant 0 : i32
    %c0_i32_0 = arith.constant 0 : i32
    %c0_i32_1 = arith.constant 0 : i32
    return %arg0, %arg1, %c0_i32, %c0_i32_0 : i32, i32, i32, i32
  }
  func.func @transform_1(%arg0: i32, %arg1: i32, %arg2: i32) -> (i32, i32, i32, i32) {
    %c1_i32 = arith.constant 1 : i32
    %0 = arith.addi %arg1, %c1_i32 : i32
    %c0_i32 = arith.constant 0 : i32
    %c0_i32_0 = arith.constant 0 : i32
    %c0_i32_1 = arith.constant 0 : i32
    return %arg0, %0, %c0_i32, %c0_i32_0 : i32, i32, i32, i32
  }
  func.func @transform_2(%arg0: i32, %arg1: i32, %arg2: i32) -> (i32, i32, i32) {
    %c0_i32 = arith.constant 0 : i32
    %c0_i32_0 = arith.constant 0 : i32
    %c0_i32_1 = arith.constant 0 : i32
    return %c0_i32, %c0_i32_0, %arg2 : i32, i32, i32
  }
  func.func @transform_3(%arg0: i32, %arg1: i32, %arg2: i32) -> (i32, i32) {
    %c0_i32 = arith.constant 0 : i32
    %c0_i32_0 = arith.constant 0 : i32
    return %c0_i32, %arg2 : i32, i32
  }
  func.func @transform_4(%arg0: i32, %arg1: i32, %arg2: i32) -> (i32, i32, i32, i32) {
    %c0_i32 = arith.constant 0 : i32
    %c0_i32_0 = arith.constant 0 : i32
    return %arg0, %arg1, %c0_i32, %arg2 : i32, i32, i32, i32
  }
}

module attributes {stable_mosaic.version = 11 : i64} {
  func.func @_mm_bias_act_kernel(%arg0: i32, %arg1: i32, %arg2: i32, %arg3: memref<1024x128xbf16, #tpu.memory_space<vmem>>, %arg4: memref<128x64xbf16, #tpu.memory_space<vmem>>, %arg5: memref<1x64xf32, #tpu.memory_space<vmem>>, %arg6: memref<1024x64xbf16, #tpu.memory_space<vmem>>, %arg7: memref<1024x64xf32, #tpu.memory_space<vmem>>) attributes {dimension_semantics = [#tpu.dimension_semantics<parallel>, #tpu.dimension_semantics<parallel>, #tpu.dimension_semantics<arbitrary>], iteration_bounds = array<i64: 65, 1, 1>, scalar_prefetch = 0 : i64, scratch_operands = 1 : i64, tpu.core_type = #tpu.core_type<tc>, window_params = [{transform_indices = @transform_0, window_bounds = array<i64: 1024, 128>}, {transform_indices = @transform_1, window_bounds = array<i64: 128, 64>}, {transform_indices = @transform_2, window_bounds = array<i64: 1, 64>}, {transform_indices = @transform_3, window_bounds = array<i64: 1024, 64>}]} {
    %c0_i32 = arith.constant 0 : i32
    %0 = arith.cmpi eq, %arg2, %c0_i32 : i32
    %1 = arith.extui %0 : i1 to i32
    %c0_i32_0 = arith.constant 0 : i32
    %2 = arith.cmpi ne, %1, %c0_i32_0 : i32
    scf.if %2 {
      %cst_10 = arith.constant 0.000000e+00 : f32
      %12 = vector.broadcast %cst_10 : f32 to vector<1024x64xf32>
      %c0_11 = arith.constant 0 : index
      %c0_12 = arith.constant 0 : index
      %13 = vector.load %arg7[%c0_11, %c0_12] : memref<1024x64xf32, #tpu.memory_space<vmem>>, vector<1024x64xf32>
      tpu.vector_store %arg7[%c0_11, %c0_12], %12 {strides = array<i32>} : memref<1024x64xf32, #tpu.memory_space<vmem>>, vector<1024x64xf32>,
    } else {
    }
    %c0 = arith.constant 0 : index
    %c0_1 = arith.constant 0 : index
    %3 = vector.load %arg7[%c0, %c0_1] : memref<1024x64xf32, #tpu.memory_space<vmem>>, vector<1024x64xf32>
    %c0_2 = arith.constant 0 : index
    %c0_3 = arith.constant 0 : index
    %4 = vector.load %arg3[%c0_2, %c0_3] : memref<1024x128xbf16, #tpu.memory_space<vmem>>, vector<1024x128xbf16>
    %c0_4 = arith.constant 0 : index
    %c0_5 = arith.constant 0 : index
    %5 = vector.load %arg4[%c0_4, %c0_5] : memref<128x64xbf16, #tpu.memory_space<vmem>>, vector<128x64xbf16>
    %cst = arith.constant dense<0.000000e+00> : vector<1024x64xf32>
    %6 = tpu.matmul %4, %5, %cst {dimension_numbers = #tpu.dot_dimension_numbers<[1], [0], [0], [1], [0, 0, 1, 1], [], []>} : vector<1024x128xbf16>, vector<128x64xbf16>, vector<1024x64xf32> -> vector<1024x64xf32>
    %7 = arith.addf %3, %6 : vector<1024x64xf32>
    %c0_6 = arith.constant 0 : index
    %c0_7 = arith.constant 0 : index
    %8 = vector.load %arg7[%c0_6, %c0_7] : memref<1024x64xf32, #tpu.memory_space<vmem>>, vector<1024x64xf32>
    tpu.vector_store %arg7[%c0_6, %c0_7], %7 {strides = array<i32>} : memref<1024x64xf32, #tpu.memory_space<vmem>>, vector<1024x64xf32>,
    %c0_i32_8 = arith.constant 0 : i32
    %9 = arith.cmpi eq, %arg2, %c0_i32_8 : i32
    %10 = arith.extui %9 : i1 to i32
    %c0_i32_9 = arith.constant 0 : i32
    %11 = arith.cmpi ne, %10, %c0_i32_9 : i32
    scf.if %11 {
      %c0_10 = arith.constant 0 : index
      %c0_11 = arith.constant 0 : index
      %12 = vector.load %arg7[%c0_10, %c0_11] : memref<1024x64xf32, #tpu.memory_space<vmem>>, vector<1024x64xf32>
      %c0_12 = arith.constant 0 : index
      %c0_13 = arith.constant 0 : index
      %13 = vector.load %arg5[%c0_12, %c0_13] : memref<1x64xf32, #tpu.memory_space<vmem>>, vector<1x64xf32>
      %14 = vector.broadcast %13 : vector<1x64xf32> to vector<1024x64xf32>
      %15 = arith.addf %12, %14 : vector<1024x64xf32>
      %cst_14 = arith.constant 0.000000e+00 : f32
      %16 = vector.broadcast %cst_14 : f32 to vector<1024x64xf32>
      %17 = arith.maximumf %15, %16 : vector<1024x64xf32>
      %18 = arith.truncf %17 : vector<1024x64xf32> to vector<1024x64xbf16>
      %c0_15 = arith.constant 0 : index
      %c0_16 = arith.constant 0 : index
      %19 = vector.load %arg6[%c0_15, %c0_16] : memref<1024x64xbf16, #tpu.memory_space<vmem>>, vector<1024x64xbf16>
      tpu.vector_store %arg6[%c0_15, %c0_16], %18 {strides = array<i32>} : memref<1024x64xbf16, #tpu.memory_space<vmem>>, vector<1024x64xbf16>,
    } else {
    }
    return
  }
  func.func @transform_0(%arg0: i32, %arg1: i32, %arg2: i32) -> (i32, i32) {
    %c0_i32 = arith.constant 0 : i32
    return %arg0, %arg2 : i32, i32
  }
  func.func @transform_1(%arg0: i32, %arg1: i32, %arg2: i32) -> (i32, i32) {
    %c0_i32 = arith.constant 0 : i32
    return %arg2, %arg1 : i32, i32
  }
  func.func @transform_2(%arg0: i32, %arg1: i32, %arg2: i32) -> (i32, i32) {
    %c0_i32 = arith.constant 0 : i32
    %c0_i32_0 = arith.constant 0 : i32
    return %c0_i32, %arg1 : i32, i32
  }
  func.func @transform_3(%arg0: i32, %arg1: i32, %arg2: i32) -> (i32, i32) {
    %c0_i32 = arith.constant 0 : i32
    return %arg0, %arg1 : i32, i32
  }
}

</mosaic_0001>

<llo_original>
// kernel: tpu_custom_call.1
$region0: #{tpu_custom_call.1}
  #allocation0 [shape = 'u32[]', space=smem, size = 0x4, offset = 0x4, fixed_abs, tag = 'smem constant byte address 0x4 - core index']
  #allocation1 [shape = 'u32[72,128]{1,0:T(1,128)}', space=vmem, size = 0x9000, scoped, tag = 'internal scratch']
  #allocation2 [shape = 'f32[384,128]{1,0:T(8,128)}', space=vmem, size = 0x30000, scoped, tag = 'scratch operand']
  %s0 = inlined_call_operand.hbm [shape: bf16[1,48,24,64], index: 0, kind: input, shape index: {}]
  %s1 = inlined_call_operand.hbm [shape: bf16[1,48,24,64], index: 1, kind: input, shape index: {}]
  %s2 = inlined_call_operand.hbm [shape: bf16[9,64,128], index: 2, kind: input, shape index: {}]
  %s3 = inlined_call_operand.vmem [shape: f32[1,128], index: 3, kind: input, shape index: {}]
  %s4 = inlined_call_operand.vmem [shape: bf16[1,32,20,128], index: 4, kind: output, shape index: {}]
  %s5 = sld [smem:[#allocation0]]
  $region61: #{tpu_custom_call.1} parent=0
    _
  %s7 = ssub.s32 1, %s5
  %s8 = scalar_select 0, %s7, %s5
  $region1: #{tpu_custom_call.1} parent=0
    #allocation3 [shape = 'u8[196608]{0}', space=vmem, size = 0x30000, scoped, tag = 'input window, operand 0']
    #allocation4 [shape = 's32[2]{0}', space=sflag, size = 0x8, scoped, tag = 'scoped memory for tpu_custom_call.1']
    #allocation5 [shape = 'u8[196608]{0}', space=vmem, size = 0x30000, scoped, tag = 'input window, operand 1']
    #allocation6 [shape = 's32[2]{0}', space=sflag, size = 0x8, scoped, tag = 'scoped memory for tpu_custom_call.1']
    #allocation7 [shape = 'u8[147456]{0}', space=vmem, size = 0x24000, scoped, tag = 'input window, operand 2, single buffered']
    %9 = vsyncpa [#allocation4], 0
    %s10 = scalar_lea.sflag [#allocation4], 1
    %11 = vsyncpa %s10, 0
    %12 = vsyncpa [#allocation6], 0
    %s13 = scalar_lea.sflag [#allocation6], 1
    %14 = vsyncpa %s13, 0
    loop: start=0, step=1, limit=4
    $region2: #{tpu_custom_call.1} parent=1 // loop_pre_header
      _
    $region3: #{tpu_custom_call.1} parent=1 // loop_header
      %s16 = sphi 0, %s20
      %p17 = scmp.ge.s32.totalorder %s16, 4
      %s23 = sphi 0, %s42
      %s24 = sphi 0, %s38
      %s25 = sphi 0, %s34
      %s26 = sphi 0, %s23
      %s27 = sphi 0, %s24
      %s28 = sphi 0, %s25
      %s29 = sphi 0, %s26
      %s30 = sphi 0, %s27
      %s31 = sphi 0, %s28
      %s47 = sphi 0, %s49
      %s50 = sphi 0, %s47
      %s51 = sphi 0, %s50
      %s67 = sphi 0, %s51
      %s77 = sphi 0, %s79
      %s80 = sphi 0, %s77
      %s81 = sphi 0, %s80
      %s97 = sphi 0, %s81
      %s103 = sphi 0, %s105
      %s106 = sphi 0, %s103
      %s107 = sphi 0, %s106
      %s123 = sphi 0, %s107
      %s129 = sphi 0, %s131
      %s132 = sphi 0, %s129
      %s133 = sphi 0, %s132
      %s149 = sphi 0, %s133
      %s159 = sphi 0, %s161
      %s162 = sphi 0, %s159
      %s163 = sphi 0, %s162
      %s179 = sphi 0, %s163
    $region4: #{tpu_custom_call.1} parent=1 // loop_header_branch
      %19 = sbr.rel (%p17) target = $region8
    $region5: #{tpu_custom_call.1} parent=1 // loop_body
      %s21 = ssub.s32 %s16, 1
      %s22 = ssub.s32 %s16, 2
      %s32 = sadd.s32 1, %s25
      %p33 = scmp.ge.s32.totalorder %s32, 1
      %s34 = scalar_select %p33, 0, %s32
      %s35 = sadd.s32 1, %s24
      %s36 = scalar_select %p33, %s35, %s24
      %p37 = scmp.ge.s32.totalorder %s36, 2
      %s38 = scalar_select %p37, 0, %s36
      %s39 = sadd.s32 1, %s23
      %s40 = scalar_select %p37, %s39, %s23
      %p41 = scmp.ge.s32.totalorder %s40, 1
      %s42 = scalar_select %p41, 0, %s40
      %s43 = ssub.s32 %s23, %s42
      %s44 = ssub.s32 %s24, %s38
      %s45 = sor.u32 %s43, %s44
      %p46 = scmp.eq.s32.totalorder %s45, 0
      %s48 = sadd.s32 %s47, 1
      %s49 = scalar_select %p46, %s47, %s48
      %p52 = pneg %p46
      %p53 = scmp.eq.s32.totalorder %s16, 1
      %p54 = por %p52, %p53
      %p55 = scmp.ne.s32.totalorder %s47, %s50
      %p56 = scmp.eq.s32.totalorder %s16, 0
      %p57 = por %p55, %p56
      %p58 = scmp.ne.s32.totalorder %s47, %s50
      %p59 = scmp.eq.s32.totalorder %s21, 1
      %p60 = por %p58, %p59
      %p61 = scmp.ne.s32.totalorder %s50, %s51
      %p62 = scmp.eq.s32.totalorder %s21, 0
      %p63 = por %p61, %p62
      %p64 = scmp.ne.s32.totalorder %s50, %s51
      %p65 = scmp.eq.s32.totalorder %s22, 1
      %p66 = por %p64, %p65
      %p68 = scmp.ne.s32.totalorder %s51, %s67
      %p69 = scmp.eq.s32.totalorder %s22, 0
      %p70 = por %p68, %p69
      %s71 = sadd.s32 %s24, 1
      %s72 = sadd.s32 %s38, 1
      %s73 = ssub.s32 %s23, %s42
      %s74 = ssub.s32 %s71, %s72
      %s75 = sor.u32 %s73, %s74
      %p76 = scmp.eq.s32.totalorder %s75, 0
      %s78 = sadd.s32 %s77, 1
      %s79 = scalar_select %p76, %s77, %s78
      %p82 = pneg %p76
      %p83 = scmp.eq.s32.totalorder %s16, 1
      %p84 = por %p82, %p83
      %p85 = scmp.ne.s32.totalorder %s77, %s80
      %p86 = scmp.eq.s32.totalorder %s16, 0
      %p87 = por %p85, %p86
      %p88 = scmp.ne.s32.totalorder %s77, %s80
      %p89 = scmp.eq.s32.totalorder %s21, 1
      %p90 = por %p88, %p89
      %p91 = scmp.ne.s32.totalorder %s80, %s81
      %p92 = scmp.eq.s32.totalorder %s21, 0
      %p93 = por %p91, %p92
      %p94 = scmp.ne.s32.totalorder %s80, %s81
      %p95 = scmp.eq.s32.totalorder %s22, 1
      %p96 = por %p94, %p95
      %p98 = scmp.ne.s32.totalorder %s81, %s97
      %p99 = scmp.eq.s32.totalorder %s22, 0
      %p100 = por %p98, %p99
      %s101 = ssub.s32 %s25, %s34
      %p102 = scmp.eq.s32.totalorder %s101, 0
      %s104 = sadd.s32 %s103, 1
      %s105 = scalar_select %p102, %s103, %s104
      %p108 = pneg %p102
      %p109 = scmp.eq.s32.totalorder %s16, 1
      %p110 = por %p108, %p109
      %p111 = scmp.ne.s32.totalorder %s103, %s106
      %p112 = scmp.eq.s32.totalorder %s16, 0
      %p113 = por %p111, %p112
      %p114 = scmp.ne.s32.totalorder %s103, %s106
      %p115 = scmp.eq.s32.totalorder %s21, 1
      %p116 = por %p114, %p115
      %p117 = scmp.ne.s32.totalorder %s106, %s107
      %p118 = scmp.eq.s32.totalorder %s21, 0
      %p119 = por %p117, %p118
      %p120 = scmp.ne.s32.totalorder %s106, %s107
      %p121 = scmp.eq.s32.totalorder %s22, 1
      %p122 = por %p120, %p121
      %p124 = scmp.ne.s32.totalorder %s107, %s123
      %p125 = scmp.eq.s32.totalorder %s22, 0
      %p126 = por %p124, %p125
      %s127 = ssub.s32 %s25, %s34
      %p128 = scmp.eq.s32.totalorder %s127, 0
      %s130 = sadd.s32 %s129, 1
      %s131 = scalar_select %p128, %s129, %s130
      %p134 = pneg %p128
      %p135 = scmp.eq.s32.totalorder %s16, 1
      %p136 = por %p134, %p135
      %p137 = scmp.ne.s32.totalorder %s129, %s132
      %p138 = scmp.eq.s32.totalorder %s16, 0
      %p139 = por %p137, %p138
      %p140 = scmp.ne.s32.totalorder %s129, %s132
      %p141 = scmp.eq.s32.totalorder %s21, 1
      %p142 = por %p140, %p141
      %p143 = scmp.ne.s32.totalorder %s132, %s133
      %p144 = scmp.eq.s32.totalorder %s21, 0
      %p145 = por %p143, %p144
      %p146 = scmp.ne.s32.totalorder %s132, %s133
      %p147 = scmp.eq.s32.totalorder %s22, 1
      %p148 = por %p146, %p147
      %p150 = scmp.ne.s32.totalorder %s133, %s149
      %p151 = scmp.eq.s32.totalorder %s22, 0
      %p152 = por %p150, %p151
      %s153 = ssub.s32 %s23, %s42
      %s154 = ssub.s32 %s24, %s38
      %s155 = sor.u32 %s153, %s154
      %s156 = ssub.s32 %s25, %s34
      %s157 = sor.u32 %s155, %s156
      %p158 = scmp.eq.s32.totalorder %s157, 0
      %s160 = sadd.s32 %s159, 1
      %s161 = scalar_select %p158, %s159, %s160
      %p164 = pneg %p158
      %p165 = scmp.eq.s32.totalorder %s16, 1
      %p166 = por %p164, %p165
      %p167 = scmp.ne.s32.totalorder %s159, %s162
      %p168 = scmp.eq.s32.totalorder %s16, 0
      %p169 = por %p167, %p168
      %p170 = scmp.ne.s32.totalorder %s159, %s162
      %p171 = scmp.eq.s32.totalorder %s21, 1
      %p172 = por %p170, %p171
      %p173 = scmp.ne.s32.totalorder %s162, %s163
      %p174 = scmp.eq.s32.totalorder %s21, 0
      %p175 = por %p173, %p174
      %p176 = scmp.ne.s32.totalorder %s162, %s163
      %p177 = scmp.eq.s32.totalorder %s22, 1
      %p178 = por %p176, %p177
      %p180 = scmp.ne.s32.totalorder %s163, %s179
      %p181 = scmp.eq.s32.totalorder %s22, 0
      %p182 = por %p180, %p181
      %p183 = scmp.le.s32.totalorder 1, %s16
      %p184 = scmp.lt.s32.totalorder %s16, 3
      %p185 = pnand %p183, %p184
      %p186 = pneg %p185
      // Predicated region
      $region9: #{tpu_custom_call.1} parent=5 // pred_check
        _
      $region10: #{tpu_custom_call.1} parent=5 // pred_check_branch
        %188 = sbr.rel (%p185) target = $region12
      $region11: #{tpu_custom_call.1} parent=5 // pred_region
        %s189 = ssub.s32 %s16, 1
        // Predicated region
        $region13: #{tpu_custom_call.1} parent=11 // pred_check
          %p190 = pneg %p119
        $region14: #{tpu_custom_call.1} parent=11 // pred_check_branch
          %192 = sbr.rel (%p190) target = $region16
        $region15: #{tpu_custom_call.1} parent=11 // pred_region
          %194 = vsyncadd [#allocation6], 0
          %s195 = smul.addr %s28, 4
          %s196 = scalar_lea.hbm %s2, %s195
          %s197 = sshll.u32 %s196, 4
          %s198 = int_to_ptr.hbm [resolvable:$true] %s197
          %s199 = sshll.u32 [#allocation7], 4
          %s200 = int_to_ptr.vmem [resolvable:$true] %s199
          %205 = dma.hbm_to_vmem [thread:$0]  %s198, 4608, %s200, [#allocation6], 64, 64, 4
        $region16: #{tpu_custom_call.1} parent=11 // pred_fallthru
          _
        // Predicated region
        $region17: #{tpu_custom_call.1} parent=11 // pred_check
          %p206 = pneg %p145
        $region18: #{tpu_custom_call.1} parent=11 // pred_check_branch
          %208 = sbr.rel (%p206) target = $region20
        $region19: #{tpu_custom_call.1} parent=11 // pred_region
          %p209 = scmp.lt.s32.totalorder %s28, 0
          %s210 = scalar_select %p209, %s28, 0
          %s211 = scalar_lea.vmem %s3, %s210
        $region20: #{tpu_custom_call.1} parent=11 // pred_fallthru
          _
      $region12: #{tpu_custom_call.1} parent=5 // pred_fallthru
        _
      %p212 = scmp.lt.s32.totalorder %s16, 2
      // Predicated region
      $region21: #{tpu_custom_call.1} parent=5 // pred_check
        %p213 = pneg %p212
      $region22: #{tpu_custom_call.1} parent=5 // pred_check_branch
        %215 = sbr.rel (%p213) target = $region24
      $region23: #{tpu_custom_call.1} parent=5 // pred_region
        // Predicated region
        $region25: #{tpu_custom_call.1} parent=23 // pred_check
          %p216 = pneg %p57
        $region26: #{tpu_custom_call.1} parent=23 // pred_check_branch
          %218 = sbr.rel (%p216) target = $region28
        $region27: #{tpu_custom_call.1} parent=23 // pred_region
          %s219 = sand.u32 %s47, 1
          %s220 = scalar_lea.sflag [#allocation4], %s219
          %s221 = sand.u32 %s47, 1
          %s222 = smul.addr %s221, 192
          %s223 = scalar_lea.vmem [#allocation3], %s222
          %s224 = smul.u32 16, %s24
          %226 = vsyncadd %s220, 0
          %s227 = smul.addr %s224, 3
          %s228 = smul.addr %s23, 144
          %s229 = sadd.s32 %s227, %s228
          %s230 = smul.addr %s229, 4
          %s231 = scalar_lea.hbm %s0, %s230
          %s232 = sshll.u32 %s231, 4
          %s233 = int_to_ptr.hbm [resolvable:$true] %s232
          %s234 = sshll.u32 %s223, 4
          %s235 = int_to_ptr.vmem [resolvable:$true] %s234
          %240 = dma.hbm_to_vmem [thread:$0]  %s233, 3072, %s235, %s220, 64, 64, 4
        $region28: #{tpu_custom_call.1} parent=23 // pred_fallthru
          _
        // Predicated region
        $region29: #{tpu_custom_call.1} parent=23 // pred_check
          %p241 = pneg %p87
        $region30: #{tpu_custom_call.1} parent=23 // pred_check_branch
          %243 = sbr.rel (%p241) target = $region32
        $region31: #{tpu_custom_call.1} parent=23 // pred_region
          %s244 = sand.u32 %s16, 1
          %s245 = scalar_lea.sflag [#allocation6], %s244
          %s246 = sand.u32 %s77, 1
          %s247 = smul.addr %s246, 192
          %s248 = scalar_lea.vmem [#allocation5], %s247
          %s249 = sadd.s32 %s24, 1
          %s250 = smul.u32 16, %s249
          %252 = vsyncadd %s245, 0
          %s253 = smul.addr %s250, 3
          %s254 = smul.addr %s23, 144
          %s255 = sadd.s32 %s253, %s254
          %s256 = smul.addr %s255, 4
          %s257 = scalar_lea.hbm %s1, %s256
          %s258 = sshll.u32 %s257, 4
          %s259 = int_to_ptr.hbm [resolvable:$true] %s258
          %s260 = sshll.u32 %s248, 4
          %s261 = int_to_ptr.vmem [resolvable:$true] %s260
          %266 = dma.hbm_to_vmem [thread:$0]  %s259, 3072, %s261, %s245, 64, 64, 4
        $region32: #{tpu_custom_call.1} parent=23 // pred_fallthru
          _
      $region24: #{tpu_custom_call.1} parent=5 // pred_fallthru
        _
      %p267 = scmp.le.s32.totalorder 1, %s16
      %p268 = scmp.lt.s32.totalorder %s16, 3
      %p269 = pnand %p267, %p268
      %p270 = pneg %p269
      // Predicated region
      $region33: #{tpu_custom_call.1} parent=5 // pred_check
        _
      $region34: #{tpu_custom_call.1} parent=5 // pred_check_branch
        %272 = sbr.rel (%p269) target = $region36
      $region35: #{tpu_custom_call.1} parent=5 // pred_region
        %s273 = ssub.s32 %s16, 1
        %s274 = sand.u32 %s50, 1
        %s275 = scalar_lea.sflag [#allocation4], %s274
        %s276 = sand.u32 %s50, 1
        %s277 = smul.addr %s276, 192
        %s278 = scalar_lea.vmem [#allocation3], %s277
        // Predicated region
        $region37: #{tpu_custom_call.1} parent=35 // pred_check
          %p279 = pneg %p63
        $region38: #{tpu_custom_call.1} parent=35 // pred_check_branch
          %281 = sbr.rel (%p279) target = $region40
        $region39: #{tpu_custom_call.1} parent=35 // pred_region
          %283 = dma.done %s275, 3072
        $region40: #{tpu_custom_call.1} parent=35 // pred_fallthru
          _
        %s284 = sand.u32 %s21, 1
        %s285 = scalar_lea.sflag [#allocation6], %s284
        %s286 = sand.u32 %s80, 1
        %s287 = smul.addr %s286, 192
        %s288 = scalar_lea.vmem [#allocation5], %s287
        // Predicated region
        $region41: #{tpu_custom_call.1} parent=35 // pred_check
          %p289 = pneg %p93
        $region42: #{tpu_custom_call.1} parent=35 // pred_check_branch
          %291 = sbr.rel (%p289) target = $region44
        $region43: #{tpu_custom_call.1} parent=35 // pred_region
          %293 = dma.done %s285, 3072
        $region44: #{tpu_custom_call.1} parent=35 // pred_fallthru
          _
        // Predicated region
        $region45: #{tpu_custom_call.1} parent=35 // pred_check
          %p294 = pneg %p119
        $region46: #{tpu_custom_call.1} parent=35 // pred_check_branch
          %296 = sbr.rel (%p294) target = $region48
        $region47: #{tpu_custom_call.1} parent=35 // pred_region
          %298 = dma.done [#allocation6], 4608
        $region48: #{tpu_custom_call.1} parent=35 // pred_fallthru
          _
        %s299 = sand.u32 %s50, 1
        %s300 = scalar_lea.sflag [#allocation4], %s299
        %s301 = sand.u32 %s50, 1
        %s302 = smul.addr %s301, 192
        %s303 = scalar_lea.vmem [#allocation3], %s302
        %p304 = pneg %p63
        %p305 = pneg %p60
        %s306 = sand.u32 %s21, 1
        %s307 = scalar_lea.sflag [#allocation6], %s306
        %s308 = sand.u32 %s80, 1
        %s309 = smul.addr %s308, 192
        %s310 = scalar_lea.vmem [#allocation5], %s309
        %p311 = pneg %p93
        %p312 = pneg %p90
        %p313 = pneg %p119
        %p314 = pneg %p116
        %p315 = scmp.lt.s32.totalorder %s28, 0
        %s316 = scalar_select %p315, %s28, 0
        %s317 = scalar_lea.vmem %s3, %s316
        %p318 = pneg %p145
        %p319 = pneg %p142
        %p320 = pneg %p175
        %p321 = pneg %p172
        %s322 = smul.u32 16, %s27
        %p323 = scmp.lt.s32.totalorder %s26, 0
        %s324 = scalar_select %p323, %s26, 0
        %p325 = scmp.lt.s32.totalorder %s322, 31
        %s326 = scalar_select %p325, %s322, 31
        %p327 = scmp.lt.s32.totalorder %s28, 0
        %s328 = scalar_select %p327, %s28, 0
        %s329 = smul.addr %s326, 3
        %s330 = sadd.s32 %s328, %s329
        %s331 = smul.addr %s324, 96
        %s332 = sadd.s32 %s330, %s331
        %s333 = smul.addr %s332, 4
        %s334 = scalar_lea.vmem %s4, %s333
        %s335 = smul.u32 16, %s27
        %s336 = sadd.s32 %s27, 1
        %s337 = smul.u32 16, %s336
        %p338 = scmp.lt.s32.totalorder %s28, 0
        %s339 = scalar_select %p338, %s28, 0
        %s340 = scalar_lea.vmem %s3, %s339
        %s341 = smul.u32 16, %s27
        %p342 = scmp.lt.s32.totalorder %s26, 0
        %s343 = scalar_select %p342, %s26, 0
        %p344 = scmp.lt.s32.totalorder %s341, 31
        %s345 = scalar_select %p344, %s341, 31
        %p346 = scmp.lt.s32.totalorder %s28, 0
        %s347 = scalar_select %p346, %s28, 0
        %s348 = smul.addr %s345, 3
        %s349 = sadd.s32 %s347, %s348
        %s350 = smul.addr %s343, 96
        %s351 = sadd.s32 %s349, %s350
        %s352 = smul.addr %s351, 4
        %s353 = scalar_lea.vmem %s4, %s352
        %s354 = smul.u32 16, %s27
        %v356 = vld [vmem:[%s278] sm:$0xf]
        %v357 = vld [vmem:[%s278 + $0x4] sm:$0xf]
        %v358 = vld [vmem:[%s278 + $0x8] sm:$0xf]
        %v359 = vld [vmem:[%s278 + $0xc] sm:$0xf]
        %v360 = vld [vmem:[%s278 + $0x10] sm:$0xf]
        %v361 = vld [vmem:[%s278 + $0x14] sm:$0xf]
        %v362 = vld [vmem:[%s278 + $0x18] sm:$0xf]
        %v363 = vld [vmem:[%s278 + $0x1c] sm:$0xf]
        %v364 = vld [vmem:[%s278 + $0x20] sm:$0xf]
        %v365 = vld [vmem:[%s278 + $0x24] sm:$0xf]
        %v366 = vld [vmem:[%s278 + $0x28] sm:$0xf]
        %v367 = vld [vmem:[%s278 + $0x2c] sm:$0xf]
        %v368 = vld [vmem:[%s278 + $0x30] sm:$0xf]
        %v369 = vld [vmem:[%s278 + $0x34] sm:$0xf]
        %v370 = vld [vmem:[%s278 + $0x38] sm:$0xf]
        %v371 = vld [vmem:[%s278 + $0x3c] sm:$0xf]
        %v372 = vld [vmem:[%s278 + $0x40] sm:$0xf]
        %v373 = vld [vmem:[%s278 + $0x44] sm:$0xf]
        %v374 = vld [vmem:[%s278 + $0x48] sm:$0xf]
        %v375 = vld [vmem:[%s278 + $0x4c] sm:$0xf]
        %v376 = vld [vmem:[%s278 + $0x50] sm:$0xf]
        %v377 = vld [vmem:[%s278 + $0x54] sm:$0xf]
        %v378 = vld [vmem:[%s278 + $0x58] sm:$0xf]
        %v379 = vld [vmem:[%s278 + $0x5c] sm:$0xf]
        %v380 = vld [vmem:[%s278 + $0x60] sm:$0xf]
        %v381 = vld [vmem:[%s278 + $0x64] sm:$0xf]
        %v382 = vld [vmem:[%s278 + $0x68] sm:$0xf]
        %v383 = vld [vmem:[%s278 + $0x6c] sm:$0xf]
        %v384 = vld [vmem:[%s278 + $0x70] sm:$0xf]
        %v385 = vld [vmem:[%s278 + $0x74] sm:$0xf]
        %v386 = vld [vmem:[%s278 + $0x78] sm:$0xf]
        %v387 = vld [vmem:[%s278 + $0x7c] sm:$0xf]
        %v388 = vld [vmem:[%s278 + $0x80] sm:$0xf]
        %v389 = vld [vmem:[%s278 + $0x84] sm:$0xf]
        %v390 = vld [vmem:[%s278 + $0x88] sm:$0xf]
        %v391 = vld [vmem:[%s278 + $0x8c] sm:$0xf]
        %v392 = vld [vmem:[%s278 + $0x90] sm:$0xf]
        %v393 = vld [vmem:[%s278 + $0x94] sm:$0xf]
        %v394 = vld [vmem:[%s278 + $0x98] sm:$0xf]
        %v395 = vld [vmem:[%s278 + $0x9c] sm:$0xf]
        %v396 = vld [vmem:[%s278 + $0xa0] sm:$0xf]
        %v397 = vld [vmem:[%s278 + $0xa4] sm:$0xf]
        %v398 = vld [vmem:[%s278 + $0xa8] sm:$0xf]
        %v399 = vld [vmem:[%s278 + $0xac] sm:$0xf]
        %v400 = vld [vmem:[%s278 + $0xb0] sm:$0xf]
        %v401 = vld [vmem:[%s278 + $0xb4] sm:$0xf]
        %v402 = vld [vmem:[%s278 + $0xb8] sm:$0xf]
        %v403 = vld [vmem:[%s278 + $0xbc] sm:$0xf]
        %v404 = vld [vmem:[%s288] sm:$0xf]
        %v405 = vld [vmem:[%s288 + $0x4] sm:$0xf]
        %v406 = vld [vmem:[%s288 + $0x8] sm:$0xf]
        %v407 = vld [vmem:[%s288 + $0xc] sm:$0xf]
        %v408 = vld [vmem:[%s288 + $0x10] sm:$0xf]
        %v409 = vld [vmem:[%s288 + $0x14] sm:$0xf]
        %v410 = vld [vmem:[%s288 + $0x18] sm:$0xf]
        %v411 = vld [vmem:[#allocation7] sm:$0xf]
        %v412 = vld [vmem:[#allocation7 + $0x4] sm:$0xf]
        %v413 = vld [vmem:[#allocation7 + $0x8] sm:$0xf]
        %v414 = vld [vmem:[#allocation7 + $0xc] sm:$0xf]
        %v415 = vld [vmem:[#allocation7 + $0x10] sm:$0xf]
        %v416 = vld [vmem:[#allocation7 + $0x14] sm:$0xf]
        %v417 = vld [vmem:[#allocation7 + $0x18] sm:$0xf]
        %v418 = vld [vmem:[#allocation7 + $0x1c] sm:$0xf]
        %v467 = vunpack.c.l.b16 %v356
        %v468 = vunpack.c.l.b16 %v357
        %v469 = vunpack.c.l.b16 %v358
        %v470 = vunpack.c.l.b16 %v359
        %v471 = vunpack.c.l.b16 %v360
        %v472 = vunpack.c.l.b16 %v361
        %v473 = vunpack.c.l.b16 %v362
        %v474 = vunpack.c.l.b16 %v363
        %v475 = vunpack.c.l.b16 %v364
        %v476 = vunpack.c.l.b16 %v365
        %v477 = vunpack.c.l.b16 %v366
        %v478 = vunpack.c.l.b16 %v367
        %v479 = vunpack.c.l.b16 %v368
        %v480 = vunpack.c.l.b16 %v369
        %v481 = vunpack.c.l.b16 %v370
        %v482 = vunpack.c.l.b16 %v371
        %v483 = vunpack.c.l.b16 %v372
        %v484 = vunpack.c.l.b16 %v373
        %v485 = vunpack.c.l.b16 %v374
        %v486 = vunpack.c.l.b16 %v375
        %v487 = vunpack.c.l.b16 %v376
        %v488 = vunpack.c.l.b16 %v377
        %v489 = vunpack.c.l.b16 %v378
        %v490 = vunpack.c.l.b16 %v379
        %v491 = vunpack.c.l.b16 %v380
        %v492 = vunpack.c.l.b16 %v381
        %v493 = vunpack.c.l.b16 %v382
        %v494 = vunpack.c.l.b16 %v383
        %v495 = vunpack.c.l.b16 %v384
        %v496 = vunpack.c.l.b16 %v385
        %v497 = vunpack.c.l.b16 %v386
        %v498 = vunpack.c.l.b16 %v387
        %v499 = vunpack.c.l.b16 %v388
        %v500 = vunpack.c.l.b16 %v389
        %v501 = vunpack.c.l.b16 %v390
        %v502 = vunpack.c.l.b16 %v391
        %v503 = vunpack.c.l.b16 %v392
        %v504 = vunpack.c.l.b16 %v393
        %v505 = vunpack.c.l.b16 %v394
        %v506 = vunpack.c.l.b16 %v395
        %v507 = vunpack.c.l.b16 %v396
        %v508 = vunpack.c.l.b16 %v397
        %v509 = vunpack.c.l.b16 %v398
        %v510 = vunpack.c.l.b16 %v399
        %v511 = vunpack.c.l.b16 %v400
        %v512 = vunpack.c.l.b16 %v401
        %v513 = vunpack.c.l.b16 %v402
        %v514 = vunpack.c.l.b16 %v403
        %v515 = vpack.c.b16 %v468, %v467
        %v516 = vpack.c.b16 %v470, %v469
        %v517 = vpack.c.b16 %v472, %v471
        %v518 = vpack.c.b16 %v474, %v473
        %v519 = vpack.c.b16 %v476, %v475
        %v520 = vpack.c.b16 %v478, %v477
        %v521 = vpack.c.b16 %v480, %v479
        %v522 = vpack.c.b16 %v482, %v481
        %v523 = vpack.c.b16 %v484, %v483
        %v524 = vpack.c.b16 %v486, %v485
        %v525 = vpack.c.b16 %v488, %v487
        %v526 = vpack.c.b16 %v490, %v489
        %v527 = vpack.c.b16 %v492, %v491
        %v528 = vpack.c.b16 %v494, %v493
        %v529 = vpack.c.b16 %v496, %v495
        %v530 = vpack.c.b16 %v498, %v497
        %v531 = vpack.c.b16 %v500, %v499
        %v532 = vpack.c.b16 %v502, %v501
        %v533 = vpack.c.b16 %v504, %v503
        %v534 = vpack.c.b16 %v506, %v505
        %v535 = vpack.c.b16 %v508, %v507
        %v536 = vpack.c.b16 %v510, %v509
        %v537 = vpack.c.b16 %v512, %v511
        %v538 = vpack.c.b16 %v514, %v513
        %v547 = vunpack.c.l.b16 %v411
        %v548 = vunpack.c.l.b16 %v412
        %v549 = vunpack.c.l.b16 %v413
        %v550 = vunpack.c.l.b16 %v414
        %v551 = vunpack.c.l.b16 %v415
        %v552 = vunpack.c.l.b16 %v416
        %v553 = vunpack.c.l.b16 %v417
        %v554 = vunpack.c.l.b16 %v418
        %v555 = vpack.c.b16 %v548, %v547
        %v556 = vpack.c.b16 %v550, %v549
        %v557 = vpack.c.b16 %v552, %v551
        %v558 = vpack.c.b16 %v554, %v553
        %vm563 = vcmask 523264
        %v565 = vsel %vm563, %v515, 0
        %v568 = vsel %vm563, %v516, 0
        %v571 = vsel %vm563, %v517, 0
        %v574 = vsel %vm563, %v518, 0
        %v577 = vsel %vm563, %v519, 0
        %v580 = vsel %vm563, %v520, 0
        %v583 = vsel %vm563, %v521, 0
        %v586 = vsel %vm563, %v522, 0
        %v589 = vsel %vm563, %v523, 0
        %v592 = vsel %vm563, %v524, 0
        %v595 = vsel %vm563, %v525, 0
        %v598 = vsel %vm563, %v526, 0
        %v601 = vsel %vm563, %v527, 0
        %v604 = vsel %vm563, %v528, 0
        %v607 = vsel %vm563, %v529, 0
        %v610 = vsel %vm563, %v530, 0
        %v613 = vsel %vm563, %v531, 0
        %v616 = vsel %vm563, %v532, 0
        %v619 = vsel %vm563, %v533, 0
        %v622 = vsel %vm563, %v534, 0
        %v625 = vsel %vm563, %v535, 0
        %v628 = vsel %vm563, %v536, 0
        %v631 = vsel %vm563, %v537, 0
        %v634 = vsel %vm563, %v538, 0
        %636 = vmatpush.bf16.msra.mxu0 0
        %637 = vmatpush.bf16.msra.mxu0 0
        %638 = vmatpush.bf16.msra.mxu0 0
        %639 = vmatpush.bf16.msra.mxu0 0
        %640 = vmatpush.bf16.msra.mxu0 %v558
        %641 = vmatpush.bf16.msra.mxu0 %v557
        %642 = vmatpush.bf16.msra.mxu0 %v556
        %643 = vmatpush.bf16.msra.mxu0 %v555
        %644 = vmatmul.bf16.gmra.mxu0 %v565
        %v645 = vpop.f32.mrf.mxu0
        %v646 = vadd.f32 0.0, %v645
        %v647 = vpop.f32.mrf.mxu0
        %v648 = vadd.f32 0.0, %v647
        %649 = vmatmul.bf16.gmra.mxu0 %v568
        %v650 = vpop.f32.mrf.mxu0
        %v651 = vadd.f32 0.0, %v650
        %v652 = vpop.f32.mrf.mxu0
        %v653 = vadd.f32 0.0, %v652
        %654 = vmatmul.bf16.gmra.mxu0 %v571
        %v655 = vpop.f32.mrf.mxu0
        %v656 = vadd.f32 0.0, %v655
        %v657 = vpop.f32.mrf.mxu0
        %v658 = vadd.f32 0.0, %v657
        %659 = vmatmul.bf16.gmra.mxu0 %v574
        %v660 = vpop.f32.mrf.mxu0
        %v661 = vadd.f32 0.0, %v660
        %v662 = vpop.f32.mrf.mxu0
        %v663 = vadd.f32 0.0, %v662
        %664 = vmatmul.bf16.gmra.mxu0 %v577
        %v665 = vpop.f32.mrf.mxu0
        %v666 = vadd.f32 0.0, %v665
        %v667 = vpop.f32.mrf.mxu0
        %v668 = vadd.f32 0.0, %v667
        %669 = vmatmul.bf16.gmra.mxu0 %v580
        %v670 = vpop.f32.mrf.mxu0
        %v671 = vadd.f32 0.0, %v670
        %v672 = vpop.f32.mrf.mxu0
        %v673 = vadd.f32 0.0, %v672
        %674 = vmatmul.bf16.gmra.mxu0 %v583
        %v675 = vpop.f32.mrf.mxu0
        %v676 = vadd.f32 0.0, %v675
        %v677 = vpop.f32.mrf.mxu0
        %v678 = vadd.f32 0.0, %v677
        %679 = vmatmul.bf16.gmra.mxu0 %v586
        %v680 = vpop.f32.mrf.mxu0
        %v681 = vadd.f32 0.0, %v680
        %v682 = vpop.f32.mrf.mxu0
        %v683 = vadd.f32 0.0, %v682
        %684 = vmatmul.bf16.gmra.mxu0 %v589
        %v685 = vpop.f32.mrf.mxu0
        %v686 = vadd.f32 0.0, %v685
        %v687 = vpop.f32.mrf.mxu0
        %v688 = vadd.f32 0.0, %v687
        %689 = vmatmul.bf16.gmra.mxu0 %v592
        %v690 = vpop.f32.mrf.mxu0
        %v691 = vadd.f32 0.0, %v690
        %v692 = vpop.f32.mrf.mxu0
        %v693 = vadd.f32 0.0, %v692
        %694 = vmatmul.bf16.gmra.mxu0 %v595
        %v695 = vpop.f32.mrf.mxu0
        %v696 = vadd.f32 0.0, %v695
        %v697 = vpop.f32.mrf.mxu0
        %v698 = vadd.f32 0.0, %v697
        %699 = vmatmul.bf16.gmra.mxu0 %v598
        %v700 = vpop.f32.mrf.mxu0
        %v701 = vadd.f32 0.0, %v700
        %v702 = vpop.f32.mrf.mxu0
        %v703 = vadd.f32 0.0, %v702
        %704 = vmatmul.bf16.gmra.mxu0 %v601
        %v705 = vpop.f32.mrf.mxu0
        %v706 = vadd.f32 0.0, %v705
        %v707 = vpop.f32.mrf.mxu0
        %v708 = vadd.f32 0.0, %v707
        %709 = vmatmul.bf16.gmra.mxu0 %v604
        %v710 = vpop.f32.mrf.mxu0
        %v711 = vadd.f32 0.0, %v710
        %v712 = vpop.f32.mrf.mxu0
        %v713 = vadd.f32 0.0, %v712
        %714 = vmatmul.bf16.gmra.mxu0 %v607
        %v715 = vpop.f32.mrf.mxu0
        %v716 = vadd.f32 0.0, %v715
        %v717 = vpop.f32.mrf.mxu0
        %v718 = vadd.f32 0.0, %v717
        %719 = vmatmul.bf16.gmra.mxu0 %v610
        %v720 = vpop.f32.mrf.mxu0
        %v721 = vadd.f32 0.0, %v720
        %v722 = vpop.f32.mrf.mxu0
        %v723 = vadd.f32 0.0, %v722
        %724 = vmatmul.bf16.gmra.mxu0 %v613
        %v725 = vpop.f32.mrf.mxu0
        %v726 = vadd.f32 0.0, %v725
        %v727 = vpop.f32.mrf.mxu0
        %v728 = vadd.f32 0.0, %v727
        %729 = vmatmul.bf16.gmra.mxu0 %v616
        %v730 = vpop.f32.mrf.mxu0
        %v731 = vadd.f32 0.0, %v730
        %v732 = vpop.f32.mrf.mxu0
        %v733 = vadd.f32 0.0, %v732
        %734 = vmatmul.bf16.gmra.mxu0 %v619
        %v735 = vpop.f32.mrf.mxu0
        %v736 = vadd.f32 0.0, %v735
        %v737 = vpop.f32.mrf.mxu0
        %v738 = vadd.f32 0.0, %v737
        %739 = vmatmul.bf16.gmra.mxu0 %v622
        %v740 = vpop.f32.mrf.mxu0
        %v741 = vadd.f32 0.0, %v740
        %v742 = vpop.f32.mrf.mxu0
        %v743 = vadd.f32 0.0, %v742
        %744 = vmatmul.bf16.gmra.mxu0 %v625
        %v745 = vpop.f32.mrf.mxu0
        %v746 = vadd.f32 0.0, %v745
        %v747 = vpop.f32.mrf.mxu0
        %v748 = vadd.f32 0.0, %v747
        %749 = vmatmul.bf16.gmra.mxu0 %v628
        %v750 = vpop.f32.mrf.mxu0
        %v751 = vadd.f32 0.0, %v750
        %v752 = vpop.f32.mrf.mxu0
        %v753 = vadd.f32 0.0, %v752
        %754 = vmatmul.bf16.gmra.mxu0 %v631
        %v755 = vpop.f32.mrf.mxu0
        %v756 = vadd.f32 0.0, %v755
        %v757 = vpop.f32.mrf.mxu0
        %v758 = vadd.f32 0.0, %v757
        %759 = vmatmul.bf16.gmra.mxu0 %v634
        %v760 = vpop.f32.mrf.mxu0
        %v761 = vadd.f32 0.0, %v760
        %v762 = vpop.f32.mrf.mxu0
        %v763 = vadd.f32 0.0, %v762
        %764 = vdwg.mxu0
        %765 = vst [vmem:[#allocation2] sm:$0xff] %v646
        %766 = vst [vmem:[#allocation2 + $0x8] sm:$0xff] %v648
        %767 = vst [vmem:[#allocation2 + $0x10] sm:$0xff] %v651
        %768 = vst [vmem:[#allocation2 + $0x18] sm:$0xff] %v653
        %769 = vst [vmem:[#allocation2 + $0x20] sm:$0xff] %v656
        %770 = vst [vmem:[#allocation2 + $0x28] sm:$0xff] %v658
        %771 = vst [vmem:[#allocation2 + $0x30] sm:$0xff] %v661
        %772 = vst [vmem:[#allocation2 + $0x38] sm:$0xff] %v663
        %773 = vst [vmem:[#allocation2 + $0x40] sm:$0xff] %v666
        %774 = vst [vmem:[#allocation2 + $0x48] sm:$0xff] %v668
        %775 = vst [vmem:[#allocation2 + $0x50] sm:$0xff] %v671
        %776 = vst [vmem:[#allocation2 + $0x58] sm:$0xff] %v673
        %777 = vst [vmem:[#allocation2 + $0x60] sm:$0xff] %v676
        %778 = vst [vmem:[#allocation2 + $0x68] sm:$0xff] %v678
        %779 = vst [vmem:[#allocation2 + $0x70] sm:$0xff] %v681
        %780 = vst [vmem:[#allocation2 + $0x78] sm:$0xff] %v683
        %781 = vst [vmem:[#allocation2 + $0x80] sm:$0xff] %v686
        %782 = vst [vmem:[#allocation2 + $0x88] sm:$0xff] %v688
        %783 = vst [vmem:[#allocation2 + $0x90] sm:$0xff] %v691
        %784 = vst [vmem:[#allocation2 + $0x98] sm:$0xff] %v693
        %785 = vst [vmem:[#allocation2 + $0xa0] sm:$0xff] %v696
        %786 = vst [vmem:[#allocation2 + $0xa8] sm:$0xff] %v698
        %787 = vst [vmem:[#allocation2 + $0xb0] sm:$0xff] %v701
        %788 = vst [vmem:[#allocation2 + $0xb8] sm:$0xff] %v703
        %789 = vst [vmem:[#allocation2 + $0xc0] sm:$0xff] %v706
        %790 = vst [vmem:[#allocation2 + $0xc8] sm:$0xff] %v708
        %791 = vst [vmem:[#allocation2 + $0xd0] sm:$0xff] %v711
        %792 = vst [vmem:[#allocation2 + $0xd8] sm:$0xff] %v713
        %793 = vst [vmem:[#allocation2 + $0xe0] sm:$0xff] %v716
        %794 = vst [vmem:[#allocation2 + $0xe8] sm:$0xff] %v718
        %795 = vst [vmem:[#allocation2 + $0xf0] sm:$0xff] %v721
        %796 = vst [vmem:[#allocation2 + $0xf8] sm:$0xff] %v723
        %797 = vst [vmem:[#allocation2 + $0x100] sm:$0xff] %v726
        %798 = vst [vmem:[#allocation2 + $0x108] sm:$0xff] %v728
        %799 = vst [vmem:[#allocation2 + $0x110] sm:$0xff] %v731
        %800 = vst [vmem:[#allocation2 + $0x118] sm:$0xff] %v733
        %801 = vst [vmem:[#allocation2 + $0x120] sm:$0xff] %v736
        %802 = vst [vmem:[#allocation2 + $0x128] sm:$0xff] %v738
        %803 = vst [vmem:[#allocation2 + $0x130] sm:$0xff] %v741
        %804 = vst [vmem:[#allocation2 + $0x138] sm:$0xff] %v743
        %805 = vst [vmem:[#allocation2 + $0x140] sm:$0xff] %v746
        %806 = vst [vmem:[#allocation2 + $0x148] sm:$0xff] %v748
        %807 = vst [vmem:[#allocation2 + $0x150] sm:$0xff] %v751
        %808 = vst [vmem:[#allocation2 + $0x158] sm:$0xff] %v753
        %809 = vst [vmem:[#allocation2 + $0x160] sm:$0xff] %v756
        %810 = vst [vmem:[#allocation2 + $0x168] sm:$0xff] %v758
        %811 = vst [vmem:[#allocation2 + $0x170] sm:$0xff] %v761
        %812 = vst [vmem:[#allocation2 + $0x178] sm:$0xff] %v763
        %s813 = scalar_lea.vmem [#allocation7], 32
        %v814 = vld [vmem:[%s813] sm:$0xf]
        %v815 = vld [vmem:[%s813 + $0x4] sm:$0xf]
        %v816 = vld [vmem:[%s813 + $0x8] sm:$0xf]
        %v817 = vld [vmem:[%s813 + $0xc] sm:$0xf]
        %v818 = vld [vmem:[%s813 + $0x10] sm:$0xf]
        %v819 = vld [vmem:[%s813 + $0x14] sm:$0xf]
        %v820 = vld [vmem:[%s813 + $0x18] sm:$0xf]
        %v821 = vld [vmem:[%s813 + $0x1c] sm:$0xf]
        %v823 = vunpack.c.l.b16 %v404
        %v824 = vpack.c.b16 %v823, %v823
        %vm825 = vsmask.f32 7424
        %v826 = vshrl.u32 %v515, 16
        %v828 = vshll.u32 %v515, 16
        %v830 = vrot.slane %v828, 1
        %v831 = vor.u32 %v826, %v830
        %v832 = vshll.u32 %v516, 16
        %v834 = vrot.slane %v832, 1
        %v835 = vsel %vm825, %v831, %v834
        %v836 = vshrl.u32 %v516, 16
        %v838 = vor.u32 %v836, %v834
        %v839 = vshll.u32 %v517, 16
        %v841 = vrot.slane %v839, 1
        %v842 = vsel %vm825, %v838, %v841
        %v843 = vshrl.u32 %v517, 16
        %v845 = vor.u32 %v843, %v841
        %v846 = vshll.u32 %v518, 16
        %v848 = vrot.slane %v846, 1
        %v849 = vsel %vm825, %v845, %v848
        %v850 = vshrl.u32 %v518, 16
        %v852 = vor.u32 %v850, %v848
        %v853 = vshll.u32 %v519, 16
        %v855 = vrot.slane %v853, 1
        %v856 = vsel %vm825, %v852, %v855
        %v857 = vshrl.u32 %v519, 16
        %v859 = vor.u32 %v857, %v855
        %v860 = vshll.u32 %v520, 16
        %v862 = vrot.slane %v860, 1
        %v863 = vsel %vm825, %v859, %v862
        %v864 = vshrl.u32 %v520, 16
        %v866 = vor.u32 %v864, %v862
        %v867 = vshll.u32 %v521, 16
        %v869 = vrot.slane %v867, 1
        %v870 = vsel %vm825, %v866, %v869
        %v871 = vshrl.u32 %v521, 16
        %v873 = vor.u32 %v871, %v869
        %v874 = vshll.u32 %v522, 16
        %v876 = vrot.slane %v874, 1
        %v877 = vsel %vm825, %v873, %v876
        %v878 = vshrl.u32 %v522, 16
        %v880 = vor.u32 %v878, %v876
        %v881 = vshll.u32 %v523, 16
        %v883 = vrot.slane %v881, 1
        %v884 = vsel %vm825, %v880, %v883
        %v885 = vshrl.u32 %v523, 16
        %v887 = vor.u32 %v885, %v883
        %v888 = vshll.u32 %v524, 16
        %v890 = vrot.slane %v888, 1
        %v891 = vsel %vm825, %v887, %v890
        %v892 = vshrl.u32 %v524, 16
        %v894 = vor.u32 %v892, %v890
        %v895 = vshll.u32 %v525, 16
        %v897 = vrot.slane %v895, 1
        %v898 = vsel %vm825, %v894, %v897
        %v899 = vshrl.u32 %v525, 16
        %v901 = vor.u32 %v899, %v897
        %v902 = vshll.u32 %v526, 16
        %v904 = vrot.slane %v902, 1
        %v905 = vsel %vm825, %v901, %v904
        %v906 = vshrl.u32 %v526, 16
        %v908 = vor.u32 %v906, %v904
        %v909 = vshll.u32 %v527, 16
        %v911 = vrot.slane %v909, 1
        %v912 = vsel %vm825, %v908, %v911
        %v913 = vshrl.u32 %v527, 16
        %v915 = vor.u32 %v913, %v911
        %v916 = vshll.u32 %v528, 16
        %v918 = vrot.slane %v916, 1
        %v919 = vsel %vm825, %v915, %v918
        %v920 = vshrl.u32 %v528, 16
        %v922 = vor.u32 %v920, %v918
        %v923 = vshll.u32 %v529, 16
        %v925 = vrot.slane %v923, 1
        %v926 = vsel %vm825, %v922, %v925
        %v927 = vshrl.u32 %v529, 16
        %v929 = vor.u32 %v927, %v925
        %v930 = vshll.u32 %v530, 16
        %v932 = vrot.slane %v930, 1
        %v933 = vsel %vm825, %v929, %v932
        %v934 = vshrl.u32 %v530, 16
        %v936 = vor.u32 %v934, %v932
        %v937 = vshll.u32 %v531, 16
        %v939 = vrot.slane %v937, 1
        %v940 = vsel %vm825, %v936, %v939
        %v941 = vshrl.u32 %v531, 16
        %v943 = vor.u32 %v941, %v939
        %v944 = vshll.u32 %v532, 16
        %v946 = vrot.slane %v944, 1
        %v947 = vsel %vm825, %v943, %v946
        %v948 = vshrl.u32 %v532, 16
        %v950 = vor.u32 %v948, %v946
        %v951 = vshll.u32 %v533, 16
        %v953 = vrot.slane %v951, 1
        %v954 = vsel %vm825, %v950, %v953
        %v955 = vshrl.u32 %v533, 16
        %v957 = vor.u32 %v955, %v953
        %v958 = vshll.u32 %v534, 16
        %v960 = vrot.slane %v958, 1
        %v961 = vsel %vm825, %v957, %v960
        %v962 = vshrl.u32 %v534, 16
        %v964 = vor.u32 %v962, %v960
        %v965 = vshll.u32 %v535, 16
        %v967 = vrot.slane %v965, 1
        %v968 = vsel %vm825, %v964, %v967
        %v969 = vshrl.u32 %v535, 16
        %v971 = vor.u32 %v969, %v967
        %v972 = vshll.u32 %v536, 16
        %v974 = vrot.slane %v972, 1
        %v975 = vsel %vm825, %v971, %v974
        %v976 = vshrl.u32 %v536, 16
        %v978 = vor.u32 %v976, %v974
        %v979 = vshll.u32 %v537, 16
        %v981 = vrot.slane %v979, 1
        %v982 = vsel %vm825, %v978, %v981
        %v983 = vshrl.u32 %v537, 16
        %v985 = vor.u32 %v983, %v981
        %v986 = vshll.u32 %v538, 16
        %v988 = vrot.slane %v986, 1
        %v989 = vsel %vm825, %v985, %v988
        %v990 = vshrl.u32 %v538, 16
        %v992 = vor.u32 %v990, %v988
        %v994 = vshll.u32 %v824, 16
        %v996 = vrot.slane %v994, 1
        %v997 = vsel %vm825, %v992, %v996
        %v1006 = vunpack.c.l.b16 %v814
        %v1007 = vunpack.c.l.b16 %v815
        %v1008 = vunpack.c.l.b16 %v816
        %v1009 = vunpack.c.l.b16 %v817
        %v1010 = vunpack.c.l.b16 %v818
        %v1011 = vunpack.c.l.b16 %v819
        %v1012 = vunpack.c.l.b16 %v820
        %v1013 = vunpack.c.l.b16 %v821
        %v1014 = vpack.c.b16 %v1007, %v1006
        %v1015 = vpack.c.b16 %v1009, %v1008
        %v1016 = vpack.c.b16 %v1011, %v1010
        %v1017 = vpack.c.b16 %v1013, %v1012
        %v1023 = vsel %vm563, %v835, 0
        %v1026 = vsel %vm563, %v842, 0
        %v1029 = vsel %vm563, %v849, 0
        %v1032 = vsel %vm563, %v856, 0
        %v1035 = vsel %vm563, %v863, 0
        %v1038 = vsel %vm563, %v870, 0
        %v1041 = vsel %vm563, %v877, 0
        %v1044 = vsel %vm563, %v884, 0
        %v1047 = vsel %vm563, %v891, 0
        %v1050 = vsel %vm563, %v898, 0
        %v1053 = vsel %vm563, %v905, 0
        %v1056 = vsel %vm563, %v912, 0
        %v1059 = vsel %vm563, %v919, 0
        %v1062 = vsel %vm563, %v926, 0
        %v1065 = vsel %vm563, %v933, 0
        %v1068 = vsel %vm563, %v940, 0
        %v1071 = vsel %vm563, %v947, 0
        %v1074 = vsel %vm563, %v954, 0
        %v1077 = vsel %vm563, %v961, 0
        %v1080 = vsel %vm563, %v968, 0
        %v1083 = vsel %vm563, %v975, 0
        %v1086 = vsel %vm563, %v982, 0
        %v1089 = vsel %vm563, %v989, 0
        %v1092 = vsel %vm563, %v997, 0
        %1094 = vmatpush.bf16.msra.mxu0 0
        %1095 = vmatpush.bf16.msra.mxu0 0
        %1096 = vmatpush.bf16.msra.mxu0 0
        %1097 = vmatpush.bf16.msra.mxu0 0
        %1098 = vmatpush.bf16.msra.mxu0 %v1017
        %1099 = vmatpush.bf16.msra.mxu0 %v1016
        %1100 = vmatpush.bf16.msra.mxu0 %v1015
        %1101 = vmatpush.bf16.msra.mxu0 %v1014
        %1102 = vmatmul.bf16.gmra.mxu0 %v1023
        %v1103 = vpop.f32.mrf.mxu0
        %v1104 = vadd.f32 0.0, %v1103
        %v1105 = vpop.f32.mrf.mxu0
        %v1106 = vadd.f32 0.0, %v1105
        %1107 = vmatmul.bf16.gmra.mxu0 %v1026
        %v1108 = vpop.f32.mrf.mxu0
        %v1109 = vadd.f32 0.0, %v1108
        %v1110 = vpop.f32.mrf.mxu0
        %v1111 = vadd.f32 0.0, %v1110
        %1112 = vmatmul.bf16.gmra.mxu0 %v1029
        %v1113 = vpop.f32.mrf.mxu0
        %v1114 = vadd.f32 0.0, %v1113
        %v1115 = vpop.f32.mrf.mxu0
        %v1116 = vadd.f32 0.0, %v1115
        %1117 = vmatmul.bf16.gmra.mxu0 %v1032
        %v1118 = vpop.f32.mrf.mxu0
        %v1119 = vadd.f32 0.0, %v1118
        %v1120 = vpop.f32.mrf.mxu0
        %v1121 = vadd.f32 0.0, %v1120
        %1122 = vmatmul.bf16.gmra.mxu0 %v1035
        %v1123 = vpop.f32.mrf.mxu0
        %v1124 = vadd.f32 0.0, %v1123
        %v1125 = vpop.f32.mrf.mxu0
        %v1126 = vadd.f32 0.0, %v1125
        %1127 = vmatmul.bf16.gmra.mxu0 %v1038
        %v1128 = vpop.f32.mrf.mxu0
        %v1129 = vadd.f32 0.0, %v1128
        %v1130 = vpop.f32.mrf.mxu0
        %v1131 = vadd.f32 0.0, %v1130
        %1132 = vmatmul.bf16.gmra.mxu0 %v1041
        %v1133 = vpop.f32.mrf.mxu0
        %v1134 = vadd.f32 0.0, %v1133
        %v1135 = vpop.f32.mrf.mxu0
        %v1136 = vadd.f32 0.0, %v1135
        %1137 = vmatmul.bf16.gmra.mxu0 %v1044
        %v1138 = vpop.f32.mrf.mxu0
        %v1139 = vadd.f32 0.0, %v1138
        %v1140 = vpop.f32.mrf.mxu0
        %v1141 = vadd.f32 0.0, %v1140
        %1142 = vmatmul.bf16.gmra.mxu0 %v1047
        %v1143 = vpop.f32.mrf.mxu0
        %v1144 = vadd.f32 0.0, %v1143
        %v1145 = vpop.f32.mrf.mxu0
        %v1146 = vadd.f32 0.0, %v1145
        %1147 = vmatmul.bf16.gmra.mxu0 %v1050
        %v1148 = vpop.f32.mrf.mxu0
        %v1149 = vadd.f32 0.0, %v1148
        %v1150 = vpop.f32.mrf.mxu0
        %v1151 = vadd.f32 0.0, %v1150
        %1152 = vmatmul.bf16.gmra.mxu0 %v1053
        %v1153 = vpop.f32.mrf.mxu0
        %v1154 = vadd.f32 0.0, %v1153
        %v1155 = vpop.f32.mrf.mxu0
        %v1156 = vadd.f32 0.0, %v1155
        %1157 = vmatmul.bf16.gmra.mxu0 %v1056
        %v1158 = vpop.f32.mrf.mxu0
        %v1159 = vadd.f32 0.0, %v1158
        %v1160 = vpop.f32.mrf.mxu0
        %v1161 = vadd.f32 0.0, %v1160
        %1162 = vmatmul.bf16.gmra.mxu0 %v1059
        %v1163 = vpop.f32.mrf.mxu0
        %v1164 = vadd.f32 0.0, %v1163
        %v1165 = vpop.f32.mrf.mxu0
        %v1166 = vadd.f32 0.0, %v1165
        %1167 = vmatmul.bf16.gmra.mxu0 %v1062
        %v1168 = vpop.f32.mrf.mxu0
        %v1169 = vadd.f32 0.0, %v1168
        %v1170 = vpop.f32.mrf.mxu0
        %v1171 = vadd.f32 0.0, %v1170
        %1172 = vmatmul.bf16.gmra.mxu0 %v1065
        %v1173 = vpop.f32.mrf.mxu0
        %v1174 = vadd.f32 0.0, %v1173
        %v1175 = vpop.f32.mrf.mxu0
        %v1176 = vadd.f32 0.0, %v1175
        %1177 = vmatmul.bf16.gmra.mxu0 %v1068
        %v1178 = vpop.f32.mrf.mxu0
        %v1179 = vadd.f32 0.0, %v1178
        %v1180 = vpop.f32.mrf.mxu0
        %v1181 = vadd.f32 0.0, %v1180
        %1182 = vmatmul.bf16.gmra.mxu0 %v1071
        %v1183 = vpop.f32.mrf.mxu0
        %v1184 = vadd.f32 0.0, %v1183
        %v1185 = vpop.f32.mrf.mxu0
        %v1186 = vadd.f32 0.0, %v1185
        %1187 = vmatmul.bf16.gmra.mxu0 %v1074
        %v1188 = vpop.f32.mrf.mxu0
        %v1189 = vadd.f32 0.0, %v1188
        %v1190 = vpop.f32.mrf.mxu0
        %v1191 = vadd.f32 0.0, %v1190
        %1192 = vmatmul.bf16.gmra.mxu0 %v1077
        %v1193 = vpop.f32.mrf.mxu0
        %v1194 = vadd.f32 0.0, %v1193
        %v1195 = vpop.f32.mrf.mxu0
        %v1196 = vadd.f32 0.0, %v1195
        %1197 = vmatmul.bf16.gmra.mxu0 %v1080
        %v1198 = vpop.f32.mrf.mxu0
        %v1199 = vadd.f32 0.0, %v1198
        %v1200 = vpop.f32.mrf.mxu0
        %v1201 = vadd.f32 0.0, %v1200
        %1202 = vmatmul.bf16.gmra.mxu0 %v1083
        %v1203 = vpop.f32.mrf.mxu0
        %v1204 = vadd.f32 0.0, %v1203
        %v1205 = vpop.f32.mrf.mxu0
        %v1206 = vadd.f32 0.0, %v1205
        %1207 = vmatmul.bf16.gmra.mxu0 %v1086
        %v1208 = vpop.f32.mrf.mxu0
        %v1209 = vadd.f32 0.0, %v1208
        %v1210 = vpop.f32.mrf.mxu0
        %v1211 = vadd.f32 0.0, %v1210
        %1212 = vmatmul.bf16.gmra.mxu0 %v1089
        %v1213 = vpop.f32.mrf.mxu0
        %v1214 = vadd.f32 0.0, %v1213
        %v1215 = vpop.f32.mrf.mxu0
        %v1216 = vadd.f32 0.0, %v1215
        %1217 = vmatmul.bf16.gmra.mxu0 %v1092
        %v1218 = vpop.f32.mrf.mxu0
        %v1219 = vadd.f32 0.0, %v1218
        %v1220 = vpop.f32.mrf.mxu0
        %v1221 = vadd.f32 0.0, %v1220
        %1222 = vdwg.mxu0
        %v1223 = vld [vmem:[#allocation2] sm:$0xff]
        %v1224 = vld [vmem:[#allocation2 + $0x8] sm:$0xff]
        %v1225 = vld [vmem:[#allocation2 + $0x10] sm:$0xff]
        %v1226 = vld [vmem:[#allocation2 + $0x18] sm:$0xff]
        %v1227 = vld [vmem:[#allocation2 + $0x20] sm:$0xff]
        %v1228 = vld [vmem:[#allocation2 + $0x28] sm:$0xff]
        %v1229 = vld [vmem:[#allocation2 + $0x30] sm:$0xff]
        %v1230 = vld [vmem:[#allocation2 + $0x38] sm:$0xff]
        %v1231 = vld [vmem:[#allocation2 + $0x40] sm:$0xff]
        %v1232 = vld [vmem:[#allocation2 + $0x48] sm:$0xff]
        %v1233 = vld [vmem:[#allocation2 + $0x50] sm:$0xff]
        %v1234 = vld [vmem:[#allocation2 + $0x58] sm:$0xff]
        %v1235 = vld [vmem:[#allocation2 + $0x60] sm:$0xff]
        %v1236 = vld [vmem:[#allocation2 + $0x68] sm:$0xff]
        %v1237 = vld [vmem:[#allocation2 + $0x70] sm:$0xff]
        %v1238 = vld [vmem:[#allocation2 + $0x78] sm:$0xff]
        %v1239 = vld [vmem:[#allocation2 + $0x80] sm:$0xff]
        %v1240 = vld [vmem:[#allocation2 + $0x88] sm:$0xff]
        %v1241 = vld [vmem:[#allocation2 + $0x90] sm:$0xff]
        %v1242 = vld [vmem:[#allocation2 + $0x98] sm:$0xff]
        %v1243 = vld [vmem:[#allocation2 + $0xa0] sm:$0xff]
        %v1244 = vld [vmem:[#allocation2 + $0xa8] sm:$0xff]
        %v1245 = vld [vmem:[#allocation2 + $0xb0] sm:$0xff]
        %v1246 = vld [vmem:[#allocation2 + $0xb8] sm:$0xff]
        %v1247 = vld [vmem:[#allocation2 + $0xc0] sm:$0xff]
        %v1248 = vld [vmem:[#allocation2 + $0xc8] sm:$0xff]
        %v1249 = vld [vmem:[#allocation2 + $0xd0] sm:$0xff]
        %v1250 = vld [vmem:[#allocation2 + $0xd8] sm:$0xff]
        %v1251 = vld [vmem:[#allocation2 + $0xe0] sm:$0xff]
        %v1252 = vld [vmem:[#allocation2 + $0xe8] sm:$0xff]
        %v1253 = vld [vmem:[#allocation2 + $0xf0] sm:$0xff]
        %v1254 = vld [vmem:[#allocation2 + $0xf8] sm:$0xff]
        %v1255 = vld [vmem:[#allocation2 + $0x100] sm:$0xff]
        %v1256 = vld [vmem:[#allocation2 + $0x108] sm:$0xff]
        %v1257 = vld [vmem:[#allocation2 + $0x110] sm:$0xff]
        %v1258 = vld [vmem:[#allocation2 + $0x118] sm:$0xff]
        %v1259 = vld [vmem:[#allocation2 + $0x120] sm:$0xff]
        %v1260 = vld [vmem:[#allocation2 + $0x128] sm:$0xff]
        %v1261 = vld [vmem:[#allocation2 + $0x130] sm:$0xff]
        %v1262 = vld [vmem:[#allocation2 + $0x138] sm:$0xff]
        %v1263 = vld [vmem:[#allocation2 + $0x140] sm:$0xff]
        %v1264 = vld [vmem:[#allocation2 + $0x148] sm:$0xff]
        %v1265 = vld [vmem:[#allocation2 + $0x150] sm:$0xff]
        %v1266 = vld [vmem:[#allocation2 + $0x158] sm:$0xff]
        %v1267 = vld [vmem:[#allocation2 + $0x160] sm:$0xff]
        %v1268 = vld [vmem:[#allocation2 + $0x168] sm:$0xff]
        %v1269 = vld [vmem:[#allocation2 + $0x170] sm:$0xff]
        %v1270 = vld [vmem:[#allocation2 + $0x178] sm:$0xff]
        %v1271 = vadd.f32 %v1223, %v1104
        %v1272 = vadd.f32 %v1224, %v1106
        %v1273 = vadd.f32 %v1225, %v1109
        %v1274 = vadd.f32 %v1226, %v1111
        %v1275 = vadd.f32 %v1227, %v1114
        %v1276 = vadd.f32 %v1228, %v1116
        %v1277 = vadd.f32 %v1229, %v1119
        %v1278 = vadd.f32 %v1230, %v1121
        %v1279 = vadd.f32 %v1231, %v1124
        %v1280 = vadd.f32 %v1232, %v1126
        %v1281 = vadd.f32 %v1233, %v1129
        %v1282 = vadd.f32 %v1234, %v1131
        %v1283 = vadd.f32 %v1235, %v1134
        %v1284 = vadd.f32 %v1236, %v1136
        %v1285 = vadd.f32 %v1237, %v1139
        %v1286 = vadd.f32 %v1238, %v1141
        %v1287 = vadd.f32 %v1239, %v1144
        %v1288 = vadd.f32 %v1240, %v1146
        %v1289 = vadd.f32 %v1241, %v1149
        %v1290 = vadd.f32 %v1242, %v1151
        %v1291 = vadd.f32 %v1243, %v1154
        %v1292 = vadd.f32 %v1244, %v1156
        %v1293 = vadd.f32 %v1245, %v1159
        %v1294 = vadd.f32 %v1246, %v1161
        %v1295 = vadd.f32 %v1247, %v1164
        %v1296 = vadd.f32 %v1248, %v1166
        %v1297 = vadd.f32 %v1249, %v1169
        %v1298 = vadd.f32 %v1250, %v1171
        %v1299 = vadd.f32 %v1251, %v1174
        %v1300 = vadd.f32 %v1252, %v1176
        %v1301 = vadd.f32 %v1253, %v1179
        %v1302 = vadd.f32 %v1254, %v1181
        %v1303 = vadd.f32 %v1255, %v1184
        %v1304 = vadd.f32 %v1256, %v1186
        %v1305 = vadd.f32 %v1257, %v1189
        %v1306 = vadd.f32 %v1258, %v1191
        %v1307 = vadd.f32 %v1259, %v1194
        %v1308 = vadd.f32 %v1260, %v1196
        %v1309 = vadd.f32 %v1261, %v1199
        %v1310 = vadd.f32 %v1262, %v1201
        %v1311 = vadd.f32 %v1263, %v1204
        %v1312 = vadd.f32 %v1264, %v1206
        %v1313 = vadd.f32 %v1265, %v1209
        %v1314 = vadd.f32 %v1266, %v1211
        %v1315 = vadd.f32 %v1267, %v1214
        %v1316 = vadd.f32 %v1268, %v1216
        %v1317 = vadd.f32 %v1269, %v1219
        %v1318 = vadd.f32 %v1270, %v1221
        %1319 = vst [vmem:[#allocation2] sm:$0xff] %v1271
        %1320 = vst [vmem:[#allocation2 + $0x8] sm:$0xff] %v1272
        %1321 = vst [vmem:[#allocation2 + $0x10] sm:$0xff] %v1273
        %1322 = vst [vmem:[#allocation2 + $0x18] sm:$0xff] %v1274
        %1323 = vst [vmem:[#allocation2 + $0x20] sm:$0xff] %v1275
        %1324 = vst [vmem:[#allocation2 + $0x28] sm:$0xff] %v1276
        %1325 = vst [vmem:[#allocation2 + $0x30] sm:$0xff] %v1277
        %1326 = vst [vmem:[#allocation2 + $0x38] sm:$0xff] %v1278
        %1327 = vst [vmem:[#allocation2 + $0x40] sm:$0xff] %v1279
        %1328 = vst [vmem:[#allocation2 + $0x48] sm:$0xff] %v1280
        %1329 = vst [vmem:[#allocation2 + $0x50] sm:$0xff] %v1281
        %1330 = vst [vmem:[#allocation2 + $0x58] sm:$0xff] %v1282
        %1331 = vst [vmem:[#allocation2 + $0x60] sm:$0xff] %v1283
        %1332 = vst [vmem:[#allocation2 + $0x68] sm:$0xff] %v1284
        %1333 = vst [vmem:[#allocation2 + $0x70] sm:$0xff] %v1285
        %1334 = vst [vmem:[#allocation2 + $0x78] sm:$0xff] %v1286
        %1335 = vst [vmem:[#allocation2 + $0x80] sm:$0xff] %v1287
        %1336 = vst [vmem:[#allocation2 + $0x88] sm:$0xff] %v1288
        %1337 = vst [vmem:[#allocation2 + $0x90] sm:$0xff] %v1289
        %1338 = vst [vmem:[#allocation2 + $0x98] sm:$0xff] %v1290
        %1339 = vst [vmem:[#allocation2 + $0xa0] sm:$0xff] %v1291
        %1340 = vst [vmem:[#allocation2 + $0xa8] sm:$0xff] %v1292
        %1341 = vst [vmem:[#allocation2 + $0xb0] sm:$0xff] %v1293
        %1342 = vst [vmem:[#allocation2 + $0xb8] sm:$0xff] %v1294
        %1343 = vst [vmem:[#allocation2 + $0xc0] sm:$0xff] %v1295
        %1344 = vst [vmem:[#allocation2 + $0xc8] sm:$0xff] %v1296
        %1345 = vst [vmem:[#allocation2 + $0xd0] sm:$0xff] %v1297
        %1346 = vst [vmem:[#allocation2 + $0xd8] sm:$0xff] %v1298
        %1347 = vst [vmem:[#allocation2 + $0xe0] sm:$0xff] %v1299
        %1348 = vst [vmem:[#allocation2 + $0xe8] sm:$0xff] %v1300
        %1349 = vst [vmem:[#allocation2 + $0xf0] sm:$0xff] %v1301
        %1350 = vst [vmem:[#allocation2 + $0xf8] sm:$0xff] %v1302
        %1351 = vst [vmem:[#allocation2 + $0x100] sm:$0xff] %v1303
        %1352 = vst [vmem:[#allocation2 + $0x108] sm:$0xff] %v1304
        %1353 = vst [vmem:[#allocation2 + $0x110] sm:$0xff] %v1305
        %1354 = vst [vmem:[#allocation2 + $0x118] sm:$0xff] %v1306
        %1355 = vst [vmem:[#allocation2 + $0x120] sm:$0xff] %v1307
        %1356 = vst [vmem:[#allocation2 + $0x128] sm:$0xff] %v1308
        %1357 = vst [vmem:[#allocation2 + $0x130] sm:$0xff] %v1309
        %1358 = vst [vmem:[#allocation2 + $0x138] sm:$0xff] %v1310
        %1359 = vst [vmem:[#allocation2 + $0x140] sm:$0xff] %v1311
        %1360 = vst [vmem:[#allocation2 + $0x148] sm:$0xff] %v1312
        %1361 = vst [vmem:[#allocation2 + $0x150] sm:$0xff] %v1313
        %1362 = vst [vmem:[#allocation2 + $0x158] sm:$0xff] %v1314
        %1363 = vst [vmem:[#allocation2 + $0x160] sm:$0xff] %v1315
        %1364 = vst [vmem:[#allocation2 + $0x168] sm:$0xff] %v1316
        %1365 = vst [vmem:[#allocation2 + $0x170] sm:$0xff] %v1317
        %1366 = vst [vmem:[#allocation2 + $0x178] sm:$0xff] %v1318
        %s1367 = scalar_lea.vmem [#allocation7], 64
        %v1368 = vld [vmem:[%s1367] sm:$0xf]
        %v1369 = vld [vmem:[%s1367 + $0x4] sm:$0xf]
        %v1370 = vld [vmem:[%s1367 + $0x8] sm:$0xf]
        %v1371 = vld [vmem:[%s1367 + $0xc] sm:$0xf]
        %v1372 = vld [vmem:[%s1367 + $0x10] sm:$0xf]
        %v1373 = vld [vmem:[%s1367 + $0x14] sm:$0xf]
        %v1374 = vld [vmem:[%s1367 + $0x18] sm:$0xf]
        %v1375 = vld [vmem:[%s1367 + $0x1c] sm:$0xf]
        %vm1376 = vcmask 1046528
        %v1377 = vrot.slane %v515, 1
        %v1378 = vrot.slane %v516, 1
        %v1379 = vsel %vm1376, %v1377, %v1378
        %v1380 = vrot.slane %v517, 1
        %v1381 = vsel %vm1376, %v1378, %v1380
        %v1382 = vrot.slane %v518, 1
        %v1383 = vsel %vm1376, %v1380, %v1382
        %v1384 = vrot.slane %v519, 1
        %v1385 = vsel %vm1376, %v1382, %v1384
        %v1386 = vrot.slane %v520, 1
        %v1387 = vsel %vm1376, %v1384, %v1386
        %v1388 = vrot.slane %v521, 1
        %v1389 = vsel %vm1376, %v1386, %v1388
        %v1390 = vrot.slane %v522, 1
        %v1391 = vsel %vm1376, %v1388, %v1390
        %v1392 = vrot.slane %v523, 1
        %v1393 = vsel %vm1376, %v1390, %v1392
        %v1394 = vrot.slane %v524, 1
        %v1395 = vsel %vm1376, %v1392, %v1394
        %v1396 = vrot.slane %v525, 1
        %v1397 = vsel %vm1376, %v1394, %v1396
        %v1398 = vrot.slane %v526, 1
        %v1399 = vsel %vm1376, %v1396, %v1398
        %v1400 = vrot.slane %v527, 1
        %v1401 = vsel %vm1376, %v1398, %v1400
        %v1402 = vrot.slane %v528, 1
        %v1403 = vsel %vm1376, %v1400, %v1402
        %v1404 = vrot.slane %v529, 1
        %v1405 = vsel %vm1376, %v1402, %v1404
        %v1406 = vrot.slane %v530, 1
        %v1407 = vsel %vm1376, %v1404, %v1406
        %v1408 = vrot.slane %v531, 1
        %v1409 = vsel %vm1376, %v1406, %v1408
        %v1410 = vrot.slane %v532, 1
        %v1411 = vsel %vm1376, %v1408, %v1410
        %v1412 = vrot.slane %v533, 1
        %v1413 = vsel %vm1376, %v1410, %v1412
        %v1414 = vrot.slane %v534, 1
        %v1415 = vsel %vm1376, %v1412, %v1414
        %v1416 = vrot.slane %v535, 1
        %v1417 = vsel %vm1376, %v1414, %v1416
        %v1418 = vrot.slane %v536, 1
        %v1419 = vsel %vm1376, %v1416, %v1418
        %v1420 = vrot.slane %v537, 1
        %v1421 = vsel %vm1376, %v1418, %v1420
        %v1422 = vrot.slane %v538, 1
        %v1423 = vsel %vm1376, %v1420, %v1422
        %v1424 = vrot.slane %v824, 1
        %v1425 = vsel %vm1376, %v1422, %v1424
        %v1434 = vunpack.c.l.b16 %v1368
        %v1435 = vunpack.c.l.b16 %v1369
        %v1436 = vunpack.c.l.b16 %v1370
        %v1437 = vunpack.c.l.b16 %v1371
        %v1438 = vunpack.c.l.b16 %v1372
        %v1439 = vunpack.c.l.b16 %v1373
        %v1440 = vunpack.c.l.b16 %v1374
        %v1441 = vunpack.c.l.b16 %v1375
        %v1442 = vpack.c.b16 %v1435, %v1434
        %v1443 = vpack.c.b16 %v1437, %v1436
        %v1444 = vpack.c.b16 %v1439, %v1438
        %v1445 = vpack.c.b16 %v1441, %v1440
        %v1451 = vsel %vm563, %v1379, 0
        %v1454 = vsel %vm563, %v1381, 0
        %v1457 = vsel %vm563, %v1383, 0
        %v1460 = vsel %vm563, %v1385, 0
        %v1463 = vsel %vm563, %v1387, 0
        %v1466 = vsel %vm563, %v1389, 0
        %v1469 = vsel %vm563, %v1391, 0
        %v1472 = vsel %vm563, %v1393, 0
        %v1475 = vsel %vm563, %v1395, 0
        %v1478 = vsel %vm563, %v1397, 0
        %v1481 = vsel %vm563, %v1399, 0
        %v1484 = vsel %vm563, %v1401, 0
        %v1487 = vsel %vm563, %v1403, 0
        %v1490 = vsel %vm563, %v1405, 0
        %v1493 = vsel %vm563, %v1407, 0
        %v1496 = vsel %vm563, %v1409, 0
        %v1499 = vsel %vm563, %v1411, 0
        %v1502 = vsel %vm563, %v1413, 0
        %v1505 = vsel %vm563, %v1415, 0
        %v1508 = vsel %vm563, %v1417, 0
        %v1511 = vsel %vm563, %v1419, 0
        %v1514 = vsel %vm563, %v1421, 0
        %v1517 = vsel %vm563, %v1423, 0
        %v1520 = vsel %vm563, %v1425, 0
        %1522 = vmatpush.bf16.msra.mxu0 0
        %1523 = vmatpush.bf16.msra.mxu0 0
        %1524 = vmatpush.bf16.msra.mxu0 0
        %1525 = vmatpush.bf16.msra.mxu0 0
        %1526 = vmatpush.bf16.msra.mxu0 %v1445
        %1527 = vmatpush.bf16.msra.mxu0 %v1444
        %1528 = vmatpush.bf16.msra.mxu0 %v1443
        %1529 = vmatpush.bf16.msra.mxu0 %v1442
        %1530 = vmatmul.bf16.gmra.mxu0 %v1451
        %v1531 = vpop.f32.mrf.mxu0
        %v1532 = vadd.f32 0.0, %v1531
        %v1533 = vpop.f32.mrf.mxu0
        %v1534 = vadd.f32 0.0, %v1533
        %1535 = vmatmul.bf16.gmra.mxu0 %v1454
        %v1536 = vpop.f32.mrf.mxu0
        %v1537 = vadd.f32 0.0, %v1536
        %v1538 = vpop.f32.mrf.mxu0
        %v1539 = vadd.f32 0.0, %v1538
        %1540 = vmatmul.bf16.gmra.mxu0 %v1457
        %v1541 = vpop.f32.mrf.mxu0
        %v1542 = vadd.f32 0.0, %v1541
        %v1543 = vpop.f32.mrf.mxu0
        %v1544 = vadd.f32 0.0, %v1543
        %1545 = vmatmul.bf16.gmra.mxu0 %v1460
        %v1546 = vpop.f32.mrf.mxu0
        %v1547 = vadd.f32 0.0, %v1546
        %v1548 = vpop.f32.mrf.mxu0
        %v1549 = vadd.f32 0.0, %v1548
        %1550 = vmatmul.bf16.gmra.mxu0 %v1463
        %v1551 = vpop.f32.mrf.mxu0
        %v1552 = vadd.f32 0.0, %v1551
        %v1553 = vpop.f32.mrf.mxu0
        %v1554 = vadd.f32 0.0, %v1553
        %1555 = vmatmul.bf16.gmra.mxu0 %v1466
        %v1556 = vpop.f32.mrf.mxu0
        %v1557 = vadd.f32 0.0, %v1556
        %v1558 = vpop.f32.mrf.mxu0
        %v1559 = vadd.f32 0.0, %v1558
        %1560 = vmatmul.bf16.gmra.mxu0 %v1469
        %v1561 = vpop.f32.mrf.mxu0
        %v1562 = vadd.f32 0.0, %v1561
        %v1563 = vpop.f32.mrf.mxu0
        %v1564 = vadd.f32 0.0, %v1563
        %1565 = vmatmul.bf16.gmra.mxu0 %v1472
        %v1566 = vpop.f32.mrf.mxu0
        %v1567 = vadd.f32 0.0, %v1566
        %v1568 = vpop.f32.mrf.mxu0
        %v1569 = vadd.f32 0.0, %v1568
        %1570 = vmatmul.bf16.gmra.mxu0 %v1475
        %v1571 = vpop.f32.mrf.mxu0
        %v1572 = vadd.f32 0.0, %v1571
        %v1573 = vpop.f32.mrf.mxu0
        %v1574 = vadd.f32 0.0, %v1573
        %1575 = vmatmul.bf16.gmra.mxu0 %v1478
        %v1576 = vpop.f32.mrf.mxu0
        %v1577 = vadd.f32 0.0, %v1576
        %v1578 = vpop.f32.mrf.mxu0
        %v1579 = vadd.f32 0.0, %v1578
        %1580 = vmatmul.bf16.gmra.mxu0 %v1481
        %v1581 = vpop.f32.mrf.mxu0
        %v1582 = vadd.f32 0.0, %v1581
        %v1583 = vpop.f32.mrf.mxu0
        %v1584 = vadd.f32 0.0, %v1583
        %1585 = vmatmul.bf16.gmra.mxu0 %v1484
        %v1586 = vpop.f32.mrf.mxu0
        %v1587 = vadd.f32 0.0, %v1586
        %v1588 = vpop.f32.mrf.mxu0
        %v1589 = vadd.f32 0.0, %v1588
        %1590 = vmatmul.bf16.gmra.mxu0 %v1487
        %v1591 = vpop.f32.mrf.mxu0
        %v1592 = vadd.f32 0.0, %v1591
        %v1593 = vpop.f32.mrf.mxu0
        %v1594 = vadd.f32 0.0, %v1593
        %1595 = vmatmul.bf16.gmra.mxu0 %v1490
        %v1596 = vpop.f32.mrf.mxu0
        %v1597 = vadd.f32 0.0, %v1596
        %v1598 = vpop.f32.mrf.mxu0
        %v1599 = vadd.f32 0.0, %v1598
        %1600 = vmatmul.bf16.gmra.mxu0 %v1493
        %v1601 = vpop.f32.mrf.mxu0
        %v1602 = vadd.f32 0.0, %v1601
        %v1603 = vpop.f32.mrf.mxu0
        %v1604 = vadd.f32 0.0, %v1603
        %1605 = vmatmul.bf16.gmra.mxu0 %v1496
        %v1606 = vpop.f32.mrf.mxu0
        %v1607 = vadd.f32 0.0, %v1606
        %v1608 = vpop.f32.mrf.mxu0
        %v1609 = vadd.f32 0.0, %v1608
        %1610 = vmatmul.bf16.gmra.mxu0 %v1499
        %v1611 = vpop.f32.mrf.mxu0
        %v1612 = vadd.f32 0.0, %v1611
        %v1613 = vpop.f32.mrf.mxu0
        %v1614 = vadd.f32 0.0, %v1613
        %1615 = vmatmul.bf16.gmra.mxu0 %v1502
        %v1616 = vpop.f32.mrf.mxu0
        %v1617 = vadd.f32 0.0, %v1616
        %v1618 = vpop.f32.mrf.mxu0
        %v1619 = vadd.f32 0.0, %v1618
        %1620 = vmatmul.bf16.gmra.mxu0 %v1505
        %v1621 = vpop.f32.mrf.mxu0
        %v1622 = vadd.f32 0.0, %v1621
        %v1623 = vpop.f32.mrf.mxu0
        %v1624 = vadd.f32 0.0, %v1623
        %1625 = vmatmul.bf16.gmra.mxu0 %v1508
        %v1626 = vpop.f32.mrf.mxu0
        %v1627 = vadd.f32 0.0, %v1626
        %v1628 = vpop.f32.mrf.mxu0
        %v1629 = vadd.f32 0.0, %v1628
        %1630 = vmatmul.bf16.gmra.mxu0 %v1511
        %v1631 = vpop.f32.mrf.mxu0
        %v1632 = vadd.f32 0.0, %v1631
        %v1633 = vpop.f32.mrf.mxu0
        %v1634 = vadd.f32 0.0, %v1633
        %1635 = vmatmul.bf16.gmra.mxu0 %v1514
        %v1636 = vpop.f32.mrf.mxu0
        %v1637 = vadd.f32 0.0, %v1636
        %v1638 = vpop.f32.mrf.mxu0
        %v1639 = vadd.f32 0.0, %v1638
        %1640 = vmatmul.bf16.gmra.mxu0 %v1517
        %v1641 = vpop.f32.mrf.mxu0
        %v1642 = vadd.f32 0.0, %v1641
        %v1643 = vpop.f32.mrf.mxu0
        %v1644 = vadd.f32 0.0, %v1643
        %1645 = vmatmul.bf16.gmra.mxu0 %v1520
        %v1646 = vpop.f32.mrf.mxu0
        %v1647 = vadd.f32 0.0, %v1646
        %v1648 = vpop.f32.mrf.mxu0
        %v1649 = vadd.f32 0.0, %v1648
        %1650 = vdwg.mxu0
        %v1651 = vld [vmem:[#allocation2] sm:$0xff]
        %v1652 = vld [vmem:[#allocation2 + $0x8] sm:$0xff]
        %v1653 = vld [vmem:[#allocation2 + $0x10] sm:$0xff]
        %v1654 = vld [vmem:[#allocation2 + $0x18] sm:$0xff]
        %v1655 = vld [vmem:[#allocation2 + $0x20] sm:$0xff]
        %v1656 = vld [vmem:[#allocation2 + $0x28] sm:$0xff]
        %v1657 = vld [vmem:[#allocation2 + $0x30] sm:$0xff]
        %v1658 = vld [vmem:[#allocation2 + $0x38] sm:$0xff]
        %v1659 = vld [vmem:[#allocation2 + $0x40] sm:$0xff]
        %v1660 = vld [vmem:[#allocation2 + $0x48] sm:$0xff]
        %v1661 = vld [vmem:[#allocation2 + $0x50] sm:$0xff]
        %v1662 = vld [vmem:[#allocation2 + $0x58] sm:$0xff]
        %v1663 = vld [vmem:[#allocation2 + $0x60] sm:$0xff]
        %v1664 = vld [vmem:[#allocation2 + $0x68] sm:$0xff]
        %v1665 = vld [vmem:[#allocation2 + $0x70] sm:$0xff]
        %v1666 = vld [vmem:[#allocation2 + $0x78] sm:$0xff]
        %v1667 = vld [vmem:[#allocation2 + $0x80] sm:$0xff]
        %v1668 = vld [vmem:[#allocation2 + $0x88] sm:$0xff]
        %v1669 = vld [vmem:[#allocation2 + $0x90] sm:$0xff]
        %v1670 = vld [vmem:[#allocation2 + $0x98] sm:$0xff]
        %v1671 = vld [vmem:[#allocation2 + $0xa0] sm:$0xff]
        %v1672 = vld [vmem:[#allocation2 + $0xa8] sm:$0xff]
        %v1673 = vld [vmem:[#allocation2 + $0xb0] sm:$0xff]
        %v1674 = vld [vmem:[#allocation2 + $0xb8] sm:$0xff]
        %v1675 = vld [vmem:[#allocation2 + $0xc0] sm:$0xff]
        %v1676 = vld [vmem:[#allocation2 + $0xc8] sm:$0xff]
        %v1677 = vld [vmem:[#allocation2 + $0xd0] sm:$0xff]
        %v1678 = vld [vmem:[#allocation2 + $0xd8] sm:$0xff]
        %v1679 = vld [vmem:[#allocation2 + $0xe0] sm:$0xff]
        %v1680 = vld [vmem:[#allocation2 + $0xe8] sm:$0xff]
        %v1681 = vld [vmem:[#allocation2 + $0xf0] sm:$0xff]
        %v1682 = vld [vmem:[#allocation2 + $0xf8] sm:$0xff]
        %v1683 = vld [vmem:[#allocation2 + $0x100] sm:$0xff]
        %v1684 = vld [vmem:[#allocation2 + $0x108] sm:$0xff]
        %v1685 = vld [vmem:[#allocation2 + $0x110] sm:$0xff]
        %v1686 = vld [vmem:[#allocation2 + $0x118] sm:$0xff]
        %v1687 = vld [vmem:[#allocation2 + $0x120] sm:$0xff]
        %v1688 = vld [vmem:[#allocation2 + $0x128] sm:$0xff]
        %v1689 = vld [vmem:[#allocation2 + $0x130] sm:$0xff]
        %v1690 = vld [vmem:[#allocation2 + $0x138] sm:$0xff]
        %v1691 = vld [vmem:[#allocation2 + $0x140] sm:$0xff]
        %v1692 = vld [vmem:[#allocation2 + $0x148] sm:$0xff]
        %v1693 = vld [vmem:[#allocation2 + $0x150] sm:$0xff]
        %v1694 = vld [vmem:[#allocation2 + $0x158] sm:$0xff]
        %v1695 = vld [vmem:[#allocation2 + $0x160] sm:$0xff]
        %v1696 = vld [vmem:[#allocation2 + $0x168] sm:$0xff]
        %v1697 = vld [vmem:[#allocation2 + $0x170] sm:$0xff]
        %v1698 = vld [vmem:[#allocation2 + $0x178] sm:$0xff]
        %v1699 = vadd.f32 %v1651, %v1532
        %v1700 = vadd.f32 %v1652, %v1534
        %v1701 = vadd.f32 %v1653, %v1537
        %v1702 = vadd.f32 %v1654, %v1539
        %v1703 = vadd.f32 %v1655, %v1542
        %v1704 = vadd.f32 %v1656, %v1544
        %v1705 = vadd.f32 %v1657, %v1547
        %v1706 = vadd.f32 %v1658, %v1549
        %v1707 = vadd.f32 %v1659, %v1552
        %v1708 = vadd.f32 %v1660, %v1554
        %v1709 = vadd.f32 %v1661, %v1557
        %v1710 = vadd.f32 %v1662, %v1559
        %v1711 = vadd.f32 %v1663, %v1562
        %v1712 = vadd.f32 %v1664, %v1564
        %v1713 = vadd.f32 %v1665, %v1567
        %v1714 = vadd.f32 %v1666, %v1569
        %v1715 = vadd.f32 %v1667, %v1572
        %v1716 = vadd.f32 %v1668, %v1574
        %v1717 = vadd.f32 %v1669, %v1577
        %v1718 = vadd.f32 %v1670, %v1579
        %v1719 = vadd.f32 %v1671, %v1582
        %v1720 = vadd.f32 %v1672, %v1584
        %v1721 = vadd.f32 %v1673, %v1587
        %v1722 = vadd.f32 %v1674, %v1589
        %v1723 = vadd.f32 %v1675, %v1592
        %v1724 = vadd.f32 %v1676, %v1594
        %v1725 = vadd.f32 %v1677, %v1597
        %v1726 = vadd.f32 %v1678, %v1599
        %v1727 = vadd.f32 %v1679, %v1602
        %v1728 = vadd.f32 %v1680, %v1604
        %v1729 = vadd.f32 %v1681, %v1607
        %v1730 = vadd.f32 %v1682, %v1609
        %v1731 = vadd.f32 %v1683, %v1612
        %v1732 = vadd.f32 %v1684, %v1614
        %v1733 = vadd.f32 %v1685, %v1617
        %v1734 = vadd.f32 %v1686, %v1619
        %v1735 = vadd.f32 %v1687, %v1622
        %v1736 = vadd.f32 %v1688, %v1624
        %v1737 = vadd.f32 %v1689, %v1627
        %v1738 = vadd.f32 %v1690, %v1629
        %v1739 = vadd.f32 %v1691, %v1632
        %v1740 = vadd.f32 %v1692, %v1634
        %v1741 = vadd.f32 %v1693, %v1637
        %v1742 = vadd.f32 %v1694, %v1639
        %v1743 = vadd.f32 %v1695, %v1642
        %v1744 = vadd.f32 %v1696, %v1644
        %v1745 = vadd.f32 %v1697, %v1647
        %v1746 = vadd.f32 %v1698, %v1649
        %1747 = vst [vmem:[#allocation2] sm:$0xff] %v1699
        %1748 = vst [vmem:[#allocation2 + $0x8] sm:$0xff] %v1700
        %1749 = vst [vmem:[#allocation2 + $0x10] sm:$0xff] %v1701
        %1750 = vst [vmem:[#allocation2 + $0x18] sm:$0xff] %v1702
        %1751 = vst [vmem:[#allocation2 + $0x20] sm:$0xff] %v1703
        %1752 = vst [vmem:[#allocation2 + $0x28] sm:$0xff] %v1704
        %1753 = vst [vmem:[#allocation2 + $0x30] sm:$0xff] %v1705
        %1754 = vst [vmem:[#allocation2 + $0x38] sm:$0xff] %v1706
        %1755 = vst [vmem:[#allocation2 + $0x40] sm:$0xff] %v1707
        %1756 = vst [vmem:[#allocation2 + $0x48] sm:$0xff] %v1708
        %1757 = vst [vmem:[#allocation2 + $0x50] sm:$0xff] %v1709
        %1758 = vst [vmem:[#allocation2 + $0x58] sm:$0xff] %v1710
        %1759 = vst [vmem:[#allocation2 + $0x60] sm:$0xff] %v1711
        %1760 = vst [vmem:[#allocation2 + $0x68] sm:$0xff] %v1712
        %1761 = vst [vmem:[#allocation2 + $0x70] sm:$0xff] %v1713
        %1762 = vst [vmem:[#allocation2 + $0x78] sm:$0xff] %v1714
        %1763 = vst [vmem:[#allocation2 + $0x80] sm:$0xff] %v1715
        %1764 = vst [vmem:[#allocation2 + $0x88] sm:$0xff] %v1716
        %1765 = vst [vmem:[#allocation2 + $0x90] sm:$0xff] %v1717
        %1766 = vst [vmem:[#allocation2 + $0x98] sm:$0xff] %v1718
        %1767 = vst [vmem:[#allocation2 + $0xa0] sm:$0xff] %v1719
        %1768 = vst [vmem:[#allocation2 + $0xa8] sm:$0xff] %v1720
        %1769 = vst [vmem:[#allocation2 + $0xb0] sm:$0xff] %v1721
        %1770 = vst [vmem:[#allocation2 + $0xb8] sm:$0xff] %v1722
        %1771 = vst [vmem:[#allocation2 + $0xc0] sm:$0xff] %v1723
        %1772 = vst [vmem:[#allocation2 + $0xc8] sm:$0xff] %v1724
        %1773 = vst [vmem:[#allocation2 + $0xd0] sm:$0xff] %v1725
        %1774 = vst [vmem:[#allocation2 + $0xd8] sm:$0xff] %v1726
        %1775 = vst [vmem:[#allocation2 + $0xe0] sm:$0xff] %v1727
        %1776 = vst [vmem:[#allocation2 + $0xe8] sm:$0xff] %v1728
        %1777 = vst [vmem:[#allocation2 + $0xf0] sm:$0xff] %v1729
        %1778 = vst [vmem:[#allocation2 + $0xf8] sm:$0xff] %v1730
        %1779 = vst [vmem:[#allocation2 + $0x100] sm:$0xff] %v1731
        %1780 = vst [vmem:[#allocation2 + $0x108] sm:$0xff] %v1732
        %1781 = vst [vmem:[#allocation2 + $0x110] sm:$0xff] %v1733
        %1782 = vst [vmem:[#allocation2 + $0x118] sm:$0xff] %v1734
        %1783 = vst [vmem:[#allocation2 + $0x120] sm:$0xff] %v1735
        %1784 = vst [vmem:[#allocation2 + $0x128] sm:$0xff] %v1736
        %1785 = vst [vmem:[#allocation2 + $0x130] sm:$0xff] %v1737
        %1786 = vst [vmem:[#allocation2 + $0x138] sm:$0xff] %v1738
        %1787 = vst [vmem:[#allocation2 + $0x140] sm:$0xff] %v1739
        %1788 = vst [vmem:[#allocation2 + $0x148] sm:$0xff] %v1740
        %1789 = vst [vmem:[#allocation2 + $0x150] sm:$0xff] %v1741
        %1790 = vst [vmem:[#allocation2 + $0x158] sm:$0xff] %v1742
        %1791 = vst [vmem:[#allocation2 + $0x160] sm:$0xff] %v1743
        %1792 = vst [vmem:[#allocation2 + $0x168] sm:$0xff] %v1744
        %1793 = vst [vmem:[#allocation2 + $0x170] sm:$0xff] %v1745
        %1794 = vst [vmem:[#allocation2 + $0x178] sm:$0xff] %v1746
        %s1795 = scalar_lea.vmem [#allocation7], 96
        %v1796 = vld [vmem:[%s1795] sm:$0xf]
        %v1797 = vld [vmem:[%s1795 + $0x4] sm:$0xf]
        %v1798 = vld [vmem:[%s1795 + $0x8] sm:$0xf]
        %v1799 = vld [vmem:[%s1795 + $0xc] sm:$0xf]
        %v1800 = vld [vmem:[%s1795 + $0x10] sm:$0xf]
        %v1801 = vld [vmem:[%s1795 + $0x14] sm:$0xf]
        %v1802 = vld [vmem:[%s1795 + $0x18] sm:$0xf]
        %v1803 = vld [vmem:[%s1795 + $0x1c] sm:$0xf]
        %v1806 = vunpack.c.l.b16 %v405
        %v1807 = vunpack.c.l.b16 %v406
        %v1808 = vpack.c.b16 %v471, %v470
        %v1809 = vpack.c.b16 %v473, %v472
        %v1810 = vpack.c.b16 %v475, %v474
        %v1811 = vpack.c.b16 %v477, %v476
        %v1812 = vpack.c.b16 %v479, %v478
        %v1813 = vpack.c.b16 %v481, %v480
        %v1814 = vpack.c.b16 %v483, %v482
        %v1815 = vpack.c.b16 %v485, %v484
        %v1816 = vpack.c.b16 %v487, %v486
        %v1817 = vpack.c.b16 %v489, %v488
        %v1818 = vpack.c.b16 %v491, %v490
        %v1819 = vpack.c.b16 %v493, %v492
        %v1820 = vpack.c.b16 %v495, %v494
        %v1821 = vpack.c.b16 %v497, %v496
        %v1822 = vpack.c.b16 %v499, %v498
        %v1823 = vpack.c.b16 %v501, %v500
        %v1824 = vpack.c.b16 %v503, %v502
        %v1825 = vpack.c.b16 %v505, %v504
        %v1826 = vpack.c.b16 %v507, %v506
        %v1827 = vpack.c.b16 %v509, %v508
        %v1828 = vpack.c.b16 %v511, %v510
        %v1829 = vpack.c.b16 %v513, %v512
        %v1830 = vpack.c.b16 %v823, %v514
        %v1831 = vpack.c.b16 %v1807, %v1806
        %v1840 = vunpack.c.l.b16 %v1796
        %v1841 = vunpack.c.l.b16 %v1797
        %v1842 = vunpack.c.l.b16 %v1798
        %v1843 = vunpack.c.l.b16 %v1799
        %v1844 = vunpack.c.l.b16 %v1800
        %v1845 = vunpack.c.l.b16 %v1801
        %v1846 = vunpack.c.l.b16 %v1802
        %v1847 = vunpack.c.l.b16 %v1803
        %v1848 = vpack.c.b16 %v1841, %v1840
        %v1849 = vpack.c.b16 %v1843, %v1842
        %v1850 = vpack.c.b16 %v1845, %v1844
        %v1851 = vpack.c.b16 %v1847, %v1846
        %v1857 = vsel %vm563, %v1808, 0
        %v1860 = vsel %vm563, %v1809, 0
        %v1863 = vsel %vm563, %v1810, 0
        %v1866 = vsel %vm563, %v1811, 0
        %v1869 = vsel %vm563, %v1812, 0
        %v1872 = vsel %vm563, %v1813, 0
        %v1875 = vsel %vm563, %v1814, 0
        %v1878 = vsel %vm563, %v1815, 0
        %v1881 = vsel %vm563, %v1816, 0
        %v1884 = vsel %vm563, %v1817, 0
        %v1887 = vsel %vm563, %v1818, 0
        %v1890 = vsel %vm563, %v1819, 0
        %v1893 = vsel %vm563, %v1820, 0
        %v1896 = vsel %vm563, %v1821, 0
        %v1899 = vsel %vm563, %v1822, 0
        %v1902 = vsel %vm563, %v1823, 0
        %v1905 = vsel %vm563, %v1824, 0
        %v1908 = vsel %vm563, %v1825, 0
        %v1911 = vsel %vm563, %v1826, 0
        %v1914 = vsel %vm563, %v1827, 0
        %v1917 = vsel %vm563, %v1828, 0
        %v1920 = vsel %vm563, %v1829, 0
        %v1923 = vsel %vm563, %v1830, 0
        %v1926 = vsel %vm563, %v1831, 0
        %1928 = vmatpush.bf16.msra.mxu0 0
        %1929 = vmatpush.bf16.msra.mxu0 0
        %1930 = vmatpush.bf16.msra.mxu0 0
        %1931 = vmatpush.bf16.msra.mxu0 0
        %1932 = vmatpush.bf16.msra.mxu0 %v1851
        %1933 = vmatpush.bf16.msra.mxu0 %v1850
        %1934 = vmatpush.bf16.msra.mxu0 %v1849
        %1935 = vmatpush.bf16.msra.mxu0 %v1848
        %1936 = vmatmul.bf16.gmra.mxu0 %v1857
        %v1937 = vpop.f32.mrf.mxu0
        %v1938 = vadd.f32 0.0, %v1937
        %v1939 = vpop.f32.mrf.mxu0
        %v1940 = vadd.f32 0.0, %v1939
        %1941 = vmatmul.bf16.gmra.mxu0 %v1860
        %v1942 = vpop.f32.mrf.mxu0
        %v1943 = vadd.f32 0.0, %v1942
        %v1944 = vpop.f32.mrf.mxu0
        %v1945 = vadd.f32 0.0, %v1944
        %1946 = vmatmul.bf16.gmra.mxu0 %v1863
        %v1947 = vpop.f32.mrf.mxu0
        %v1948 = vadd.f32 0.0, %v1947
        %v1949 = vpop.f32.mrf.mxu0
        %v1950 = vadd.f32 0.0, %v1949
        %1951 = vmatmul.bf16.gmra.mxu0 %v1866
        %v1952 = vpop.f32.mrf.mxu0
        %v1953 = vadd.f32 0.0, %v1952
        %v1954 = vpop.f32.mrf.mxu0
        %v1955 = vadd.f32 0.0, %v1954
        %1956 = vmatmul.bf16.gmra.mxu0 %v1869
        %v1957 = vpop.f32.mrf.mxu0
        %v1958 = vadd.f32 0.0, %v1957
        %v1959 = vpop.f32.mrf.mxu0
        %v1960 = vadd.f32 0.0, %v1959
        %1961 = vmatmul.bf16.gmra.mxu0 %v1872
        %v1962 = vpop.f32.mrf.mxu0
        %v1963 = vadd.f32 0.0, %v1962
        %v1964 = vpop.f32.mrf.mxu0
        %v1965 = vadd.f32 0.0, %v1964
        %1966 = vmatmul.bf16.gmra.mxu0 %v1875
        %v1967 = vpop.f32.mrf.mxu0
        %v1968 = vadd.f32 0.0, %v1967
        %v1969 = vpop.f32.mrf.mxu0
        %v1970 = vadd.f32 0.0, %v1969
        %1971 = vmatmul.bf16.gmra.mxu0 %v1878
        %v1972 = vpop.f32.mrf.mxu0
        %v1973 = vadd.f32 0.0, %v1972
        %v1974 = vpop.f32.mrf.mxu0
        %v1975 = vadd.f32 0.0, %v1974
        %1976 = vmatmul.bf16.gmra.mxu0 %v1881
        %v1977 = vpop.f32.mrf.mxu0
        %v1978 = vadd.f32 0.0, %v1977
        %v1979 = vpop.f32.mrf.mxu0
        %v1980 = vadd.f32 0.0, %v1979
        %1981 = vmatmul.bf16.gmra.mxu0 %v1884
        %v1982 = vpop.f32.mrf.mxu0
        %v1983 = vadd.f32 0.0, %v1982
        %v1984 = vpop.f32.mrf.mxu0
        %v1985 = vadd.f32 0.0, %v1984
        %1986 = vmatmul.bf16.gmra.mxu0 %v1887
        %v1987 = vpop.f32.mrf.mxu0
        %v1988 = vadd.f32 0.0, %v1987
        %v1989 = vpop.f32.mrf.mxu0
        %v1990 = vadd.f32 0.0, %v1989
        %1991 = vmatmul.bf16.gmra.mxu0 %v1890
        %v1992 = vpop.f32.mrf.mxu0
        %v1993 = vadd.f32 0.0, %v1992
        %v1994 = vpop.f32.mrf.mxu0
        %v1995 = vadd.f32 0.0, %v1994
        %1996 = vmatmul.bf16.gmra.mxu0 %v1893
        %v1997 = vpop.f32.mrf.mxu0
        %v1998 = vadd.f32 0.0, %v1997
        %v1999 = vpop.f32.mrf.mxu0
        %v2000 = vadd.f32 0.0, %v1999
        %2001 = vmatmul.bf16.gmra.mxu0 %v1896
        %v2002 = vpop.f32.mrf.mxu0
        %v2003 = vadd.f32 0.0, %v2002
        %v2004 = vpop.f32.mrf.mxu0
        %v2005 = vadd.f32 0.0, %v2004
        %2006 = vmatmul.bf16.gmra.mxu0 %v1899
        %v2007 = vpop.f32.mrf.mxu0
        %v2008 = vadd.f32 0.0, %v2007
        %v2009 = vpop.f32.mrf.mxu0
        %v2010 = vadd.f32 0.0, %v2009
        %2011 = vmatmul.bf16.gmra.mxu0 %v1902
        %v2012 = vpop.f32.mrf.mxu0
        %v2013 = vadd.f32 0.0, %v2012
        %v2014 = vpop.f32.mrf.mxu0
        %v2015 = vadd.f32 0.0, %v2014
        %2016 = vmatmul.bf16.gmra.mxu0 %v1905
        %v2017 = vpop.f32.mrf.mxu0
        %v2018 = vadd.f32 0.0, %v2017
        %v2019 = vpop.f32.mrf.mxu0
        %v2020 = vadd.f32 0.0, %v2019
        %2021 = vmatmul.bf16.gmra.mxu0 %v1908
        %v2022 = vpop.f32.mrf.mxu0
        %v2023 = vadd.f32 0.0, %v2022
        %v2024 = vpop.f32.mrf.mxu0
        %v2025 = vadd.f32 0.0, %v2024
        %2026 = vmatmul.bf16.gmra.mxu0 %v1911
        %v2027 = vpop.f32.mrf.mxu0
        %v2028 = vadd.f32 0.0, %v2027
        %v2029 = vpop.f32.mrf.mxu0
        %v2030 = vadd.f32 0.0, %v2029
        %2031 = vmatmul.bf16.gmra.mxu0 %v1914
        %v2032 = vpop.f32.mrf.mxu0
        %v2033 = vadd.f32 0.0, %v2032
        %v2034 = vpop.f32.mrf.mxu0
        %v2035 = vadd.f32 0.0, %v2034
        %2036 = vmatmul.bf16.gmra.mxu0 %v1917
        %v2037 = vpop.f32.mrf.mxu0
        %v2038 = vadd.f32 0.0, %v2037
        %v2039 = vpop.f32.mrf.mxu0
        %v2040 = vadd.f32 0.0, %v2039
        %2041 = vmatmul.bf16.gmra.mxu0 %v1920
        %v2042 = vpop.f32.mrf.mxu0
        %v2043 = vadd.f32 0.0, %v2042
        %v2044 = vpop.f32.mrf.mxu0
        %v2045 = vadd.f32 0.0, %v2044
        %2046 = vmatmul.bf16.gmra.mxu0 %v1923
        %v2047 = vpop.f32.mrf.mxu0
        %v2048 = vadd.f32 0.0, %v2047
        %v2049 = vpop.f32.mrf.mxu0
        %v2050 = vadd.f32 0.0, %v2049
        %2051 = vmatmul.bf16.gmra.mxu0 %v1926
        %v2052 = vpop.f32.mrf.mxu0
        %v2053 = vadd.f32 0.0, %v2052
        %v2054 = vpop.f32.mrf.mxu0
        %v2055 = vadd.f32 0.0, %v2054
        %2056 = vdwg.mxu0
        %v2057 = vld [vmem:[#allocation2] sm:$0xff]
        %v2058 = vld [vmem:[#allocation2 + $0x8] sm:$0xff]
        %v2059 = vld [vmem:[#allocation2 + $0x10] sm:$0xff]
        %v2060 = vld [vmem:[#allocation2 + $0x18] sm:$0xff]
        %v2061 = vld [vmem:[#allocation2 + $0x20] sm:$0xff]
        %v2062 = vld [vmem:[#allocation2 + $0x28] sm:$0xff]
        %v2063 = vld [vmem:[#allocation2 + $0x30] sm:$0xff]
        %v2064 = vld [vmem:[#allocation2 + $0x38] sm:$0xff]
        %v2065 = vld [vmem:[#allocation2 + $0x40] sm:$0xff]
        %v2066 = vld [vmem:[#allocation2 + $0x48] sm:$0xff]
        %v2067 = vld [vmem:[#allocation2 + $0x50] sm:$0xff]
        %v2068 = vld [vmem:[#allocation2 + $0x58] sm:$0xff]
        %v2069 = vld [vmem:[#allocation2 + $0x60] sm:$0xff]
        %v2070 = vld [vmem:[#allocation2 + $0x68] sm:$0xff]
        %v2071 = vld [vmem:[#allocation2 + $0x70] sm:$0xff]
        %v2072 = vld [vmem:[#allocation2 + $0x78] sm:$0xff]
        %v2073 = vld [vmem:[#allocation2 + $0x80] sm:$0xff]
        %v2074 = vld [vmem:[#allocation2 + $0x88] sm:$0xff]
        %v2075 = vld [vmem:[#allocation2 + $0x90] sm:$0xff]
        %v2076 = vld [vmem:[#allocation2 + $0x98] sm:$0xff]
        %v2077 = vld [vmem:[#allocation2 + $0xa0] sm:$0xff]
        %v2078 = vld [vmem:[#allocation2 + $0xa8] sm:$0xff]
        %v2079 = vld [vmem:[#allocation2 + $0xb0] sm:$0xff]
        %v2080 = vld [vmem:[#allocation2 + $0xb8] sm:$0xff]
        %v2081 = vld [vmem:[#allocation2 + $0xc0] sm:$0xff]
        %v2082 = vld [vmem:[#allocation2 + $0xc8] sm:$0xff]
        %v2083 = vld [vmem:[#allocation2 + $0xd0] sm:$0xff]
        %v2084 = vld [vmem:[#allocation2 + $0xd8] sm:$0xff]
        %v2085 = vld [vmem:[#allocation2 + $0xe0] sm:$0xff]
        %v2086 = vld [vmem:[#allocation2 + $0xe8] sm:$0xff]
        %v2087 = vld [vmem:[#allocation2 + $0xf0] sm:$0xff]
        %v2088 = vld [vmem:[#allocation2 + $0xf8] sm:$0xff]
        %v2089 = vld [vmem:[#allocation2 + $0x100] sm:$0xff]
        %v2090 = vld [vmem:[#allocation2 + $0x108] sm:$0xff]
        %v2091 = vld [vmem:[#allocation2 + $0x110] sm:$0xff]
        %v2092 = vld [vmem:[#allocation2 + $0x118] sm:$0xff]
        %v2093 = vld [vmem:[#allocation2 + $0x120] sm:$0xff]
        %v2094 = vld [vmem:[#allocation2 + $0x128] sm:$0xff]
        %v2095 = vld [vmem:[#allocation2 + $0x130] sm:$0xff]
        %v2096 = vld [vmem:[#allocation2 + $0x138] sm:$0xff]
        %v2097 = vld [vmem:[#allocation2 + $0x140] sm:$0xff]
        %v2098 = vld [vmem:[#allocation2 + $0x148] sm:$0xff]
        %v2099 = vld [vmem:[#allocation2 + $0x150] sm:$0xff]
        %v2100 = vld [vmem:[#allocation2 + $0x158] sm:$0xff]
        %v2101 = vld [vmem:[#allocation2 + $0x160] sm:$0xff]
        %v2102 = vld [vmem:[#allocation2 + $0x168] sm:$0xff]
        %v2103 = vld [vmem:[#allocation2 + $0x170] sm:$0xff]
        %v2104 = vld [vmem:[#allocation2 + $0x178] sm:$0xff]
        %v2105 = vadd.f32 %v2057, %v1938
        %v2106 = vadd.f32 %v2058, %v1940
        %v2107 = vadd.f32 %v2059, %v1943
        %v2108 = vadd.f32 %v2060, %v1945
        %v2109 = vadd.f32 %v2061, %v1948
        %v2110 = vadd.f32 %v2062, %v1950
        %v2111 = vadd.f32 %v2063, %v1953
        %v2112 = vadd.f32 %v2064, %v1955
        %v2113 = vadd.f32 %v2065, %v1958
        %v2114 = vadd.f32 %v2066, %v1960
        %v2115 = vadd.f32 %v2067, %v1963
        %v2116 = vadd.f32 %v2068, %v1965
        %v2117 = vadd.f32 %v2069, %v1968
        %v2118 = vadd.f32 %v2070, %v1970
        %v2119 = vadd.f32 %v2071, %v1973
        %v2120 = vadd.f32 %v2072, %v1975
        %v2121 = vadd.f32 %v2073, %v1978
        %v2122 = vadd.f32 %v2074, %v1980
        %v2123 = vadd.f32 %v2075, %v1983
        %v2124 = vadd.f32 %v2076, %v1985
        %v2125 = vadd.f32 %v2077, %v1988
        %v2126 = vadd.f32 %v2078, %v1990
        %v2127 = vadd.f32 %v2079, %v1993
        %v2128 = vadd.f32 %v2080, %v1995
        %v2129 = vadd.f32 %v2081, %v1998
        %v2130 = vadd.f32 %v2082, %v2000
        %v2131 = vadd.f32 %v2083, %v2003
        %v2132 = vadd.f32 %v2084, %v2005
        %v2133 = vadd.f32 %v2085, %v2008
        %v2134 = vadd.f32 %v2086, %v2010
        %v2135 = vadd.f32 %v2087, %v2013
        %v2136 = vadd.f32 %v2088, %v2015
        %v2137 = vadd.f32 %v2089, %v2018
        %v2138 = vadd.f32 %v2090, %v2020
        %v2139 = vadd.f32 %v2091, %v2023
        %v2140 = vadd.f32 %v2092, %v2025
        %v2141 = vadd.f32 %v2093, %v2028
        %v2142 = vadd.f32 %v2094, %v2030
        %v2143 = vadd.f32 %v2095, %v2033
        %v2144 = vadd.f32 %v2096, %v2035
        %v2145 = vadd.f32 %v2097, %v2038
        %v2146 = vadd.f32 %v2098, %v2040
        %v2147 = vadd.f32 %v2099, %v2043
        %v2148 = vadd.f32 %v2100, %v2045
        %v2149 = vadd.f32 %v2101, %v2048
        %v2150 = vadd.f32 %v2102, %v2050
        %v2151 = vadd.f32 %v2103, %v2053
        %v2152 = vadd.f32 %v2104, %v2055
        %2153 = vst [vmem:[#allocation2] sm:$0xff] %v2105
        %2154 = vst [vmem:[#allocation2 + $0x8] sm:$0xff] %v2106
        %2155 = vst [vmem:[#allocation2 + $0x10] sm:$0xff] %v2107
        %2156 = vst [vmem:[#allocation2 + $0x18] sm:$0xff] %v2108
        %2157 = vst [vmem:[#allocation2 + $0x20] sm:$0xff] %v2109
        %2158 = vst [vmem:[#allocation2 + $0x28] sm:$0xff] %v2110
        %2159 = vst [vmem:[#allocation2 + $0x30] sm:$0xff] %v2111
        %2160 = vst [vmem:[#allocation2 + $0x38] sm:$0xff] %v2112
        %2161 = vst [vmem:[#allocation2 + $0x40] sm:$0xff] %v2113
        %2162 = vst [vmem:[#allocation2 + $0x48] sm:$0xff] %v2114
        %2163 = vst [vmem:[#allocation2 + $0x50] sm:$0xff] %v2115
        %2164 = vst [vmem:[#allocation2 + $0x58] sm:$0xff] %v2116
        %2165 = vst [vmem:[#allocation2 + $0x60] sm:$0xff] %v2117
        %2166 = vst [vmem:[#allocation2 + $0x68] sm:$0xff] %v2118
        %2167 = vst [vmem:[#allocation2 + $0x70] sm:$0xff] %v2119
        %2168 = vst [vmem:[#allocation2 + $0x78] sm:$0xff] %v2120
        %2169 = vst [vmem:[#allocation2 + $0x80] sm:$0xff] %v2121
        %2170 = vst [vmem:[#allocation2 + $0x88] sm:$0xff] %v2122
        %2171 = vst [vmem:[#allocation2 + $0x90] sm:$0xff] %v2123
        %2172 = vst [vmem:[#allocation2 + $0x98] sm:$0xff] %v2124
        %2173 = vst [vmem:[#allocation2 + $0xa0] sm:$0xff] %v2125
        %2174 = vst [vmem:[#allocation2 + $0xa8] sm:$0xff] %v2126
        %2175 = vst [vmem:[#allocation2 + $0xb0] sm:$0xff] %v2127
        %2176 = vst [vmem:[#allocation2 + $0xb8] sm:$0xff] %v2128
        %2177 = vst [vmem:[#allocation2 + $0xc0] sm:$0xff] %v2129
        %2178 = vst [vmem:[#allocation2 + $0xc8] sm:$0xff] %v2130
        %2179 = vst [vmem:[#allocation2 + $0xd0] sm:$0xff] %v2131
        %2180 = vst [vmem:[#allocation2 + $0xd8] sm:$0xff] %v2132
        %2181 = vst [vmem:[#allocation2 + $0xe0] sm:$0xff] %v2133
        %2182 = vst [vmem:[#allocation2 + $0xe8] sm:$0xff] %v2134
        %2183 = vst [vmem:[#allocation2 + $0xf0] sm:$0xff] %v2135
        %2184 = vst [vmem:[#allocation2 + $0xf8] sm:$0xff] %v2136
        %2185 = vst [vmem:[#allocation2 + $0x100] sm:$0xff] %v2137
        %2186 = vst [vmem:[#allocation2 + $0x108] sm:$0xff] %v2138
        %2187 = vst [vmem:[#allocation2 + $0x110] sm:$0xff] %v2139
        %2188 = vst [vmem:[#allocation2 + $0x118] sm:$0xff] %v2140
        %2189 = vst [vmem:[#allocation2 + $0x120] sm:$0xff] %v2141
        %2190 = vst [vmem:[#allocation2 + $0x128] sm:$0xff] %v2142
        %2191 = vst [vmem:[#allocation2 + $0x130] sm:$0xff] %v2143
        %2192 = vst [vmem:[#allocation2 + $0x138] sm:$0xff] %v2144
        %2193 = vst [vmem:[#allocation2 + $0x140] sm:$0xff] %v2145
        %2194 = vst [vmem:[#allocation2 + $0x148] sm:$0xff] %v2146
        %2195 = vst [vmem:[#allocation2 + $0x150] sm:$0xff] %v2147
        %2196 = vst [vmem:[#allocation2 + $0x158] sm:$0xff] %v2148
        %2197 = vst [vmem:[#allocation2 + $0x160] sm:$0xff] %v2149
        %2198 = vst [vmem:[#allocation2 + $0x168] sm:$0xff] %v2150
        %2199 = vst [vmem:[#allocation2 + $0x170] sm:$0xff] %v2151
        %2200 = vst [vmem:[#allocation2 + $0x178] sm:$0xff] %v2152
        %s2201 = scalar_lea.vmem [#allocation7], 128
        %v2202 = vld [vmem:[%s2201] sm:$0xf]
        %v2203 = vld [vmem:[%s2201 + $0x4] sm:$0xf]
        %v2204 = vld [vmem:[%s2201 + $0x8] sm:$0xf]
        %v2205 = vld [vmem:[%s2201 + $0xc] sm:$0xf]
        %v2206 = vld [vmem:[%s2201 + $0x10] sm:$0xf]
        %v2207 = vld [vmem:[%s2201 + $0x14] sm:$0xf]
        %v2208 = vld [vmem:[%s2201 + $0x18] sm:$0xf]
        %v2209 = vld [vmem:[%s2201 + $0x1c] sm:$0xf]
        %v2211 = vunpack.c.l.b16 %v407
        %v2212 = vpack.c.b16 %v2211, %v2211
        %v2213 = vshrl.u32 %v1808, 16
        %v2215 = vshll.u32 %v1808, 16
        %v2217 = vrot.slane %v2215, 1
        %v2218 = vor.u32 %v2213, %v2217
        %v2219 = vshll.u32 %v1809, 16
        %v2221 = vrot.slane %v2219, 1
        %v2222 = vsel %vm825, %v2218, %v2221
        %v2223 = vshrl.u32 %v1809, 16
        %v2225 = vor.u32 %v2223, %v2221
        %v2226 = vshll.u32 %v1810, 16
        %v2228 = vrot.slane %v2226, 1
        %v2229 = vsel %vm825, %v2225, %v2228
        %v2230 = vshrl.u32 %v1810, 16
        %v2232 = vor.u32 %v2230, %v2228
        %v2233 = vshll.u32 %v1811, 16
        %v2235 = vrot.slane %v2233, 1
        %v2236 = vsel %vm825, %v2232, %v2235
        %v2237 = vshrl.u32 %v1811, 16
        %v2239 = vor.u32 %v2237, %v2235
        %v2240 = vshll.u32 %v1812, 16
        %v2242 = vrot.slane %v2240, 1
        %v2243 = vsel %vm825, %v2239, %v2242
        %v2244 = vshrl.u32 %v1812, 16
        %v2246 = vor.u32 %v2244, %v2242
        %v2247 = vshll.u32 %v1813, 16
        %v2249 = vrot.slane %v2247, 1
        %v2250 = vsel %vm825, %v2246, %v2249
        %v2251 = vshrl.u32 %v1813, 16
        %v2253 = vor.u32 %v2251, %v2249
        %v2254 = vshll.u32 %v1814, 16
        %v2256 = vrot.slane %v2254, 1
        %v2257 = vsel %vm825, %v2253, %v2256
        %v2258 = vshrl.u32 %v1814, 16
        %v2260 = vor.u32 %v2258, %v2256
        %v2261 = vshll.u32 %v1815, 16
        %v2263 = vrot.slane %v2261, 1
        %v2264 = vsel %vm825, %v2260, %v2263
        %v2265 = vshrl.u32 %v1815, 16
        %v2267 = vor.u32 %v2265, %v2263
        %v2268 = vshll.u32 %v1816, 16
        %v2270 = vrot.slane %v2268, 1
        %v2271 = vsel %vm825, %v2267, %v2270
        %v2272 = vshrl.u32 %v1816, 16
        %v2274 = vor.u32 %v2272, %v2270
        %v2275 = vshll.u32 %v1817, 16
        %v2277 = vrot.slane %v2275, 1
        %v2278 = vsel %vm825, %v2274, %v2277
        %v2279 = vshrl.u32 %v1817, 16
        %v2281 = vor.u32 %v2279, %v2277
        %v2282 = vshll.u32 %v1818, 16
        %v2284 = vrot.slane %v2282, 1
        %v2285 = vsel %vm825, %v2281, %v2284
        %v2286 = vshrl.u32 %v1818, 16
        %v2288 = vor.u32 %v2286, %v2284
        %v2289 = vshll.u32 %v1819, 16
        %v2291 = vrot.slane %v2289, 1
        %v2292 = vsel %vm825, %v2288, %v2291
        %v2293 = vshrl.u32 %v1819, 16
        %v2295 = vor.u32 %v2293, %v2291
        %v2296 = vshll.u32 %v1820, 16
        %v2298 = vrot.slane %v2296, 1
        %v2299 = vsel %vm825, %v2295, %v2298
        %v2300 = vshrl.u32 %v1820, 16
        %v2302 = vor.u32 %v2300, %v2298
        %v2303 = vshll.u32 %v1821, 16
        %v2305 = vrot.slane %v2303, 1
        %v2306 = vsel %vm825, %v2302, %v2305
        %v2307 = vshrl.u32 %v1821, 16
        %v2309 = vor.u32 %v2307, %v2305
        %v2310 = vshll.u32 %v1822, 16
        %v2312 = vrot.slane %v2310, 1
        %v2313 = vsel %vm825, %v2309, %v2312
        %v2314 = vshrl.u32 %v1822, 16
        %v2316 = vor.u32 %v2314, %v2312
        %v2317 = vshll.u32 %v1823, 16
        %v2319 = vrot.slane %v2317, 1
        %v2320 = vsel %vm825, %v2316, %v2319
        %v2321 = vshrl.u32 %v1823, 16
        %v2323 = vor.u32 %v2321, %v2319
        %v2324 = vshll.u32 %v1824, 16
        %v2326 = vrot.slane %v2324, 1
        %v2327 = vsel %vm825, %v2323, %v2326
        %v2328 = vshrl.u32 %v1824, 16
        %v2330 = vor.u32 %v2328, %v2326
        %v2331 = vshll.u32 %v1825, 16
        %v2333 = vrot.slane %v2331, 1
        %v2334 = vsel %vm825, %v2330, %v2333
        %v2335 = vshrl.u32 %v1825, 16
        %v2337 = vor.u32 %v2335, %v2333
        %v2338 = vshll.u32 %v1826, 16
        %v2340 = vrot.slane %v2338, 1
        %v2341 = vsel %vm825, %v2337, %v2340
        %v2342 = vshrl.u32 %v1826, 16
        %v2344 = vor.u32 %v2342, %v2340
        %v2345 = vshll.u32 %v1827, 16
        %v2347 = vrot.slane %v2345, 1
        %v2348 = vsel %vm825, %v2344, %v2347
        %v2349 = vshrl.u32 %v1827, 16
        %v2351 = vor.u32 %v2349, %v2347
        %v2352 = vshll.u32 %v1828, 16
        %v2354 = vrot.slane %v2352, 1
        %v2355 = vsel %vm825, %v2351, %v2354
        %v2356 = vshrl.u32 %v1828, 16
        %v2358 = vor.u32 %v2356, %v2354
        %v2359 = vshll.u32 %v1829, 16
        %v2361 = vrot.slane %v2359, 1
        %v2362 = vsel %vm825, %v2358, %v2361
        %v2363 = vshrl.u32 %v1829, 16
        %v2365 = vor.u32 %v2363, %v2361
        %v2366 = vshll.u32 %v1830, 16
        %v2368 = vrot.slane %v2366, 1
        %v2369 = vsel %vm825, %v2365, %v2368
        %v2370 = vshrl.u32 %v1830, 16
        %v2372 = vor.u32 %v2370, %v2368
        %v2373 = vshll.u32 %v1831, 16
        %v2375 = vrot.slane %v2373, 1
        %v2376 = vsel %vm825, %v2372, %v2375
        %v2377 = vshrl.u32 %v1831, 16
        %v2379 = vor.u32 %v2377, %v2375
        %v2381 = vshll.u32 %v2212, 16
        %v2383 = vrot.slane %v2381, 1
        %v2384 = vsel %vm825, %v2379, %v2383
        %v2393 = vunpack.c.l.b16 %v2202
        %v2394 = vunpack.c.l.b16 %v2203
        %v2395 = vunpack.c.l.b16 %v2204
        %v2396 = vunpack.c.l.b16 %v2205
        %v2397 = vunpack.c.l.b16 %v2206
        %v2398 = vunpack.c.l.b16 %v2207
        %v2399 = vunpack.c.l.b16 %v2208
        %v2400 = vunpack.c.l.b16 %v2209
        %v2401 = vpack.c.b16 %v2394, %v2393
        %v2402 = vpack.c.b16 %v2396, %v2395
        %v2403 = vpack.c.b16 %v2398, %v2397
        %v2404 = vpack.c.b16 %v2400, %v2399
        %v2410 = vsel %vm563, %v2222, 0
        %v2413 = vsel %vm563, %v2229, 0
        %v2416 = vsel %vm563, %v2236, 0
        %v2419 = vsel %vm563, %v2243, 0
        %v2422 = vsel %vm563, %v2250, 0
        %v2425 = vsel %vm563, %v2257, 0
        %v2428 = vsel %vm563, %v2264, 0
        %v2431 = vsel %vm563, %v2271, 0
        %v2434 = vsel %vm563, %v2278, 0
        %v2437 = vsel %vm563, %v2285, 0
        %v2440 = vsel %vm563, %v2292, 0
        %v2443 = vsel %vm563, %v2299, 0
        %v2446 = vsel %vm563, %v2306, 0
        %v2449 = vsel %vm563, %v2313, 0
        %v2452 = vsel %vm563, %v2320, 0
        %v2455 = vsel %vm563, %v2327, 0
        %v2458 = vsel %vm563, %v2334, 0
        %v2461 = vsel %vm563, %v2341, 0
        %v2464 = vsel %vm563, %v2348, 0
        %v2467 = vsel %vm563, %v2355, 0
        %v2470 = vsel %vm563, %v2362, 0
        %v2473 = vsel %vm563, %v2369, 0
        %v2476 = vsel %vm563, %v2376, 0
        %v2479 = vsel %vm563, %v2384, 0
        %2481 = vmatpush.bf16.msra.mxu0 0
        %2482 = vmatpush.bf16.msra.mxu0 0
        %2483 = vmatpush.bf16.msra.mxu0 0
        %2484 = vmatpush.bf16.msra.mxu0 0
        %2485 = vmatpush.bf16.msra.mxu0 %v2404
        %2486 = vmatpush.bf16.msra.mxu0 %v2403
        %2487 = vmatpush.bf16.msra.mxu0 %v2402
        %2488 = vmatpush.bf16.msra.mxu0 %v2401
        %2489 = vmatmul.bf16.gmra.mxu0 %v2410
        %v2490 = vpop.f32.mrf.mxu0
        %v2491 = vadd.f32 0.0, %v2490
        %v2492 = vpop.f32.mrf.mxu0
        %v2493 = vadd.f32 0.0, %v2492
        %2494 = vmatmul.bf16.gmra.mxu0 %v2413
        %v2495 = vpop.f32.mrf.mxu0
        %v2496 = vadd.f32 0.0, %v2495
        %v2497 = vpop.f32.mrf.mxu0
        %v2498 = vadd.f32 0.0, %v2497
        %2499 = vmatmul.bf16.gmra.mxu0 %v2416
        %v2500 = vpop.f32.mrf.mxu0
        %v2501 = vadd.f32 0.0, %v2500
        %v2502 = vpop.f32.mrf.mxu0
        %v2503 = vadd.f32 0.0, %v2502
        %2504 = vmatmul.bf16.gmra.mxu0 %v2419
        %v2505 = vpop.f32.mrf.mxu0
        %v2506 = vadd.f32 0.0, %v2505
        %v2507 = vpop.f32.mrf.mxu0
        %v2508 = vadd.f32 0.0, %v2507
        %2509 = vmatmul.bf16.gmra.mxu0 %v2422
        %v2510 = vpop.f32.mrf.mxu0
        %v2511 = vadd.f32 0.0, %v2510
        %v2512 = vpop.f32.mrf.mxu0
        %v2513 = vadd.f32 0.0, %v2512
        %2514 = vmatmul.bf16.gmra.mxu0 %v2425
        %v2515 = vpop.f32.mrf.mxu0
        %v2516 = vadd.f32 0.0, %v2515
        %v2517 = vpop.f32.mrf.mxu0
        %v2518 = vadd.f32 0.0, %v2517
        %2519 = vmatmul.bf16.gmra.mxu0 %v2428
        %v2520 = vpop.f32.mrf.mxu0
        %v2521 = vadd.f32 0.0, %v2520
        %v2522 = vpop.f32.mrf.mxu0
        %v2523 = vadd.f32 0.0, %v2522
        %2524 = vmatmul.bf16.gmra.mxu0 %v2431
        %v2525 = vpop.f32.mrf.mxu0
        %v2526 = vadd.f32 0.0, %v2525
        %v2527 = vpop.f32.mrf.mxu0
        %v2528 = vadd.f32 0.0, %v2527
        %2529 = vmatmul.bf16.gmra.mxu0 %v2434
        %v2530 = vpop.f32.mrf.mxu0
        %v2531 = vadd.f32 0.0, %v2530
        %v2532 = vpop.f32.mrf.mxu0
        %v2533 = vadd.f32 0.0, %v2532
        %2534 = vmatmul.bf16.gmra.mxu0 %v2437
        %v2535 = vpop.f32.mrf.mxu0
        %v2536 = vadd.f32 0.0, %v2535
        %v2537 = vpop.f32.mrf.mxu0
        %v2538 = vadd.f32 0.0, %v2537
        %2539 = vmatmul.bf16.gmra.mxu0 %v2440
        %v2540 = vpop.f32.mrf.mxu0
        %v2541 = vadd.f32 0.0, %v2540
        %v2542 = vpop.f32.mrf.mxu0
        %v2543 = vadd.f32 0.0, %v2542
        %2544 = vmatmul.bf16.gmra.mxu0 %v2443
        %v2545 = vpop.f32.mrf.mxu0
        %v2546 = vadd.f32 0.0, %v2545
        %v2547 = vpop.f32.mrf.mxu0
        %v2548 = vadd.f32 0.0, %v2547
        %2549 = vmatmul.bf16.gmra.mxu0 %v2446
        %v2550 = vpop.f32.mrf.mxu0
        %v2551 = vadd.f32 0.0, %v2550
        %v2552 = vpop.f32.mrf.mxu0
        %v2553 = vadd.f32 0.0, %v2552
        %2554 = vmatmul.bf16.gmra.mxu0 %v2449
        %v2555 = vpop.f32.mrf.mxu0
        %v2556 = vadd.f32 0.0, %v2555
        %v2557 = vpop.f32.mrf.mxu0
        %v2558 = vadd.f32 0.0, %v2557
        %2559 = vmatmul.bf16.gmra.mxu0 %v2452
        %v2560 = vpop.f32.mrf.mxu0
        %v2561 = vadd.f32 0.0, %v2560
        %v2562 = vpop.f32.mrf.mxu0
        %v2563 = vadd.f32 0.0, %v2562
        %2564 = vmatmul.bf16.gmra.mxu0 %v2455
        %v2565 = vpop.f32.mrf.mxu0
        %v2566 = vadd.f32 0.0, %v2565
        %v2567 = vpop.f32.mrf.mxu0
        %v2568 = vadd.f32 0.0, %v2567
        %2569 = vmatmul.bf16.gmra.mxu0 %v2458
        %v2570 = vpop.f32.mrf.mxu0
        %v2571 = vadd.f32 0.0, %v2570
        %v2572 = vpop.f32.mrf.mxu0
        %v2573 = vadd.f32 0.0, %v2572
        %2574 = vmatmul.bf16.gmra.mxu0 %v2461
        %v2575 = vpop.f32.mrf.mxu0
        %v2576 = vadd.f32 0.0, %v2575
        %v2577 = vpop.f32.mrf.mxu0
        %v2578 = vadd.f32 0.0, %v2577
        %2579 = vmatmul.bf16.gmra.mxu0 %v2464
        %v2580 = vpop.f32.mrf.mxu0
        %v2581 = vadd.f32 0.0, %v2580
        %v2582 = vpop.f32.mrf.mxu0
        %v2583 = vadd.f32 0.0, %v2582
        %2584 = vmatmul.bf16.gmra.mxu0 %v2467
        %v2585 = vpop.f32.mrf.mxu0
        %v2586 = vadd.f32 0.0, %v2585
        %v2587 = vpop.f32.mrf.mxu0
        %v2588 = vadd.f32 0.0, %v2587
        %2589 = vmatmul.bf16.gmra.mxu0 %v2470
        %v2590 = vpop.f32.mrf.mxu0
        %v2591 = vadd.f32 0.0, %v2590
        %v2592 = vpop.f32.mrf.mxu0
        %v2593 = vadd.f32 0.0, %v2592
        %2594 = vmatmul.bf16.gmra.mxu0 %v2473
        %v2595 = vpop.f32.mrf.mxu0
        %v2596 = vadd.f32 0.0, %v2595
        %v2597 = vpop.f32.mrf.mxu0
        %v2598 = vadd.f32 0.0, %v2597
        %2599 = vmatmul.bf16.gmra.mxu0 %v2476
        %v2600 = vpop.f32.mrf.mxu0
        %v2601 = vadd.f32 0.0, %v2600
        %v2602 = vpop.f32.mrf.mxu0
        %v2603 = vadd.f32 0.0, %v2602
        %2604 = vmatmul.bf16.gmra.mxu0 %v2479
        %v2605 = vpop.f32.mrf.mxu0
        %v2606 = vadd.f32 0.0, %v2605
        %v2607 = vpop.f32.mrf.mxu0
        %v2608 = vadd.f32 0.0, %v2607
        %2609 = vdwg.mxu0
        %v2610 = vld [vmem:[#allocation2] sm:$0xff]
        %v2611 = vld [vmem:[#allocation2 + $0x8] sm:$0xff]
        %v2612 = vld [vmem:[#allocation2 + $0x10] sm:$0xff]
        %v2613 = vld [vmem:[#allocation2 + $0x18] sm:$0xff]
        %v2614 = vld [vmem:[#allocation2 + $0x20] sm:$0xff]
        %v2615 = vld [vmem:[#allocation2 + $0x28] sm:$0xff]
        %v2616 = vld [vmem:[#allocation2 + $0x30] sm:$0xff]
        %v2617 = vld [vmem:[#allocation2 + $0x38] sm:$0xff]
        %v2618 = vld [vmem:[#allocation2 + $0x40] sm:$0xff]
        %v2619 = vld [vmem:[#allocation2 + $0x48] sm:$0xff]
        %v2620 = vld [vmem:[#allocation2 + $0x50] sm:$0xff]
        %v2621 = vld [vmem:[#allocation2 + $0x58] sm:$0xff]
        %v2622 = vld [vmem:[#allocation2 + $0x60] sm:$0xff]
        %v2623 = vld [vmem:[#allocation2 + $0x68] sm:$0xff]
        %v2624 = vld [vmem:[#allocation2 + $0x70] sm:$0xff]
        %v2625 = vld [vmem:[#allocation2 + $0x78] sm:$0xff]
        %v2626 = vld [vmem:[#allocation2 + $0x80] sm:$0xff]
        %v2627 = vld [vmem:[#allocation2 + $0x88] sm:$0xff]
        %v2628 = vld [vmem:[#allocation2 + $0x90] sm:$0xff]
        %v2629 = vld [vmem:[#allocation2 + $0x98] sm:$0xff]
        %v2630 = vld [vmem:[#allocation2 + $0xa0] sm:$0xff]
        %v2631 = vld [vmem:[#allocation2 + $0xa8] sm:$0xff]
        %v2632 = vld [vmem:[#allocation2 + $0xb0] sm:$0xff]
        %v2633 = vld [vmem:[#allocation2 + $0xb8] sm:$0xff]
        %v2634 = vld [vmem:[#allocation2 + $0xc0] sm:$0xff]
        %v2635 = vld [vmem:[#allocation2 + $0xc8] sm:$0xff]
        %v2636 = vld [vmem:[#allocation2 + $0xd0] sm:$0xff]
        %v2637 = vld [vmem:[#allocation2 + $0xd8] sm:$0xff]
        %v2638 = vld [vmem:[#allocation2 + $0xe0] sm:$0xff]
        %v2639 = vld [vmem:[#allocation2 + $0xe8] sm:$0xff]
        %v2640 = vld [vmem:[#allocation2 + $0xf0] sm:$0xff]
        %v2641 = vld [vmem:[#allocation2 + $0xf8] sm:$0xff]
        %v2642 = vld [vmem:[#allocation2 + $0x100] sm:$0xff]
        %v2643 = vld [vmem:[#allocation2 + $0x108] sm:$0xff]
        %v2644 = vld [vmem:[#allocation2 + $0x110] sm:$0xff]
        %v2645 = vld [vmem:[#allocation2 + $0x118] sm:$0xff]
        %v2646 = vld [vmem:[#allocation2 + $0x120] sm:$0xff]
        %v2647 = vld [vmem:[#allocation2 + $0x128] sm:$0xff]
        %v2648 = vld [vmem:[#allocation2 + $0x130] sm:$0xff]
        %v2649 = vld [vmem:[#allocation2 + $0x138] sm:$0xff]
        %v2650 = vld [vmem:[#allocation2 + $0x140] sm:$0xff]
        %v2651 = vld [vmem:[#allocation2 + $0x148] sm:$0xff]
        %v2652 = vld [vmem:[#allocation2 + $0x150] sm:$0xff]
        %v2653 = vld [vmem:[#allocation2 + $0x158] sm:$0xff]
        %v2654 = vld [vmem:[#allocation2 + $0x160] sm:$0xff]
        %v2655 = vld [vmem:[#allocation2 + $0x168] sm:$0xff]
        %v2656 = vld [vmem:[#allocation2 + $0x170] sm:$0xff]
        %v2657 = vld [vmem:[#allocation2 + $0x178] sm:$0xff]
        %v2658 = vadd.f32 %v2610, %v2491
        %v2659 = vadd.f32 %v2611, %v2493
        %v2660 = vadd.f32 %v2612, %v2496
        %v2661 = vadd.f32 %v2613, %v2498
        %v2662 = vadd.f32 %v2614, %v2501
        %v2663 = vadd.f32 %v2615, %v2503
        %v2664 = vadd.f32 %v2616, %v2506
        %v2665 = vadd.f32 %v2617, %v2508
        %v2666 = vadd.f32 %v2618, %v2511
        %v2667 = vadd.f32 %v2619, %v2513
        %v2668 = vadd.f32 %v2620, %v2516
        %v2669 = vadd.f32 %v2621, %v2518
        %v2670 = vadd.f32 %v2622, %v2521
        %v2671 = vadd.f32 %v2623, %v2523
        %v2672 = vadd.f32 %v2624, %v2526
        %v2673 = vadd.f32 %v2625, %v2528
        %v2674 = vadd.f32 %v2626, %v2531
        %v2675 = vadd.f32 %v2627, %v2533
        %v2676 = vadd.f32 %v2628, %v2536
        %v2677 = vadd.f32 %v2629, %v2538
        %v2678 = vadd.f32 %v2630, %v2541
        %v2679 = vadd.f32 %v2631, %v2543
        %v2680 = vadd.f32 %v2632, %v2546
        %v2681 = vadd.f32 %v2633, %v2548
        %v2682 = vadd.f32 %v2634, %v2551
        %v2683 = vadd.f32 %v2635, %v2553
        %v2684 = vadd.f32 %v2636, %v2556
        %v2685 = vadd.f32 %v2637, %v2558
        %v2686 = vadd.f32 %v2638, %v2561
        %v2687 = vadd.f32 %v2639, %v2563
        %v2688 = vadd.f32 %v2640, %v2566
        %v2689 = vadd.f32 %v2641, %v2568
        %v2690 = vadd.f32 %v2642, %v2571
        %v2691 = vadd.f32 %v2643, %v2573
        %v2692 = vadd.f32 %v2644, %v2576
        %v2693 = vadd.f32 %v2645, %v2578
        %v2694 = vadd.f32 %v2646, %v2581
        %v2695 = vadd.f32 %v2647, %v2583
        %v2696 = vadd.f32 %v2648, %v2586
        %v2697 = vadd.f32 %v2649, %v2588
        %v2698 = vadd.f32 %v2650, %v2591
        %v2699 = vadd.f32 %v2651, %v2593
        %v2700 = vadd.f32 %v2652, %v2596
        %v2701 = vadd.f32 %v2653, %v2598
        %v2702 = vadd.f32 %v2654, %v2601
        %v2703 = vadd.f32 %v2655, %v2603
        %v2704 = vadd.f32 %v2656, %v2606
        %v2705 = vadd.f32 %v2657, %v2608
        %2706 = vst [vmem:[#allocation2] sm:$0xff] %v2658
        %2707 = vst [vmem:[#allocation2 + $0x8] sm:$0xff] %v2659
        %2708 = vst [vmem:[#allocation2 + $0x10] sm:$0xff] %v2660
        %2709 = vst [vmem:[#allocation2 + $0x18] sm:$0xff] %v2661
        %2710 = vst [vmem:[#allocation2 + $0x20] sm:$0xff] %v2662
        %2711 = vst [vmem:[#allocation2 + $0x28] sm:$0xff] %v2663
        %2712 = vst [vmem:[#allocation2 + $0x30] sm:$0xff] %v2664
        %2713 = vst [vmem:[#allocation2 + $0x38] sm:$0xff] %v2665
        %2714 = vst [vmem:[#allocation2 + $0x40] sm:$0xff] %v2666
        %2715 = vst [vmem:[#allocation2 + $0x48] sm:$0xff] %v2667
        %2716 = vst [vmem:[#allocation2 + $0x50] sm:$0xff] %v2668
        %2717 = vst [vmem:[#allocation2 + $0x58] sm:$0xff] %v2669
        %2718 = vst [vmem:[#allocation2 + $0x60] sm:$0xff] %v2670
        %2719 = vst [vmem:[#allocation2 + $0x68] sm:$0xff] %v2671
        %2720 = vst [vmem:[#allocation2 + $0x70] sm:$0xff] %v2672
        %2721 = vst [vmem:[#allocation2 + $0x78] sm:$0xff] %v2673
        %2722 = vst [vmem:[#allocation2 + $0x80] sm:$0xff] %v2674
        %2723 = vst [vmem:[#allocation2 + $0x88] sm:$0xff] %v2675
        %2724 = vst [vmem:[#allocation2 + $0x90] sm:$0xff] %v2676
        %2725 = vst [vmem:[#allocation2 + $0x98] sm:$0xff] %v2677
        %2726 = vst [vmem:[#allocation2 + $0xa0] sm:$0xff] %v2678
        %2727 = vst [vmem:[#allocation2 + $0xa8] sm:$0xff] %v2679
        %2728 = vst [vmem:[#allocation2 + $0xb0] sm:$0xff] %v2680
        %2729 = vst [vmem:[#allocation2 + $0xb8] sm:$0xff] %v2681
        %2730 = vst [vmem:[#allocation2 + $0xc0] sm:$0xff] %v2682
        %2731 = vst [vmem:[#allocation2 + $0xc8] sm:$0xff] %v2683
        %2732 = vst [vmem:[#allocation2 + $0xd0] sm:$0xff] %v2684
        %2733 = vst [vmem:[#allocation2 + $0xd8] sm:$0xff] %v2685
        %2734 = vst [vmem:[#allocation2 + $0xe0] sm:$0xff] %v2686
        %2735 = vst [vmem:[#allocation2 + $0xe8] sm:$0xff] %v2687
        %2736 = vst [vmem:[#allocation2 + $0xf0] sm:$0xff] %v2688
        %2737 = vst [vmem:[#allocation2 + $0xf8] sm:$0xff] %v2689
        %2738 = vst [vmem:[#allocation2 + $0x100] sm:$0xff] %v2690
        %2739 = vst [vmem:[#allocation2 + $0x108] sm:$0xff] %v2691
        %2740 = vst [vmem:[#allocation2 + $0x110] sm:$0xff] %v2692
        %2741 = vst [vmem:[#allocation2 + $0x118] sm:$0xff] %v2693
        %2742 = vst [vmem:[#allocation2 + $0x120] sm:$0xff] %v2694
        %2743 = vst [vmem:[#allocation2 + $0x128] sm:$0xff] %v2695
        %2744 = vst [vmem:[#allocation2 + $0x130] sm:$0xff] %v2696
        %2745 = vst [vmem:[#allocation2 + $0x138] sm:$0xff] %v2697
        %2746 = vst [vmem:[#allocation2 + $0x140] sm:$0xff] %v2698
        %2747 = vst [vmem:[#allocation2 + $0x148] sm:$0xff] %v2699
        %2748 = vst [vmem:[#allocation2 + $0x150] sm:$0xff] %v2700
        %2749 = vst [vmem:[#allocation2 + $0x158] sm:$0xff] %v2701
        %2750 = vst [vmem:[#allocation2 + $0x160] sm:$0xff] %v2702
        %2751 = vst [vmem:[#allocation2 + $0x168] sm:$0xff] %v2703
        %2752 = vst [vmem:[#allocation2 + $0x170] sm:$0xff] %v2704
        %2753 = vst [vmem:[#allocation2 + $0x178] sm:$0xff] %v2705
        %s2754 = scalar_lea.vmem [#allocation7], 160
        %v2755 = vld [vmem:[%s2754] sm:$0xf]
        %v2756 = vld [vmem:[%s2754 + $0x4] sm:$0xf]
        %v2757 = vld [vmem:[%s2754 + $0x8] sm:$0xf]
        %v2758 = vld [vmem:[%s2754 + $0xc] sm:$0xf]
        %v2759 = vld [vmem:[%s2754 + $0x10] sm:$0xf]
        %v2760 = vld [vmem:[%s2754 + $0x14] sm:$0xf]
        %v2761 = vld [vmem:[%s2754 + $0x18] sm:$0xf]
        %v2762 = vld [vmem:[%s2754 + $0x1c] sm:$0xf]
        %v2763 = vrot.slane %v1808, 1
        %v2764 = vrot.slane %v1809, 1
        %v2765 = vsel %vm1376, %v2763, %v2764
        %v2766 = vrot.slane %v1810, 1
        %v2767 = vsel %vm1376, %v2764, %v2766
        %v2768 = vrot.slane %v1811, 1
        %v2769 = vsel %vm1376, %v2766, %v2768
        %v2770 = vrot.slane %v1812, 1
        %v2771 = vsel %vm1376, %v2768, %v2770
        %v2772 = vrot.slane %v1813, 1
        %v2773 = vsel %vm1376, %v2770, %v2772
        %v2774 = vrot.slane %v1814, 1
        %v2775 = vsel %vm1376, %v2772, %v2774
        %v2776 = vrot.slane %v1815, 1
        %v2777 = vsel %vm1376, %v2774, %v2776
        %v2778 = vrot.slane %v1816, 1
        %v2779 = vsel %vm1376, %v2776, %v2778
        %v2780 = vrot.slane %v1817, 1
        %v2781 = vsel %vm1376, %v2778, %v2780
        %v2782 = vrot.slane %v1818, 1
        %v2783 = vsel %vm1376, %v2780, %v2782
        %v2784 = vrot.slane %v1819, 1
        %v2785 = vsel %vm1376, %v2782, %v2784
        %v2786 = vrot.slane %v1820, 1
        %v2787 = vsel %vm1376, %v2784, %v2786
        %v2788 = vrot.slane %v1821, 1
        %v2789 = vsel %vm1376, %v2786, %v2788
        %v2790 = vrot.slane %v1822, 1
        %v2791 = vsel %vm1376, %v2788, %v2790
        %v2792 = vrot.slane %v1823, 1
        %v2793 = vsel %vm1376, %v2790, %v2792
        %v2794 = vrot.slane %v1824, 1
        %v2795 = vsel %vm1376, %v2792, %v2794
        %v2796 = vrot.slane %v1825, 1
        %v2797 = vsel %vm1376, %v2794, %v2796
        %v2798 = vrot.slane %v1826, 1
        %v2799 = vsel %vm1376, %v2796, %v2798
        %v2800 = vrot.slane %v1827, 1
        %v2801 = vsel %vm1376, %v2798, %v2800
        %v2802 = vrot.slane %v1828, 1
        %v2803 = vsel %vm1376, %v2800, %v2802
        %v2804 = vrot.slane %v1829, 1
        %v2805 = vsel %vm1376, %v2802, %v2804
        %v2806 = vrot.slane %v1830, 1
        %v2807 = vsel %vm1376, %v2804, %v2806
        %v2808 = vrot.slane %v1831, 1
        %v2809 = vsel %vm1376, %v2806, %v2808
        %v2810 = vrot.slane %v2212, 1
        %v2811 = vsel %vm1376, %v2808, %v2810
        %v2820 = vunpack.c.l.b16 %v2755
        %v2821 = vunpack.c.l.b16 %v2756
        %v2822 = vunpack.c.l.b16 %v2757
        %v2823 = vunpack.c.l.b16 %v2758
        %v2824 = vunpack.c.l.b16 %v2759
        %v2825 = vunpack.c.l.b16 %v2760
        %v2826 = vunpack.c.l.b16 %v2761
        %v2827 = vunpack.c.l.b16 %v2762
        %v2828 = vpack.c.b16 %v2821, %v2820
        %v2829 = vpack.c.b16 %v2823, %v2822
        %v2830 = vpack.c.b16 %v2825, %v2824
        %v2831 = vpack.c.b16 %v2827, %v2826
        %v2837 = vsel %vm563, %v2765, 0
        %v2840 = vsel %vm563, %v2767, 0
        %v2843 = vsel %vm563, %v2769, 0
        %v2846 = vsel %vm563, %v2771, 0
        %v2849 = vsel %vm563, %v2773, 0
        %v2852 = vsel %vm563, %v2775, 0
        %v2855 = vsel %vm563, %v2777, 0
        %v2858 = vsel %vm563, %v2779, 0
        %v2861 = vsel %vm563, %v2781, 0
        %v2864 = vsel %vm563, %v2783, 0
        %v2867 = vsel %vm563, %v2785, 0
        %v2870 = vsel %vm563, %v2787, 0
        %v2873 = vsel %vm563, %v2789, 0
        %v2876 = vsel %vm563, %v2791, 0
        %v2879 = vsel %vm563, %v2793, 0
        %v2882 = vsel %vm563, %v2795, 0
        %v2885 = vsel %vm563, %v2797, 0
        %v2888 = vsel %vm563, %v2799, 0
        %v2891 = vsel %vm563, %v2801, 0
        %v2894 = vsel %vm563, %v2803, 0
        %v2897 = vsel %vm563, %v2805, 0
        %v2900 = vsel %vm563, %v2807, 0
        %v2903 = vsel %vm563, %v2809, 0
        %v2906 = vsel %vm563, %v2811, 0
        %2908 = vmatpush.bf16.msra.mxu0 0
        %2909 = vmatpush.bf16.msra.mxu0 0
        %2910 = vmatpush.bf16.msra.mxu0 0
        %2911 = vmatpush.bf16.msra.mxu0 0
        %2912 = vmatpush.bf16.msra.mxu0 %v2831
        %2913 = vmatpush.bf16.msra.mxu0 %v2830
        %2914 = vmatpush.bf16.msra.mxu0 %v2829
        %2915 = vmatpush.bf16.msra.mxu0 %v2828
        %2916 = vmatmul.bf16.gmra.mxu0 %v2837
        %v2917 = vpop.f32.mrf.mxu0
        %v2918 = vadd.f32 0.0, %v2917
        %v2919 = vpop.f32.mrf.mxu0
        %v2920 = vadd.f32 0.0, %v2919
        %2921 = vmatmul.bf16.gmra.mxu0 %v2840
        %v2922 = vpop.f32.mrf.mxu0
        %v2923 = vadd.f32 0.0, %v2922
        %v2924 = vpop.f32.mrf.mxu0
        %v2925 = vadd.f32 0.0, %v2924
        %2926 = vmatmul.bf16.gmra.mxu0 %v2843
        %v2927 = vpop.f32.mrf.mxu0
        %v2928 = vadd.f32 0.0, %v2927
        %v2929 = vpop.f32.mrf.mxu0
        %v2930 = vadd.f32 0.0, %v2929
        %2931 = vmatmul.bf16.gmra.mxu0 %v2846
        %v2932 = vpop.f32.mrf.mxu0
        %v2933 = vadd.f32 0.0, %v2932
        %v2934 = vpop.f32.mrf.mxu0
        %v2935 = vadd.f32 0.0, %v2934
        %2936 = vmatmul.bf16.gmra.mxu0 %v2849
        %v2937 = vpop.f32.mrf.mxu0
        %v2938 = vadd.f32 0.0, %v2937
        %v2939 = vpop.f32.mrf.mxu0
        %v2940 = vadd.f32 0.0, %v2939
        %2941 = vmatmul.bf16.gmra.mxu0 %v2852
        %v2942 = vpop.f32.mrf.mxu0
        %v2943 = vadd.f32 0.0, %v2942
        %v2944 = vpop.f32.mrf.mxu0
        %v2945 = vadd.f32 0.0, %v2944
        %2946 = vmatmul.bf16.gmra.mxu0 %v2855
        %v2947 = vpop.f32.mrf.mxu0
        %v2948 = vadd.f32 0.0, %v2947
        %v2949 = vpop.f32.mrf.mxu0
        %v2950 = vadd.f32 0.0, %v2949
        %2951 = vmatmul.bf16.gmra.mxu0 %v2858
        %v2952 = vpop.f32.mrf.mxu0
        %v2953 = vadd.f32 0.0, %v2952
        %v2954 = vpop.f32.mrf.mxu0
        %v2955 = vadd.f32 0.0, %v2954
        %2956 = vmatmul.bf16.gmra.mxu0 %v2861
        %v2957 = vpop.f32.mrf.mxu0
        %v2958 = vadd.f32 0.0, %v2957
        %v2959 = vpop.f32.mrf.mxu0
        %v2960 = vadd.f32 0.0, %v2959
        %2961 = vmatmul.bf16.gmra.mxu0 %v2864
        %v2962 = vpop.f32.mrf.mxu0
        %v2963 = vadd.f32 0.0, %v2962
        %v2964 = vpop.f32.mrf.mxu0
        %v2965 = vadd.f32 0.0, %v2964
        %2966 = vmatmul.bf16.gmra.mxu0 %v2867
        %v2967 = vpop.f32.mrf.mxu0
        %v2968 = vadd.f32 0.0, %v2967
        %v2969 = vpop.f32.mrf.mxu0
        %v2970 = vadd.f32 0.0, %v2969
        %2971 = vmatmul.bf16.gmra.mxu0 %v2870
        %v2972 = vpop.f32.mrf.mxu0
        %v2973 = vadd.f32 0.0, %v2972
        %v2974 = vpop.f32.mrf.mxu0
        %v2975 = vadd.f32 0.0, %v2974
        %2976 = vmatmul.bf16.gmra.mxu0 %v2873
        %v2977 = vpop.f32.mrf.mxu0
        %v2978 = vadd.f32 0.0, %v2977
        %v2979 = vpop.f32.mrf.mxu0
        %v2980 = vadd.f32 0.0, %v2979
        %2981 = vmatmul.bf16.gmra.mxu0 %v2876
        %v2982 = vpop.f32.mrf.mxu0
        %v2983 = vadd.f32 0.0, %v2982
        %v2984 = vpop.f32.mrf.mxu0
        %v2985 = vadd.f32 0.0, %v2984
        %2986 = vmatmul.bf16.gmra.mxu0 %v2879
        %v2987 = vpop.f32.mrf.mxu0
        %v2988 = vadd.f32 0.0, %v2987
        %v2989 = vpop.f32.mrf.mxu0
        %v2990 = vadd.f32 0.0, %v2989
        %2991 = vmatmul.bf16.gmra.mxu0 %v2882
        %v2992 = vpop.f32.mrf.mxu0
        %v2993 = vadd.f32 0.0, %v2992
        %v2994 = vpop.f32.mrf.mxu0
        %v2995 = vadd.f32 0.0, %v2994
        %2996 = vmatmul.bf16.gmra.mxu0 %v2885
        %v2997 = vpop.f32.mrf.mxu0
        %v2998 = vadd.f32 0.0, %v2997
        %v2999 = vpop.f32.mrf.mxu0
        %v3000 = vadd.f32 0.0, %v2999
        %3001 = vmatmul.bf16.gmra.mxu0 %v2888
        %v3002 = vpop.f32.mrf.mxu0
        %v3003 = vadd.f32 0.0, %v3002
        %v3004 = vpop.f32.mrf.mxu0
        %v3005 = vadd.f32 0.0, %v3004
        %3006 = vmatmul.bf16.gmra.mxu0 %v2891
        %v3007 = vpop.f32.mrf.mxu0
        %v3008 = vadd.f32 0.0, %v3007
        %v3009 = vpop.f32.mrf.mxu0
        %v3010 = vadd.f32 0.0, %v3009
        %3011 = vmatmul.bf16.gmra.mxu0 %v2894
        %v3012 = vpop.f32.mrf.mxu0
        %v3013 = vadd.f32 0.0, %v3012
        %v3014 = vpop.f32.mrf.mxu0
        %v3015 = vadd.f32 0.0, %v3014
        %3016 = vmatmul.bf16.gmra.mxu0 %v2897
        %v3017 = vpop.f32.mrf.mxu0
        %v3018 = vadd.f32 0.0, %v3017
        %v3019 = vpop.f32.mrf.mxu0
        %v3020 = vadd.f32 0.0, %v3019
        %3021 = vmatmul.bf16.gmra.mxu0 %v2900
        %v3022 = vpop.f32.mrf.mxu0
        %v3023 = vadd.f32 0.0, %v3022
        %v3024 = vpop.f32.mrf.mxu0
        %v3025 = vadd.f32 0.0, %v3024
        %3026 = vmatmul.bf16.gmra.mxu0 %v2903
        %v3027 = vpop.f32.mrf.mxu0
        %v3028 = vadd.f32 0.0, %v3027
        %v3029 = vpop.f32.mrf.mxu0
        %v3030 = vadd.f32 0.0, %v3029
        %3031 = vmatmul.bf16.gmra.mxu0 %v2906
        %v3032 = vpop.f32.mrf.mxu0
        %v3033 = vadd.f32 0.0, %v3032
        %v3034 = vpop.f32.mrf.mxu0
        %v3035 = vadd.f32 0.0, %v3034
        %3036 = vdwg.mxu0
        %v3037 = vld [vmem:[#allocation2] sm:$0xff]
        %v3038 = vld [vmem:[#allocation2 + $0x8] sm:$0xff]
        %v3039 = vld [vmem:[#allocation2 + $0x10] sm:$0xff]
        %v3040 = vld [vmem:[#allocation2 + $0x18] sm:$0xff]
        %v3041 = vld [vmem:[#allocation2 + $0x20] sm:$0xff]
        %v3042 = vld [vmem:[#allocation2 + $0x28] sm:$0xff]
        %v3043 = vld [vmem:[#allocation2 + $0x30] sm:$0xff]
        %v3044 = vld [vmem:[#allocation2 + $0x38] sm:$0xff]
        %v3045 = vld [vmem:[#allocation2 + $0x40] sm:$0xff]
        %v3046 = vld [vmem:[#allocation2 + $0x48] sm:$0xff]
        %v3047 = vld [vmem:[#allocation2 + $0x50] sm:$0xff]
        %v3048 = vld [vmem:[#allocation2 + $0x58] sm:$0xff]
        %v3049 = vld [vmem:[#allocation2 + $0x60] sm:$0xff]
        %v3050 = vld [vmem:[#allocation2 + $0x68] sm:$0xff]
        %v3051 = vld [vmem:[#allocation2 + $0x70] sm:$0xff]
        %v3052 = vld [vmem:[#allocation2 + $0x78] sm:$0xff]
        %v3053 = vld [vmem:[#allocation2 + $0x80] sm:$0xff]
        %v3054 = vld [vmem:[#allocation2 + $0x88] sm:$0xff]
        %v3055 = vld [vmem:[#allocation2 + $0x90] sm:$0xff]
        %v3056 = vld [vmem:[#allocation2 + $0x98] sm:$0xff]
        %v3057 = vld [vmem:[#allocation2 + $0xa0] sm:$0xff]
        %v3058 = vld [vmem:[#allocation2 + $0xa8] sm:$0xff]
        %v3059 = vld [vmem:[#allocation2 + $0xb0] sm:$0xff]
        %v3060 = vld [vmem:[#allocation2 + $0xb8] sm:$0xff]
        %v3061 = vld [vmem:[#allocation2 + $0xc0] sm:$0xff]
        %v3062 = vld [vmem:[#allocation2 + $0xc8] sm:$0xff]
        %v3063 = vld [vmem:[#allocation2 + $0xd0] sm:$0xff]
        %v3064 = vld [vmem:[#allocation2 + $0xd8] sm:$0xff]
        %v3065 = vld [vmem:[#allocation2 + $0xe0] sm:$0xff]
        %v3066 = vld [vmem:[#allocation2 + $0xe8] sm:$0xff]
        %v3067 = vld [vmem:[#allocation2 + $0xf0] sm:$0xff]
        %v3068 = vld [vmem:[#allocation2 + $0xf8] sm:$0xff]
        %v3069 = vld [vmem:[#allocation2 + $0x100] sm:$0xff]
        %v3070 = vld [vmem:[#allocation2 + $0x108] sm:$0xff]
        %v3071 = vld [vmem:[#allocation2 + $0x110] sm:$0xff]
        %v3072 = vld [vmem:[#allocation2 + $0x118] sm:$0xff]
        %v3073 = vld [vmem:[#allocation2 + $0x120] sm:$0xff]
        %v3074 = vld [vmem:[#allocation2 + $0x128] sm:$0xff]
        %v3075 = vld [vmem:[#allocation2 + $0x130] sm:$0xff]
        %v3076 = vld [vmem:[#allocation2 + $0x138] sm:$0xff]
        %v3077 = vld [vmem:[#allocation2 + $0x140] sm:$0xff]
        %v3078 = vld [vmem:[#allocation2 + $0x148] sm:$0xff]
        %v3079 = vld [vmem:[#allocation2 + $0x150] sm:$0xff]
        %v3080 = vld [vmem:[#allocation2 + $0x158] sm:$0xff]
        %v3081 = vld [vmem:[#allocation2 + $0x160] sm:$0xff]
        %v3082 = vld [vmem:[#allocation2 + $0x168] sm:$0xff]
        %v3083 = vld [vmem:[#allocation2 + $0x170] sm:$0xff]
        %v3084 = vld [vmem:[#allocation2 + $0x178] sm:$0xff]
        %v3085 = vadd.f32 %v3037, %v2918
        %v3086 = vadd.f32 %v3038, %v2920
        %v3087 = vadd.f32 %v3039, %v2923
        %v3088 = vadd.f32 %v3040, %v2925
        %v3089 = vadd.f32 %v3041, %v2928
        %v3090 = vadd.f32 %v3042, %v2930
        %v3091 = vadd.f32 %v3043, %v2933
        %v3092 = vadd.f32 %v3044, %v2935
        %v3093 = vadd.f32 %v3045, %v2938
        %v3094 = vadd.f32 %v3046, %v2940
        %v3095 = vadd.f32 %v3047, %v2943
        %v3096 = vadd.f32 %v3048, %v2945
        %v3097 = vadd.f32 %v3049, %v2948
        %v3098 = vadd.f32 %v3050, %v2950
        %v3099 = vadd.f32 %v3051, %v2953
        %v3100 = vadd.f32 %v3052, %v2955
        %v3101 = vadd.f32 %v3053, %v2958
        %v3102 = vadd.f32 %v3054, %v2960
        %v3103 = vadd.f32 %v3055, %v2963
        %v3104 = vadd.f32 %v3056, %v2965
        %v3105 = vadd.f32 %v3057, %v2968
        %v3106 = vadd.f32 %v3058, %v2970
        %v3107 = vadd.f32 %v3059, %v2973
        %v3108 = vadd.f32 %v3060, %v2975
        %v3109 = vadd.f32 %v3061, %v2978
        %v3110 = vadd.f32 %v3062, %v2980
        %v3111 = vadd.f32 %v3063, %v2983
        %v3112 = vadd.f32 %v3064, %v2985
        %v3113 = vadd.f32 %v3065, %v2988
        %v3114 = vadd.f32 %v3066, %v2990
        %v3115 = vadd.f32 %v3067, %v2993
        %v3116 = vadd.f32 %v3068, %v2995
        %v3117 = vadd.f32 %v3069, %v2998
        %v3118 = vadd.f32 %v3070, %v3000
        %v3119 = vadd.f32 %v3071, %v3003
        %v3120 = vadd.f32 %v3072, %v3005
        %v3121 = vadd.f32 %v3073, %v3008
        %v3122 = vadd.f32 %v3074, %v3010
        %v3123 = vadd.f32 %v3075, %v3013
        %v3124 = vadd.f32 %v3076, %v3015
        %v3125 = vadd.f32 %v3077, %v3018
        %v3126 = vadd.f32 %v3078, %v3020
        %v3127 = vadd.f32 %v3079, %v3023
        %v3128 = vadd.f32 %v3080, %v3025
        %v3129 = vadd.f32 %v3081, %v3028
        %v3130 = vadd.f32 %v3082, %v3030
        %v3131 = vadd.f32 %v3083, %v3033
        %v3132 = vadd.f32 %v3084, %v3035
        %3133 = vst [vmem:[#allocation2] sm:$0xff] %v3085
        %3134 = vst [vmem:[#allocation2 + $0x8] sm:$0xff] %v3086
        %3135 = vst [vmem:[#allocation2 + $0x10] sm:$0xff] %v3087
        %3136 = vst [vmem:[#allocation2 + $0x18] sm:$0xff] %v3088
        %3137 = vst [vmem:[#allocation2 + $0x20] sm:$0xff] %v3089
        %3138 = vst [vmem:[#allocation2 + $0x28] sm:$0xff] %v3090
        %3139 = vst [vmem:[#allocation2 + $0x30] sm:$0xff] %v3091
        %3140 = vst [vmem:[#allocation2 + $0x38] sm:$0xff] %v3092
        %3141 = vst [vmem:[#allocation2 + $0x40] sm:$0xff] %v3093
        %3142 = vst [vmem:[#allocation2 + $0x48] sm:$0xff] %v3094
        %3143 = vst [vmem:[#allocation2 + $0x50] sm:$0xff] %v3095
        %3144 = vst [vmem:[#allocation2 + $0x58] sm:$0xff] %v3096
        %3145 = vst [vmem:[#allocation2 + $0x60] sm:$0xff] %v3097
        %3146 = vst [vmem:[#allocation2 + $0x68] sm:$0xff] %v3098
        %3147 = vst [vmem:[#allocation2 + $0x70] sm:$0xff] %v3099
        %3148 = vst [vmem:[#allocation2 + $0x78] sm:$0xff] %v3100
        %3149 = vst [vmem:[#allocation2 + $0x80] sm:$0xff] %v3101
        %3150 = vst [vmem:[#allocation2 + $0x88] sm:$0xff] %v3102
        %3151 = vst [vmem:[#allocation2 + $0x90] sm:$0xff] %v3103
        %3152 = vst [vmem:[#allocation2 + $0x98] sm:$0xff] %v3104
        %3153 = vst [vmem:[#allocation2 + $0xa0] sm:$0xff] %v3105
        %3154 = vst [vmem:[#allocation2 + $0xa8] sm:$0xff] %v3106
        %3155 = vst [vmem:[#allocation2 + $0xb0] sm:$0xff] %v3107
        %3156 = vst [vmem:[#allocation2 + $0xb8] sm:$0xff] %v3108
        %3157 = vst [vmem:[#allocation2 + $0xc0] sm:$0xff] %v3109
        %3158 = vst [vmem:[#allocation2 + $0xc8] sm:$0xff] %v3110
        %3159 = vst [vmem:[#allocation2 + $0xd0] sm:$0xff] %v3111
        %3160 = vst [vmem:[#allocation2 + $0xd8] sm:$0xff] %v3112
        %3161 = vst [vmem:[#allocation2 + $0xe0] sm:$0xff] %v3113
        %3162 = vst [vmem:[#allocation2 + $0xe8] sm:$0xff] %v3114
        %3163 = vst [vmem:[#allocation2 + $0xf0] sm:$0xff] %v3115
        %3164 = vst [vmem:[#allocation2 + $0xf8] sm:$0xff] %v3116
        %3165 = vst [vmem:[#allocation2 + $0x100] sm:$0xff] %v3117
        %3166 = vst [vmem:[#allocation2 + $0x108] sm:$0xff] %v3118
        %3167 = vst [vmem:[#allocation2 + $0x110] sm:$0xff] %v3119
        %3168 = vst [vmem:[#allocation2 + $0x118] sm:$0xff] %v3120
        %3169 = vst [vmem:[#allocation2 + $0x120] sm:$0xff] %v3121
        %3170 = vst [vmem:[#allocation2 + $0x128] sm:$0xff] %v3122
        %3171 = vst [vmem:[#allocation2 + $0x130] sm:$0xff] %v3123
        %3172 = vst [vmem:[#allocation2 + $0x138] sm:$0xff] %v3124
        %3173 = vst [vmem:[#allocation2 + $0x140] sm:$0xff] %v3125
        %3174 = vst [vmem:[#allocation2 + $0x148] sm:$0xff] %v3126
        %3175 = vst [vmem:[#allocation2 + $0x150] sm:$0xff] %v3127
        %3176 = vst [vmem:[#allocation2 + $0x158] sm:$0xff] %v3128
        %3177 = vst [vmem:[#allocation2 + $0x160] sm:$0xff] %v3129
        %3178 = vst [vmem:[#allocation2 + $0x168] sm:$0xff] %v3130
        %3179 = vst [vmem:[#allocation2 + $0x170] sm:$0xff] %v3131
        %3180 = vst [vmem:[#allocation2 + $0x178] sm:$0xff] %v3132
        %s3181 = scalar_lea.vmem [#allocation7], 192
        %v3182 = vld [vmem:[%s3181] sm:$0xf]
        %v3183 = vld [vmem:[%s3181 + $0x4] sm:$0xf]
        %v3184 = vld [vmem:[%s3181 + $0x8] sm:$0xf]
        %v3185 = vld [vmem:[%s3181 + $0xc] sm:$0xf]
        %v3186 = vld [vmem:[%s3181 + $0x10] sm:$0xf]
        %v3187 = vld [vmem:[%s3181 + $0x14] sm:$0xf]
        %v3188 = vld [vmem:[%s3181 + $0x18] sm:$0xf]
        %v3189 = vld [vmem:[%s3181 + $0x1c] sm:$0xf]
        %v3192 = vunpack.c.l.b16 %v408
        %v3193 = vunpack.c.l.b16 %v409
        %v3194 = vpack.c.b16 %v1806, %v823
        %v3195 = vpack.c.b16 %v2211, %v1807
        %v3196 = vpack.c.b16 %v3193, %v3192
        %v3205 = vunpack.c.l.b16 %v3182
        %v3206 = vunpack.c.l.b16 %v3183
        %v3207 = vunpack.c.l.b16 %v3184
        %v3208 = vunpack.c.l.b16 %v3185
        %v3209 = vunpack.c.l.b16 %v3186
        %v3210 = vunpack.c.l.b16 %v3187
        %v3211 = vunpack.c.l.b16 %v3188
        %v3212 = vunpack.c.l.b16 %v3189
        %v3213 = vpack.c.b16 %v3206, %v3205
        %v3214 = vpack.c.b16 %v3208, %v3207
        %v3215 = vpack.c.b16 %v3210, %v3209
        %v3216 = vpack.c.b16 %v3212, %v3211
        %v3222 = vsel %vm563, %v3194, 0
        %v3225 = vsel %vm563, %v3195, 0
        %v3228 = vsel %vm563, %v3196, 0
        %3230 = vmatpush.bf16.msra.mxu0 0
        %3231 = vmatpush.bf16.msra.mxu0 0
        %3232 = vmatpush.bf16.msra.mxu0 0
        %3233 = vmatpush.bf16.msra.mxu0 0
        %3234 = vmatpush.bf16.msra.mxu0 %v3216
        %3235 = vmatpush.bf16.msra.mxu0 %v3215
        %3236 = vmatpush.bf16.msra.mxu0 %v3214
        %3237 = vmatpush.bf16.msra.mxu0 %v3213
        %3238 = vmatmul.bf16.gmra.mxu0 %v574
        %v3239 = vpop.f32.mrf.mxu0
        %v3240 = vadd.f32 0.0, %v3239
        %v3241 = vpop.f32.mrf.mxu0
        %v3242 = vadd.f32 0.0, %v3241
        %3243 = vmatmul.bf16.gmra.mxu0 %v577
        %v3244 = vpop.f32.mrf.mxu0
        %v3245 = vadd.f32 0.0, %v3244
        %v3246 = vpop.f32.mrf.mxu0
        %v3247 = vadd.f32 0.0, %v3246
        %3248 = vmatmul.bf16.gmra.mxu0 %v580
        %v3249 = vpop.f32.mrf.mxu0
        %v3250 = vadd.f32 0.0, %v3249
        %v3251 = vpop.f32.mrf.mxu0
        %v3252 = vadd.f32 0.0, %v3251
        %3253 = vmatmul.bf16.gmra.mxu0 %v583
        %v3254 = vpop.f32.mrf.mxu0
        %v3255 = vadd.f32 0.0, %v3254
        %v3256 = vpop.f32.mrf.mxu0
        %v3257 = vadd.f32 0.0, %v3256
        %3258 = vmatmul.bf16.gmra.mxu0 %v586
        %v3259 = vpop.f32.mrf.mxu0
        %v3260 = vadd.f32 0.0, %v3259
        %v3261 = vpop.f32.mrf.mxu0
        %v3262 = vadd.f32 0.0, %v3261
        %3263 = vmatmul.bf16.gmra.mxu0 %v589
        %v3264 = vpop.f32.mrf.mxu0
        %v3265 = vadd.f32 0.0, %v3264
        %v3266 = vpop.f32.mrf.mxu0
        %v3267 = vadd.f32 0.0, %v3266
        %3268 = vmatmul.bf16.gmra.mxu0 %v592
        %v3269 = vpop.f32.mrf.mxu0
        %v3270 = vadd.f32 0.0, %v3269
        %v3271 = vpop.f32.mrf.mxu0
        %v3272 = vadd.f32 0.0, %v3271
        %3273 = vmatmul.bf16.gmra.mxu0 %v595
        %v3274 = vpop.f32.mrf.mxu0
        %v3275 = vadd.f32 0.0, %v3274
        %v3276 = vpop.f32.mrf.mxu0
        %v3277 = vadd.f32 0.0, %v3276
        %3278 = vmatmul.bf16.gmra.mxu0 %v598
        %v3279 = vpop.f32.mrf.mxu0
        %v3280 = vadd.f32 0.0, %v3279
        %v3281 = vpop.f32.mrf.mxu0
        %v3282 = vadd.f32 0.0, %v3281
        %3283 = vmatmul.bf16.gmra.mxu0 %v601
        %v3284 = vpop.f32.mrf.mxu0
        %v3285 = vadd.f32 0.0, %v3284
        %v3286 = vpop.f32.mrf.mxu0
        %v3287 = vadd.f32 0.0, %v3286
        %3288 = vmatmul.bf16.gmra.mxu0 %v604
        %v3289 = vpop.f32.mrf.mxu0
        %v3290 = vadd.f32 0.0, %v3289
        %v3291 = vpop.f32.mrf.mxu0
        %v3292 = vadd.f32 0.0, %v3291
        %3293 = vmatmul.bf16.gmra.mxu0 %v607
        %v3294 = vpop.f32.mrf.mxu0
        %v3295 = vadd.f32 0.0, %v3294
        %v3296 = vpop.f32.mrf.mxu0
        %v3297 = vadd.f32 0.0, %v3296
        %3298 = vmatmul.bf16.gmra.mxu0 %v610
        %v3299 = vpop.f32.mrf.mxu0
        %v3300 = vadd.f32 0.0, %v3299
        %v3301 = vpop.f32.mrf.mxu0
        %v3302 = vadd.f32 0.0, %v3301
        %3303 = vmatmul.bf16.gmra.mxu0 %v613
        %v3304 = vpop.f32.mrf.mxu0
        %v3305 = vadd.f32 0.0, %v3304
        %v3306 = vpop.f32.mrf.mxu0
        %v3307 = vadd.f32 0.0, %v3306
        %3308 = vmatmul.bf16.gmra.mxu0 %v616
        %v3309 = vpop.f32.mrf.mxu0
        %v3310 = vadd.f32 0.0, %v3309
        %v3311 = vpop.f32.mrf.mxu0
        %v3312 = vadd.f32 0.0, %v3311
        %3313 = vmatmul.bf16.gmra.mxu0 %v619
        %v3314 = vpop.f32.mrf.mxu0
        %v3315 = vadd.f32 0.0, %v3314
        %v3316 = vpop.f32.mrf.mxu0
        %v3317 = vadd.f32 0.0, %v3316
        %3318 = vmatmul.bf16.gmra.mxu0 %v622
        %v3319 = vpop.f32.mrf.mxu0
        %v3320 = vadd.f32 0.0, %v3319
        %v3321 = vpop.f32.mrf.mxu0
        %v3322 = vadd.f32 0.0, %v3321
        %3323 = vmatmul.bf16.gmra.mxu0 %v625
        %v3324 = vpop.f32.mrf.mxu0
        %v3325 = vadd.f32 0.0, %v3324
        %v3326 = vpop.f32.mrf.mxu0
        %v3327 = vadd.f32 0.0, %v3326
        %3328 = vmatmul.bf16.gmra.mxu0 %v628
        %v3329 = vpop.f32.mrf.mxu0
        %v3330 = vadd.f32 0.0, %v3329
        %v3331 = vpop.f32.mrf.mxu0
        %v3332 = vadd.f32 0.0, %v3331
        %3333 = vmatmul.bf16.gmra.mxu0 %v631
        %v3334 = vpop.f32.mrf.mxu0
        %v3335 = vadd.f32 0.0, %v3334
        %v3336 = vpop.f32.mrf.mxu0
        %v3337 = vadd.f32 0.0, %v3336
        %3338 = vmatmul.bf16.gmra.mxu0 %v634
        %v3339 = vpop.f32.mrf.mxu0
        %v3340 = vadd.f32 0.0, %v3339
        %v3341 = vpop.f32.mrf.mxu0
        %v3342 = vadd.f32 0.0, %v3341
        %3343 = vmatmul.bf16.gmra.mxu0 %v3222
        %v3344 = vpop.f32.mrf.mxu0
        %v3345 = vadd.f32 0.0, %v3344
        %v3346 = vpop.f32.mrf.mxu0
        %v3347 = vadd.f32 0.0, %v3346
        %3348 = vmatmul.bf16.gmra.mxu0 %v3225
        %v3349 = vpop.f32.mrf.mxu0
        %v3350 = vadd.f32 0.0, %v3349
        %v3351 = vpop.f32.mrf.mxu0
        %v3352 = vadd.f32 0.0, %v3351
        %3353 = vmatmul.bf16.gmra.mxu0 %v3228
        %v3354 = vpop.f32.mrf.mxu0
        %v3355 = vadd.f32 0.0, %v3354
        %v3356 = vpop.f32.mrf.mxu0
        %v3357 = vadd.f32 0.0, %v3356
        %3358 = vdwg.mxu0
        %v3359 = vld [vmem:[#allocation2] sm:$0xff]
        %v3360 = vld [vmem:[#allocation2 + $0x8] sm:$0xff]
        %v3361 = vld [vmem:[#allocation2 + $0x10] sm:$0xff]
        %v3362 = vld [vmem:[#allocation2 + $0x18] sm:$0xff]
        %v3363 = vld [vmem:[#allocation2 + $0x20] sm:$0xff]
        %v3364 = vld [vmem:[#allocation2 + $0x28] sm:$0xff]
        %v3365 = vld [vmem:[#allocation2 + $0x30] sm:$0xff]
        %v3366 = vld [vmem:[#allocation2 + $0x38] sm:$0xff]
        %v3367 = vld [vmem:[#allocation2 + $0x40] sm:$0xff]
        %v3368 = vld [vmem:[#allocation2 + $0x48] sm:$0xff]
        %v3369 = vld [vmem:[#allocation2 + $0x50] sm:$0xff]
        %v3370 = vld [vmem:[#allocation2 + $0x58] sm:$0xff]
        %v3371 = vld [vmem:[#allocation2 + $0x60] sm:$0xff]
        %v3372 = vld [vmem:[#allocation2 + $0x68] sm:$0xff]
        %v3373 = vld [vmem:[#allocation2 + $0x70] sm:$0xff]
        %v3374 = vld [vmem:[#allocation2 + $0x78] sm:$0xff]
        %v3375 = vld [vmem:[#allocation2 + $0x80] sm:$0xff]
        %v3376 = vld [vmem:[#allocation2 + $0x88] sm:$0xff]
        %v3377 = vld [vmem:[#allocation2 + $0x90] sm:$0xff]
        %v3378 = vld [vmem:[#allocation2 + $0x98] sm:$0xff]
        %v3379 = vld [vmem:[#allocation2 + $0xa0] sm:$0xff]
        %v3380 = vld [vmem:[#allocation2 + $0xa8] sm:$0xff]
        %v3381 = vld [vmem:[#allocation2 + $0xb0] sm:$0xff]
        %v3382 = vld [vmem:[#allocation2 + $0xb8] sm:$0xff]
        %v3383 = vld [vmem:[#allocation2 + $0xc0] sm:$0xff]
        %v3384 = vld [vmem:[#allocation2 + $0xc8] sm:$0xff]
        %v3385 = vld [vmem:[#allocation2 + $0xd0] sm:$0xff]
        %v3386 = vld [vmem:[#allocation2 + $0xd8] sm:$0xff]
        %v3387 = vld [vmem:[#allocation2 + $0xe0] sm:$0xff]
        %v3388 = vld [vmem:[#allocation2 + $0xe8] sm:$0xff]
        %v3389 = vld [vmem:[#allocation2 + $0xf0] sm:$0xff]
        %v3390 = vld [vmem:[#allocation2 + $0xf8] sm:$0xff]
        %v3391 = vld [vmem:[#allocation2 + $0x100] sm:$0xff]
        %v3392 = vld [vmem:[#allocation2 + $0x108] sm:$0xff]
        %v3393 = vld [vmem:[#allocation2 + $0x110] sm:$0xff]
        %v3394 = vld [vmem:[#allocation2 + $0x118] sm:$0xff]
        %v3395 = vld [vmem:[#allocation2 + $0x120] sm:$0xff]
        %v3396 = vld [vmem:[#allocation2 + $0x128] sm:$0xff]
        %v3397 = vld [vmem:[#allocation2 + $0x130] sm:$0xff]
        %v3398 = vld [vmem:[#allocation2 + $0x138] sm:$0xff]
        %v3399 = vld [vmem:[#allocation2 + $0x140] sm:$0xff]
        %v3400 = vld [vmem:[#allocation2 + $0x148] sm:$0xff]
        %v3401 = vld [vmem:[#allocation2 + $0x150] sm:$0xff]
        %v3402 = vld [vmem:[#allocation2 + $0x158] sm:$0xff]
        %v3403 = vld [vmem:[#allocation2 + $0x160] sm:$0xff]
        %v3404 = vld [vmem:[#allocation2 + $0x168] sm:$0xff]
        %v3405 = vld [vmem:[#allocation2 + $0x170] sm:$0xff]
        %v3406 = vld [vmem:[#allocation2 + $0x178] sm:$0xff]
        %v3407 = vadd.f32 %v3359, %v3240
        %v3408 = vadd.f32 %v3360, %v3242
        %v3409 = vadd.f32 %v3361, %v3245
        %v3410 = vadd.f32 %v3362, %v3247
        %v3411 = vadd.f32 %v3363, %v3250
        %v3412 = vadd.f32 %v3364, %v3252
        %v3413 = vadd.f32 %v3365, %v3255
        %v3414 = vadd.f32 %v3366, %v3257
        %v3415 = vadd.f32 %v3367, %v3260
        %v3416 = vadd.f32 %v3368, %v3262
        %v3417 = vadd.f32 %v3369, %v3265
        %v3418 = vadd.f32 %v3370, %v3267
        %v3419 = vadd.f32 %v3371, %v3270
        %v3420 = vadd.f32 %v3372, %v3272
        %v3421 = vadd.f32 %v3373, %v3275
        %v3422 = vadd.f32 %v3374, %v3277
        %v3423 = vadd.f32 %v3375, %v3280
        %v3424 = vadd.f32 %v3376, %v3282
        %v3425 = vadd.f32 %v3377, %v3285
        %v3426 = vadd.f32 %v3378, %v3287
        %v3427 = vadd.f32 %v3379, %v3290
        %v3428 = vadd.f32 %v3380, %v3292
        %v3429 = vadd.f32 %v3381, %v3295
        %v3430 = vadd.f32 %v3382, %v3297
        %v3431 = vadd.f32 %v3383, %v3300
        %v3432 = vadd.f32 %v3384, %v3302
        %v3433 = vadd.f32 %v3385, %v3305
        %v3434 = vadd.f32 %v3386, %v3307
        %v3435 = vadd.f32 %v3387, %v3310
        %v3436 = vadd.f32 %v3388, %v3312
        %v3437 = vadd.f32 %v3389, %v3315
        %v3438 = vadd.f32 %v3390, %v3317
        %v3439 = vadd.f32 %v3391, %v3320
        %v3440 = vadd.f32 %v3392, %v3322
        %v3441 = vadd.f32 %v3393, %v3325
        %v3442 = vadd.f32 %v3394, %v3327
        %v3443 = vadd.f32 %v3395, %v3330
        %v3444 = vadd.f32 %v3396, %v3332
        %v3445 = vadd.f32 %v3397, %v3335
        %v3446 = vadd.f32 %v3398, %v3337
        %v3447 = vadd.f32 %v3399, %v3340
        %v3448 = vadd.f32 %v3400, %v3342
        %v3449 = vadd.f32 %v3401, %v3345
        %v3450 = vadd.f32 %v3402, %v3347
        %v3451 = vadd.f32 %v3403, %v3350
        %v3452 = vadd.f32 %v3404, %v3352
        %v3453 = vadd.f32 %v3405, %v3355
        %v3454 = vadd.f32 %v3406, %v3357
        %3455 = vst [vmem:[#allocation2] sm:$0xff] %v3407
        %3456 = vst [vmem:[#allocation2 + $0x8] sm:$0xff] %v3408
        %3457 = vst [vmem:[#allocation2 + $0x10] sm:$0xff] %v3409
        %3458 = vst [vmem:[#allocation2 + $0x18] sm:$0xff] %v3410
        %3459 = vst [vmem:[#allocation2 + $0x20] sm:$0xff] %v3411
        %3460 = vst [vmem:[#allocation2 + $0x28] sm:$0xff] %v3412
        %3461 = vst [vmem:[#allocation2 + $0x30] sm:$0xff] %v3413
        %3462 = vst [vmem:[#allocation2 + $0x38] sm:$0xff] %v3414
        %3463 = vst [vmem:[#allocation2 + $0x40] sm:$0xff] %v3415
        %3464 = vst [vmem:[#allocation2 + $0x48] sm:$0xff] %v3416
        %3465 = vst [vmem:[#allocation2 + $0x50] sm:$0xff] %v3417
        %3466 = vst [vmem:[#allocation2 + $0x58] sm:$0xff] %v3418
        %3467 = vst [vmem:[#allocation2 + $0x60] sm:$0xff] %v3419
        %3468 = vst [vmem:[#allocation2 + $0x68] sm:$0xff] %v3420
        %3469 = vst [vmem:[#allocation2 + $0x70] sm:$0xff] %v3421
        %3470 = vst [vmem:[#allocation2 + $0x78] sm:$0xff] %v3422
        %3471 = vst [vmem:[#allocation2 + $0x80] sm:$0xff] %v3423
        %3472 = vst [vmem:[#allocation2 + $0x88] sm:$0xff] %v3424
        %3473 = vst [vmem:[#allocation2 + $0x90] sm:$0xff] %v3425
        %3474 = vst [vmem:[#allocation2 + $0x98] sm:$0xff] %v3426
        %3475 = vst [vmem:[#allocation2 + $0xa0] sm:$0xff] %v3427
        %3476 = vst [vmem:[#allocation2 + $0xa8] sm:$0xff] %v3428
        %3477 = vst [vmem:[#allocation2 + $0xb0] sm:$0xff] %v3429
        %3478 = vst [vmem:[#allocation2 + $0xb8] sm:$0xff] %v3430
        %3479 = vst [vmem:[#allocation2 + $0xc0] sm:$0xff] %v3431
        %3480 = vst [vmem:[#allocation2 + $0xc8] sm:$0xff] %v3432
        %3481 = vst [vmem:[#allocation2 + $0xd0] sm:$0xff] %v3433
        %3482 = vst [vmem:[#allocation2 + $0xd8] sm:$0xff] %v3434
        %3483 = vst [vmem:[#allocation2 + $0xe0] sm:$0xff] %v3435
        %3484 = vst [vmem:[#allocation2 + $0xe8] sm:$0xff] %v3436
        %3485 = vst [vmem:[#allocation2 + $0xf0] sm:$0xff] %v3437
        %3486 = vst [vmem:[#allocation2 + $0xf8] sm:$0xff] %v3438
        %3487 = vst [vmem:[#allocation2 + $0x100] sm:$0xff] %v3439
        %3488 = vst [vmem:[#allocation2 + $0x108] sm:$0xff] %v3440
        %3489 = vst [vmem:[#allocation2 + $0x110] sm:$0xff] %v3441
        %3490 = vst [vmem:[#allocation2 + $0x118] sm:$0xff] %v3442
        %3491 = vst [vmem:[#allocation2 + $0x120] sm:$0xff] %v3443
        %3492 = vst [vmem:[#allocation2 + $0x128] sm:$0xff] %v3444
        %3493 = vst [vmem:[#allocation2 + $0x130] sm:$0xff] %v3445
        %3494 = vst [vmem:[#allocation2 + $0x138] sm:$0xff] %v3446
        %3495 = vst [vmem:[#allocation2 + $0x140] sm:$0xff] %v3447
        %3496 = vst [vmem:[#allocation2 + $0x148] sm:$0xff] %v3448
        %3497 = vst [vmem:[#allocation2 + $0x150] sm:$0xff] %v3449
        %3498 = vst [vmem:[#allocation2 + $0x158] sm:$0xff] %v3450
        %3499 = vst [vmem:[#allocation2 + $0x160] sm:$0xff] %v3451
        %3500 = vst [vmem:[#allocation2 + $0x168] sm:$0xff] %v3452
        %3501 = vst [vmem:[#allocation2 + $0x170] sm:$0xff] %v3453
        %3502 = vst [vmem:[#allocation2 + $0x178] sm:$0xff] %v3454
        %s3503 = scalar_lea.vmem [#allocation7], 224
        %v3504 = vld [vmem:[%s3503] sm:$0xf]
        %v3505 = vld [vmem:[%s3503 + $0x4] sm:$0xf]
        %v3506 = vld [vmem:[%s3503 + $0x8] sm:$0xf]
        %v3507 = vld [vmem:[%s3503 + $0xc] sm:$0xf]
        %v3508 = vld [vmem:[%s3503 + $0x10] sm:$0xf]
        %v3509 = vld [vmem:[%s3503 + $0x14] sm:$0xf]
        %v3510 = vld [vmem:[%s3503 + $0x18] sm:$0xf]
        %v3511 = vld [vmem:[%s3503 + $0x1c] sm:$0xf]
        %v3513 = vunpack.c.l.b16 %v410
        %v3514 = vpack.c.b16 %v3513, %v3513
        %v3515 = vshll.u32 %v3194, 16
        %v3517 = vrot.slane %v3515, 1
        %v3518 = vsel %vm825, %v992, %v3517
        %v3519 = vshrl.u32 %v3194, 16
        %v3521 = vor.u32 %v3519, %v3517
        %v3522 = vshll.u32 %v3195, 16
        %v3524 = vrot.slane %v3522, 1
        %v3525 = vsel %vm825, %v3521, %v3524
        %v3526 = vshrl.u32 %v3195, 16
        %v3528 = vor.u32 %v3526, %v3524
        %v3529 = vshll.u32 %v3196, 16
        %v3531 = vrot.slane %v3529, 1
        %v3532 = vsel %vm825, %v3528, %v3531
        %v3533 = vshrl.u32 %v3196, 16
        %v3535 = vor.u32 %v3533, %v3531
        %v3537 = vshll.u32 %v3514, 16
        %v3539 = vrot.slane %v3537, 1
        %v3540 = vsel %vm825, %v3535, %v3539
        %v3549 = vunpack.c.l.b16 %v3504
        %v3550 = vunpack.c.l.b16 %v3505
        %v3551 = vunpack.c.l.b16 %v3506
        %v3552 = vunpack.c.l.b16 %v3507
        %v3553 = vunpack.c.l.b16 %v3508
        %v3554 = vunpack.c.l.b16 %v3509
        %v3555 = vunpack.c.l.b16 %v3510
        %v3556 = vunpack.c.l.b16 %v3511
        %v3557 = vpack.c.b16 %v3550, %v3549
        %v3558 = vpack.c.b16 %v3552, %v3551
        %v3559 = vpack.c.b16 %v3554, %v3553
        %v3560 = vpack.c.b16 %v3556, %v3555
        %v3566 = vsel %vm563, %v3518, 0
        %v3569 = vsel %vm563, %v3525, 0
        %v3572 = vsel %vm563, %v3532, 0
        %v3575 = vsel %vm563, %v3540, 0
        %3577 = vmatpush.bf16.msra.mxu0 0
        %3578 = vmatpush.bf16.msra.mxu0 0
        %3579 = vmatpush.bf16.msra.mxu0 0
        %3580 = vmatpush.bf16.msra.mxu0 0
        %3581 = vmatpush.bf16.msra.mxu0 %v3560
        %3582 = vmatpush.bf16.msra.mxu0 %v3559
        %3583 = vmatpush.bf16.msra.mxu0 %v3558
        %3584 = vmatpush.bf16.msra.mxu0 %v3557
        %3585 = vmatmul.bf16.gmra.mxu0 %v1032
        %v3586 = vpop.f32.mrf.mxu0
        %v3587 = vadd.f32 0.0, %v3586
        %v3588 = vpop.f32.mrf.mxu0
        %v3589 = vadd.f32 0.0, %v3588
        %3590 = vmatmul.bf16.gmra.mxu0 %v1035
        %v3591 = vpop.f32.mrf.mxu0
        %v3592 = vadd.f32 0.0, %v3591
        %v3593 = vpop.f32.mrf.mxu0
        %v3594 = vadd.f32 0.0, %v3593
        %3595 = vmatmul.bf16.gmra.mxu0 %v1038
        %v3596 = vpop.f32.mrf.mxu0
        %v3597 = vadd.f32 0.0, %v3596
        %v3598 = vpop.f32.mrf.mxu0
        %v3599 = vadd.f32 0.0, %v3598
        %3600 = vmatmul.bf16.gmra.mxu0 %v1041
        %v3601 = vpop.f32.mrf.mxu0
        %v3602 = vadd.f32 0.0, %v3601
        %v3603 = vpop.f32.mrf.mxu0
        %v3604 = vadd.f32 0.0, %v3603
        %3605 = vmatmul.bf16.gmra.mxu0 %v1044
        %v3606 = vpop.f32.mrf.mxu0
        %v3607 = vadd.f32 0.0, %v3606
        %v3608 = vpop.f32.mrf.mxu0
        %v3609 = vadd.f32 0.0, %v3608
        %3610 = vmatmul.bf16.gmra.mxu0 %v1047
        %v3611 = vpop.f32.mrf.mxu0
        %v3612 = vadd.f32 0.0, %v3611
        %v3613 = vpop.f32.mrf.mxu0
        %v3614 = vadd.f32 0.0, %v3613
        %3615 = vmatmul.bf16.gmra.mxu0 %v1050
        %v3616 = vpop.f32.mrf.mxu0
        %v3617 = vadd.f32 0.0, %v3616
        %v3618 = vpop.f32.mrf.mxu0
        %v3619 = vadd.f32 0.0, %v3618
        %3620 = vmatmul.bf16.gmra.mxu0 %v1053
        %v3621 = vpop.f32.mrf.mxu0
        %v3622 = vadd.f32 0.0, %v3621
        %v3623 = vpop.f32.mrf.mxu0
        %v3624 = vadd.f32 0.0, %v3623
        %3625 = vmatmul.bf16.gmra.mxu0 %v1056
        %v3626 = vpop.f32.mrf.mxu0
        %v3627 = vadd.f32 0.0, %v3626
        %v3628 = vpop.f32.mrf.mxu0
        %v3629 = vadd.f32 0.0, %v3628
        %3630 = vmatmul.bf16.gmra.mxu0 %v1059
        %v3631 = vpop.f32.mrf.mxu0
        %v3632 = vadd.f32 0.0, %v3631
        %v3633 = vpop.f32.mrf.mxu0
        %v3634 = vadd.f32 0.0, %v3633
        %3635 = vmatmul.bf16.gmra.mxu0 %v1062
        %v3636 = vpop.f32.mrf.mxu0
        %v3637 = vadd.f32 0.0, %v3636
        %v3638 = vpop.f32.mrf.mxu0
        %v3639 = vadd.f32 0.0, %v3638
        %3640 = vmatmul.bf16.gmra.mxu0 %v1065
        %v3641 = vpop.f32.mrf.mxu0
        %v3642 = vadd.f32 0.0, %v3641
        %v3643 = vpop.f32.mrf.mxu0
        %v3644 = vadd.f32 0.0, %v3643
        %3645 = vmatmul.bf16.gmra.mxu0 %v1068
        %v3646 = vpop.f32.mrf.mxu0
        %v3647 = vadd.f32 0.0, %v3646
        %v3648 = vpop.f32.mrf.mxu0
        %v3649 = vadd.f32 0.0, %v3648
        %3650 = vmatmul.bf16.gmra.mxu0 %v1071
        %v3651 = vpop.f32.mrf.mxu0
        %v3652 = vadd.f32 0.0, %v3651
        %v3653 = vpop.f32.mrf.mxu0
        %v3654 = vadd.f32 0.0, %v3653
        %3655 = vmatmul.bf16.gmra.mxu0 %v1074
        %v3656 = vpop.f32.mrf.mxu0
        %v3657 = vadd.f32 0.0, %v3656
        %v3658 = vpop.f32.mrf.mxu0
        %v3659 = vadd.f32 0.0, %v3658
        %3660 = vmatmul.bf16.gmra.mxu0 %v1077
        %v3661 = vpop.f32.mrf.mxu0
        %v3662 = vadd.f32 0.0, %v3661
        %v3663 = vpop.f32.mrf.mxu0
        %v3664 = vadd.f32 0.0, %v3663
        %3665 = vmatmul.bf16.gmra.mxu0 %v1080
        %v3666 = vpop.f32.mrf.mxu0
        %v3667 = vadd.f32 0.0, %v3666
        %v3668 = vpop.f32.mrf.mxu0
        %v3669 = vadd.f32 0.0, %v3668
        %3670 = vmatmul.bf16.gmra.mxu0 %v1083
        %v3671 = vpop.f32.mrf.mxu0
        %v3672 = vadd.f32 0.0, %v3671
        %v3673 = vpop.f32.mrf.mxu0
        %v3674 = vadd.f32 0.0, %v3673
        %3675 = vmatmul.bf16.gmra.mxu0 %v1086
        %v3676 = vpop.f32.mrf.mxu0
        %v3677 = vadd.f32 0.0, %v3676
        %v3678 = vpop.f32.mrf.mxu0
        %v3679 = vadd.f32 0.0, %v3678
        %3680 = vmatmul.bf16.gmra.mxu0 %v1089
        %v3681 = vpop.f32.mrf.mxu0
        %v3682 = vadd.f32 0.0, %v3681
        %v3683 = vpop.f32.mrf.mxu0
        %v3684 = vadd.f32 0.0, %v3683
        %3685 = vmatmul.bf16.gmra.mxu0 %v3566
        %v3686 = vpop.f32.mrf.mxu0
        %v3687 = vadd.f32 0.0, %v3686
        %v3688 = vpop.f32.mrf.mxu0
        %v3689 = vadd.f32 0.0, %v3688
        %3690 = vmatmul.bf16.gmra.mxu0 %v3569
        %v3691 = vpop.f32.mrf.mxu0
        %v3692 = vadd.f32 0.0, %v3691
        %v3693 = vpop.f32.mrf.mxu0
        %v3694 = vadd.f32 0.0, %v3693
        %3695 = vmatmul.bf16.gmra.mxu0 %v3572
        %v3696 = vpop.f32.mrf.mxu0
        %v3697 = vadd.f32 0.0, %v3696
        %v3698 = vpop.f32.mrf.mxu0
        %v3699 = vadd.f32 0.0, %v3698
        %3700 = vmatmul.bf16.gmra.mxu0 %v3575
        %v3701 = vpop.f32.mrf.mxu0
        %v3702 = vadd.f32 0.0, %v3701
        %v3703 = vpop.f32.mrf.mxu0
        %v3704 = vadd.f32 0.0, %v3703
        %3705 = vdwg.mxu0
        %v3706 = vld [vmem:[#allocation2] sm:$0xff]
        %v3707 = vld [vmem:[#allocation2 + $0x8] sm:$0xff]
        %v3708 = vld [vmem:[#allocation2 + $0x10] sm:$0xff]
        %v3709 = vld [vmem:[#allocation2 + $0x18] sm:$0xff]
        %v3710 = vld [vmem:[#allocation2 + $0x20] sm:$0xff]
        %v3711 = vld [vmem:[#allocation2 + $0x28] sm:$0xff]
        %v3712 = vld [vmem:[#allocation2 + $0x30] sm:$0xff]
        %v3713 = vld [vmem:[#allocation2 + $0x38] sm:$0xff]
        %v3714 = vld [vmem:[#allocation2 + $0x40] sm:$0xff]
        %v3715 = vld [vmem:[#allocation2 + $0x48] sm:$0xff]
        %v3716 = vld [vmem:[#allocation2 + $0x50] sm:$0xff]
        %v3717 = vld [vmem:[#allocation2 + $0x58] sm:$0xff]
        %v3718 = vld [vmem:[#allocation2 + $0x60] sm:$0xff]
        %v3719 = vld [vmem:[#allocation2 + $0x68] sm:$0xff]
        %v3720 = vld [vmem:[#allocation2 + $0x70] sm:$0xff]
        %v3721 = vld [vmem:[#allocation2 + $0x78] sm:$0xff]
        %v3722 = vld [vmem:[#allocation2 + $0x80] sm:$0xff]
        %v3723 = vld [vmem:[#allocation2 + $0x88] sm:$0xff]
        %v3724 = vld [vmem:[#allocation2 + $0x90] sm:$0xff]
        %v3725 = vld [vmem:[#allocation2 + $0x98] sm:$0xff]
        %v3726 = vld [vmem:[#allocation2 + $0xa0] sm:$0xff]
        %v3727 = vld [vmem:[#allocation2 + $0xa8] sm:$0xff]
        %v3728 = vld [vmem:[#allocation2 + $0xb0] sm:$0xff]
        %v3729 = vld [vmem:[#allocation2 + $0xb8] sm:$0xff]
        %v3730 = vld [vmem:[#allocation2 + $0xc0] sm:$0xff]
        %v3731 = vld [vmem:[#allocation2 + $0xc8] sm:$0xff]
        %v3732 = vld [vmem:[#allocation2 + $0xd0] sm:$0xff]
        %v3733 = vld [vmem:[#allocation2 + $0xd8] sm:$0xff]
        %v3734 = vld [vmem:[#allocation2 + $0xe0] sm:$0xff]
        %v3735 = vld [vmem:[#allocation2 + $0xe8] sm:$0xff]
        %v3736 = vld [vmem:[#allocation2 + $0xf0] sm:$0xff]
        %v3737 = vld [vmem:[#allocation2 + $0xf8] sm:$0xff]
        %v3738 = vld [vmem:[#allocation2 + $0x100] sm:$0xff]
        %v3739 = vld [vmem:[#allocation2 + $0x108] sm:$0xff]
        %v3740 = vld [vmem:[#allocation2 + $0x110] sm:$0xff]
        %v3741 = vld [vmem:[#allocation2 + $0x118] sm:$0xff]
        %v3742 = vld [vmem:[#allocation2 + $0x120] sm:$0xff]
        %v3743 = vld [vmem:[#allocation2 + $0x128] sm:$0xff]
        %v3744 = vld [vmem:[#allocation2 + $0x130] sm:$0xff]
        %v3745 = vld [vmem:[#allocation2 + $0x138] sm:$0xff]
        %v3746 = vld [vmem:[#allocation2 + $0x140] sm:$0xff]
        %v3747 = vld [vmem:[#allocation2 + $0x148] sm:$0xff]
        %v3748 = vld [vmem:[#allocation2 + $0x150] sm:$0xff]
        %v3749 = vld [vmem:[#allocation2 + $0x158] sm:$0xff]
        %v3750 = vld [vmem:[#allocation2 + $0x160] sm:$0xff]
        %v3751 = vld [vmem:[#allocation2 + $0x168] sm:$0xff]
        %v3752 = vld [vmem:[#allocation2 + $0x170] sm:$0xff]
        %v3753 = vld [vmem:[#allocation2 + $0x178] sm:$0xff]
        %v3754 = vadd.f32 %v3706, %v3587
        %v3755 = vadd.f32 %v3707, %v3589
        %v3756 = vadd.f32 %v3708, %v3592
        %v3757 = vadd.f32 %v3709, %v3594
        %v3758 = vadd.f32 %v3710, %v3597
        %v3759 = vadd.f32 %v3711, %v3599
        %v3760 = vadd.f32 %v3712, %v3602
        %v3761 = vadd.f32 %v3713, %v3604
        %v3762 = vadd.f32 %v3714, %v3607
        %v3763 = vadd.f32 %v3715, %v3609
        %v3764 = vadd.f32 %v3716, %v3612
        %v3765 = vadd.f32 %v3717, %v3614
        %v3766 = vadd.f32 %v3718, %v3617
        %v3767 = vadd.f32 %v3719, %v3619
        %v3768 = vadd.f32 %v3720, %v3622
        %v3769 = vadd.f32 %v3721, %v3624
        %v3770 = vadd.f32 %v3722, %v3627
        %v3771 = vadd.f32 %v3723, %v3629
        %v3772 = vadd.f32 %v3724, %v3632
        %v3773 = vadd.f32 %v3725, %v3634
        %v3774 = vadd.f32 %v3726, %v3637
        %v3775 = vadd.f32 %v3727, %v3639
        %v3776 = vadd.f32 %v3728, %v3642
        %v3777 = vadd.f32 %v3729, %v3644
        %v3778 = vadd.f32 %v3730, %v3647
        %v3779 = vadd.f32 %v3731, %v3649
        %v3780 = vadd.f32 %v3732, %v3652
        %v3781 = vadd.f32 %v3733, %v3654
        %v3782 = vadd.f32 %v3734, %v3657
        %v3783 = vadd.f32 %v3735, %v3659
        %v3784 = vadd.f32 %v3736, %v3662
        %v3785 = vadd.f32 %v3737, %v3664
        %v3786 = vadd.f32 %v3738, %v3667
        %v3787 = vadd.f32 %v3739, %v3669
        %v3788 = vadd.f32 %v3740, %v3672
        %v3789 = vadd.f32 %v3741, %v3674
        %v3790 = vadd.f32 %v3742, %v3677
        %v3791 = vadd.f32 %v3743, %v3679
        %v3792 = vadd.f32 %v3744, %v3682
        %v3793 = vadd.f32 %v3745, %v3684
        %v3794 = vadd.f32 %v3746, %v3687
        %v3795 = vadd.f32 %v3747, %v3689
        %v3796 = vadd.f32 %v3748, %v3692
        %v3797 = vadd.f32 %v3749, %v3694
        %v3798 = vadd.f32 %v3750, %v3697
        %v3799 = vadd.f32 %v3751, %v3699
        %v3800 = vadd.f32 %v3752, %v3702
        %v3801 = vadd.f32 %v3753, %v3704
        %3802 = vst [vmem:[#allocation2] sm:$0xff] %v3754
        %3803 = vst [vmem:[#allocation2 + $0x8] sm:$0xff] %v3755
        %3804 = vst [vmem:[#allocation2 + $0x10] sm:$0xff] %v3756
        %3805 = vst [vmem:[#allocation2 + $0x18] sm:$0xff] %v3757
        %3806 = vst [vmem:[#allocation2 + $0x20] sm:$0xff] %v3758
        %3807 = vst [vmem:[#allocation2 + $0x28] sm:$0xff] %v3759
        %3808 = vst [vmem:[#allocation2 + $0x30] sm:$0xff] %v3760
        %3809 = vst [vmem:[#allocation2 + $0x38] sm:$0xff] %v3761
        %3810 = vst [vmem:[#allocation2 + $0x40] sm:$0xff] %v3762
        %3811 = vst [vmem:[#allocation2 + $0x48] sm:$0xff] %v3763
        %3812 = vst [vmem:[#allocation2 + $0x50] sm:$0xff] %v3764
        %3813 = vst [vmem:[#allocation2 + $0x58] sm:$0xff] %v3765
        %3814 = vst [vmem:[#allocation2 + $0x60] sm:$0xff] %v3766
        %3815 = vst [vmem:[#allocation2 + $0x68] sm:$0xff] %v3767
        %3816 = vst [vmem:[#allocation2 + $0x70] sm:$0xff] %v3768
        %3817 = vst [vmem:[#allocation2 + $0x78] sm:$0xff] %v3769
        %3818 = vst [vmem:[#allocation2 + $0x80] sm:$0xff] %v3770
        %3819 = vst [vmem:[#allocation2 + $0x88] sm:$0xff] %v3771
        %3820 = vst [vmem:[#allocation2 + $0x90] sm:$0xff] %v3772
        %3821 = vst [vmem:[#allocation2 + $0x98] sm:$0xff] %v3773
        %3822 = vst [vmem:[#allocation2 + $0xa0] sm:$0xff] %v3774
        %3823 = vst [vmem:[#allocation2 + $0xa8] sm:$0xff] %v3775
        %3824 = vst [vmem:[#allocation2 + $0xb0] sm:$0xff] %v3776
        %3825 = vst [vmem:[#allocation2 + $0xb8] sm:$0xff] %v3777
        %3826 = vst [vmem:[#allocation2 + $0xc0] sm:$0xff] %v3778
        %3827 = vst [vmem:[#allocation2 + $0xc8] sm:$0xff] %v3779
        %3828 = vst [vmem:[#allocation2 + $0xd0] sm:$0xff] %v3780
        %3829 = vst [vmem:[#allocation2 + $0xd8] sm:$0xff] %v3781
        %3830 = vst [vmem:[#allocation2 + $0xe0] sm:$0xff] %v3782
        %3831 = vst [vmem:[#allocation2 + $0xe8] sm:$0xff] %v3783
        %3832 = vst [vmem:[#allocation2 + $0xf0] sm:$0xff] %v3784
        %3833 = vst [vmem:[#allocation2 + $0xf8] sm:$0xff] %v3785
        %3834 = vst [vmem:[#allocation2 + $0x100] sm:$0xff] %v3786
        %3835 = vst [vmem:[#allocation2 + $0x108] sm:$0xff] %v3787
        %3836 = vst [vmem:[#allocation2 + $0x110] sm:$0xff] %v3788
        %3837 = vst [vmem:[#allocation2 + $0x118] sm:$0xff] %v3789
        %3838 = vst [vmem:[#allocation2 + $0x120] sm:$0xff] %v3790
        %3839 = vst [vmem:[#allocation2 + $0x128] sm:$0xff] %v3791
        %3840 = vst [vmem:[#allocation2 + $0x130] sm:$0xff] %v3792
        %3841 = vst [vmem:[#allocation2 + $0x138] sm:$0xff] %v3793
        %3842 = vst [vmem:[#allocation2 + $0x140] sm:$0xff] %v3794
        %3843 = vst [vmem:[#allocation2 + $0x148] sm:$0xff] %v3795
        %3844 = vst [vmem:[#allocation2 + $0x150] sm:$0xff] %v3796
        %3845 = vst [vmem:[#allocation2 + $0x158] sm:$0xff] %v3797
        %3846 = vst [vmem:[#allocation2 + $0x160] sm:$0xff] %v3798
        %3847 = vst [vmem:[#allocation2 + $0x168] sm:$0xff] %v3799
        %3848 = vst [vmem:[#allocation2 + $0x170] sm:$0xff] %v3800
        %3849 = vst [vmem:[#allocation2 + $0x178] sm:$0xff] %v3801
        %s3850 = scalar_lea.vmem [#allocation7], 256
        %v3851 = vld [vmem:[%s3850] sm:$0xf]
        %v3852 = vld [vmem:[%s3850 + $0x4] sm:$0xf]
        %v3853 = vld [vmem:[%s3850 + $0x8] sm:$0xf]
        %v3854 = vld [vmem:[%s3850 + $0xc] sm:$0xf]
        %v3855 = vld [vmem:[%s3850 + $0x10] sm:$0xf]
        %v3856 = vld [vmem:[%s3850 + $0x14] sm:$0xf]
        %v3857 = vld [vmem:[%s3850 + $0x18] sm:$0xf]
        %v3858 = vld [vmem:[%s3850 + $0x1c] sm:$0xf]
        %v3859 = vrot.slane %v3194, 1
        %v3860 = vsel %vm1376, %v1422, %v3859
        %v3861 = vrot.slane %v3195, 1
        %v3862 = vsel %vm1376, %v3859, %v3861
        %v3863 = vrot.slane %v3196, 1
        %v3864 = vsel %vm1376, %v3861, %v3863
        %v3865 = vrot.slane %v3514, 1
        %v3866 = vsel %vm1376, %v3863, %v3865
        %v3875 = vunpack.c.l.b16 %v3851
        %v3876 = vunpack.c.l.b16 %v3852
        %v3877 = vunpack.c.l.b16 %v3853
        %v3878 = vunpack.c.l.b16 %v3854
        %v3879 = vunpack.c.l.b16 %v3855
        %v3880 = vunpack.c.l.b16 %v3856
        %v3881 = vunpack.c.l.b16 %v3857
        %v3882 = vunpack.c.l.b16 %v3858
        %v3883 = vpack.c.b16 %v3876, %v3875
        %v3884 = vpack.c.b16 %v3878, %v3877
        %v3885 = vpack.c.b16 %v3880, %v3879
        %v3886 = vpack.c.b16 %v3882, %v3881
        %v3892 = vsel %vm563, %v3860, 0
        %v3895 = vsel %vm563, %v3862, 0
        %v3898 = vsel %vm563, %v3864, 0
        %v3901 = vsel %vm563, %v3866, 0
        %3903 = vmatpush.bf16.msra.mxu0 0
        %3904 = vmatpush.bf16.msra.mxu0 0
        %3905 = vmatpush.bf16.msra.mxu0 0
        %3906 = vmatpush.bf16.msra.mxu0 0
        %3907 = vmatpush.bf16.msra.mxu0 %v3886
        %3908 = vmatpush.bf16.msra.mxu0 %v3885
        %3909 = vmatpush.bf16.msra.mxu0 %v3884
        %3910 = vmatpush.bf16.msra.mxu0 %v3883
        %3911 = vmatmul.bf16.gmra.mxu0 %v1460
        %v3912 = vpop.f32.mrf.mxu0
        %v3913 = vadd.f32 0.0, %v3912
        %v3914 = vpop.f32.mrf.mxu0
        %v3915 = vadd.f32 0.0, %v3914
        %3916 = vmatmul.bf16.gmra.mxu0 %v1463
        %v3917 = vpop.f32.mrf.mxu0
        %v3918 = vadd.f32 0.0, %v3917
        %v3919 = vpop.f32.mrf.mxu0
        %v3920 = vadd.f32 0.0, %v3919
        %3921 = vmatmul.bf16.gmra.mxu0 %v1466
        %v3922 = vpop.f32.mrf.mxu0
        %v3923 = vadd.f32 0.0, %v3922
        %v3924 = vpop.f32.mrf.mxu0
        %v3925 = vadd.f32 0.0, %v3924
        %3926 = vmatmul.bf16.gmra.mxu0 %v1469
        %v3927 = vpop.f32.mrf.mxu0
        %v3928 = vadd.f32 0.0, %v3927
        %v3929 = vpop.f32.mrf.mxu0
        %v3930 = vadd.f32 0.0, %v3929
        %3931 = vmatmul.bf16.gmra.mxu0 %v1472
        %v3932 = vpop.f32.mrf.mxu0
        %v3933 = vadd.f32 0.0, %v3932
        %v3934 = vpop.f32.mrf.mxu0
        %v3935 = vadd.f32 0.0, %v3934
        %3936 = vmatmul.bf16.gmra.mxu0 %v1475
        %v3937 = vpop.f32.mrf.mxu0
        %v3938 = vadd.f32 0.0, %v3937
        %v3939 = vpop.f32.mrf.mxu0
        %v3940 = vadd.f32 0.0, %v3939
        %3941 = vmatmul.bf16.gmra.mxu0 %v1478
        %v3942 = vpop.f32.mrf.mxu0
        %v3943 = vadd.f32 0.0, %v3942
        %v3944 = vpop.f32.mrf.mxu0
        %v3945 = vadd.f32 0.0, %v3944
        %3946 = vmatmul.bf16.gmra.mxu0 %v1481
        %v3947 = vpop.f32.mrf.mxu0
        %v3948 = vadd.f32 0.0, %v3947
        %v3949 = vpop.f32.mrf.mxu0
        %v3950 = vadd.f32 0.0, %v3949
        %3951 = vmatmul.bf16.gmra.mxu0 %v1484
        %v3952 = vpop.f32.mrf.mxu0
        %v3953 = vadd.f32 0.0, %v3952
        %v3954 = vpop.f32.mrf.mxu0
        %v3955 = vadd.f32 0.0, %v3954
        %3956 = vmatmul.bf16.gmra.mxu0 %v1487
        %v3957 = vpop.f32.mrf.mxu0
        %v3958 = vadd.f32 0.0, %v3957
        %v3959 = vpop.f32.mrf.mxu0
        %v3960 = vadd.f32 0.0, %v3959
        %3961 = vmatmul.bf16.gmra.mxu0 %v1490
        %v3962 = vpop.f32.mrf.mxu0
        %v3963 = vadd.f32 0.0, %v3962
        %v3964 = vpop.f32.mrf.mxu0
        %v3965 = vadd.f32 0.0, %v3964
        %3966 = vmatmul.bf16.gmra.mxu0 %v1493
        %v3967 = vpop.f32.mrf.mxu0
        %v3968 = vadd.f32 0.0, %v3967
        %v3969 = vpop.f32.mrf.mxu0
        %v3970 = vadd.f32 0.0, %v3969
        %3971 = vmatmul.bf16.gmra.mxu0 %v1496
        %v3972 = vpop.f32.mrf.mxu0
        %v3973 = vadd.f32 0.0, %v3972
        %v3974 = vpop.f32.mrf.mxu0
        %v3975 = vadd.f32 0.0, %v3974
        %3976 = vmatmul.bf16.gmra.mxu0 %v1499
        %v3977 = vpop.f32.mrf.mxu0
        %v3978 = vadd.f32 0.0, %v3977
        %v3979 = vpop.f32.mrf.mxu0
        %v3980 = vadd.f32 0.0, %v3979
        %3981 = vmatmul.bf16.gmra.mxu0 %v1502
        %v3982 = vpop.f32.mrf.mxu0
        %v3983 = vadd.f32 0.0, %v3982
        %v3984 = vpop.f32.mrf.mxu0
        %v3985 = vadd.f32 0.0, %v3984
        %3986 = vmatmul.bf16.gmra.mxu0 %v1505
        %v3987 = vpop.f32.mrf.mxu0
        %v3988 = vadd.f32 0.0, %v3987
        %v3989 = vpop.f32.mrf.mxu0
        %v3990 = vadd.f32 0.0, %v3989
        %3991 = vmatmul.bf16.gmra.mxu0 %v1508
        %v3992 = vpop.f32.mrf.mxu0
        %v3993 = vadd.f32 0.0, %v3992
        %v3994 = vpop.f32.mrf.mxu0
        %v3995 = vadd.f32 0.0, %v3994
        %3996 = vmatmul.bf16.gmra.mxu0 %v1511
        %v3997 = vpop.f32.mrf.mxu0
        %v3998 = vadd.f32 0.0, %v3997
        %v3999 = vpop.f32.mrf.mxu0
        %v4000 = vadd.f32 0.0, %v3999
        %4001 = vmatmul.bf16.gmra.mxu0 %v1514
        %v4002 = vpop.f32.mrf.mxu0
        %v4003 = vadd.f32 0.0, %v4002
        %v4004 = vpop.f32.mrf.mxu0
        %v4005 = vadd.f32 0.0, %v4004
        %4006 = vmatmul.bf16.gmra.mxu0 %v1517
        %v4007 = vpop.f32.mrf.mxu0
        %v4008 = vadd.f32 0.0, %v4007
        %v4009 = vpop.f32.mrf.mxu0
        %v4010 = vadd.f32 0.0, %v4009
        %4011 = vmatmul.bf16.gmra.mxu0 %v3892
        %v4012 = vpop.f32.mrf.mxu0
        %v4013 = vadd.f32 0.0, %v4012
        %v4014 = vpop.f32.mrf.mxu0
        %v4015 = vadd.f32 0.0, %v4014
        %4016 = vmatmul.bf16.gmra.mxu0 %v3895
        %v4017 = vpop.f32.mrf.mxu0
        %v4018 = vadd.f32 0.0, %v4017
        %v4019 = vpop.f32.mrf.mxu0
        %v4020 = vadd.f32 0.0, %v4019
        %4021 = vmatmul.bf16.gmra.mxu0 %v3898
        %v4022 = vpop.f32.mrf.mxu0
        %v4023 = vadd.f32 0.0, %v4022
        %v4024 = vpop.f32.mrf.mxu0
        %v4025 = vadd.f32 0.0, %v4024
        %4026 = vmatmul.bf16.gmra.mxu0 %v3901
        %v4027 = vpop.f32.mrf.mxu0
        %v4028 = vadd.f32 0.0, %v4027
        %v4029 = vpop.f32.mrf.mxu0
        %v4030 = vadd.f32 0.0, %v4029
        %4031 = vdwg.mxu0
        %v4032 = vld [vmem:[#allocation2] sm:$0xff]
        %v4033 = vld [vmem:[#allocation2 + $0x8] sm:$0xff]
        %v4034 = vld [vmem:[#allocation2 + $0x10] sm:$0xff]
        %v4035 = vld [vmem:[#allocation2 + $0x18] sm:$0xff]
        %v4036 = vld [vmem:[#allocation2 + $0x20] sm:$0xff]
        %v4037 = vld [vmem:[#allocation2 + $0x28] sm:$0xff]
        %v4038 = vld [vmem:[#allocation2 + $0x30] sm:$0xff]
        %v4039 = vld [vmem:[#allocation2 + $0x38] sm:$0xff]
        %v4040 = vld [vmem:[#allocation2 + $0x40] sm:$0xff]
        %v4041 = vld [vmem:[#allocation2 + $0x48] sm:$0xff]
        %v4042 = vld [vmem:[#allocation2 + $0x50] sm:$0xff]
        %v4043 = vld [vmem:[#allocation2 + $0x58] sm:$0xff]
        %v4044 = vld [vmem:[#allocation2 + $0x60] sm:$0xff]
        %v4045 = vld [vmem:[#allocation2 + $0x68] sm:$0xff]
        %v4046 = vld [vmem:[#allocation2 + $0x70] sm:$0xff]
        %v4047 = vld [vmem:[#allocation2 + $0x78] sm:$0xff]
        %v4048 = vld [vmem:[#allocation2 + $0x80] sm:$0xff]
        %v4049 = vld [vmem:[#allocation2 + $0x88] sm:$0xff]
        %v4050 = vld [vmem:[#allocation2 + $0x90] sm:$0xff]
        %v4051 = vld [vmem:[#allocation2 + $0x98] sm:$0xff]
        %v4052 = vld [vmem:[#allocation2 + $0xa0] sm:$0xff]
        %v4053 = vld [vmem:[#allocation2 + $0xa8] sm:$0xff]
        %v4054 = vld [vmem:[#allocation2 + $0xb0] sm:$0xff]
        %v4055 = vld [vmem:[#allocation2 + $0xb8] sm:$0xff]
        %v4056 = vld [vmem:[#allocation2 + $0xc0] sm:$0xff]
        %v4057 = vld [vmem:[#allocation2 + $0xc8] sm:$0xff]
        %v4058 = vld [vmem:[#allocation2 + $0xd0] sm:$0xff]
        %v4059 = vld [vmem:[#allocation2 + $0xd8] sm:$0xff]
        %v4060 = vld [vmem:[#allocation2 + $0xe0] sm:$0xff]
        %v4061 = vld [vmem:[#allocation2 + $0xe8] sm:$0xff]
        %v4062 = vld [vmem:[#allocation2 + $0xf0] sm:$0xff]
        %v4063 = vld [vmem:[#allocation2 + $0xf8] sm:$0xff]
        %v4064 = vld [vmem:[#allocation2 + $0x100] sm:$0xff]
        %v4065 = vld [vmem:[#allocation2 + $0x108] sm:$0xff]
        %v4066 = vld [vmem:[#allocation2 + $0x110] sm:$0xff]
        %v4067 = vld [vmem:[#allocation2 + $0x118] sm:$0xff]
        %v4068 = vld [vmem:[#allocation2 + $0x120] sm:$0xff]
        %v4069 = vld [vmem:[#allocation2 + $0x128] sm:$0xff]
        %v4070 = vld [vmem:[#allocation2 + $0x130] sm:$0xff]
        %v4071 = vld [vmem:[#allocation2 + $0x138] sm:$0xff]
        %v4072 = vld [vmem:[#allocation2 + $0x140] sm:$0xff]
        %v4073 = vld [vmem:[#allocation2 + $0x148] sm:$0xff]
        %v4074 = vld [vmem:[#allocation2 + $0x150] sm:$0xff]
        %v4075 = vld [vmem:[#allocation2 + $0x158] sm:$0xff]
        %v4076 = vld [vmem:[#allocation2 + $0x160] sm:$0xff]
        %v4077 = vld [vmem:[#allocation2 + $0x168] sm:$0xff]
        %v4078 = vld [vmem:[#allocation2 + $0x170] sm:$0xff]
        %v4079 = vld [vmem:[#allocation2 + $0x178] sm:$0xff]
        %v4080 = vadd.f32 %v4032, %v3913
        %v4081 = vadd.f32 %v4033, %v3915
        %v4082 = vadd.f32 %v4034, %v3918
        %v4083 = vadd.f32 %v4035, %v3920
        %v4084 = vadd.f32 %v4036, %v3923
        %v4085 = vadd.f32 %v4037, %v3925
        %v4086 = vadd.f32 %v4038, %v3928
        %v4087 = vadd.f32 %v4039, %v3930
        %v4088 = vadd.f32 %v4040, %v3933
        %v4089 = vadd.f32 %v4041, %v3935
        %v4090 = vadd.f32 %v4042, %v3938
        %v4091 = vadd.f32 %v4043, %v3940
        %v4092 = vadd.f32 %v4044, %v3943
        %v4093 = vadd.f32 %v4045, %v3945
        %v4094 = vadd.f32 %v4046, %v3948
        %v4095 = vadd.f32 %v4047, %v3950
        %v4096 = vadd.f32 %v4048, %v3953
        %v4097 = vadd.f32 %v4049, %v3955
        %v4098 = vadd.f32 %v4050, %v3958
        %v4099 = vadd.f32 %v4051, %v3960
        %v4100 = vadd.f32 %v4052, %v3963
        %v4101 = vadd.f32 %v4053, %v3965
        %v4102 = vadd.f32 %v4054, %v3968
        %v4103 = vadd.f32 %v4055, %v3970
        %v4104 = vadd.f32 %v4056, %v3973
        %v4105 = vadd.f32 %v4057, %v3975
        %v4106 = vadd.f32 %v4058, %v3978
        %v4107 = vadd.f32 %v4059, %v3980
        %v4108 = vadd.f32 %v4060, %v3983
        %v4109 = vadd.f32 %v4061, %v3985
        %v4110 = vadd.f32 %v4062, %v3988
        %v4111 = vadd.f32 %v4063, %v3990
        %v4112 = vadd.f32 %v4064, %v3993
        %v4113 = vadd.f32 %v4065, %v3995
        %v4114 = vadd.f32 %v4066, %v3998
        %v4115 = vadd.f32 %v4067, %v4000
        %v4116 = vadd.f32 %v4068, %v4003
        %v4117 = vadd.f32 %v4069, %v4005
        %v4118 = vadd.f32 %v4070, %v4008
        %v4119 = vadd.f32 %v4071, %v4010
        %v4120 = vadd.f32 %v4072, %v4013
        %v4121 = vadd.f32 %v4073, %v4015
        %v4122 = vadd.f32 %v4074, %v4018
        %v4123 = vadd.f32 %v4075, %v4020
        %v4124 = vadd.f32 %v4076, %v4023
        %v4125 = vadd.f32 %v4077, %v4025
        %v4126 = vadd.f32 %v4078, %v4028
        %v4127 = vadd.f32 %v4079, %v4030
        %4128 = vst [vmem:[#allocation2] sm:$0xff] %v4080
        %4129 = vst [vmem:[#allocation2 + $0x8] sm:$0xff] %v4081
        %4130 = vst [vmem:[#allocation2 + $0x10] sm:$0xff] %v4082
        %4131 = vst [vmem:[#allocation2 + $0x18] sm:$0xff] %v4083
        %4132 = vst [vmem:[#allocation2 + $0x20] sm:$0xff] %v4084
        %4133 = vst [vmem:[#allocation2 + $0x28] sm:$0xff] %v4085
        %4134 = vst [vmem:[#allocation2 + $0x30] sm:$0xff] %v4086
        %4135 = vst [vmem:[#allocation2 + $0x38] sm:$0xff] %v4087
        %4136 = vst [vmem:[#allocation2 + $0x40] sm:$0xff] %v4088
        %4137 = vst [vmem:[#allocation2 + $0x48] sm:$0xff] %v4089
        %4138 = vst [vmem:[#allocation2 + $0x50] sm:$0xff] %v4090
        %4139 = vst [vmem:[#allocation2 + $0x58] sm:$0xff] %v4091
        %4140 = vst [vmem:[#allocation2 + $0x60] sm:$0xff] %v4092
        %4141 = vst [vmem:[#allocation2 + $0x68] sm:$0xff] %v4093
        %4142 = vst [vmem:[#allocation2 + $0x70] sm:$0xff] %v4094
        %4143 = vst [vmem:[#allocation2 + $0x78] sm:$0xff] %v4095
        %4144 = vst [vmem:[#allocation2 + $0x80] sm:$0xff] %v4096
        %4145 = vst [vmem:[#allocation2 + $0x88] sm:$0xff] %v4097
        %4146 = vst [vmem:[#allocation2 + $0x90] sm:$0xff] %v4098
        %4147 = vst [vmem:[#allocation2 + $0x98] sm:$0xff] %v4099
        %4148 = vst [vmem:[#allocation2 + $0xa0] sm:$0xff] %v4100
        %4149 = vst [vmem:[#allocation2 + $0xa8] sm:$0xff] %v4101
        %4150 = vst [vmem:[#allocation2 + $0xb0] sm:$0xff] %v4102
        %4151 = vst [vmem:[#allocation2 + $0xb8] sm:$0xff] %v4103
        %4152 = vst [vmem:[#allocation2 + $0xc0] sm:$0xff] %v4104
        %4153 = vst [vmem:[#allocation2 + $0xc8] sm:$0xff] %v4105
        %4154 = vst [vmem:[#allocation2 + $0xd0] sm:$0xff] %v4106
        %4155 = vst [vmem:[#allocation2 + $0xd8] sm:$0xff] %v4107
        %4156 = vst [vmem:[#allocation2 + $0xe0] sm:$0xff] %v4108
        %4157 = vst [vmem:[#allocation2 + $0xe8] sm:$0xff] %v4109
        %4158 = vst [vmem:[#allocation2 + $0xf0] sm:$0xff] %v4110
        %4159 = vst [vmem:[#allocation2 + $0xf8] sm:$0xff] %v4111
        %4160 = vst [vmem:[#allocation2 + $0x100] sm:$0xff] %v4112
        %4161 = vst [vmem:[#allocation2 + $0x108] sm:$0xff] %v4113
        %4162 = vst [vmem:[#allocation2 + $0x110] sm:$0xff] %v4114
        %4163 = vst [vmem:[#allocation2 + $0x118] sm:$0xff] %v4115
        %4164 = vst [vmem:[#allocation2 + $0x120] sm:$0xff] %v4116
        %4165 = vst [vmem:[#allocation2 + $0x128] sm:$0xff] %v4117
        %4166 = vst [vmem:[#allocation2 + $0x130] sm:$0xff] %v4118
        %4167 = vst [vmem:[#allocation2 + $0x138] sm:$0xff] %v4119
        %4168 = vst [vmem:[#allocation2 + $0x140] sm:$0xff] %v4120
        %4169 = vst [vmem:[#allocation2 + $0x148] sm:$0xff] %v4121
        %4170 = vst [vmem:[#allocation2 + $0x150] sm:$0xff] %v4122
        %4171 = vst [vmem:[#allocation2 + $0x158] sm:$0xff] %v4123
        %4172 = vst [vmem:[#allocation2 + $0x160] sm:$0xff] %v4124
        %4173 = vst [vmem:[#allocation2 + $0x168] sm:$0xff] %v4125
        %4174 = vst [vmem:[#allocation2 + $0x170] sm:$0xff] %v4126
        %4175 = vst [vmem:[#allocation2 + $0x178] sm:$0xff] %v4127
        %v4176 = vld [vmem:[#allocation2] sm:$0xff]
        %v4177 = vld [vmem:[#allocation2 + $0x8] sm:$0xff]
        %v4178 = vld [vmem:[#allocation2 + $0x10] sm:$0xff]
        %v4179 = vld [vmem:[#allocation2 + $0x18] sm:$0xff]
        %v4180 = vld [vmem:[#allocation2 + $0x20] sm:$0xff]
        %v4181 = vld [vmem:[#allocation2 + $0x28] sm:$0xff]
        %v4182 = vld [vmem:[#allocation2 + $0x30] sm:$0xff]
        %v4183 = vld [vmem:[#allocation2 + $0x38] sm:$0xff]
        %v4184 = vld [vmem:[#allocation2 + $0x40] sm:$0xff]
        %v4185 = vld [vmem:[#allocation2 + $0x48] sm:$0xff]
        %v4186 = vld [vmem:[#allocation2 + $0x50] sm:$0xff]
        %v4187 = vld [vmem:[#allocation2 + $0x58] sm:$0xff]
        %v4188 = vld [vmem:[#allocation2 + $0x60] sm:$0xff]
        %v4189 = vld [vmem:[#allocation2 + $0x68] sm:$0xff]
        %v4190 = vld [vmem:[#allocation2 + $0x70] sm:$0xff]
        %v4191 = vld [vmem:[#allocation2 + $0x78] sm:$0xff]
        %v4192 = vld [vmem:[#allocation2 + $0x80] sm:$0xff]
        %v4193 = vld [vmem:[#allocation2 + $0x88] sm:$0xff]
        %v4194 = vld [vmem:[#allocation2 + $0x90] sm:$0xff]
        %v4195 = vld [vmem:[#allocation2 + $0x98] sm:$0xff]
        %v4196 = vld [vmem:[#allocation2 + $0xa0] sm:$0xff]
        %v4197 = vld [vmem:[#allocation2 + $0xa8] sm:$0xff]
        %v4198 = vld [vmem:[#allocation2 + $0xb0] sm:$0xff]
        %v4199 = vld [vmem:[#allocation2 + $0xb8] sm:$0xff]
        %v4200 = vld [vmem:[#allocation2 + $0xc0] sm:$0xff]
        %v4201 = vld [vmem:[#allocation2 + $0xc8] sm:$0xff]
        %v4202 = vld [vmem:[#allocation2 + $0xd0] sm:$0xff]
        %v4203 = vld [vmem:[#allocation2 + $0xd8] sm:$0xff]
        %v4204 = vld [vmem:[#allocation2 + $0xe0] sm:$0xff]
        %v4205 = vld [vmem:[#allocation2 + $0xe8] sm:$0xff]
        %v4206 = vld [vmem:[#allocation2 + $0xf0] sm:$0xff]
        %v4207 = vld [vmem:[#allocation2 + $0xf8] sm:$0xff]
        %v4208 = vld [vmem:[#allocation2 + $0x100] sm:$0xff]
        %v4209 = vld [vmem:[#allocation2 + $0x108] sm:$0xff]
        %v4210 = vld [vmem:[#allocation2 + $0x110] sm:$0xff]
        %v4211 = vld [vmem:[#allocation2 + $0x118] sm:$0xff]
        %v4212 = vld [vmem:[#allocation2 + $0x120] sm:$0xff]
        %v4213 = vld [vmem:[#allocation2 + $0x128] sm:$0xff]
        %v4214 = vld [vmem:[#allocation2 + $0x130] sm:$0xff]
        %v4215 = vld [vmem:[#allocation2 + $0x138] sm:$0xff]
        %v4216 = vld [vmem:[#allocation2 + $0x140] sm:$0xff]
        %v4217 = vld [vmem:[#allocation2 + $0x148] sm:$0xff]
        %v4218 = vld [vmem:[#allocation2 + $0x150] sm:$0xff]
        %v4219 = vld [vmem:[#allocation2 + $0x158] sm:$0xff]
        %v4220 = vld [vmem:[#allocation2 + $0x160] sm:$0xff]
        %v4221 = vld [vmem:[#allocation2 + $0x168] sm:$0xff]
        %v4222 = vld [vmem:[#allocation2 + $0x170] sm:$0xff]
        %v4223 = vld [vmem:[#allocation2 + $0x178] sm:$0xff]
        %v4224 = vld [vmem:[%s340] sm:$0x1]
        %v4226 = vperm.slane %v4224, 0
        %v4228 = vadd.f32 %v4176, %v4226
        %v4229 = vadd.f32 %v4177, %v4226
        %v4230 = vadd.f32 %v4178, %v4226
        %v4231 = vadd.f32 %v4179, %v4226
        %v4232 = vadd.f32 %v4180, %v4226
        %v4233 = vadd.f32 %v4181, %v4226
        %v4234 = vadd.f32 %v4182, %v4226
        %v4235 = vadd.f32 %v4183, %v4226
        %v4236 = vadd.f32 %v4184, %v4226
        %v4237 = vadd.f32 %v4185, %v4226
        %v4238 = vadd.f32 %v4186, %v4226
        %v4239 = vadd.f32 %v4187, %v4226
        %v4240 = vadd.f32 %v4188, %v4226
        %v4241 = vadd.f32 %v4189, %v4226
        %v4242 = vadd.f32 %v4190, %v4226
        %v4243 = vadd.f32 %v4191, %v4226
        %v4244 = vadd.f32 %v4192, %v4226
        %v4245 = vadd.f32 %v4193, %v4226
        %v4246 = vadd.f32 %v4194, %v4226
        %v4247 = vadd.f32 %v4195, %v4226
        %v4248 = vadd.f32 %v4196, %v4226
        %v4249 = vadd.f32 %v4197, %v4226
        %v4250 = vadd.f32 %v4198, %v4226
        %v4251 = vadd.f32 %v4199, %v4226
        %v4252 = vadd.f32 %v4200, %v4226
        %v4253 = vadd.f32 %v4201, %v4226
        %v4254 = vadd.f32 %v4202, %v4226
        %v4255 = vadd.f32 %v4203, %v4226
        %v4256 = vadd.f32 %v4204, %v4226
        %v4257 = vadd.f32 %v4205, %v4226
        %v4258 = vadd.f32 %v4206, %v4226
        %v4259 = vadd.f32 %v4207, %v4226
        %v4260 = vadd.f32 %v4208, %v4226
        %v4261 = vadd.f32 %v4209, %v4226
        %v4262 = vadd.f32 %v4210, %v4226
        %v4263 = vadd.f32 %v4211, %v4226
        %v4264 = vadd.f32 %v4212, %v4226
        %v4265 = vadd.f32 %v4213, %v4226
        %v4266 = vadd.f32 %v4214, %v4226
        %v4267 = vadd.f32 %v4215, %v4226
        %v4268 = vadd.f32 %v4216, %v4226
        %v4269 = vadd.f32 %v4217, %v4226
        %v4270 = vadd.f32 %v4218, %v4226
        %v4271 = vadd.f32 %v4219, %v4226
        %v4272 = vadd.f32 %v4220, %v4226
        %v4273 = vadd.f32 %v4221, %v4226
        %v4274 = vadd.f32 %v4222, %v4226
        %v4275 = vadd.f32 %v4223, %v4226
        %v4276 = vmax.f32 %v4228, 0.0
        %v4277 = vmax.f32 %v4229, 0.0
        %v4278 = vmax.f32 %v4230, 0.0
        %v4279 = vmax.f32 %v4231, 0.0
        %v4280 = vmax.f32 %v4232, 0.0
        %v4281 = vmax.f32 %v4233, 0.0
        %v4282 = vmax.f32 %v4234, 0.0
        %v4283 = vmax.f32 %v4235, 0.0
        %v4284 = vmax.f32 %v4236, 0.0
        %v4285 = vmax.f32 %v4237, 0.0
        %v4286 = vmax.f32 %v4238, 0.0
        %v4287 = vmax.f32 %v4239, 0.0
        %v4288 = vmax.f32 %v4240, 0.0
        %v4289 = vmax.f32 %v4241, 0.0
        %v4290 = vmax.f32 %v4242, 0.0
        %v4291 = vmax.f32 %v4243, 0.0
        %v4292 = vmax.f32 %v4244, 0.0
        %v4293 = vmax.f32 %v4245, 0.0
        %v4294 = vmax.f32 %v4246, 0.0
        %v4295 = vmax.f32 %v4247, 0.0
        %v4296 = vmax.f32 %v4248, 0.0
        %v4297 = vmax.f32 %v4249, 0.0
        %v4298 = vmax.f32 %v4250, 0.0
        %v4299 = vmax.f32 %v4251, 0.0
        %v4300 = vmax.f32 %v4252, 0.0
        %v4301 = vmax.f32 %v4253, 0.0
        %v4302 = vmax.f32 %v4254, 0.0
        %v4303 = vmax.f32 %v4255, 0.0
        %v4304 = vmax.f32 %v4256, 0.0
        %v4305 = vmax.f32 %v4257, 0.0
        %v4306 = vmax.f32 %v4258, 0.0
        %v4307 = vmax.f32 %v4259, 0.0
        %v4308 = vmax.f32 %v4260, 0.0
        %v4309 = vmax.f32 %v4261, 0.0
        %v4310 = vmax.f32 %v4262, 0.0
        %v4311 = vmax.f32 %v4263, 0.0
        %v4312 = vmax.f32 %v4264, 0.0
        %v4313 = vmax.f32 %v4265, 0.0
        %v4314 = vmax.f32 %v4266, 0.0
        %v4315 = vmax.f32 %v4267, 0.0
        %v4316 = vmax.f32 %v4268, 0.0
        %v4317 = vmax.f32 %v4269, 0.0
        %v4318 = vmax.f32 %v4270, 0.0
        %v4319 = vmax.f32 %v4271, 0.0
        %v4320 = vmax.f32 %v4272, 0.0
        %v4321 = vmax.f32 %v4273, 0.0
        %v4322 = vmax.f32 %v4274, 0.0
        %v4323 = vmax.f32 %v4275, 0.0
        %v4324 = vpack.c.bf16 %v4276, %v4276
        %v4325 = vpack.c.bf16 %v4277, %v4277
        %v4326 = vpack.c.bf16 %v4278, %v4278
        %v4327 = vpack.c.bf16 %v4279, %v4279
        %v4328 = vpack.c.bf16 %v4280, %v4280
        %v4329 = vpack.c.bf16 %v4281, %v4281
        %v4330 = vpack.c.bf16 %v4282, %v4282
        %v4331 = vpack.c.bf16 %v4283, %v4283
        %v4332 = vpack.c.bf16 %v4284, %v4284
        %v4333 = vpack.c.bf16 %v4285, %v4285
        %v4334 = vpack.c.bf16 %v4286, %v4286
        %v4335 = vpack.c.bf16 %v4287, %v4287
        %v4336 = vpack.c.bf16 %v4288, %v4288
        %v4337 = vpack.c.bf16 %v4289, %v4289
        %v4338 = vpack.c.bf16 %v4290, %v4290
        %v4339 = vpack.c.bf16 %v4291, %v4291
        %v4340 = vpack.c.bf16 %v4292, %v4292
        %v4341 = vpack.c.bf16 %v4293, %v4293
        %v4342 = vpack.c.bf16 %v4294, %v4294
        %v4343 = vpack.c.bf16 %v4295, %v4295
        %v4344 = vpack.c.bf16 %v4296, %v4296
        %v4345 = vpack.c.bf16 %v4297, %v4297
        %v4346 = vpack.c.bf16 %v4298, %v4298
        %v4347 = vpack.c.bf16 %v4299, %v4299
        %v4348 = vpack.c.bf16 %v4300, %v4300
        %v4349 = vpack.c.bf16 %v4301, %v4301
        %v4350 = vpack.c.bf16 %v4302, %v4302
        %v4351 = vpack.c.bf16 %v4303, %v4303
        %v4352 = vpack.c.bf16 %v4304, %v4304
        %v4353 = vpack.c.bf16 %v4305, %v4305
        %v4354 = vpack.c.bf16 %v4306, %v4306
        %v4355 = vpack.c.bf16 %v4307, %v4307
        %v4356 = vpack.c.bf16 %v4308, %v4308
        %v4357 = vpack.c.bf16 %v4309, %v4309
        %v4358 = vpack.c.bf16 %v4310, %v4310
        %v4359 = vpack.c.bf16 %v4311, %v4311
        %v4360 = vpack.c.bf16 %v4312, %v4312
        %v4361 = vpack.c.bf16 %v4313, %v4313
        %v4362 = vpack.c.bf16 %v4314, %v4314
        %v4363 = vpack.c.bf16 %v4315, %v4315
        %v4364 = vpack.c.bf16 %v4316, %v4316
        %v4365 = vpack.c.bf16 %v4317, %v4317
        %v4366 = vpack.c.bf16 %v4318, %v4318
        %v4367 = vpack.c.bf16 %v4319, %v4319
        %v4368 = vpack.c.bf16 %v4320, %v4320
        %v4369 = vpack.c.bf16 %v4321, %v4321
        %v4370 = vpack.c.bf16 %v4322, %v4322
        %v4371 = vpack.c.bf16 %v4323, %v4323
        %4372 = vst [vmem:[%s353] sm:$0xf] %v4324
        %4373 = vst [vmem:[%s353 + $0x4] sm:$0xf] %v4325
        %4374 = vst [vmem:[%s353 + $0x8] sm:$0x3] %v4326
        %4375 = vst [vmem:[%s353 + $0xc] sm:$0xf] %v4327
        %4376 = vst [vmem:[%s353 + $0x10] sm:$0xf] %v4328
        %4377 = vst [vmem:[%s353 + $0x14] sm:$0x3] %v4329
        %4378 = vst [vmem:[%s353 + $0x18] sm:$0xf] %v4330
        %4379 = vst [vmem:[%s353 + $0x1c] sm:$0xf] %v4331
        %4380 = vst [vmem:[%s353 + $0x20] sm:$0x3] %v4332
        %4381 = vst [vmem:[%s353 + $0x24] sm:$0xf] %v4333
        %4382 = vst [vmem:[%s353 + $0x28] sm:$0xf] %v4334
        %4383 = vst [vmem:[%s353 + $0x2c] sm:$0x3] %v4335
        %4384 = vst [vmem:[%s353 + $0x30] sm:$0xf] %v4336
        %4385 = vst [vmem:[%s353 + $0x34] sm:$0xf] %v4337
        %4386 = vst [vmem:[%s353 + $0x38] sm:$0x3] %v4338
        %4387 = vst [vmem:[%s353 + $0x3c] sm:$0xf] %v4339
        %4388 = vst [vmem:[%s353 + $0x40] sm:$0xf] %v4340
        %4389 = vst [vmem:[%s353 + $0x44] sm:$0x3] %v4341
        %4390 = vst [vmem:[%s353 + $0x48] sm:$0xf] %v4342
        %4391 = vst [vmem:[%s353 + $0x4c] sm:$0xf] %v4343
        %4392 = vst [vmem:[%s353 + $0x50] sm:$0x3] %v4344
        %4393 = vst [vmem:[%s353 + $0x54] sm:$0xf] %v4345
        %4394 = vst [vmem:[%s353 + $0x58] sm:$0xf] %v4346
        %4395 = vst [vmem:[%s353 + $0x5c] sm:$0x3] %v4347
        %4396 = vst [vmem:[%s353 + $0x60] sm:$0xf] %v4348
        %4397 = vst [vmem:[%s353 + $0x64] sm:$0xf] %v4349
        %4398 = vst [vmem:[%s353 + $0x68] sm:$0x3] %v4350
        %4399 = vst [vmem:[%s353 + $0x6c] sm:$0xf] %v4351
        %4400 = vst [vmem:[%s353 + $0x70] sm:$0xf] %v4352
        %4401 = vst [vmem:[%s353 + $0x74] sm:$0x3] %v4353
        %4402 = vst [vmem:[%s353 + $0x78] sm:$0xf] %v4354
        %4403 = vst [vmem:[%s353 + $0x7c] sm:$0xf] %v4355
        %4404 = vst [vmem:[%s353 + $0x80] sm:$0x3] %v4356
        %4405 = vst [vmem:[%s353 + $0x84] sm:$0xf] %v4357
        %4406 = vst [vmem:[%s353 + $0x88] sm:$0xf] %v4358
        %4407 = vst [vmem:[%s353 + $0x8c] sm:$0x3] %v4359
        %4408 = vst [vmem:[%s353 + $0x90] sm:$0xf] %v4360
        %4409 = vst [vmem:[%s353 + $0x94] sm:$0xf] %v4361
        %4410 = vst [vmem:[%s353 + $0x98] sm:$0x3] %v4362
        %4411 = vst [vmem:[%s353 + $0x9c] sm:$0xf] %v4363
        %4412 = vst [vmem:[%s353 + $0xa0] sm:$0xf] %v4364
        %4413 = vst [vmem:[%s353 + $0xa4] sm:$0x3] %v4365
        %4414 = vst [vmem:[%s353 + $0xa8] sm:$0xf] %v4366
        %4415 = vst [vmem:[%s353 + $0xac] sm:$0xf] %v4367
        %4416 = vst [vmem:[%s353 + $0xb0] sm:$0x3] %v4368
        %4417 = vst [vmem:[%s353 + $0xb4] sm:$0xf] %v4369
        %4418 = vst [vmem:[%s353 + $0xb8] sm:$0xf] %v4370
        %4419 = vst [vmem:[%s353 + $0xbc] sm:$0x3] %v4371
        %s4420 = smul.u32 16, %s27
        %p4421 = scmp.lt.s32.totalorder %s26, 0
        %s4422 = scalar_select %p4421, %s26, 0
        %p4423 = scmp.lt.s32.totalorder %s4420, 31
        %s4424 = scalar_select %p4423, %s4420, 31
        %p4425 = scmp.lt.s32.totalorder %s28, 0
        %s4426 = scalar_select %p4425, %s28, 0
        %s4427 = smul.addr %s4424, 3
        %s4428 = sadd.s32 %s4426, %s4427
        %s4429 = smul.addr %s4422, 96
        %s4430 = sadd.s32 %s4428, %s4429
        %s4431 = smul.addr %s4430, 4
        %s4432 = scalar_lea.vmem %s4, %s4431
        // Predicated region
        $region49: #{tpu_custom_call.1} parent=35 // pred_check
          %p4433 = pneg %p172
        $region50: #{tpu_custom_call.1} parent=35 // pred_check_branch
          %4435 = sbr.rel (%p4433) target = $region52
        $region51: #{tpu_custom_call.1} parent=35 // pred_region
          %s4436 = smul.u32 16, %s27
        $region52: #{tpu_custom_call.1} parent=35 // pred_fallthru
          _
      $region36: #{tpu_custom_call.1} parent=5 // pred_fallthru
        _
      %p4437 = scmp.le.s32.totalorder 2, %s16
      // Predicated region
      $region53: #{tpu_custom_call.1} parent=5 // pred_check
        %p4438 = pneg %p4437
      $region54: #{tpu_custom_call.1} parent=5 // pred_check_branch
        %4440 = sbr.rel (%p4438) target = $region56
      $region55: #{tpu_custom_call.1} parent=5 // pred_region
        %s4441 = ssub.s32 %s16, 2
        // Predicated region
        $region57: #{tpu_custom_call.1} parent=55 // pred_check
          %p4442 = pneg %p178
        $region58: #{tpu_custom_call.1} parent=55 // pred_check_branch
          %4444 = sbr.rel (%p4442) target = $region60
        $region59: #{tpu_custom_call.1} parent=55 // pred_region
          %s4445 = smul.u32 16, %s30
          %p4446 = scmp.lt.s32.totalorder %s29, 0
          %s4447 = scalar_select %p4446, %s29, 0
          %p4448 = scmp.lt.s32.totalorder %s4445, 31
          %s4449 = scalar_select %p4448, %s4445, 31
          %p4450 = scmp.lt.s32.totalorder %s31, 0
          %s4451 = scalar_select %p4450, %s31, 0
          %s4452 = smul.addr %s4449, 3
          %s4453 = sadd.s32 %s4451, %s4452
          %s4454 = smul.addr %s4447, 96
          %s4455 = sadd.s32 %s4453, %s4454
          %s4456 = smul.addr %s4455, 4
          %s4457 = scalar_lea.vmem %s4, %s4456
        $region60: #{tpu_custom_call.1} parent=55 // pred_fallthru
          _
      $region56: #{tpu_custom_call.1} parent=5 // pred_fallthru
        _
    $region6: #{tpu_custom_call.1} parent=1 // loop_footer
      %s20 = sadd.s32 1, %s16
    $region7: #{tpu_custom_call.1} parent=1 // loop_footer_branch
      %15 = sbr.rel target = $region3
    $region8: #{tpu_custom_call.1} parent=1 // loop_exit
      _
    %4458 = vsyncpa [#allocation4], 1
    %s4459 = scalar_lea.sflag [#allocation4], 1
    %4460 = vsyncpa %s4459, 1
    %4461 = vsyncpa [#allocation6], 1
    %s4462 = scalar_lea.sflag [#allocation6], 1
    %4463 = vsyncpa %s4462, 1

// kernel: tpu_custom_call.1
$region0: #{tpu_custom_call.1}
  #allocation0 [shape = 'u32[]', space=smem, size = 0x4, offset = 0x4, fixed_abs, tag = 'smem constant byte address 0x4 - core index']
  #allocation1 [shape = 'u32[72,128]{1,0:T(1,128)}', space=vmem, size = 0x9000, scoped, tag = 'internal scratch']
  #allocation2 [shape = 'f32[1024,64]{1,0:T(8,128)}', space=vmem, size = 0x80000, scoped, tag = 'scratch operand']
  %s0 = inlined_call_operand.hbm [shape: bf16[66560,128], index: 0, kind: input, shape index: {}]
  %s1 = inlined_call_operand.vmem [shape: bf16[128,64], index: 1, kind: input, shape index: {}]
  %s2 = inlined_call_operand.hbm [shape: f32[1,64], index: 2, kind: input, shape index: {}]
  %s3 = inlined_call_operand.vmem [shape: bf16[66560,64], index: 3, kind: output, shape index: {}]
  %s4 = sld [smem:[#allocation0]]
  $region61: #{tpu_custom_call.1} parent=0
    _
  %s6 = ssub.s32 1, %s4
  %s7 = scalar_select 0, %s6, %s4
  $region1: #{tpu_custom_call.1} parent=0
    #allocation3 [shape = 'u8[524288]{0}', space=vmem, size = 0x80000, scoped, tag = 'input window, operand 0']
    #allocation4 [shape = 's32[2]{0}', space=sflag, size = 0x8, scoped, tag = 'scoped memory for tpu_custom_call.1']
    #allocation5 [shape = 'u8[512]{0}', space=vmem, size = 0x400, scoped, tag = 'input window, operand 2, single buffered']
    #allocation6 [shape = 's32[1]{0}', space=sflag, size = 0x4, scoped, tag = 'scoped memory for tpu_custom_call.1']
    %8 = vsyncpa [#allocation4], 0
    %s9 = scalar_lea.sflag [#allocation4], 1
    %10 = vsyncpa %s9, 0
    %11 = vsyncpa [#allocation6], 0
    loop: start=0, step=1, limit=67
    $region2: #{tpu_custom_call.1} parent=1 // loop_pre_header
      _
    $region3: #{tpu_custom_call.1} parent=1 // loop_header
      %s13 = sphi 0, %s17
      %p14 = scmp.ge.s32.totalorder %s13, 67
      %s20 = sphi 0, %s39
      %s21 = sphi 0, %s35
      %s22 = sphi 0, %s31
      %s23 = sphi 0, %s20
      %s24 = sphi 0, %s21
      %s25 = sphi 0, %s22
      %s26 = sphi 0, %s23
      %s27 = sphi 0, %s24
      %s28 = sphi 0, %s25
      %s44 = sphi 0, %s46
      %s47 = sphi 0, %s44
      %s48 = sphi 0, %s47
      %s64 = sphi 0, %s48
      %s72 = sphi 0, %s74
      %s75 = sphi 0, %s72
      %s76 = sphi 0, %s75
      %s92 = sphi 0, %s76
      %s98 = sphi 0, %s100
      %s101 = sphi 0, %s98
      %s102 = sphi 0, %s101
      %s118 = sphi 0, %s102
      %s126 = sphi 0, %s128
      %s129 = sphi 0, %s126
      %s130 = sphi 0, %s129
      %s146 = sphi 0, %s130
    $region4: #{tpu_custom_call.1} parent=1 // loop_header_branch
      %16 = sbr.rel (%p14) target = $region8
    $region5: #{tpu_custom_call.1} parent=1 // loop_body
      %s18 = ssub.s32 %s13, 1
      %s19 = ssub.s32 %s13, 2
      %s29 = sadd.s32 1, %s22
      %p30 = scmp.ge.s32.totalorder %s29, 1
      %s31 = scalar_select %p30, 0, %s29
      %s32 = sadd.s32 1, %s21
      %s33 = scalar_select %p30, %s32, %s21
      %p34 = scmp.ge.s32.totalorder %s33, 1
      %s35 = scalar_select %p34, 0, %s33
      %s36 = sadd.s32 1, %s20
      %s37 = scalar_select %p34, %s36, %s20
      %p38 = scmp.ge.s32.totalorder %s37, 65
      %s39 = scalar_select %p38, 0, %s37
      %s40 = ssub.s32 %s20, %s39
      %s41 = ssub.s32 %s22, %s31
      %s42 = sor.u32 %s40, %s41
      %p43 = scmp.eq.s32.totalorder %s42, 0
      %s45 = sadd.s32 %s44, 1
      %s46 = scalar_select %p43, %s44, %s45
      %p49 = pneg %p43
      %p50 = scmp.eq.s32.totalorder %s13, 64
      %p51 = por %p49, %p50
      %p52 = scmp.ne.s32.totalorder %s44, %s47
      %p53 = scmp.eq.s32.totalorder %s13, 0
      %p54 = por %p52, %p53
      %p55 = scmp.ne.s32.totalorder %s44, %s47
      %p56 = scmp.eq.s32.totalorder %s18, 64
      %p57 = por %p55, %p56
      %p58 = scmp.ne.s32.totalorder %s47, %s48
      %p59 = scmp.eq.s32.totalorder %s18, 0
      %p60 = por %p58, %p59
      %p61 = scmp.ne.s32.totalorder %s47, %s48
      %p62 = scmp.eq.s32.totalorder %s19, 64
      %p63 = por %p61, %p62
      %p65 = scmp.ne.s32.totalorder %s48, %s64
      %p66 = scmp.eq.s32.totalorder %s19, 0
      %p67 = por %p65, %p66
      %s68 = ssub.s32 %s22, %s31
      %s69 = ssub.s32 %s21, %s35
      %s70 = sor.u32 %s68, %s69
      %p71 = scmp.eq.s32.totalorder %s70, 0
      %s73 = sadd.s32 %s72, 1
      %s74 = scalar_select %p71, %s72, %s73
      %p77 = pneg %p71
      %p78 = scmp.eq.s32.totalorder %s13, 64
      %p79 = por %p77, %p78
      %p80 = scmp.ne.s32.totalorder %s72, %s75
      %p81 = scmp.eq.s32.totalorder %s13, 0
      %p82 = por %p80, %p81
      %p83 = scmp.ne.s32.totalorder %s72, %s75
      %p84 = scmp.eq.s32.totalorder %s18, 64
      %p85 = por %p83, %p84
      %p86 = scmp.ne.s32.totalorder %s75, %s76
      %p87 = scmp.eq.s32.totalorder %s18, 0
      %p88 = por %p86, %p87
      %p89 = scmp.ne.s32.totalorder %s75, %s76
      %p90 = scmp.eq.s32.totalorder %s19, 64
      %p91 = por %p89, %p90
      %p93 = scmp.ne.s32.totalorder %s76, %s92
      %p94 = scmp.eq.s32.totalorder %s19, 0
      %p95 = por %p93, %p94
      %s96 = ssub.s32 %s21, %s35
      %p97 = scmp.eq.s32.totalorder %s96, 0
      %s99 = sadd.s32 %s98, 1
      %s100 = scalar_select %p97, %s98, %s99
      %p103 = pneg %p97
      %p104 = scmp.eq.s32.totalorder %s13, 64
      %p105 = por %p103, %p104
      %p106 = scmp.ne.s32.totalorder %s98, %s101
      %p107 = scmp.eq.s32.totalorder %s13, 0
      %p108 = por %p106, %p107
      %p109 = scmp.ne.s32.totalorder %s98, %s101
      %p110 = scmp.eq.s32.totalorder %s18, 64
      %p111 = por %p109, %p110
      %p112 = scmp.ne.s32.totalorder %s101, %s102
      %p113 = scmp.eq.s32.totalorder %s18, 0
      %p114 = por %p112, %p113
      %p115 = scmp.ne.s32.totalorder %s101, %s102
      %p116 = scmp.eq.s32.totalorder %s19, 64
      %p117 = por %p115, %p116
      %p119 = scmp.ne.s32.totalorder %s102, %s118
      %p120 = scmp.eq.s32.totalorder %s19, 0
      %p121 = por %p119, %p120
      %s122 = ssub.s32 %s20, %s39
      %s123 = ssub.s32 %s21, %s35
      %s124 = sor.u32 %s122, %s123
      %p125 = scmp.eq.s32.totalorder %s124, 0
      %s127 = sadd.s32 %s126, 1
      %s128 = scalar_select %p125, %s126, %s127
      %p131 = pneg %p125
      %p132 = scmp.eq.s32.totalorder %s13, 64
      %p133 = por %p131, %p132
      %p134 = scmp.ne.s32.totalorder %s126, %s129
      %p135 = scmp.eq.s32.totalorder %s13, 0
      %p136 = por %p134, %p135
      %p137 = scmp.ne.s32.totalorder %s126, %s129
      %p138 = scmp.eq.s32.totalorder %s18, 64
      %p139 = por %p137, %p138
      %p140 = scmp.ne.s32.totalorder %s129, %s130
      %p141 = scmp.eq.s32.totalorder %s18, 0
      %p142 = por %p140, %p141
      %p143 = scmp.ne.s32.totalorder %s129, %s130
      %p144 = scmp.eq.s32.totalorder %s19, 64
      %p145 = por %p143, %p144
      %p147 = scmp.ne.s32.totalorder %s130, %s146
      %p148 = scmp.eq.s32.totalorder %s19, 0
      %p149 = por %p147, %p148
      %p150 = scmp.le.s32.totalorder 1, %s13
      %p151 = scmp.lt.s32.totalorder %s13, 66
      %p152 = pnand %p150, %p151
      %p153 = pneg %p152
      // Predicated region
      $region9: #{tpu_custom_call.1} parent=5 // pred_check
        _
      $region10: #{tpu_custom_call.1} parent=5 // pred_check_branch
        %155 = sbr.rel (%p152) target = $region12
      $region11: #{tpu_custom_call.1} parent=5 // pred_region
        %s156 = ssub.s32 %s13, 1
        // Predicated region
        $region13: #{tpu_custom_call.1} parent=11 // pred_check
          %p157 = pneg %p88
        $region14: #{tpu_custom_call.1} parent=11 // pred_check_branch
          %159 = sbr.rel (%p157) target = $region16
        $region15: #{tpu_custom_call.1} parent=11 // pred_region
          %s160 = smul.u32 16, %s25
          %p161 = scmp.lt.s32.totalorder %s160, 15
          %s162 = scalar_select %p161, %s160, 15
          %p163 = scmp.lt.s32.totalorder %s24, 0
          %s164 = scalar_select %p163, %s24, 0
          %s165 = sadd.s32 %s164, %s162
          %s166 = smul.addr %s165, 4
          %s167 = scalar_lea.vmem %s1, %s166
          %s168 = smul.u32 16, %s25
        $region16: #{tpu_custom_call.1} parent=11 // pred_fallthru
          _
        // Predicated region
        $region17: #{tpu_custom_call.1} parent=11 // pred_check
          %p169 = pneg %p114
        $region18: #{tpu_custom_call.1} parent=11 // pred_check_branch
          %171 = sbr.rel (%p169) target = $region20
        $region19: #{tpu_custom_call.1} parent=11 // pred_region
          %173 = vsyncadd [#allocation6], 0
          %s174 = scalar_lea.hbm %s2, %s24
          %s176 = sshll.u32 %s174, 4
          %s177 = int_to_ptr.hbm [resolvable:$true] %s176
          %s178 = sshll.u32 [#allocation5], 4
          %s179 = int_to_ptr.vmem [resolvable:$true] %s178
          %181 = dma.hbm_to_vmem [thread:$0]  %s177, 16, %s179, [#allocation6]
        $region20: #{tpu_custom_call.1} parent=11 // pred_fallthru
          _
      $region12: #{tpu_custom_call.1} parent=5 // pred_fallthru
        _
      %p182 = scmp.lt.s32.totalorder %s13, 65
      // Predicated region
      $region21: #{tpu_custom_call.1} parent=5 // pred_check
        %p183 = pneg %p182
      $region22: #{tpu_custom_call.1} parent=5 // pred_check_branch
        %185 = sbr.rel (%p183) target = $region24
      $region23: #{tpu_custom_call.1} parent=5 // pred_region
        // Predicated region
        $region25: #{tpu_custom_call.1} parent=23 // pred_check
          %p186 = pneg %p54
        $region26: #{tpu_custom_call.1} parent=23 // pred_check_branch
          %188 = sbr.rel (%p186) target = $region28
        $region27: #{tpu_custom_call.1} parent=23 // pred_region
          %s189 = sand.u32 %s44, 1
          %s190 = scalar_lea.sflag [#allocation4], %s189
          %s191 = sand.u32 %s44, 1
          %s192 = smul.addr %s191, 512
          %s193 = scalar_lea.vmem [#allocation3], %s192
          %s194 = smul.u32 128, %s20
          %196 = vsyncadd %s190, 0
          %s197 = sadd.s32 %s22, %s194
          %s198 = smul.addr %s197, 4
          %s199 = scalar_lea.hbm %s0, %s198
          %s200 = sshll.u32 %s199, 4
          %s201 = int_to_ptr.hbm [resolvable:$true] %s200
          %s202 = sshll.u32 %s193, 4
          %s203 = int_to_ptr.vmem [resolvable:$true] %s202
          %208 = dma.hbm_to_vmem [thread:$0]  %s201, 8192, %s203, %s190, 64, 64, 4
        $region28: #{tpu_custom_call.1} parent=23 // pred_fallthru
          _
      $region24: #{tpu_custom_call.1} parent=5 // pred_fallthru
        _
      %p209 = scmp.le.s32.totalorder 1, %s13
      %p210 = scmp.lt.s32.totalorder %s13, 66
      %p211 = pnand %p209, %p210
      %p212 = pneg %p211
      // Predicated region
      $region29: #{tpu_custom_call.1} parent=5 // pred_check
        _
      $region30: #{tpu_custom_call.1} parent=5 // pred_check_branch
        %214 = sbr.rel (%p211) target = $region32
      $region31: #{tpu_custom_call.1} parent=5 // pred_region
        %s215 = ssub.s32 %s13, 1
        %s216 = sand.u32 %s47, 1
        %s217 = scalar_lea.sflag [#allocation4], %s216
        %s218 = sand.u32 %s47, 1
        %s219 = smul.addr %s218, 512
        %s220 = scalar_lea.vmem [#allocation3], %s219
        // Predicated region
        $region33: #{tpu_custom_call.1} parent=31 // pred_check
          %p221 = pneg %p60
        $region34: #{tpu_custom_call.1} parent=31 // pred_check_branch
          %223 = sbr.rel (%p221) target = $region36
        $region35: #{tpu_custom_call.1} parent=31 // pred_region
          %225 = dma.done %s217, 8192
        $region36: #{tpu_custom_call.1} parent=31 // pred_fallthru
          _
        // Predicated region
        $region37: #{tpu_custom_call.1} parent=31 // pred_check
          %p226 = pneg %p114
        $region38: #{tpu_custom_call.1} parent=31 // pred_check_branch
          %228 = sbr.rel (%p226) target = $region40
        $region39: #{tpu_custom_call.1} parent=31 // pred_region
          %230 = dma.done [#allocation6], 16
        $region40: #{tpu_custom_call.1} parent=31 // pred_fallthru
          _
        %s231 = sand.u32 %s47, 1
        %s232 = scalar_lea.sflag [#allocation4], %s231
        %s233 = sand.u32 %s47, 1
        %s234 = smul.addr %s233, 512
        %s235 = scalar_lea.vmem [#allocation3], %s234
        %p236 = pneg %p60
        %p237 = pneg %p57
        %s238 = smul.u32 16, %s25
        %p239 = scmp.lt.s32.totalorder %s238, 15
        %s240 = scalar_select %p239, %s238, 15
        %p241 = scmp.lt.s32.totalorder %s24, 0
        %s242 = scalar_select %p241, %s24, 0
        %s243 = sadd.s32 %s242, %s240
        %s244 = smul.addr %s243, 4
        %s245 = scalar_lea.vmem %s1, %s244
        %p246 = pneg %p88
        %p247 = pneg %p85
        %p248 = pneg %p114
        %p249 = pneg %p111
        %p250 = pneg %p142
        %p251 = pneg %p139
        %s252 = smul.u32 128, %s23
        %p253 = scmp.lt.s32.totalorder %s252, 8319
        %s254 = scalar_select %p253, %s252, 8319
        %p255 = scmp.lt.s32.totalorder %s24, 0
        %s256 = scalar_select %p255, %s24, 0
        %s257 = sadd.s32 %s256, %s254
        %s258 = smul.addr %s257, 4
        %s259 = scalar_lea.vmem %s3, %s258
        %s260 = smul.u32 128, %s23
        %s261 = smul.u32 16, %s25
        %p262 = scmp.lt.s32.totalorder %s261, 15
        %s263 = scalar_select %p262, %s261, 15
        %p264 = scmp.lt.s32.totalorder %s24, 0
        %s265 = scalar_select %p264, %s24, 0
        %s266 = sadd.s32 %s265, %s263
        %s267 = smul.addr %s266, 4
        %s268 = scalar_lea.vmem %s1, %s267
        %s269 = smul.u32 16, %s25
        %s270 = smul.u32 128, %s23
        %p271 = scmp.lt.s32.totalorder %s270, 8319
        %s272 = scalar_select %p271, %s270, 8319
        %p273 = scmp.lt.s32.totalorder %s24, 0
        %s274 = scalar_select %p273, %s24, 0
        %s275 = sadd.s32 %s274, %s272
        %s276 = smul.addr %s275, 4
        %s277 = scalar_lea.vmem %s3, %s276
        %s278 = smul.u32 128, %s23
        %p279 = scmp.eq.s32.totalorder %s25, 0
        // Predicated region
        $region41: #{tpu_custom_call.1} parent=31 // pred_check
          %p280 = pneg %p279
        $region42: #{tpu_custom_call.1} parent=31 // pred_check_branch
          %282 = sbr.rel (%p280) target = $region44
        $region43: #{tpu_custom_call.1} parent=31 // pred_region
          %vm283 = vcmask 523264
          %284 = vst.msk [vmem:[#allocation2] sm:$0xff] %vm283, 0.0
          %285 = vst.msk [vmem:[#allocation2 + $0x8] sm:$0xff] %vm283, 0.0
          %286 = vst.msk [vmem:[#allocation2 + $0x10] sm:$0xff] %vm283, 0.0
          %287 = vst.msk [vmem:[#allocation2 + $0x18] sm:$0xff] %vm283, 0.0
          %288 = vst.msk [vmem:[#allocation2 + $0x20] sm:$0xff] %vm283, 0.0
          %289 = vst.msk [vmem:[#allocation2 + $0x28] sm:$0xff] %vm283, 0.0
          %290 = vst.msk [vmem:[#allocation2 + $0x30] sm:$0xff] %vm283, 0.0
          %291 = vst.msk [vmem:[#allocation2 + $0x38] sm:$0xff] %vm283, 0.0
          %292 = vst.msk [vmem:[#allocation2 + $0x40] sm:$0xff] %vm283, 0.0
          %293 = vst.msk [vmem:[#allocation2 + $0x48] sm:$0xff] %vm283, 0.0
          %294 = vst.msk [vmem:[#allocation2 + $0x50] sm:$0xff] %vm283, 0.0
          %295 = vst.msk [vmem:[#allocation2 + $0x58] sm:$0xff] %vm283, 0.0
          %296 = vst.msk [vmem:[#allocation2 + $0x60] sm:$0xff] %vm283, 0.0
          %297 = vst.msk [vmem:[#allocation2 + $0x68] sm:$0xff] %vm283, 0.0
          %298 = vst.msk [vmem:[#allocation2 + $0x70] sm:$0xff] %vm283, 0.0
          %299 = vst.msk [vmem:[#allocation2 + $0x78] sm:$0xff] %vm283, 0.0
          %300 = vst.msk [vmem:[#allocation2 + $0x80] sm:$0xff] %vm283, 0.0
          %301 = vst.msk [vmem:[#allocation2 + $0x88] sm:$0xff] %vm283, 0.0
          %302 = vst.msk [vmem:[#allocation2 + $0x90] sm:$0xff] %vm283, 0.0
          %303 = vst.msk [vmem:[#allocation2 + $0x98] sm:$0xff] %vm283, 0.0
          %304 = vst.msk [vmem:[#allocation2 + $0xa0] sm:$0xff] %vm283, 0.0
          %305 = vst.msk [vmem:[#allocation2 + $0xa8] sm:$0xff] %vm283, 0.0
          %306 = vst.msk [vmem:[#allocation2 + $0xb0] sm:$0xff] %vm283, 0.0
          %307 = vst.msk [vmem:[#allocation2 + $0xb8] sm:$0xff] %vm283, 0.0
          %308 = vst.msk [vmem:[#allocation2 + $0xc0] sm:$0xff] %vm283, 0.0
          %309 = vst.msk [vmem:[#allocation2 + $0xc8] sm:$0xff] %vm283, 0.0
          %310 = vst.msk [vmem:[#allocation2 + $0xd0] sm:$0xff] %vm283, 0.0
          %311 = vst.msk [vmem:[#allocation2 + $0xd8] sm:$0xff] %vm283, 0.0
          %312 = vst.msk [vmem:[#allocation2 + $0xe0] sm:$0xff] %vm283, 0.0
          %313 = vst.msk [vmem:[#allocation2 + $0xe8] sm:$0xff] %vm283, 0.0
          %314 = vst.msk [vmem:[#allocation2 + $0xf0] sm:$0xff] %vm283, 0.0
          %315 = vst.msk [vmem:[#allocation2 + $0xf8] sm:$0xff] %vm283, 0.0
          %316 = vst.msk [vmem:[#allocation2 + $0x100] sm:$0xff] %vm283, 0.0
          %317 = vst.msk [vmem:[#allocation2 + $0x108] sm:$0xff] %vm283, 0.0
          %318 = vst.msk [vmem:[#allocation2 + $0x110] sm:$0xff] %vm283, 0.0
          %319 = vst.msk [vmem:[#allocation2 + $0x118] sm:$0xff] %vm283, 0.0
          %320 = vst.msk [vmem:[#allocation2 + $0x120] sm:$0xff] %vm283, 0.0
          %321 = vst.msk [vmem:[#allocation2 + $0x128] sm:$0xff] %vm283, 0.0
          %322 = vst.msk [vmem:[#allocation2 + $0x130] sm:$0xff] %vm283, 0.0
          %323 = vst.msk [vmem:[#allocation2 + $0x138] sm:$0xff] %vm283, 0.0
          %324 = vst.msk [vmem:[#allocation2 + $0x140] sm:$0xff] %vm283, 0.0
          %325 = vst.msk [vmem:[#allocation2 + $0x148] sm:$0xff] %vm283, 0.0
          %326 = vst.msk [vmem:[#allocation2 + $0x150] sm:$0xff] %vm283, 0.0
          %327 = vst.msk [vmem:[#allocation2 + $0x158] sm:$0xff] %vm283, 0.0
          %328 = vst.msk [vmem:[#allocation2 + $0x160] sm:$0xff] %vm283, 0.0
          %329 = vst.msk [vmem:[#allocation2 + $0x168] sm:$0xff] %vm283, 0.0
          %330 = vst.msk [vmem:[#allocation2 + $0x170] sm:$0xff] %vm283, 0.0
          %331 = vst.msk [vmem:[#allocation2 + $0x178] sm:$0xff] %vm283, 0.0
          %332 = vst.msk [vmem:[#allocation2 + $0x180] sm:$0xff] %vm283, 0.0
          %333 = vst.msk [vmem:[#allocation2 + $0x188] sm:$0xff] %vm283, 0.0
          %334 = vst.msk [vmem:[#allocation2 + $0x190] sm:$0xff] %vm283, 0.0
          %335 = vst.msk [vmem:[#allocation2 + $0x198] sm:$0xff] %vm283, 0.0
          %336 = vst.msk [vmem:[#allocation2 + $0x1a0] sm:$0xff] %vm283, 0.0
          %337 = vst.msk [vmem:[#allocation2 + $0x1a8] sm:$0xff] %vm283, 0.0
          %338 = vst.msk [vmem:[#allocation2 + $0x1b0] sm:$0xff] %vm283, 0.0
          %339 = vst.msk [vmem:[#allocation2 + $0x1b8] sm:$0xff] %vm283, 0.0
          %340 = vst.msk [vmem:[#allocation2 + $0x1c0] sm:$0xff] %vm283, 0.0
          %341 = vst.msk [vmem:[#allocation2 + $0x1c8] sm:$0xff] %vm283, 0.0
          %342 = vst.msk [vmem:[#allocation2 + $0x1d0] sm:$0xff] %vm283, 0.0
          %343 = vst.msk [vmem:[#allocation2 + $0x1d8] sm:$0xff] %vm283, 0.0
          %344 = vst.msk [vmem:[#allocation2 + $0x1e0] sm:$0xff] %vm283, 0.0
          %345 = vst.msk [vmem:[#allocation2 + $0x1e8] sm:$0xff] %vm283, 0.0
          %346 = vst.msk [vmem:[#allocation2 + $0x1f0] sm:$0xff] %vm283, 0.0
          %347 = vst.msk [vmem:[#allocation2 + $0x1f8] sm:$0xff] %vm283, 0.0
          %348 = vst.msk [vmem:[#allocation2 + $0x200] sm:$0xff] %vm283, 0.0
          %349 = vst.msk [vmem:[#allocation2 + $0x208] sm:$0xff] %vm283, 0.0
          %350 = vst.msk [vmem:[#allocation2 + $0x210] sm:$0xff] %vm283, 0.0
          %351 = vst.msk [vmem:[#allocation2 + $0x218] sm:$0xff] %vm283, 0.0
          %352 = vst.msk [vmem:[#allocation2 + $0x220] sm:$0xff] %vm283, 0.0
          %353 = vst.msk [vmem:[#allocation2 + $0x228] sm:$0xff] %vm283, 0.0
          %354 = vst.msk [vmem:[#allocation2 + $0x230] sm:$0xff] %vm283, 0.0
          %355 = vst.msk [vmem:[#allocation2 + $0x238] sm:$0xff] %vm283, 0.0
          %356 = vst.msk [vmem:[#allocation2 + $0x240] sm:$0xff] %vm283, 0.0
          %357 = vst.msk [vmem:[#allocation2 + $0x248] sm:$0xff] %vm283, 0.0
          %358 = vst.msk [vmem:[#allocation2 + $0x250] sm:$0xff] %vm283, 0.0
          %359 = vst.msk [vmem:[#allocation2 + $0x258] sm:$0xff] %vm283, 0.0
          %360 = vst.msk [vmem:[#allocation2 + $0x260] sm:$0xff] %vm283, 0.0
          %361 = vst.msk [vmem:[#allocation2 + $0x268] sm:$0xff] %vm283, 0.0
          %362 = vst.msk [vmem:[#allocation2 + $0x270] sm:$0xff] %vm283, 0.0
          %363 = vst.msk [vmem:[#allocation2 + $0x278] sm:$0xff] %vm283, 0.0
          %364 = vst.msk [vmem:[#allocation2 + $0x280] sm:$0xff] %vm283, 0.0
          %365 = vst.msk [vmem:[#allocation2 + $0x288] sm:$0xff] %vm283, 0.0
          %366 = vst.msk [vmem:[#allocation2 + $0x290] sm:$0xff] %vm283, 0.0
          %367 = vst.msk [vmem:[#allocation2 + $0x298] sm:$0xff] %vm283, 0.0
          %368 = vst.msk [vmem:[#allocation2 + $0x2a0] sm:$0xff] %vm283, 0.0
          %369 = vst.msk [vmem:[#allocation2 + $0x2a8] sm:$0xff] %vm283, 0.0
          %370 = vst.msk [vmem:[#allocation2 + $0x2b0] sm:$0xff] %vm283, 0.0
          %371 = vst.msk [vmem:[#allocation2 + $0x2b8] sm:$0xff] %vm283, 0.0
          %372 = vst.msk [vmem:[#allocation2 + $0x2c0] sm:$0xff] %vm283, 0.0
          %373 = vst.msk [vmem:[#allocation2 + $0x2c8] sm:$0xff] %vm283, 0.0
          %374 = vst.msk [vmem:[#allocation2 + $0x2d0] sm:$0xff] %vm283, 0.0
          %375 = vst.msk [vmem:[#allocation2 + $0x2d8] sm:$0xff] %vm283, 0.0
          %376 = vst.msk [vmem:[#allocation2 + $0x2e0] sm:$0xff] %vm283, 0.0
          %377 = vst.msk [vmem:[#allocation2 + $0x2e8] sm:$0xff] %vm283, 0.0
          %378 = vst.msk [vmem:[#allocation2 + $0x2f0] sm:$0xff] %vm283, 0.0
          %379 = vst.msk [vmem:[#allocation2 + $0x2f8] sm:$0xff] %vm283, 0.0
          %380 = vst.msk [vmem:[#allocation2 + $0x300] sm:$0xff] %vm283, 0.0
          %381 = vst.msk [vmem:[#allocation2 + $0x308] sm:$0xff] %vm283, 0.0
          %382 = vst.msk [vmem:[#allocation2 + $0x310] sm:$0xff] %vm283, 0.0
          %383 = vst.msk [vmem:[#allocation2 + $0x318] sm:$0xff] %vm283, 0.0
          %384 = vst.msk [vmem:[#allocation2 + $0x320] sm:$0xff] %vm283, 0.0
          %385 = vst.msk [vmem:[#allocation2 + $0x328] sm:$0xff] %vm283, 0.0
          %386 = vst.msk [vmem:[#allocation2 + $0x330] sm:$0xff] %vm283, 0.0
          %387 = vst.msk [vmem:[#allocation2 + $0x338] sm:$0xff] %vm283, 0.0
          %388 = vst.msk [vmem:[#allocation2 + $0x340] sm:$0xff] %vm283, 0.0
          %389 = vst.msk [vmem:[#allocation2 + $0x348] sm:$0xff] %vm283, 0.0
          %390 = vst.msk [vmem:[#allocation2 + $0x350] sm:$0xff] %vm283, 0.0
          %391 = vst.msk [vmem:[#allocation2 + $0x358] sm:$0xff] %vm283, 0.0
          %392 = vst.msk [vmem:[#allocation2 + $0x360] sm:$0xff] %vm283, 0.0
          %393 = vst.msk [vmem:[#allocation2 + $0x368] sm:$0xff] %vm283, 0.0
          %394 = vst.msk [vmem:[#allocation2 + $0x370] sm:$0xff] %vm283, 0.0
          %395 = vst.msk [vmem:[#allocation2 + $0x378] sm:$0xff] %vm283, 0.0
          %396 = vst.msk [vmem:[#allocation2 + $0x380] sm:$0xff] %vm283, 0.0
          %397 = vst.msk [vmem:[#allocation2 + $0x388] sm:$0xff] %vm283, 0.0
          %398 = vst.msk [vmem:[#allocation2 + $0x390] sm:$0xff] %vm283, 0.0
          %399 = vst.msk [vmem:[#allocation2 + $0x398] sm:$0xff] %vm283, 0.0
          %400 = vst.msk [vmem:[#allocation2 + $0x3a0] sm:$0xff] %vm283, 0.0
          %401 = vst.msk [vmem:[#allocation2 + $0x3a8] sm:$0xff] %vm283, 0.0
          %402 = vst.msk [vmem:[#allocation2 + $0x3b0] sm:$0xff] %vm283, 0.0
          %403 = vst.msk [vmem:[#allocation2 + $0x3b8] sm:$0xff] %vm283, 0.0
          %404 = vst.msk [vmem:[#allocation2 + $0x3c0] sm:$0xff] %vm283, 0.0
          %405 = vst.msk [vmem:[#allocation2 + $0x3c8] sm:$0xff] %vm283, 0.0
          %406 = vst.msk [vmem:[#allocation2 + $0x3d0] sm:$0xff] %vm283, 0.0
          %407 = vst.msk [vmem:[#allocation2 + $0x3d8] sm:$0xff] %vm283, 0.0
          %408 = vst.msk [vmem:[#allocation2 + $0x3e0] sm:$0xff] %vm283, 0.0
          %409 = vst.msk [vmem:[#allocation2 + $0x3e8] sm:$0xff] %vm283, 0.0
          %410 = vst.msk [vmem:[#allocation2 + $0x3f0] sm:$0xff] %vm283, 0.0
          %411 = vst.msk [vmem:[#allocation2 + $0x3f8] sm:$0xff] %vm283, 0.0
        $region44: #{tpu_custom_call.1} parent=31 // pred_fallthru
          _
        %v412 = vld [vmem:[#allocation2] sm:$0xff]
        %v413 = vld [vmem:[#allocation2 + $0x8] sm:$0xff]
        %v414 = vld [vmem:[#allocation2 + $0x10] sm:$0xff]
        %v415 = vld [vmem:[#allocation2 + $0x18] sm:$0xff]
        %v416 = vld [vmem:[#allocation2 + $0x20] sm:$0xff]
        %v417 = vld [vmem:[#allocation2 + $0x28] sm:$0xff]
        %v418 = vld [vmem:[#allocation2 + $0x30] sm:$0xff]
        %v419 = vld [vmem:[#allocation2 + $0x38] sm:$0xff]
        %v420 = vld [vmem:[#allocation2 + $0x40] sm:$0xff]
        %v421 = vld [vmem:[#allocation2 + $0x48] sm:$0xff]
        %v422 = vld [vmem:[#allocation2 + $0x50] sm:$0xff]
        %v423 = vld [vmem:[#allocation2 + $0x58] sm:$0xff]
        %v424 = vld [vmem:[#allocation2 + $0x60] sm:$0xff]
        %v425 = vld [vmem:[#allocation2 + $0x68] sm:$0xff]
        %v426 = vld [vmem:[#allocation2 + $0x70] sm:$0xff]
        %v427 = vld [vmem:[#allocation2 + $0x78] sm:$0xff]
        %v428 = vld [vmem:[#allocation2 + $0x80] sm:$0xff]
        %v429 = vld [vmem:[#allocation2 + $0x88] sm:$0xff]
        %v430 = vld [vmem:[#allocation2 + $0x90] sm:$0xff]
        %v431 = vld [vmem:[#allocation2 + $0x98] sm:$0xff]
        %v432 = vld [vmem:[#allocation2 + $0xa0] sm:$0xff]
        %v433 = vld [vmem:[#allocation2 + $0xa8] sm:$0xff]
        %v434 = vld [vmem:[#allocation2 + $0xb0] sm:$0xff]
        %v435 = vld [vmem:[#allocation2 + $0xb8] sm:$0xff]
        %v436 = vld [vmem:[#allocation2 + $0xc0] sm:$0xff]
        %v437 = vld [vmem:[#allocation2 + $0xc8] sm:$0xff]
        %v438 = vld [vmem:[#allocation2 + $0xd0] sm:$0xff]
        %v439 = vld [vmem:[#allocation2 + $0xd8] sm:$0xff]
        %v440 = vld [vmem:[#allocation2 + $0xe0] sm:$0xff]
        %v441 = vld [vmem:[#allocation2 + $0xe8] sm:$0xff]
        %v442 = vld [vmem:[#allocation2 + $0xf0] sm:$0xff]
        %v443 = vld [vmem:[#allocation2 + $0xf8] sm:$0xff]
        %v444 = vld [vmem:[#allocation2 + $0x100] sm:$0xff]
        %v445 = vld [vmem:[#allocation2 + $0x108] sm:$0xff]
        %v446 = vld [vmem:[#allocation2 + $0x110] sm:$0xff]
        %v447 = vld [vmem:[#allocation2 + $0x118] sm:$0xff]
        %v448 = vld [vmem:[#allocation2 + $0x120] sm:$0xff]
        %v449 = vld [vmem:[#allocation2 + $0x128] sm:$0xff]
        %v450 = vld [vmem:[#allocation2 + $0x130] sm:$0xff]
        %v451 = vld [vmem:[#allocation2 + $0x138] sm:$0xff]
        %v452 = vld [vmem:[#allocation2 + $0x140] sm:$0xff]
        %v453 = vld [vmem:[#allocation2 + $0x148] sm:$0xff]
        %v454 = vld [vmem:[#allocation2 + $0x150] sm:$0xff]
        %v455 = vld [vmem:[#allocation2 + $0x158] sm:$0xff]
        %v456 = vld [vmem:[#allocation2 + $0x160] sm:$0xff]
        %v457 = vld [vmem:[#allocation2 + $0x168] sm:$0xff]
        %v458 = vld [vmem:[#allocation2 + $0x170] sm:$0xff]
        %v459 = vld [vmem:[#allocation2 + $0x178] sm:$0xff]
        %v460 = vld [vmem:[#allocation2 + $0x180] sm:$0xff]
        %v461 = vld [vmem:[#allocation2 + $0x188] sm:$0xff]
        %v462 = vld [vmem:[#allocation2 + $0x190] sm:$0xff]
        %v463 = vld [vmem:[#allocation2 + $0x198] sm:$0xff]
        %v464 = vld [vmem:[#allocation2 + $0x1a0] sm:$0xff]
        %v465 = vld [vmem:[#allocation2 + $0x1a8] sm:$0xff]
        %v466 = vld [vmem:[#allocation2 + $0x1b0] sm:$0xff]
        %v467 = vld [vmem:[#allocation2 + $0x1b8] sm:$0xff]
        %v468 = vld [vmem:[#allocation2 + $0x1c0] sm:$0xff]
        %v469 = vld [vmem:[#allocation2 + $0x1c8] sm:$0xff]
        %v470 = vld [vmem:[#allocation2 + $0x1d0] sm:$0xff]
        %v471 = vld [vmem:[#allocation2 + $0x1d8] sm:$0xff]
        %v472 = vld [vmem:[#allocation2 + $0x1e0] sm:$0xff]
        %v473 = vld [vmem:[#allocation2 + $0x1e8] sm:$0xff]
        %v474 = vld [vmem:[#allocation2 + $0x1f0] sm:$0xff]
        %v475 = vld [vmem:[#allocation2 + $0x1f8] sm:$0xff]
        %v476 = vld [vmem:[#allocation2 + $0x200] sm:$0xff]
        %v477 = vld [vmem:[#allocation2 + $0x208] sm:$0xff]
        %v478 = vld [vmem:[#allocation2 + $0x210] sm:$0xff]
        %v479 = vld [vmem:[#allocation2 + $0x218] sm:$0xff]
        %v480 = vld [vmem:[#allocation2 + $0x220] sm:$0xff]
        %v481 = vld [vmem:[#allocation2 + $0x228] sm:$0xff]
        %v482 = vld [vmem:[#allocation2 + $0x230] sm:$0xff]
        %v483 = vld [vmem:[#allocation2 + $0x238] sm:$0xff]
        %v484 = vld [vmem:[#allocation2 + $0x240] sm:$0xff]
        %v485 = vld [vmem:[#allocation2 + $0x248] sm:$0xff]
        %v486 = vld [vmem:[#allocation2 + $0x250] sm:$0xff]
        %v487 = vld [vmem:[#allocation2 + $0x258] sm:$0xff]
        %v488 = vld [vmem:[#allocation2 + $0x260] sm:$0xff]
        %v489 = vld [vmem:[#allocation2 + $0x268] sm:$0xff]
        %v490 = vld [vmem:[#allocation2 + $0x270] sm:$0xff]
        %v491 = vld [vmem:[#allocation2 + $0x278] sm:$0xff]
        %v492 = vld [vmem:[#allocation2 + $0x280] sm:$0xff]
        %v493 = vld [vmem:[#allocation2 + $0x288] sm:$0xff]
        %v494 = vld [vmem:[#allocation2 + $0x290] sm:$0xff]
        %v495 = vld [vmem:[#allocation2 + $0x298] sm:$0xff]
        %v496 = vld [vmem:[#allocation2 + $0x2a0] sm:$0xff]
        %v497 = vld [vmem:[#allocation2 + $0x2a8] sm:$0xff]
        %v498 = vld [vmem:[#allocation2 + $0x2b0] sm:$0xff]
        %v499 = vld [vmem:[#allocation2 + $0x2b8] sm:$0xff]
        %v500 = vld [vmem:[#allocation2 + $0x2c0] sm:$0xff]
        %v501 = vld [vmem:[#allocation2 + $0x2c8] sm:$0xff]
        %v502 = vld [vmem:[#allocation2 + $0x2d0] sm:$0xff]
        %v503 = vld [vmem:[#allocation2 + $0x2d8] sm:$0xff]
        %v504 = vld [vmem:[#allocation2 + $0x2e0] sm:$0xff]
        %v505 = vld [vmem:[#allocation2 + $0x2e8] sm:$0xff]
        %v506 = vld [vmem:[#allocation2 + $0x2f0] sm:$0xff]
        %v507 = vld [vmem:[#allocation2 + $0x2f8] sm:$0xff]
        %v508 = vld [vmem:[#allocation2 + $0x300] sm:$0xff]
        %v509 = vld [vmem:[#allocation2 + $0x308] sm:$0xff]
        %v510 = vld [vmem:[#allocation2 + $0x310] sm:$0xff]
        %v511 = vld [vmem:[#allocation2 + $0x318] sm:$0xff]
        %v512 = vld [vmem:[#allocation2 + $0x320] sm:$0xff]
        %v513 = vld [vmem:[#allocation2 + $0x328] sm:$0xff]
        %v514 = vld [vmem:[#allocation2 + $0x330] sm:$0xff]
        %v515 = vld [vmem:[#allocation2 + $0x338] sm:$0xff]
        %v516 = vld [vmem:[#allocation2 + $0x340] sm:$0xff]
        %v517 = vld [vmem:[#allocation2 + $0x348] sm:$0xff]
        %v518 = vld [vmem:[#allocation2 + $0x350] sm:$0xff]
        %v519 = vld [vmem:[#allocation2 + $0x358] sm:$0xff]
        %v520 = vld [vmem:[#allocation2 + $0x360] sm:$0xff]
        %v521 = vld [vmem:[#allocation2 + $0x368] sm:$0xff]
        %v522 = vld [vmem:[#allocation2 + $0x370] sm:$0xff]
        %v523 = vld [vmem:[#allocation2 + $0x378] sm:$0xff]
        %v524 = vld [vmem:[#allocation2 + $0x380] sm:$0xff]
        %v525 = vld [vmem:[#allocation2 + $0x388] sm:$0xff]
        %v526 = vld [vmem:[#allocation2 + $0x390] sm:$0xff]
        %v527 = vld [vmem:[#allocation2 + $0x398] sm:$0xff]
        %v528 = vld [vmem:[#allocation2 + $0x3a0] sm:$0xff]
        %v529 = vld [vmem:[#allocation2 + $0x3a8] sm:$0xff]
        %v530 = vld [vmem:[#allocation2 + $0x3b0] sm:$0xff]
        %v531 = vld [vmem:[#allocation2 + $0x3b8] sm:$0xff]
        %v532 = vld [vmem:[#allocation2 + $0x3c0] sm:$0xff]
        %v533 = vld [vmem:[#allocation2 + $0x3c8] sm:$0xff]
        %v534 = vld [vmem:[#allocation2 + $0x3d0] sm:$0xff]
        %v535 = vld [vmem:[#allocation2 + $0x3d8] sm:$0xff]
        %v536 = vld [vmem:[#allocation2 + $0x3e0] sm:$0xff]
        %v537 = vld [vmem:[#allocation2 + $0x3e8] sm:$0xff]
        %v538 = vld [vmem:[#allocation2 + $0x3f0] sm:$0xff]
        %v539 = vld [vmem:[#allocation2 + $0x3f8] sm:$0xff]
        %v540 = vld [vmem:[%s220] sm:$0xf]
        %v541 = vld [vmem:[%s220 + $0x4] sm:$0xf]
        %v542 = vld [vmem:[%s220 + $0x8] sm:$0xf]
        %v543 = vld [vmem:[%s220 + $0xc] sm:$0xf]
        %v544 = vld [vmem:[%s220 + $0x10] sm:$0xf]
        %v545 = vld [vmem:[%s220 + $0x14] sm:$0xf]
        %v546 = vld [vmem:[%s220 + $0x18] sm:$0xf]
        %v547 = vld [vmem:[%s220 + $0x1c] sm:$0xf]
        %v548 = vld [vmem:[%s220 + $0x20] sm:$0xf]
        %v549 = vld [vmem:[%s220 + $0x24] sm:$0xf]
        %v550 = vld [vmem:[%s220 + $0x28] sm:$0xf]
        %v551 = vld [vmem:[%s220 + $0x2c] sm:$0xf]
        %v552 = vld [vmem:[%s220 + $0x30] sm:$0xf]
        %v553 = vld [vmem:[%s220 + $0x34] sm:$0xf]
        %v554 = vld [vmem:[%s220 + $0x38] sm:$0xf]
        %v555 = vld [vmem:[%s220 + $0x3c] sm:$0xf]
        %v556 = vld [vmem:[%s220 + $0x40] sm:$0xf]
        %v557 = vld [vmem:[%s220 + $0x44] sm:$0xf]
        %v558 = vld [vmem:[%s220 + $0x48] sm:$0xf]
        %v559 = vld [vmem:[%s220 + $0x4c] sm:$0xf]
        %v560 = vld [vmem:[%s220 + $0x50] sm:$0xf]
        %v561 = vld [vmem:[%s220 + $0x54] sm:$0xf]
        %v562 = vld [vmem:[%s220 + $0x58] sm:$0xf]
        %v563 = vld [vmem:[%s220 + $0x5c] sm:$0xf]
        %v564 = vld [vmem:[%s220 + $0x60] sm:$0xf]
        %v565 = vld [vmem:[%s220 + $0x64] sm:$0xf]
        %v566 = vld [vmem:[%s220 + $0x68] sm:$0xf]
        %v567 = vld [vmem:[%s220 + $0x6c] sm:$0xf]
        %v568 = vld [vmem:[%s220 + $0x70] sm:$0xf]
        %v569 = vld [vmem:[%s220 + $0x74] sm:$0xf]
        %v570 = vld [vmem:[%s220 + $0x78] sm:$0xf]
        %v571 = vld [vmem:[%s220 + $0x7c] sm:$0xf]
        %v572 = vld [vmem:[%s220 + $0x80] sm:$0xf]
        %v573 = vld [vmem:[%s220 + $0x84] sm:$0xf]
        %v574 = vld [vmem:[%s220 + $0x88] sm:$0xf]
        %v575 = vld [vmem:[%s220 + $0x8c] sm:$0xf]
        %v576 = vld [vmem:[%s220 + $0x90] sm:$0xf]
        %v577 = vld [vmem:[%s220 + $0x94] sm:$0xf]
        %v578 = vld [vmem:[%s220 + $0x98] sm:$0xf]
        %v579 = vld [vmem:[%s220 + $0x9c] sm:$0xf]
        %v580 = vld [vmem:[%s220 + $0xa0] sm:$0xf]
        %v581 = vld [vmem:[%s220 + $0xa4] sm:$0xf]
        %v582 = vld [vmem:[%s220 + $0xa8] sm:$0xf]
        %v583 = vld [vmem:[%s220 + $0xac] sm:$0xf]
        %v584 = vld [vmem:[%s220 + $0xb0] sm:$0xf]
        %v585 = vld [vmem:[%s220 + $0xb4] sm:$0xf]
        %v586 = vld [vmem:[%s220 + $0xb8] sm:$0xf]
        %v587 = vld [vmem:[%s220 + $0xbc] sm:$0xf]
        %v588 = vld [vmem:[%s220 + $0xc0] sm:$0xf]
        %v589 = vld [vmem:[%s220 + $0xc4] sm:$0xf]
        %v590 = vld [vmem:[%s220 + $0xc8] sm:$0xf]
        %v591 = vld [vmem:[%s220 + $0xcc] sm:$0xf]
        %v592 = vld [vmem:[%s220 + $0xd0] sm:$0xf]
        %v593 = vld [vmem:[%s220 + $0xd4] sm:$0xf]
        %v594 = vld [vmem:[%s220 + $0xd8] sm:$0xf]
        %v595 = vld [vmem:[%s220 + $0xdc] sm:$0xf]
        %v596 = vld [vmem:[%s220 + $0xe0] sm:$0xf]
        %v597 = vld [vmem:[%s220 + $0xe4] sm:$0xf]
        %v598 = vld [vmem:[%s220 + $0xe8] sm:$0xf]
        %v599 = vld [vmem:[%s220 + $0xec] sm:$0xf]
        %v600 = vld [vmem:[%s220 + $0xf0] sm:$0xf]
        %v601 = vld [vmem:[%s220 + $0xf4] sm:$0xf]
        %v602 = vld [vmem:[%s220 + $0xf8] sm:$0xf]
        %v603 = vld [vmem:[%s220 + $0xfc] sm:$0xf]
        %v604 = vld [vmem:[%s220 + $0x100] sm:$0xf]
        %v605 = vld [vmem:[%s220 + $0x104] sm:$0xf]
        %v606 = vld [vmem:[%s220 + $0x108] sm:$0xf]
        %v607 = vld [vmem:[%s220 + $0x10c] sm:$0xf]
        %v608 = vld [vmem:[%s220 + $0x110] sm:$0xf]
        %v609 = vld [vmem:[%s220 + $0x114] sm:$0xf]
        %v610 = vld [vmem:[%s220 + $0x118] sm:$0xf]
        %v611 = vld [vmem:[%s220 + $0x11c] sm:$0xf]
        %v612 = vld [vmem:[%s220 + $0x120] sm:$0xf]
        %v613 = vld [vmem:[%s220 + $0x124] sm:$0xf]
        %v614 = vld [vmem:[%s220 + $0x128] sm:$0xf]
        %v615 = vld [vmem:[%s220 + $0x12c] sm:$0xf]
        %v616 = vld [vmem:[%s220 + $0x130] sm:$0xf]
        %v617 = vld [vmem:[%s220 + $0x134] sm:$0xf]
        %v618 = vld [vmem:[%s220 + $0x138] sm:$0xf]
        %v619 = vld [vmem:[%s220 + $0x13c] sm:$0xf]
        %v620 = vld [vmem:[%s220 + $0x140] sm:$0xf]
        %v621 = vld [vmem:[%s220 + $0x144] sm:$0xf]
        %v622 = vld [vmem:[%s220 + $0x148] sm:$0xf]
        %v623 = vld [vmem:[%s220 + $0x14c] sm:$0xf]
        %v624 = vld [vmem:[%s220 + $0x150] sm:$0xf]
        %v625 = vld [vmem:[%s220 + $0x154] sm:$0xf]
        %v626 = vld [vmem:[%s220 + $0x158] sm:$0xf]
        %v627 = vld [vmem:[%s220 + $0x15c] sm:$0xf]
        %v628 = vld [vmem:[%s220 + $0x160] sm:$0xf]
        %v629 = vld [vmem:[%s220 + $0x164] sm:$0xf]
        %v630 = vld [vmem:[%s220 + $0x168] sm:$0xf]
        %v631 = vld [vmem:[%s220 + $0x16c] sm:$0xf]
        %v632 = vld [vmem:[%s220 + $0x170] sm:$0xf]
        %v633 = vld [vmem:[%s220 + $0x174] sm:$0xf]
        %v634 = vld [vmem:[%s220 + $0x178] sm:$0xf]
        %v635 = vld [vmem:[%s220 + $0x17c] sm:$0xf]
        %v636 = vld [vmem:[%s220 + $0x180] sm:$0xf]
        %v637 = vld [vmem:[%s220 + $0x184] sm:$0xf]
        %v638 = vld [vmem:[%s220 + $0x188] sm:$0xf]
        %v639 = vld [vmem:[%s220 + $0x18c] sm:$0xf]
        %v640 = vld [vmem:[%s220 + $0x190] sm:$0xf]
        %v641 = vld [vmem:[%s220 + $0x194] sm:$0xf]
        %v642 = vld [vmem:[%s220 + $0x198] sm:$0xf]
        %v643 = vld [vmem:[%s220 + $0x19c] sm:$0xf]
        %v644 = vld [vmem:[%s220 + $0x1a0] sm:$0xf]
        %v645 = vld [vmem:[%s220 + $0x1a4] sm:$0xf]
        %v646 = vld [vmem:[%s220 + $0x1a8] sm:$0xf]
        %v647 = vld [vmem:[%s220 + $0x1ac] sm:$0xf]
        %v648 = vld [vmem:[%s220 + $0x1b0] sm:$0xf]
        %v649 = vld [vmem:[%s220 + $0x1b4] sm:$0xf]
        %v650 = vld [vmem:[%s220 + $0x1b8] sm:$0xf]
        %v651 = vld [vmem:[%s220 + $0x1bc] sm:$0xf]
        %v652 = vld [vmem:[%s220 + $0x1c0] sm:$0xf]
        %v653 = vld [vmem:[%s220 + $0x1c4] sm:$0xf]
        %v654 = vld [vmem:[%s220 + $0x1c8] sm:$0xf]
        %v655 = vld [vmem:[%s220 + $0x1cc] sm:$0xf]
        %v656 = vld [vmem:[%s220 + $0x1d0] sm:$0xf]
        %v657 = vld [vmem:[%s220 + $0x1d4] sm:$0xf]
        %v658 = vld [vmem:[%s220 + $0x1d8] sm:$0xf]
        %v659 = vld [vmem:[%s220 + $0x1dc] sm:$0xf]
        %v660 = vld [vmem:[%s220 + $0x1e0] sm:$0xf]
        %v661 = vld [vmem:[%s220 + $0x1e4] sm:$0xf]
        %v662 = vld [vmem:[%s220 + $0x1e8] sm:$0xf]
        %v663 = vld [vmem:[%s220 + $0x1ec] sm:$0xf]
        %v664 = vld [vmem:[%s220 + $0x1f0] sm:$0xf]
        %v665 = vld [vmem:[%s220 + $0x1f4] sm:$0xf]
        %v666 = vld [vmem:[%s220 + $0x1f8] sm:$0xf]
        %v667 = vld [vmem:[%s220 + $0x1fc] sm:$0xf]
        %v668 = vld [vmem:[%s268] sm:$0xf]
        %v669 = vld [vmem:[%s268 + $0x4] sm:$0xf]
        %v670 = vld [vmem:[%s268 + $0x8] sm:$0xf]
        %v671 = vld [vmem:[%s268 + $0xc] sm:$0xf]
        %v672 = vld [vmem:[%s268 + $0x10] sm:$0xf]
        %v673 = vld [vmem:[%s268 + $0x14] sm:$0xf]
        %v674 = vld [vmem:[%s268 + $0x18] sm:$0xf]
        %v675 = vld [vmem:[%s268 + $0x1c] sm:$0xf]
        %v676 = vld [vmem:[%s268 + $0x20] sm:$0xf]
        %v677 = vld [vmem:[%s268 + $0x24] sm:$0xf]
        %v678 = vld [vmem:[%s268 + $0x28] sm:$0xf]
        %v679 = vld [vmem:[%s268 + $0x2c] sm:$0xf]
        %v680 = vld [vmem:[%s268 + $0x30] sm:$0xf]
        %v681 = vld [vmem:[%s268 + $0x34] sm:$0xf]
        %v682 = vld [vmem:[%s268 + $0x38] sm:$0xf]
        %v683 = vld [vmem:[%s268 + $0x3c] sm:$0xf]
        %v812 = vunpack.c.l.b16 %v540
        %v813 = vunpack.c.l.b16 %v541
        %v814 = vunpack.c.l.b16 %v542
        %v815 = vunpack.c.l.b16 %v543
        %v816 = vunpack.c.l.b16 %v544
        %v817 = vunpack.c.l.b16 %v545
        %v818 = vunpack.c.l.b16 %v546
        %v819 = vunpack.c.l.b16 %v547
        %v820 = vunpack.c.l.b16 %v548
        %v821 = vunpack.c.l.b16 %v549
        %v822 = vunpack.c.l.b16 %v550
        %v823 = vunpack.c.l.b16 %v551
        %v824 = vunpack.c.l.b16 %v552
        %v825 = vunpack.c.l.b16 %v553
        %v826 = vunpack.c.l.b16 %v554
        %v827 = vunpack.c.l.b16 %v555
        %v828 = vunpack.c.l.b16 %v556
        %v829 = vunpack.c.l.b16 %v557
        %v830 = vunpack.c.l.b16 %v558
        %v831 = vunpack.c.l.b16 %v559
        %v832 = vunpack.c.l.b16 %v560
        %v833 = vunpack.c.l.b16 %v561
        %v834 = vunpack.c.l.b16 %v562
        %v835 = vunpack.c.l.b16 %v563
        %v836 = vunpack.c.l.b16 %v564
        %v837 = vunpack.c.l.b16 %v565
        %v838 = vunpack.c.l.b16 %v566
        %v839 = vunpack.c.l.b16 %v567
        %v840 = vunpack.c.l.b16 %v568
        %v841 = vunpack.c.l.b16 %v569
        %v842 = vunpack.c.l.b16 %v570
        %v843 = vunpack.c.l.b16 %v571
        %v844 = vunpack.c.l.b16 %v572
        %v845 = vunpack.c.l.b16 %v573
        %v846 = vunpack.c.l.b16 %v574
        %v847 = vunpack.c.l.b16 %v575
        %v848 = vunpack.c.l.b16 %v576
        %v849 = vunpack.c.l.b16 %v577
        %v850 = vunpack.c.l.b16 %v578
        %v851 = vunpack.c.l.b16 %v579
        %v852 = vunpack.c.l.b16 %v580
        %v853 = vunpack.c.l.b16 %v581
        %v854 = vunpack.c.l.b16 %v582
        %v855 = vunpack.c.l.b16 %v583
        %v856 = vunpack.c.l.b16 %v584
        %v857 = vunpack.c.l.b16 %v585
        %v858 = vunpack.c.l.b16 %v586
        %v859 = vunpack.c.l.b16 %v587
        %v860 = vunpack.c.l.b16 %v588
        %v861 = vunpack.c.l.b16 %v589
        %v862 = vunpack.c.l.b16 %v590
        %v863 = vunpack.c.l.b16 %v591
        %v864 = vunpack.c.l.b16 %v592
        %v865 = vunpack.c.l.b16 %v593
        %v866 = vunpack.c.l.b16 %v594
        %v867 = vunpack.c.l.b16 %v595
        %v868 = vunpack.c.l.b16 %v596
        %v869 = vunpack.c.l.b16 %v597
        %v870 = vunpack.c.l.b16 %v598
        %v871 = vunpack.c.l.b16 %v599
        %v872 = vunpack.c.l.b16 %v600
        %v873 = vunpack.c.l.b16 %v601
        %v874 = vunpack.c.l.b16 %v602
        %v875 = vunpack.c.l.b16 %v603
        %v876 = vunpack.c.l.b16 %v604
        %v877 = vunpack.c.l.b16 %v605
        %v878 = vunpack.c.l.b16 %v606
        %v879 = vunpack.c.l.b16 %v607
        %v880 = vunpack.c.l.b16 %v608
        %v881 = vunpack.c.l.b16 %v609
        %v882 = vunpack.c.l.b16 %v610
        %v883 = vunpack.c.l.b16 %v611
        %v884 = vunpack.c.l.b16 %v612
        %v885 = vunpack.c.l.b16 %v613
        %v886 = vunpack.c.l.b16 %v614
        %v887 = vunpack.c.l.b16 %v615
        %v888 = vunpack.c.l.b16 %v616
        %v889 = vunpack.c.l.b16 %v617
        %v890 = vunpack.c.l.b16 %v618
        %v891 = vunpack.c.l.b16 %v619
        %v892 = vunpack.c.l.b16 %v620
        %v893 = vunpack.c.l.b16 %v621
        %v894 = vunpack.c.l.b16 %v622
        %v895 = vunpack.c.l.b16 %v623
        %v896 = vunpack.c.l.b16 %v624
        %v897 = vunpack.c.l.b16 %v625
        %v898 = vunpack.c.l.b16 %v626
        %v899 = vunpack.c.l.b16 %v627
        %v900 = vunpack.c.l.b16 %v628
        %v901 = vunpack.c.l.b16 %v629
        %v902 = vunpack.c.l.b16 %v630
        %v903 = vunpack.c.l.b16 %v631
        %v904 = vunpack.c.l.b16 %v632
        %v905 = vunpack.c.l.b16 %v633
        %v906 = vunpack.c.l.b16 %v634
        %v907 = vunpack.c.l.b16 %v635
        %v908 = vunpack.c.l.b16 %v636
        %v909 = vunpack.c.l.b16 %v637
        %v910 = vunpack.c.l.b16 %v638
        %v911 = vunpack.c.l.b16 %v639
        %v912 = vunpack.c.l.b16 %v640
        %v913 = vunpack.c.l.b16 %v641
        %v914 = vunpack.c.l.b16 %v642
        %v915 = vunpack.c.l.b16 %v643
        %v916 = vunpack.c.l.b16 %v644
        %v917 = vunpack.c.l.b16 %v645
        %v918 = vunpack.c.l.b16 %v646
        %v919 = vunpack.c.l.b16 %v647
        %v920 = vunpack.c.l.b16 %v648
        %v921 = vunpack.c.l.b16 %v649
        %v922 = vunpack.c.l.b16 %v650
        %v923 = vunpack.c.l.b16 %v651
        %v924 = vunpack.c.l.b16 %v652
        %v925 = vunpack.c.l.b16 %v653
        %v926 = vunpack.c.l.b16 %v654
        %v927 = vunpack.c.l.b16 %v655
        %v928 = vunpack.c.l.b16 %v656
        %v929 = vunpack.c.l.b16 %v657
        %v930 = vunpack.c.l.b16 %v658
        %v931 = vunpack.c.l.b16 %v659
        %v932 = vunpack.c.l.b16 %v660
        %v933 = vunpack.c.l.b16 %v661
        %v934 = vunpack.c.l.b16 %v662
        %v935 = vunpack.c.l.b16 %v663
        %v936 = vunpack.c.l.b16 %v664
        %v937 = vunpack.c.l.b16 %v665
        %v938 = vunpack.c.l.b16 %v666
        %v939 = vunpack.c.l.b16 %v667
        %v940 = vpack.c.b16 %v813, %v812
        %v941 = vpack.c.b16 %v815, %v814
        %v942 = vpack.c.b16 %v817, %v816
        %v943 = vpack.c.b16 %v819, %v818
        %v944 = vpack.c.b16 %v821, %v820
        %v945 = vpack.c.b16 %v823, %v822
        %v946 = vpack.c.b16 %v825, %v824
        %v947 = vpack.c.b16 %v827, %v826
        %v948 = vpack.c.b16 %v829, %v828
        %v949 = vpack.c.b16 %v831, %v830
        %v950 = vpack.c.b16 %v833, %v832
        %v951 = vpack.c.b16 %v835, %v834
        %v952 = vpack.c.b16 %v837, %v836
        %v953 = vpack.c.b16 %v839, %v838
        %v954 = vpack.c.b16 %v841, %v840
        %v955 = vpack.c.b16 %v843, %v842
        %v956 = vpack.c.b16 %v845, %v844
        %v957 = vpack.c.b16 %v847, %v846
        %v958 = vpack.c.b16 %v849, %v848
        %v959 = vpack.c.b16 %v851, %v850
        %v960 = vpack.c.b16 %v853, %v852
        %v961 = vpack.c.b16 %v855, %v854
        %v962 = vpack.c.b16 %v857, %v856
        %v963 = vpack.c.b16 %v859, %v858
        %v964 = vpack.c.b16 %v861, %v860
        %v965 = vpack.c.b16 %v863, %v862
        %v966 = vpack.c.b16 %v865, %v864
        %v967 = vpack.c.b16 %v867, %v866
        %v968 = vpack.c.b16 %v869, %v868
        %v969 = vpack.c.b16 %v871, %v870
        %v970 = vpack.c.b16 %v873, %v872
        %v971 = vpack.c.b16 %v875, %v874
        %v972 = vpack.c.b16 %v877, %v876
        %v973 = vpack.c.b16 %v879, %v878
        %v974 = vpack.c.b16 %v881, %v880
        %v975 = vpack.c.b16 %v883, %v882
        %v976 = vpack.c.b16 %v885, %v884
        %v977 = vpack.c.b16 %v887, %v886
        %v978 = vpack.c.b16 %v889, %v888
        %v979 = vpack.c.b16 %v891, %v890
        %v980 = vpack.c.b16 %v893, %v892
        %v981 = vpack.c.b16 %v895, %v894
        %v982 = vpack.c.b16 %v897, %v896
        %v983 = vpack.c.b16 %v899, %v898
        %v984 = vpack.c.b16 %v901, %v900
        %v985 = vpack.c.b16 %v903, %v902
        %v986 = vpack.c.b16 %v905, %v904
        %v987 = vpack.c.b16 %v907, %v906
        %v988 = vpack.c.b16 %v909, %v908
        %v989 = vpack.c.b16 %v911, %v910
        %v990 = vpack.c.b16 %v913, %v912
        %v991 = vpack.c.b16 %v915, %v914
        %v992 = vpack.c.b16 %v917, %v916
        %v993 = vpack.c.b16 %v919, %v918
        %v994 = vpack.c.b16 %v921, %v920
        %v995 = vpack.c.b16 %v923, %v922
        %v996 = vpack.c.b16 %v925, %v924
        %v997 = vpack.c.b16 %v927, %v926
        %v998 = vpack.c.b16 %v929, %v928
        %v999 = vpack.c.b16 %v931, %v930
        %v1000 = vpack.c.b16 %v933, %v932
        %v1001 = vpack.c.b16 %v935, %v934
        %v1002 = vpack.c.b16 %v937, %v936
        %v1003 = vpack.c.b16 %v939, %v938
        %v1084 = vunpack.c.l.b16 %v668
        %v1085 = vunpack.c.l.b16 %v669
        %v1086 = vunpack.c.l.b16 %v670
        %v1087 = vunpack.c.l.b16 %v671
        %v1088 = vunpack.c.l.b16 %v672
        %v1089 = vunpack.c.l.b16 %v673
        %v1090 = vunpack.c.l.b16 %v674
        %v1091 = vunpack.c.l.b16 %v675
        %v1092 = vunpack.c.l.b16 %v676
        %v1093 = vunpack.c.l.b16 %v677
        %v1094 = vunpack.c.l.b16 %v678
        %v1095 = vunpack.c.l.b16 %v679
        %v1096 = vunpack.c.l.b16 %v680
        %v1097 = vunpack.c.l.b16 %v681
        %v1098 = vunpack.c.l.b16 %v682
        %v1099 = vunpack.c.l.b16 %v683
        %v1100 = vpack.c.b16 %v1085, %v1084
        %v1101 = vpack.c.b16 %v1087, %v1086
        %v1102 = vpack.c.b16 %v1089, %v1088
        %v1103 = vpack.c.b16 %v1091, %v1090
        %v1104 = vpack.c.b16 %v1093, %v1092
        %v1105 = vpack.c.b16 %v1095, %v1094
        %v1106 = vpack.c.b16 %v1097, %v1096
        %v1107 = vpack.c.b16 %v1099, %v1098
        %1116 = vmatpush.bf16.msra.mxu0 %v1107
        %1117 = vmatpush.bf16.msra.mxu0 %v1106
        %1118 = vmatpush.bf16.msra.mxu0 %v1105
        %1119 = vmatpush.bf16.msra.mxu0 %v1104
        %1120 = vmatpush.bf16.msra.mxu0 %v1103
        %1121 = vmatpush.bf16.msra.mxu0 %v1102
        %1122 = vmatpush.bf16.msra.mxu0 %v1101
        %1123 = vmatpush.bf16.msra.mxu0 %v1100
        %1124 = vmatmul.bf16.gmra.mxu0 %v940
        %v1125 = vpop.f32.mrf.mxu0
        %v1126 = vadd.f32 0.0, %v1125
        %v1127 = vpop.f32.mrf.mxu0
        %v1128 = vadd.f32 0.0, %v1127
        %1129 = vmatmul.bf16.gmra.mxu0 %v941
        %v1130 = vpop.f32.mrf.mxu0
        %v1131 = vadd.f32 0.0, %v1130
        %v1132 = vpop.f32.mrf.mxu0
        %v1133 = vadd.f32 0.0, %v1132
        %1134 = vmatmul.bf16.gmra.mxu0 %v942
        %v1135 = vpop.f32.mrf.mxu0
        %v1136 = vadd.f32 0.0, %v1135
        %v1137 = vpop.f32.mrf.mxu0
        %v1138 = vadd.f32 0.0, %v1137
        %1139 = vmatmul.bf16.gmra.mxu0 %v943
        %v1140 = vpop.f32.mrf.mxu0
        %v1141 = vadd.f32 0.0, %v1140
        %v1142 = vpop.f32.mrf.mxu0
        %v1143 = vadd.f32 0.0, %v1142
        %1144 = vmatmul.bf16.gmra.mxu0 %v944
        %v1145 = vpop.f32.mrf.mxu0
        %v1146 = vadd.f32 0.0, %v1145
        %v1147 = vpop.f32.mrf.mxu0
        %v1148 = vadd.f32 0.0, %v1147
        %1149 = vmatmul.bf16.gmra.mxu0 %v945
        %v1150 = vpop.f32.mrf.mxu0
        %v1151 = vadd.f32 0.0, %v1150
        %v1152 = vpop.f32.mrf.mxu0
        %v1153 = vadd.f32 0.0, %v1152
        %1154 = vmatmul.bf16.gmra.mxu0 %v946
        %v1155 = vpop.f32.mrf.mxu0
        %v1156 = vadd.f32 0.0, %v1155
        %v1157 = vpop.f32.mrf.mxu0
        %v1158 = vadd.f32 0.0, %v1157
        %1159 = vmatmul.bf16.gmra.mxu0 %v947
        %v1160 = vpop.f32.mrf.mxu0
        %v1161 = vadd.f32 0.0, %v1160
        %v1162 = vpop.f32.mrf.mxu0
        %v1163 = vadd.f32 0.0, %v1162
        %1164 = vmatmul.bf16.gmra.mxu0 %v948
        %v1165 = vpop.f32.mrf.mxu0
        %v1166 = vadd.f32 0.0, %v1165
        %v1167 = vpop.f32.mrf.mxu0
        %v1168 = vadd.f32 0.0, %v1167
        %1169 = vmatmul.bf16.gmra.mxu0 %v949
        %v1170 = vpop.f32.mrf.mxu0
        %v1171 = vadd.f32 0.0, %v1170
        %v1172 = vpop.f32.mrf.mxu0
        %v1173 = vadd.f32 0.0, %v1172
        %1174 = vmatmul.bf16.gmra.mxu0 %v950
        %v1175 = vpop.f32.mrf.mxu0
        %v1176 = vadd.f32 0.0, %v1175
        %v1177 = vpop.f32.mrf.mxu0
        %v1178 = vadd.f32 0.0, %v1177
        %1179 = vmatmul.bf16.gmra.mxu0 %v951
        %v1180 = vpop.f32.mrf.mxu0
        %v1181 = vadd.f32 0.0, %v1180
        %v1182 = vpop.f32.mrf.mxu0
        %v1183 = vadd.f32 0.0, %v1182
        %1184 = vmatmul.bf16.gmra.mxu0 %v952
        %v1185 = vpop.f32.mrf.mxu0
        %v1186 = vadd.f32 0.0, %v1185
        %v1187 = vpop.f32.mrf.mxu0
        %v1188 = vadd.f32 0.0, %v1187
        %1189 = vmatmul.bf16.gmra.mxu0 %v953
        %v1190 = vpop.f32.mrf.mxu0
        %v1191 = vadd.f32 0.0, %v1190
        %v1192 = vpop.f32.mrf.mxu0
        %v1193 = vadd.f32 0.0, %v1192
        %1194 = vmatmul.bf16.gmra.mxu0 %v954
        %v1195 = vpop.f32.mrf.mxu0
        %v1196 = vadd.f32 0.0, %v1195
        %v1197 = vpop.f32.mrf.mxu0
        %v1198 = vadd.f32 0.0, %v1197
        %1199 = vmatmul.bf16.gmra.mxu0 %v955
        %v1200 = vpop.f32.mrf.mxu0
        %v1201 = vadd.f32 0.0, %v1200
        %v1202 = vpop.f32.mrf.mxu0
        %v1203 = vadd.f32 0.0, %v1202
        %1204 = vmatmul.bf16.gmra.mxu0 %v956
        %v1205 = vpop.f32.mrf.mxu0
        %v1206 = vadd.f32 0.0, %v1205
        %v1207 = vpop.f32.mrf.mxu0
        %v1208 = vadd.f32 0.0, %v1207
        %1209 = vmatmul.bf16.gmra.mxu0 %v957
        %v1210 = vpop.f32.mrf.mxu0
        %v1211 = vadd.f32 0.0, %v1210
        %v1212 = vpop.f32.mrf.mxu0
        %v1213 = vadd.f32 0.0, %v1212
        %1214 = vmatmul.bf16.gmra.mxu0 %v958
        %v1215 = vpop.f32.mrf.mxu0
        %v1216 = vadd.f32 0.0, %v1215
        %v1217 = vpop.f32.mrf.mxu0
        %v1218 = vadd.f32 0.0, %v1217
        %1219 = vmatmul.bf16.gmra.mxu0 %v959
        %v1220 = vpop.f32.mrf.mxu0
        %v1221 = vadd.f32 0.0, %v1220
        %v1222 = vpop.f32.mrf.mxu0
        %v1223 = vadd.f32 0.0, %v1222
        %1224 = vmatmul.bf16.gmra.mxu0 %v960
        %v1225 = vpop.f32.mrf.mxu0
        %v1226 = vadd.f32 0.0, %v1225
        %v1227 = vpop.f32.mrf.mxu0
        %v1228 = vadd.f32 0.0, %v1227
        %1229 = vmatmul.bf16.gmra.mxu0 %v961
        %v1230 = vpop.f32.mrf.mxu0
        %v1231 = vadd.f32 0.0, %v1230
        %v1232 = vpop.f32.mrf.mxu0
        %v1233 = vadd.f32 0.0, %v1232
        %1234 = vmatmul.bf16.gmra.mxu0 %v962
        %v1235 = vpop.f32.mrf.mxu0
        %v1236 = vadd.f32 0.0, %v1235
        %v1237 = vpop.f32.mrf.mxu0
        %v1238 = vadd.f32 0.0, %v1237
        %1239 = vmatmul.bf16.gmra.mxu0 %v963
        %v1240 = vpop.f32.mrf.mxu0
        %v1241 = vadd.f32 0.0, %v1240
        %v1242 = vpop.f32.mrf.mxu0
        %v1243 = vadd.f32 0.0, %v1242
        %1244 = vmatmul.bf16.gmra.mxu0 %v964
        %v1245 = vpop.f32.mrf.mxu0
        %v1246 = vadd.f32 0.0, %v1245
        %v1247 = vpop.f32.mrf.mxu0
        %v1248 = vadd.f32 0.0, %v1247
        %1249 = vmatmul.bf16.gmra.mxu0 %v965
        %v1250 = vpop.f32.mrf.mxu0
        %v1251 = vadd.f32 0.0, %v1250
        %v1252 = vpop.f32.mrf.mxu0
        %v1253 = vadd.f32 0.0, %v1252
        %1254 = vmatmul.bf16.gmra.mxu0 %v966
        %v1255 = vpop.f32.mrf.mxu0
        %v1256 = vadd.f32 0.0, %v1255
        %v1257 = vpop.f32.mrf.mxu0
        %v1258 = vadd.f32 0.0, %v1257
        %1259 = vmatmul.bf16.gmra.mxu0 %v967
        %v1260 = vpop.f32.mrf.mxu0
        %v1261 = vadd.f32 0.0, %v1260
        %v1262 = vpop.f32.mrf.mxu0
        %v1263 = vadd.f32 0.0, %v1262
        %1264 = vmatmul.bf16.gmra.mxu0 %v968
        %v1265 = vpop.f32.mrf.mxu0
        %v1266 = vadd.f32 0.0, %v1265
        %v1267 = vpop.f32.mrf.mxu0
        %v1268 = vadd.f32 0.0, %v1267
        %1269 = vmatmul.bf16.gmra.mxu0 %v969
        %v1270 = vpop.f32.mrf.mxu0
        %v1271 = vadd.f32 0.0, %v1270
        %v1272 = vpop.f32.mrf.mxu0
        %v1273 = vadd.f32 0.0, %v1272
        %1274 = vmatmul.bf16.gmra.mxu0 %v970
        %v1275 = vpop.f32.mrf.mxu0
        %v1276 = vadd.f32 0.0, %v1275
        %v1277 = vpop.f32.mrf.mxu0
        %v1278 = vadd.f32 0.0, %v1277
        %1279 = vmatmul.bf16.gmra.mxu0 %v971
        %v1280 = vpop.f32.mrf.mxu0
        %v1281 = vadd.f32 0.0, %v1280
        %v1282 = vpop.f32.mrf.mxu0
        %v1283 = vadd.f32 0.0, %v1282
        %1284 = vmatmul.bf16.gmra.mxu0 %v972
        %v1285 = vpop.f32.mrf.mxu0
        %v1286 = vadd.f32 0.0, %v1285
        %v1287 = vpop.f32.mrf.mxu0
        %v1288 = vadd.f32 0.0, %v1287
        %1289 = vmatmul.bf16.gmra.mxu0 %v973
        %v1290 = vpop.f32.mrf.mxu0
        %v1291 = vadd.f32 0.0, %v1290
        %v1292 = vpop.f32.mrf.mxu0
        %v1293 = vadd.f32 0.0, %v1292
        %1294 = vmatmul.bf16.gmra.mxu0 %v974
        %v1295 = vpop.f32.mrf.mxu0
        %v1296 = vadd.f32 0.0, %v1295
        %v1297 = vpop.f32.mrf.mxu0
        %v1298 = vadd.f32 0.0, %v1297
        %1299 = vmatmul.bf16.gmra.mxu0 %v975
        %v1300 = vpop.f32.mrf.mxu0
        %v1301 = vadd.f32 0.0, %v1300
        %v1302 = vpop.f32.mrf.mxu0
        %v1303 = vadd.f32 0.0, %v1302
        %1304 = vmatmul.bf16.gmra.mxu0 %v976
        %v1305 = vpop.f32.mrf.mxu0
        %v1306 = vadd.f32 0.0, %v1305
        %v1307 = vpop.f32.mrf.mxu0
        %v1308 = vadd.f32 0.0, %v1307
        %1309 = vmatmul.bf16.gmra.mxu0 %v977
        %v1310 = vpop.f32.mrf.mxu0
        %v1311 = vadd.f32 0.0, %v1310
        %v1312 = vpop.f32.mrf.mxu0
        %v1313 = vadd.f32 0.0, %v1312
        %1314 = vmatmul.bf16.gmra.mxu0 %v978
        %v1315 = vpop.f32.mrf.mxu0
        %v1316 = vadd.f32 0.0, %v1315
        %v1317 = vpop.f32.mrf.mxu0
        %v1318 = vadd.f32 0.0, %v1317
        %1319 = vmatmul.bf16.gmra.mxu0 %v979
        %v1320 = vpop.f32.mrf.mxu0
        %v1321 = vadd.f32 0.0, %v1320
        %v1322 = vpop.f32.mrf.mxu0
        %v1323 = vadd.f32 0.0, %v1322
        %1324 = vmatmul.bf16.gmra.mxu0 %v980
        %v1325 = vpop.f32.mrf.mxu0
        %v1326 = vadd.f32 0.0, %v1325
        %v1327 = vpop.f32.mrf.mxu0
        %v1328 = vadd.f32 0.0, %v1327
        %1329 = vmatmul.bf16.gmra.mxu0 %v981
        %v1330 = vpop.f32.mrf.mxu0
        %v1331 = vadd.f32 0.0, %v1330
        %v1332 = vpop.f32.mrf.mxu0
        %v1333 = vadd.f32 0.0, %v1332
        %1334 = vmatmul.bf16.gmra.mxu0 %v982
        %v1335 = vpop.f32.mrf.mxu0
        %v1336 = vadd.f32 0.0, %v1335
        %v1337 = vpop.f32.mrf.mxu0
        %v1338 = vadd.f32 0.0, %v1337
        %1339 = vmatmul.bf16.gmra.mxu0 %v983
        %v1340 = vpop.f32.mrf.mxu0
        %v1341 = vadd.f32 0.0, %v1340
        %v1342 = vpop.f32.mrf.mxu0
        %v1343 = vadd.f32 0.0, %v1342
        %1344 = vmatmul.bf16.gmra.mxu0 %v984
        %v1345 = vpop.f32.mrf.mxu0
        %v1346 = vadd.f32 0.0, %v1345
        %v1347 = vpop.f32.mrf.mxu0
        %v1348 = vadd.f32 0.0, %v1347
        %1349 = vmatmul.bf16.gmra.mxu0 %v985
        %v1350 = vpop.f32.mrf.mxu0
        %v1351 = vadd.f32 0.0, %v1350
        %v1352 = vpop.f32.mrf.mxu0
        %v1353 = vadd.f32 0.0, %v1352
        %1354 = vmatmul.bf16.gmra.mxu0 %v986
        %v1355 = vpop.f32.mrf.mxu0
        %v1356 = vadd.f32 0.0, %v1355
        %v1357 = vpop.f32.mrf.mxu0
        %v1358 = vadd.f32 0.0, %v1357
        %1359 = vmatmul.bf16.gmra.mxu0 %v987
        %v1360 = vpop.f32.mrf.mxu0
        %v1361 = vadd.f32 0.0, %v1360
        %v1362 = vpop.f32.mrf.mxu0
        %v1363 = vadd.f32 0.0, %v1362
        %1364 = vmatmul.bf16.gmra.mxu0 %v988
        %v1365 = vpop.f32.mrf.mxu0
        %v1366 = vadd.f32 0.0, %v1365
        %v1367 = vpop.f32.mrf.mxu0
        %v1368 = vadd.f32 0.0, %v1367
        %1369 = vmatmul.bf16.gmra.mxu0 %v989
        %v1370 = vpop.f32.mrf.mxu0
        %v1371 = vadd.f32 0.0, %v1370
        %v1372 = vpop.f32.mrf.mxu0
        %v1373 = vadd.f32 0.0, %v1372
        %1374 = vmatmul.bf16.gmra.mxu0 %v990
        %v1375 = vpop.f32.mrf.mxu0
        %v1376 = vadd.f32 0.0, %v1375
        %v1377 = vpop.f32.mrf.mxu0
        %v1378 = vadd.f32 0.0, %v1377
        %1379 = vmatmul.bf16.gmra.mxu0 %v991
        %v1380 = vpop.f32.mrf.mxu0
        %v1381 = vadd.f32 0.0, %v1380
        %v1382 = vpop.f32.mrf.mxu0
        %v1383 = vadd.f32 0.0, %v1382
        %1384 = vmatmul.bf16.gmra.mxu0 %v992
        %v1385 = vpop.f32.mrf.mxu0
        %v1386 = vadd.f32 0.0, %v1385
        %v1387 = vpop.f32.mrf.mxu0
        %v1388 = vadd.f32 0.0, %v1387
        %1389 = vmatmul.bf16.gmra.mxu0 %v993
        %v1390 = vpop.f32.mrf.mxu0
        %v1391 = vadd.f32 0.0, %v1390
        %v1392 = vpop.f32.mrf.mxu0
        %v1393 = vadd.f32 0.0, %v1392
        %1394 = vmatmul.bf16.gmra.mxu0 %v994
        %v1395 = vpop.f32.mrf.mxu0
        %v1396 = vadd.f32 0.0, %v1395
        %v1397 = vpop.f32.mrf.mxu0
        %v1398 = vadd.f32 0.0, %v1397
        %1399 = vmatmul.bf16.gmra.mxu0 %v995
        %v1400 = vpop.f32.mrf.mxu0
        %v1401 = vadd.f32 0.0, %v1400
        %v1402 = vpop.f32.mrf.mxu0
        %v1403 = vadd.f32 0.0, %v1402
        %1404 = vmatmul.bf16.gmra.mxu0 %v996
        %v1405 = vpop.f32.mrf.mxu0
        %v1406 = vadd.f32 0.0, %v1405
        %v1407 = vpop.f32.mrf.mxu0
        %v1408 = vadd.f32 0.0, %v1407
        %1409 = vmatmul.bf16.gmra.mxu0 %v997
        %v1410 = vpop.f32.mrf.mxu0
        %v1411 = vadd.f32 0.0, %v1410
        %v1412 = vpop.f32.mrf.mxu0
        %v1413 = vadd.f32 0.0, %v1412
        %1414 = vmatmul.bf16.gmra.mxu0 %v998
        %v1415 = vpop.f32.mrf.mxu0
        %v1416 = vadd.f32 0.0, %v1415
        %v1417 = vpop.f32.mrf.mxu0
        %v1418 = vadd.f32 0.0, %v1417
        %1419 = vmatmul.bf16.gmra.mxu0 %v999
        %v1420 = vpop.f32.mrf.mxu0
        %v1421 = vadd.f32 0.0, %v1420
        %v1422 = vpop.f32.mrf.mxu0
        %v1423 = vadd.f32 0.0, %v1422
        %1424 = vmatmul.bf16.gmra.mxu0 %v1000
        %v1425 = vpop.f32.mrf.mxu0
        %v1426 = vadd.f32 0.0, %v1425
        %v1427 = vpop.f32.mrf.mxu0
        %v1428 = vadd.f32 0.0, %v1427
        %1429 = vmatmul.bf16.gmra.mxu0 %v1001
        %v1430 = vpop.f32.mrf.mxu0
        %v1431 = vadd.f32 0.0, %v1430
        %v1432 = vpop.f32.mrf.mxu0
        %v1433 = vadd.f32 0.0, %v1432
        %1434 = vmatmul.bf16.gmra.mxu0 %v1002
        %v1435 = vpop.f32.mrf.mxu0
        %v1436 = vadd.f32 0.0, %v1435
        %v1437 = vpop.f32.mrf.mxu0
        %v1438 = vadd.f32 0.0, %v1437
        %1439 = vmatmul.bf16.gmra.mxu0 %v1003
        %v1440 = vpop.f32.mrf.mxu0
        %v1441 = vadd.f32 0.0, %v1440
        %v1442 = vpop.f32.mrf.mxu0
        %v1443 = vadd.f32 0.0, %v1442
        %1444 = vdwg.mxu0
        %v1445 = vadd.f32 %v412, %v1126
        %v1446 = vadd.f32 %v413, %v1128
        %v1447 = vadd.f32 %v414, %v1131
        %v1448 = vadd.f32 %v415, %v1133
        %v1449 = vadd.f32 %v416, %v1136
        %v1450 = vadd.f32 %v417, %v1138
        %v1451 = vadd.f32 %v418, %v1141
        %v1452 = vadd.f32 %v419, %v1143
        %v1453 = vadd.f32 %v420, %v1146
        %v1454 = vadd.f32 %v421, %v1148
        %v1455 = vadd.f32 %v422, %v1151
        %v1456 = vadd.f32 %v423, %v1153
        %v1457 = vadd.f32 %v424, %v1156
        %v1458 = vadd.f32 %v425, %v1158
        %v1459 = vadd.f32 %v426, %v1161
        %v1460 = vadd.f32 %v427, %v1163
        %v1461 = vadd.f32 %v428, %v1166
        %v1462 = vadd.f32 %v429, %v1168
        %v1463 = vadd.f32 %v430, %v1171
        %v1464 = vadd.f32 %v431, %v1173
        %v1465 = vadd.f32 %v432, %v1176
        %v1466 = vadd.f32 %v433, %v1178
        %v1467 = vadd.f32 %v434, %v1181
        %v1468 = vadd.f32 %v435, %v1183
        %v1469 = vadd.f32 %v436, %v1186
        %v1470 = vadd.f32 %v437, %v1188
        %v1471 = vadd.f32 %v438, %v1191
        %v1472 = vadd.f32 %v439, %v1193
        %v1473 = vadd.f32 %v440, %v1196
        %v1474 = vadd.f32 %v441, %v1198
        %v1475 = vadd.f32 %v442, %v1201
        %v1476 = vadd.f32 %v443, %v1203
        %v1477 = vadd.f32 %v444, %v1206
        %v1478 = vadd.f32 %v445, %v1208
        %v1479 = vadd.f32 %v446, %v1211
        %v1480 = vadd.f32 %v447, %v1213
        %v1481 = vadd.f32 %v448, %v1216
        %v1482 = vadd.f32 %v449, %v1218
        %v1483 = vadd.f32 %v450, %v1221
        %v1484 = vadd.f32 %v451, %v1223
        %v1485 = vadd.f32 %v452, %v1226
        %v1486 = vadd.f32 %v453, %v1228
        %v1487 = vadd.f32 %v454, %v1231
        %v1488 = vadd.f32 %v455, %v1233
        %v1489 = vadd.f32 %v456, %v1236
        %v1490 = vadd.f32 %v457, %v1238
        %v1491 = vadd.f32 %v458, %v1241
        %v1492 = vadd.f32 %v459, %v1243
        %v1493 = vadd.f32 %v460, %v1246
        %v1494 = vadd.f32 %v461, %v1248
        %v1495 = vadd.f32 %v462, %v1251
        %v1496 = vadd.f32 %v463, %v1253
        %v1497 = vadd.f32 %v464, %v1256
        %v1498 = vadd.f32 %v465, %v1258
        %v1499 = vadd.f32 %v466, %v1261
        %v1500 = vadd.f32 %v467, %v1263
        %v1501 = vadd.f32 %v468, %v1266
        %v1502 = vadd.f32 %v469, %v1268
        %v1503 = vadd.f32 %v470, %v1271
        %v1504 = vadd.f32 %v471, %v1273
        %v1505 = vadd.f32 %v472, %v1276
        %v1506 = vadd.f32 %v473, %v1278
        %v1507 = vadd.f32 %v474, %v1281
        %v1508 = vadd.f32 %v475, %v1283
        %v1509 = vadd.f32 %v476, %v1286
        %v1510 = vadd.f32 %v477, %v1288
        %v1511 = vadd.f32 %v478, %v1291
        %v1512 = vadd.f32 %v479, %v1293
        %v1513 = vadd.f32 %v480, %v1296
        %v1514 = vadd.f32 %v481, %v1298
        %v1515 = vadd.f32 %v482, %v1301
        %v1516 = vadd.f32 %v483, %v1303
        %v1517 = vadd.f32 %v484, %v1306
        %v1518 = vadd.f32 %v485, %v1308
        %v1519 = vadd.f32 %v486, %v1311
        %v1520 = vadd.f32 %v487, %v1313
        %v1521 = vadd.f32 %v488, %v1316
        %v1522 = vadd.f32 %v489, %v1318
        %v1523 = vadd.f32 %v490, %v1321
        %v1524 = vadd.f32 %v491, %v1323
        %v1525 = vadd.f32 %v492, %v1326
        %v1526 = vadd.f32 %v493, %v1328
        %v1527 = vadd.f32 %v494, %v1331
        %v1528 = vadd.f32 %v495, %v1333
        %v1529 = vadd.f32 %v496, %v1336
        %v1530 = vadd.f32 %v497, %v1338
        %v1531 = vadd.f32 %v498, %v1341
        %v1532 = vadd.f32 %v499, %v1343
        %v1533 = vadd.f32 %v500, %v1346
        %v1534 = vadd.f32 %v501, %v1348
        %v1535 = vadd.f32 %v502, %v1351
        %v1536 = vadd.f32 %v503, %v1353
        %v1537 = vadd.f32 %v504, %v1356
        %v1538 = vadd.f32 %v505, %v1358
        %v1539 = vadd.f32 %v506, %v1361
        %v1540 = vadd.f32 %v507, %v1363
        %v1541 = vadd.f32 %v508, %v1366
        %v1542 = vadd.f32 %v509, %v1368
        %v1543 = vadd.f32 %v510, %v1371
        %v1544 = vadd.f32 %v511, %v1373
        %v1545 = vadd.f32 %v512, %v1376
        %v1546 = vadd.f32 %v513, %v1378
        %v1547 = vadd.f32 %v514, %v1381
        %v1548 = vadd.f32 %v515, %v1383
        %v1549 = vadd.f32 %v516, %v1386
        %v1550 = vadd.f32 %v517, %v1388
        %v1551 = vadd.f32 %v518, %v1391
        %v1552 = vadd.f32 %v519, %v1393
        %v1553 = vadd.f32 %v520, %v1396
        %v1554 = vadd.f32 %v521, %v1398
        %v1555 = vadd.f32 %v522, %v1401
        %v1556 = vadd.f32 %v523, %v1403
        %v1557 = vadd.f32 %v524, %v1406
        %v1558 = vadd.f32 %v525, %v1408
        %v1559 = vadd.f32 %v526, %v1411
        %v1560 = vadd.f32 %v527, %v1413
        %v1561 = vadd.f32 %v528, %v1416
        %v1562 = vadd.f32 %v529, %v1418
        %v1563 = vadd.f32 %v530, %v1421
        %v1564 = vadd.f32 %v531, %v1423
        %v1565 = vadd.f32 %v532, %v1426
        %v1566 = vadd.f32 %v533, %v1428
        %v1567 = vadd.f32 %v534, %v1431
        %v1568 = vadd.f32 %v535, %v1433
        %v1569 = vadd.f32 %v536, %v1436
        %v1570 = vadd.f32 %v537, %v1438
        %v1571 = vadd.f32 %v538, %v1441
        %v1572 = vadd.f32 %v539, %v1443
        %vm1573 = vcmask 523264
        %1574 = vst.msk [vmem:[#allocation2] sm:$0xff] %vm1573, %v1445
        %1575 = vst.msk [vmem:[#allocation2 + $0x8] sm:$0xff] %vm1573, %v1446
        %1576 = vst.msk [vmem:[#allocation2 + $0x10] sm:$0xff] %vm1573, %v1447
        %1577 = vst.msk [vmem:[#allocation2 + $0x18] sm:$0xff] %vm1573, %v1448
        %1578 = vst.msk [vmem:[#allocation2 + $0x20] sm:$0xff] %vm1573, %v1449
        %1579 = vst.msk [vmem:[#allocation2 + $0x28] sm:$0xff] %vm1573, %v1450
        %1580 = vst.msk [vmem:[#allocation2 + $0x30] sm:$0xff] %vm1573, %v1451
        %1581 = vst.msk [vmem:[#allocation2 + $0x38] sm:$0xff] %vm1573, %v1452
        %1582 = vst.msk [vmem:[#allocation2 + $0x40] sm:$0xff] %vm1573, %v1453
        %1583 = vst.msk [vmem:[#allocation2 + $0x48] sm:$0xff] %vm1573, %v1454
        %1584 = vst.msk [vmem:[#allocation2 + $0x50] sm:$0xff] %vm1573, %v1455
        %1585 = vst.msk [vmem:[#allocation2 + $0x58] sm:$0xff] %vm1573, %v1456
        %1586 = vst.msk [vmem:[#allocation2 + $0x60] sm:$0xff] %vm1573, %v1457
        %1587 = vst.msk [vmem:[#allocation2 + $0x68] sm:$0xff] %vm1573, %v1458
        %1588 = vst.msk [vmem:[#allocation2 + $0x70] sm:$0xff] %vm1573, %v1459
        %1589 = vst.msk [vmem:[#allocation2 + $0x78] sm:$0xff] %vm1573, %v1460
        %1590 = vst.msk [vmem:[#allocation2 + $0x80] sm:$0xff] %vm1573, %v1461
        %1591 = vst.msk [vmem:[#allocation2 + $0x88] sm:$0xff] %vm1573, %v1462
        %1592 = vst.msk [vmem:[#allocation2 + $0x90] sm:$0xff] %vm1573, %v1463
        %1593 = vst.msk [vmem:[#allocation2 + $0x98] sm:$0xff] %vm1573, %v1464
        %1594 = vst.msk [vmem:[#allocation2 + $0xa0] sm:$0xff] %vm1573, %v1465
        %1595 = vst.msk [vmem:[#allocation2 + $0xa8] sm:$0xff] %vm1573, %v1466
        %1596 = vst.msk [vmem:[#allocation2 + $0xb0] sm:$0xff] %vm1573, %v1467
        %1597 = vst.msk [vmem:[#allocation2 + $0xb8] sm:$0xff] %vm1573, %v1468
        %1598 = vst.msk [vmem:[#allocation2 + $0xc0] sm:$0xff] %vm1573, %v1469
        %1599 = vst.msk [vmem:[#allocation2 + $0xc8] sm:$0xff] %vm1573, %v1470
        %1600 = vst.msk [vmem:[#allocation2 + $0xd0] sm:$0xff] %vm1573, %v1471
        %1601 = vst.msk [vmem:[#allocation2 + $0xd8] sm:$0xff] %vm1573, %v1472
        %1602 = vst.msk [vmem:[#allocation2 + $0xe0] sm:$0xff] %vm1573, %v1473
        %1603 = vst.msk [vmem:[#allocation2 + $0xe8] sm:$0xff] %vm1573, %v1474
        %1604 = vst.msk [vmem:[#allocation2 + $0xf0] sm:$0xff] %vm1573, %v1475
        %1605 = vst.msk [vmem:[#allocation2 + $0xf8] sm:$0xff] %vm1573, %v1476
        %1606 = vst.msk [vmem:[#allocation2 + $0x100] sm:$0xff] %vm1573, %v1477
        %1607 = vst.msk [vmem:[#allocation2 + $0x108] sm:$0xff] %vm1573, %v1478
        %1608 = vst.msk [vmem:[#allocation2 + $0x110] sm:$0xff] %vm1573, %v1479
        %1609 = vst.msk [vmem:[#allocation2 + $0x118] sm:$0xff] %vm1573, %v1480
        %1610 = vst.msk [vmem:[#allocation2 + $0x120] sm:$0xff] %vm1573, %v1481
        %1611 = vst.msk [vmem:[#allocation2 + $0x128] sm:$0xff] %vm1573, %v1482
        %1612 = vst.msk [vmem:[#allocation2 + $0x130] sm:$0xff] %vm1573, %v1483
        %1613 = vst.msk [vmem:[#allocation2 + $0x138] sm:$0xff] %vm1573, %v1484
        %1614 = vst.msk [vmem:[#allocation2 + $0x140] sm:$0xff] %vm1573, %v1485
        %1615 = vst.msk [vmem:[#allocation2 + $0x148] sm:$0xff] %vm1573, %v1486
        %1616 = vst.msk [vmem:[#allocation2 + $0x150] sm:$0xff] %vm1573, %v1487
        %1617 = vst.msk [vmem:[#allocation2 + $0x158] sm:$0xff] %vm1573, %v1488
        %1618 = vst.msk [vmem:[#allocation2 + $0x160] sm:$0xff] %vm1573, %v1489
        %1619 = vst.msk [vmem:[#allocation2 + $0x168] sm:$0xff] %vm1573, %v1490
        %1620 = vst.msk [vmem:[#allocation2 + $0x170] sm:$0xff] %vm1573, %v1491
        %1621 = vst.msk [vmem:[#allocation2 + $0x178] sm:$0xff] %vm1573, %v1492
        %1622 = vst.msk [vmem:[#allocation2 + $0x180] sm:$0xff] %vm1573, %v1493
        %1623 = vst.msk [vmem:[#allocation2 + $0x188] sm:$0xff] %vm1573, %v1494
        %1624 = vst.msk [vmem:[#allocation2 + $0x190] sm:$0xff] %vm1573, %v1495
        %1625 = vst.msk [vmem:[#allocation2 + $0x198] sm:$0xff] %vm1573, %v1496
        %1626 = vst.msk [vmem:[#allocation2 + $0x1a0] sm:$0xff] %vm1573, %v1497
        %1627 = vst.msk [vmem:[#allocation2 + $0x1a8] sm:$0xff] %vm1573, %v1498
        %1628 = vst.msk [vmem:[#allocation2 + $0x1b0] sm:$0xff] %vm1573, %v1499
        %1629 = vst.msk [vmem:[#allocation2 + $0x1b8] sm:$0xff] %vm1573, %v1500
        %1630 = vst.msk [vmem:[#allocation2 + $0x1c0] sm:$0xff] %vm1573, %v1501
        %1631 = vst.msk [vmem:[#allocation2 + $0x1c8] sm:$0xff] %vm1573, %v1502
        %1632 = vst.msk [vmem:[#allocation2 + $0x1d0] sm:$0xff] %vm1573, %v1503
        %1633 = vst.msk [vmem:[#allocation2 + $0x1d8] sm:$0xff] %vm1573, %v1504
        %1634 = vst.msk [vmem:[#allocation2 + $0x1e0] sm:$0xff] %vm1573, %v1505
        %1635 = vst.msk [vmem:[#allocation2 + $0x1e8] sm:$0xff] %vm1573, %v1506
        %1636 = vst.msk [vmem:[#allocation2 + $0x1f0] sm:$0xff] %vm1573, %v1507
        %1637 = vst.msk [vmem:[#allocation2 + $0x1f8] sm:$0xff] %vm1573, %v1508
        %1638 = vst.msk [vmem:[#allocation2 + $0x200] sm:$0xff] %vm1573, %v1509
        %1639 = vst.msk [vmem:[#allocation2 + $0x208] sm:$0xff] %vm1573, %v1510
        %1640 = vst.msk [vmem:[#allocation2 + $0x210] sm:$0xff] %vm1573, %v1511
        %1641 = vst.msk [vmem:[#allocation2 + $0x218] sm:$0xff] %vm1573, %v1512
        %1642 = vst.msk [vmem:[#allocation2 + $0x220] sm:$0xff] %vm1573, %v1513
        %1643 = vst.msk [vmem:[#allocation2 + $0x228] sm:$0xff] %vm1573, %v1514
        %1644 = vst.msk [vmem:[#allocation2 + $0x230] sm:$0xff] %vm1573, %v1515
        %1645 = vst.msk [vmem:[#allocation2 + $0x238] sm:$0xff] %vm1573, %v1516
        %1646 = vst.msk [vmem:[#allocation2 + $0x240] sm:$0xff] %vm1573, %v1517
        %1647 = vst.msk [vmem:[#allocation2 + $0x248] sm:$0xff] %vm1573, %v1518
        %1648 = vst.msk [vmem:[#allocation2 + $0x250] sm:$0xff] %vm1573, %v1519
        %1649 = vst.msk [vmem:[#allocation2 + $0x258] sm:$0xff] %vm1573, %v1520
        %1650 = vst.msk [vmem:[#allocation2 + $0x260] sm:$0xff] %vm1573, %v1521
        %1651 = vst.msk [vmem:[#allocation2 + $0x268] sm:$0xff] %vm1573, %v1522
        %1652 = vst.msk [vmem:[#allocation2 + $0x270] sm:$0xff] %vm1573, %v1523
        %1653 = vst.msk [vmem:[#allocation2 + $0x278] sm:$0xff] %vm1573, %v1524
        %1654 = vst.msk [vmem:[#allocation2 + $0x280] sm:$0xff] %vm1573, %v1525
        %1655 = vst.msk [vmem:[#allocation2 + $0x288] sm:$0xff] %vm1573, %v1526
        %1656 = vst.msk [vmem:[#allocation2 + $0x290] sm:$0xff] %vm1573, %v1527
        %1657 = vst.msk [vmem:[#allocation2 + $0x298] sm:$0xff] %vm1573, %v1528
        %1658 = vst.msk [vmem:[#allocation2 + $0x2a0] sm:$0xff] %vm1573, %v1529
        %1659 = vst.msk [vmem:[#allocation2 + $0x2a8] sm:$0xff] %vm1573, %v1530
        %1660 = vst.msk [vmem:[#allocation2 + $0x2b0] sm:$0xff] %vm1573, %v1531
        %1661 = vst.msk [vmem:[#allocation2 + $0x2b8] sm:$0xff] %vm1573, %v1532
        %1662 = vst.msk [vmem:[#allocation2 + $0x2c0] sm:$0xff] %vm1573, %v1533
        %1663 = vst.msk [vmem:[#allocation2 + $0x2c8] sm:$0xff] %vm1573, %v1534
        %1664 = vst.msk [vmem:[#allocation2 + $0x2d0] sm:$0xff] %vm1573, %v1535
        %1665 = vst.msk [vmem:[#allocation2 + $0x2d8] sm:$0xff] %vm1573, %v1536
        %1666 = vst.msk [vmem:[#allocation2 + $0x2e0] sm:$0xff] %vm1573, %v1537
        %1667 = vst.msk [vmem:[#allocation2 + $0x2e8] sm:$0xff] %vm1573, %v1538
        %1668 = vst.msk [vmem:[#allocation2 + $0x2f0] sm:$0xff] %vm1573, %v1539
        %1669 = vst.msk [vmem:[#allocation2 + $0x2f8] sm:$0xff] %vm1573, %v1540
        %1670 = vst.msk [vmem:[#allocation2 + $0x300] sm:$0xff] %vm1573, %v1541
        %1671 = vst.msk [vmem:[#allocation2 + $0x308] sm:$0xff] %vm1573, %v1542
        %1672 = vst.msk [vmem:[#allocation2 + $0x310] sm:$0xff] %vm1573, %v1543
        %1673 = vst.msk [vmem:[#allocation2 + $0x318] sm:$0xff] %vm1573, %v1544
        %1674 = vst.msk [vmem:[#allocation2 + $0x320] sm:$0xff] %vm1573, %v1545
        %1675 = vst.msk [vmem:[#allocation2 + $0x328] sm:$0xff] %vm1573, %v1546
        %1676 = vst.msk [vmem:[#allocation2 + $0x330] sm:$0xff] %vm1573, %v1547
        %1677 = vst.msk [vmem:[#allocation2 + $0x338] sm:$0xff] %vm1573, %v1548
        %1678 = vst.msk [vmem:[#allocation2 + $0x340] sm:$0xff] %vm1573, %v1549
        %1679 = vst.msk [vmem:[#allocation2 + $0x348] sm:$0xff] %vm1573, %v1550
        %1680 = vst.msk [vmem:[#allocation2 + $0x350] sm:$0xff] %vm1573, %v1551
        %1681 = vst.msk [vmem:[#allocation2 + $0x358] sm:$0xff] %vm1573, %v1552
        %1682 = vst.msk [vmem:[#allocation2 + $0x360] sm:$0xff] %vm1573, %v1553
        %1683 = vst.msk [vmem:[#allocation2 + $0x368] sm:$0xff] %vm1573, %v1554
        %1684 = vst.msk [vmem:[#allocation2 + $0x370] sm:$0xff] %vm1573, %v1555
        %1685 = vst.msk [vmem:[#allocation2 + $0x378] sm:$0xff] %vm1573, %v1556
        %1686 = vst.msk [vmem:[#allocation2 + $0x380] sm:$0xff] %vm1573, %v1557
        %1687 = vst.msk [vmem:[#allocation2 + $0x388] sm:$0xff] %vm1573, %v1558
        %1688 = vst.msk [vmem:[#allocation2 + $0x390] sm:$0xff] %vm1573, %v1559
        %1689 = vst.msk [vmem:[#allocation2 + $0x398] sm:$0xff] %vm1573, %v1560
        %1690 = vst.msk [vmem:[#allocation2 + $0x3a0] sm:$0xff] %vm1573, %v1561
        %1691 = vst.msk [vmem:[#allocation2 + $0x3a8] sm:$0xff] %vm1573, %v1562
        %1692 = vst.msk [vmem:[#allocation2 + $0x3b0] sm:$0xff] %vm1573, %v1563
        %1693 = vst.msk [vmem:[#allocation2 + $0x3b8] sm:$0xff] %vm1573, %v1564
        %1694 = vst.msk [vmem:[#allocation2 + $0x3c0] sm:$0xff] %vm1573, %v1565
        %1695 = vst.msk [vmem:[#allocation2 + $0x3c8] sm:$0xff] %vm1573, %v1566
        %1696 = vst.msk [vmem:[#allocation2 + $0x3d0] sm:$0xff] %vm1573, %v1567
        %1697 = vst.msk [vmem:[#allocation2 + $0x3d8] sm:$0xff] %vm1573, %v1568
        %1698 = vst.msk [vmem:[#allocation2 + $0x3e0] sm:$0xff] %vm1573, %v1569
        %1699 = vst.msk [vmem:[#allocation2 + $0x3e8] sm:$0xff] %vm1573, %v1570
        %1700 = vst.msk [vmem:[#allocation2 + $0x3f0] sm:$0xff] %vm1573, %v1571
        %1701 = vst.msk [vmem:[#allocation2 + $0x3f8] sm:$0xff] %vm1573, %v1572
        // Predicated region
        $region45: #{tpu_custom_call.1} parent=31 // pred_check
          %p1702 = pneg %p279
        $region46: #{tpu_custom_call.1} parent=31 // pred_check_branch
          %1704 = sbr.rel (%p1702) target = $region48
        $region47: #{tpu_custom_call.1} parent=31 // pred_region
          %v1705 = vld [vmem:[#allocation2] sm:$0xff]
          %v1706 = vld [vmem:[#allocation2 + $0x8] sm:$0xff]
          %v1707 = vld [vmem:[#allocation2 + $0x10] sm:$0xff]
          %v1708 = vld [vmem:[#allocation2 + $0x18] sm:$0xff]
          %v1709 = vld [vmem:[#allocation2 + $0x20] sm:$0xff]
          %v1710 = vld [vmem:[#allocation2 + $0x28] sm:$0xff]
          %v1711 = vld [vmem:[#allocation2 + $0x30] sm:$0xff]
          %v1712 = vld [vmem:[#allocation2 + $0x38] sm:$0xff]
          %v1713 = vld [vmem:[#allocation2 + $0x40] sm:$0xff]
          %v1714 = vld [vmem:[#allocation2 + $0x48] sm:$0xff]
          %v1715 = vld [vmem:[#allocation2 + $0x50] sm:$0xff]
          %v1716 = vld [vmem:[#allocation2 + $0x58] sm:$0xff]
          %v1717 = vld [vmem:[#allocation2 + $0x60] sm:$0xff]
          %v1718 = vld [vmem:[#allocation2 + $0x68] sm:$0xff]
          %v1719 = vld [vmem:[#allocation2 + $0x70] sm:$0xff]
          %v1720 = vld [vmem:[#allocation2 + $0x78] sm:$0xff]
          %v1721 = vld [vmem:[#allocation2 + $0x80] sm:$0xff]
          %v1722 = vld [vmem:[#allocation2 + $0x88] sm:$0xff]
          %v1723 = vld [vmem:[#allocation2 + $0x90] sm:$0xff]
          %v1724 = vld [vmem:[#allocation2 + $0x98] sm:$0xff]
          %v1725 = vld [vmem:[#allocation2 + $0xa0] sm:$0xff]
          %v1726 = vld [vmem:[#allocation2 + $0xa8] sm:$0xff]
          %v1727 = vld [vmem:[#allocation2 + $0xb0] sm:$0xff]
          %v1728 = vld [vmem:[#allocation2 + $0xb8] sm:$0xff]
          %v1729 = vld [vmem:[#allocation2 + $0xc0] sm:$0xff]
          %v1730 = vld [vmem:[#allocation2 + $0xc8] sm:$0xff]
          %v1731 = vld [vmem:[#allocation2 + $0xd0] sm:$0xff]
          %v1732 = vld [vmem:[#allocation2 + $0xd8] sm:$0xff]
          %v1733 = vld [vmem:[#allocation2 + $0xe0] sm:$0xff]
          %v1734 = vld [vmem:[#allocation2 + $0xe8] sm:$0xff]
          %v1735 = vld [vmem:[#allocation2 + $0xf0] sm:$0xff]
          %v1736 = vld [vmem:[#allocation2 + $0xf8] sm:$0xff]
          %v1737 = vld [vmem:[#allocation2 + $0x100] sm:$0xff]
          %v1738 = vld [vmem:[#allocation2 + $0x108] sm:$0xff]
          %v1739 = vld [vmem:[#allocation2 + $0x110] sm:$0xff]
          %v1740 = vld [vmem:[#allocation2 + $0x118] sm:$0xff]
          %v1741 = vld [vmem:[#allocation2 + $0x120] sm:$0xff]
          %v1742 = vld [vmem:[#allocation2 + $0x128] sm:$0xff]
          %v1743 = vld [vmem:[#allocation2 + $0x130] sm:$0xff]
          %v1744 = vld [vmem:[#allocation2 + $0x138] sm:$0xff]
          %v1745 = vld [vmem:[#allocation2 + $0x140] sm:$0xff]
          %v1746 = vld [vmem:[#allocation2 + $0x148] sm:$0xff]
          %v1747 = vld [vmem:[#allocation2 + $0x150] sm:$0xff]
          %v1748 = vld [vmem:[#allocation2 + $0x158] sm:$0xff]
          %v1749 = vld [vmem:[#allocation2 + $0x160] sm:$0xff]
          %v1750 = vld [vmem:[#allocation2 + $0x168] sm:$0xff]
          %v1751 = vld [vmem:[#allocation2 + $0x170] sm:$0xff]
          %v1752 = vld [vmem:[#allocation2 + $0x178] sm:$0xff]
          %v1753 = vld [vmem:[#allocation2 + $0x180] sm:$0xff]
          %v1754 = vld [vmem:[#allocation2 + $0x188] sm:$0xff]
          %v1755 = vld [vmem:[#allocation2 + $0x190] sm:$0xff]
          %v1756 = vld [vmem:[#allocation2 + $0x198] sm:$0xff]
          %v1757 = vld [vmem:[#allocation2 + $0x1a0] sm:$0xff]
          %v1758 = vld [vmem:[#allocation2 + $0x1a8] sm:$0xff]
          %v1759 = vld [vmem:[#allocation2 + $0x1b0] sm:$0xff]
          %v1760 = vld [vmem:[#allocation2 + $0x1b8] sm:$0xff]
          %v1761 = vld [vmem:[#allocation2 + $0x1c0] sm:$0xff]
          %v1762 = vld [vmem:[#allocation2 + $0x1c8] sm:$0xff]
          %v1763 = vld [vmem:[#allocation2 + $0x1d0] sm:$0xff]
          %v1764 = vld [vmem:[#allocation2 + $0x1d8] sm:$0xff]
          %v1765 = vld [vmem:[#allocation2 + $0x1e0] sm:$0xff]
          %v1766 = vld [vmem:[#allocation2 + $0x1e8] sm:$0xff]
          %v1767 = vld [vmem:[#allocation2 + $0x1f0] sm:$0xff]
          %v1768 = vld [vmem:[#allocation2 + $0x1f8] sm:$0xff]
          %v1769 = vld [vmem:[#allocation2 + $0x200] sm:$0xff]
          %v1770 = vld [vmem:[#allocation2 + $0x208] sm:$0xff]
          %v1771 = vld [vmem:[#allocation2 + $0x210] sm:$0xff]
          %v1772 = vld [vmem:[#allocation2 + $0x218] sm:$0xff]
          %v1773 = vld [vmem:[#allocation2 + $0x220] sm:$0xff]
          %v1774 = vld [vmem:[#allocation2 + $0x228] sm:$0xff]
          %v1775 = vld [vmem:[#allocation2 + $0x230] sm:$0xff]
          %v1776 = vld [vmem:[#allocation2 + $0x238] sm:$0xff]
          %v1777 = vld [vmem:[#allocation2 + $0x240] sm:$0xff]
          %v1778 = vld [vmem:[#allocation2 + $0x248] sm:$0xff]
          %v1779 = vld [vmem:[#allocation2 + $0x250] sm:$0xff]
          %v1780 = vld [vmem:[#allocation2 + $0x258] sm:$0xff]
          %v1781 = vld [vmem:[#allocation2 + $0x260] sm:$0xff]
          %v1782 = vld [vmem:[#allocation2 + $0x268] sm:$0xff]
          %v1783 = vld [vmem:[#allocation2 + $0x270] sm:$0xff]
          %v1784 = vld [vmem:[#allocation2 + $0x278] sm:$0xff]
          %v1785 = vld [vmem:[#allocation2 + $0x280] sm:$0xff]
          %v1786 = vld [vmem:[#allocation2 + $0x288] sm:$0xff]
          %v1787 = vld [vmem:[#allocation2 + $0x290] sm:$0xff]
          %v1788 = vld [vmem:[#allocation2 + $0x298] sm:$0xff]
          %v1789 = vld [vmem:[#allocation2 + $0x2a0] sm:$0xff]
          %v1790 = vld [vmem:[#allocation2 + $0x2a8] sm:$0xff]
          %v1791 = vld [vmem:[#allocation2 + $0x2b0] sm:$0xff]
          %v1792 = vld [vmem:[#allocation2 + $0x2b8] sm:$0xff]
          %v1793 = vld [vmem:[#allocation2 + $0x2c0] sm:$0xff]
          %v1794 = vld [vmem:[#allocation2 + $0x2c8] sm:$0xff]
          %v1795 = vld [vmem:[#allocation2 + $0x2d0] sm:$0xff]
          %v1796 = vld [vmem:[#allocation2 + $0x2d8] sm:$0xff]
          %v1797 = vld [vmem:[#allocation2 + $0x2e0] sm:$0xff]
          %v1798 = vld [vmem:[#allocation2 + $0x2e8] sm:$0xff]
          %v1799 = vld [vmem:[#allocation2 + $0x2f0] sm:$0xff]
          %v1800 = vld [vmem:[#allocation2 + $0x2f8] sm:$0xff]
          %v1801 = vld [vmem:[#allocation2 + $0x300] sm:$0xff]
          %v1802 = vld [vmem:[#allocation2 + $0x308] sm:$0xff]
          %v1803 = vld [vmem:[#allocation2 + $0x310] sm:$0xff]
          %v1804 = vld [vmem:[#allocation2 + $0x318] sm:$0xff]
          %v1805 = vld [vmem:[#allocation2 + $0x320] sm:$0xff]
          %v1806 = vld [vmem:[#allocation2 + $0x328] sm:$0xff]
          %v1807 = vld [vmem:[#allocation2 + $0x330] sm:$0xff]
          %v1808 = vld [vmem:[#allocation2 + $0x338] sm:$0xff]
          %v1809 = vld [vmem:[#allocation2 + $0x340] sm:$0xff]
          %v1810 = vld [vmem:[#allocation2 + $0x348] sm:$0xff]
          %v1811 = vld [vmem:[#allocation2 + $0x350] sm:$0xff]
          %v1812 = vld [vmem:[#allocation2 + $0x358] sm:$0xff]
          %v1813 = vld [vmem:[#allocation2 + $0x360] sm:$0xff]
          %v1814 = vld [vmem:[#allocation2 + $0x368] sm:$0xff]
          %v1815 = vld [vmem:[#allocation2 + $0x370] sm:$0xff]
          %v1816 = vld [vmem:[#allocation2 + $0x378] sm:$0xff]
          %v1817 = vld [vmem:[#allocation2 + $0x380] sm:$0xff]
          %v1818 = vld [vmem:[#allocation2 + $0x388] sm:$0xff]
          %v1819 = vld [vmem:[#allocation2 + $0x390] sm:$0xff]
          %v1820 = vld [vmem:[#allocation2 + $0x398] sm:$0xff]
          %v1821 = vld [vmem:[#allocation2 + $0x3a0] sm:$0xff]
          %v1822 = vld [vmem:[#allocation2 + $0x3a8] sm:$0xff]
          %v1823 = vld [vmem:[#allocation2 + $0x3b0] sm:$0xff]
          %v1824 = vld [vmem:[#allocation2 + $0x3b8] sm:$0xff]
          %v1825 = vld [vmem:[#allocation2 + $0x3c0] sm:$0xff]
          %v1826 = vld [vmem:[#allocation2 + $0x3c8] sm:$0xff]
          %v1827 = vld [vmem:[#allocation2 + $0x3d0] sm:$0xff]
          %v1828 = vld [vmem:[#allocation2 + $0x3d8] sm:$0xff]
          %v1829 = vld [vmem:[#allocation2 + $0x3e0] sm:$0xff]
          %v1830 = vld [vmem:[#allocation2 + $0x3e8] sm:$0xff]
          %v1831 = vld [vmem:[#allocation2 + $0x3f0] sm:$0xff]
          %v1832 = vld [vmem:[#allocation2 + $0x3f8] sm:$0xff]
          %v1833 = vld [vmem:[#allocation5] sm:$0x1]
          %v1835 = vperm.slane %v1833, 0
          %v1837 = vadd.f32 %v1705, %v1835
          %v1838 = vadd.f32 %v1706, %v1835
          %v1839 = vadd.f32 %v1707, %v1835
          %v1840 = vadd.f32 %v1708, %v1835
          %v1841 = vadd.f32 %v1709, %v1835
          %v1842 = vadd.f32 %v1710, %v1835
          %v1843 = vadd.f32 %v1711, %v1835
          %v1844 = vadd.f32 %v1712, %v1835
          %v1845 = vadd.f32 %v1713, %v1835
          %v1846 = vadd.f32 %v1714, %v1835
          %v1847 = vadd.f32 %v1715, %v1835
          %v1848 = vadd.f32 %v1716, %v1835
          %v1849 = vadd.f32 %v1717, %v1835
          %v1850 = vadd.f32 %v1718, %v1835
          %v1851 = vadd.f32 %v1719, %v1835
          %v1852 = vadd.f32 %v1720, %v1835
          %v1853 = vadd.f32 %v1721, %v1835
          %v1854 = vadd.f32 %v1722, %v1835
          %v1855 = vadd.f32 %v1723, %v1835
          %v1856 = vadd.f32 %v1724, %v1835
          %v1857 = vadd.f32 %v1725, %v1835
          %v1858 = vadd.f32 %v1726, %v1835
          %v1859 = vadd.f32 %v1727, %v1835
          %v1860 = vadd.f32 %v1728, %v1835
          %v1861 = vadd.f32 %v1729, %v1835
          %v1862 = vadd.f32 %v1730, %v1835
          %v1863 = vadd.f32 %v1731, %v1835
          %v1864 = vadd.f32 %v1732, %v1835
          %v1865 = vadd.f32 %v1733, %v1835
          %v1866 = vadd.f32 %v1734, %v1835
          %v1867 = vadd.f32 %v1735, %v1835
          %v1868 = vadd.f32 %v1736, %v1835
          %v1869 = vadd.f32 %v1737, %v1835
          %v1870 = vadd.f32 %v1738, %v1835
          %v1871 = vadd.f32 %v1739, %v1835
          %v1872 = vadd.f32 %v1740, %v1835
          %v1873 = vadd.f32 %v1741, %v1835
          %v1874 = vadd.f32 %v1742, %v1835
          %v1875 = vadd.f32 %v1743, %v1835
          %v1876 = vadd.f32 %v1744, %v1835
          %v1877 = vadd.f32 %v1745, %v1835
          %v1878 = vadd.f32 %v1746, %v1835
          %v1879 = vadd.f32 %v1747, %v1835
          %v1880 = vadd.f32 %v1748, %v1835
          %v1881 = vadd.f32 %v1749, %v1835
          %v1882 = vadd.f32 %v1750, %v1835
          %v1883 = vadd.f32 %v1751, %v1835
          %v1884 = vadd.f32 %v1752, %v1835
          %v1885 = vadd.f32 %v1753, %v1835
          %v1886 = vadd.f32 %v1754, %v1835
          %v1887 = vadd.f32 %v1755, %v1835
          %v1888 = vadd.f32 %v1756, %v1835
          %v1889 = vadd.f32 %v1757, %v1835
          %v1890 = vadd.f32 %v1758, %v1835
          %v1891 = vadd.f32 %v1759, %v1835
          %v1892 = vadd.f32 %v1760, %v1835
          %v1893 = vadd.f32 %v1761, %v1835
          %v1894 = vadd.f32 %v1762, %v1835
          %v1895 = vadd.f32 %v1763, %v1835
          %v1896 = vadd.f32 %v1764, %v1835
          %v1897 = vadd.f32 %v1765, %v1835
          %v1898 = vadd.f32 %v1766, %v1835
          %v1899 = vadd.f32 %v1767, %v1835
          %v1900 = vadd.f32 %v1768, %v1835
          %v1901 = vadd.f32 %v1769, %v1835
          %v1902 = vadd.f32 %v1770, %v1835
          %v1903 = vadd.f32 %v1771, %v1835
          %v1904 = vadd.f32 %v1772, %v1835
          %v1905 = vadd.f32 %v1773, %v1835
          %v1906 = vadd.f32 %v1774, %v1835
          %v1907 = vadd.f32 %v1775, %v1835
          %v1908 = vadd.f32 %v1776, %v1835
          %v1909 = vadd.f32 %v1777, %v1835
          %v1910 = vadd.f32 %v1778, %v1835
          %v1911 = vadd.f32 %v1779, %v1835
          %v1912 = vadd.f32 %v1780, %v1835
          %v1913 = vadd.f32 %v1781, %v1835
          %v1914 = vadd.f32 %v1782, %v1835
          %v1915 = vadd.f32 %v1783, %v1835
          %v1916 = vadd.f32 %v1784, %v1835
          %v1917 = vadd.f32 %v1785, %v1835
          %v1918 = vadd.f32 %v1786, %v1835
          %v1919 = vadd.f32 %v1787, %v1835
          %v1920 = vadd.f32 %v1788, %v1835
          %v1921 = vadd.f32 %v1789, %v1835
          %v1922 = vadd.f32 %v1790, %v1835
          %v1923 = vadd.f32 %v1791, %v1835
          %v1924 = vadd.f32 %v1792, %v1835
          %v1925 = vadd.f32 %v1793, %v1835
          %v1926 = vadd.f32 %v1794, %v1835
          %v1927 = vadd.f32 %v1795, %v1835
          %v1928 = vadd.f32 %v1796, %v1835
          %v1929 = vadd.f32 %v1797, %v1835
          %v1930 = vadd.f32 %v1798, %v1835
          %v1931 = vadd.f32 %v1799, %v1835
          %v1932 = vadd.f32 %v1800, %v1835
          %v1933 = vadd.f32 %v1801, %v1835
          %v1934 = vadd.f32 %v1802, %v1835
          %v1935 = vadd.f32 %v1803, %v1835
          %v1936 = vadd.f32 %v1804, %v1835
          %v1937 = vadd.f32 %v1805, %v1835
          %v1938 = vadd.f32 %v1806, %v1835
          %v1939 = vadd.f32 %v1807, %v1835
          %v1940 = vadd.f32 %v1808, %v1835
          %v1941 = vadd.f32 %v1809, %v1835
          %v1942 = vadd.f32 %v1810, %v1835
          %v1943 = vadd.f32 %v1811, %v1835
          %v1944 = vadd.f32 %v1812, %v1835
          %v1945 = vadd.f32 %v1813, %v1835
          %v1946 = vadd.f32 %v1814, %v1835
          %v1947 = vadd.f32 %v1815, %v1835
          %v1948 = vadd.f32 %v1816, %v1835
          %v1949 = vadd.f32 %v1817, %v1835
          %v1950 = vadd.f32 %v1818, %v1835
          %v1951 = vadd.f32 %v1819, %v1835
          %v1952 = vadd.f32 %v1820, %v1835
          %v1953 = vadd.f32 %v1821, %v1835
          %v1954 = vadd.f32 %v1822, %v1835
          %v1955 = vadd.f32 %v1823, %v1835
          %v1956 = vadd.f32 %v1824, %v1835
          %v1957 = vadd.f32 %v1825, %v1835
          %v1958 = vadd.f32 %v1826, %v1835
          %v1959 = vadd.f32 %v1827, %v1835
          %v1960 = vadd.f32 %v1828, %v1835
          %v1961 = vadd.f32 %v1829, %v1835
          %v1962 = vadd.f32 %v1830, %v1835
          %v1963 = vadd.f32 %v1831, %v1835
          %v1964 = vadd.f32 %v1832, %v1835
          %v1965 = vmax.f32 %v1837, 0.0
          %v1966 = vmax.f32 %v1838, 0.0
          %v1967 = vmax.f32 %v1839, 0.0
          %v1968 = vmax.f32 %v1840, 0.0
          %v1969 = vmax.f32 %v1841, 0.0
          %v1970 = vmax.f32 %v1842, 0.0
          %v1971 = vmax.f32 %v1843, 0.0
          %v1972 = vmax.f32 %v1844, 0.0
          %v1973 = vmax.f32 %v1845, 0.0
          %v1974 = vmax.f32 %v1846, 0.0
          %v1975 = vmax.f32 %v1847, 0.0
          %v1976 = vmax.f32 %v1848, 0.0
          %v1977 = vmax.f32 %v1849, 0.0
          %v1978 = vmax.f32 %v1850, 0.0
          %v1979 = vmax.f32 %v1851, 0.0
          %v1980 = vmax.f32 %v1852, 0.0
          %v1981 = vmax.f32 %v1853, 0.0
          %v1982 = vmax.f32 %v1854, 0.0
          %v1983 = vmax.f32 %v1855, 0.0
          %v1984 = vmax.f32 %v1856, 0.0
          %v1985 = vmax.f32 %v1857, 0.0
          %v1986 = vmax.f32 %v1858, 0.0
          %v1987 = vmax.f32 %v1859, 0.0
          %v1988 = vmax.f32 %v1860, 0.0
          %v1989 = vmax.f32 %v1861, 0.0
          %v1990 = vmax.f32 %v1862, 0.0
          %v1991 = vmax.f32 %v1863, 0.0
          %v1992 = vmax.f32 %v1864, 0.0
          %v1993 = vmax.f32 %v1865, 0.0
          %v1994 = vmax.f32 %v1866, 0.0
          %v1995 = vmax.f32 %v1867, 0.0
          %v1996 = vmax.f32 %v1868, 0.0
          %v1997 = vmax.f32 %v1869, 0.0
          %v1998 = vmax.f32 %v1870, 0.0
          %v1999 = vmax.f32 %v1871, 0.0
          %v2000 = vmax.f32 %v1872, 0.0
          %v2001 = vmax.f32 %v1873, 0.0
          %v2002 = vmax.f32 %v1874, 0.0
          %v2003 = vmax.f32 %v1875, 0.0
          %v2004 = vmax.f32 %v1876, 0.0
          %v2005 = vmax.f32 %v1877, 0.0
          %v2006 = vmax.f32 %v1878, 0.0
          %v2007 = vmax.f32 %v1879, 0.0
          %v2008 = vmax.f32 %v1880, 0.0
          %v2009 = vmax.f32 %v1881, 0.0
          %v2010 = vmax.f32 %v1882, 0.0
          %v2011 = vmax.f32 %v1883, 0.0
          %v2012 = vmax.f32 %v1884, 0.0
          %v2013 = vmax.f32 %v1885, 0.0
          %v2014 = vmax.f32 %v1886, 0.0
          %v2015 = vmax.f32 %v1887, 0.0
          %v2016 = vmax.f32 %v1888, 0.0
          %v2017 = vmax.f32 %v1889, 0.0
          %v2018 = vmax.f32 %v1890, 0.0
          %v2019 = vmax.f32 %v1891, 0.0
          %v2020 = vmax.f32 %v1892, 0.0
          %v2021 = vmax.f32 %v1893, 0.0
          %v2022 = vmax.f32 %v1894, 0.0
          %v2023 = vmax.f32 %v1895, 0.0
          %v2024 = vmax.f32 %v1896, 0.0
          %v2025 = vmax.f32 %v1897, 0.0
          %v2026 = vmax.f32 %v1898, 0.0
          %v2027 = vmax.f32 %v1899, 0.0
          %v2028 = vmax.f32 %v1900, 0.0
          %v2029 = vmax.f32 %v1901, 0.0
          %v2030 = vmax.f32 %v1902, 0.0
          %v2031 = vmax.f32 %v1903, 0.0
          %v2032 = vmax.f32 %v1904, 0.0
          %v2033 = vmax.f32 %v1905, 0.0
          %v2034 = vmax.f32 %v1906, 0.0
          %v2035 = vmax.f32 %v1907, 0.0
          %v2036 = vmax.f32 %v1908, 0.0
          %v2037 = vmax.f32 %v1909, 0.0
          %v2038 = vmax.f32 %v1910, 0.0
          %v2039 = vmax.f32 %v1911, 0.0
          %v2040 = vmax.f32 %v1912, 0.0
          %v2041 = vmax.f32 %v1913, 0.0
          %v2042 = vmax.f32 %v1914, 0.0
          %v2043 = vmax.f32 %v1915, 0.0
          %v2044 = vmax.f32 %v1916, 0.0
          %v2045 = vmax.f32 %v1917, 0.0
          %v2046 = vmax.f32 %v1918, 0.0
          %v2047 = vmax.f32 %v1919, 0.0
          %v2048 = vmax.f32 %v1920, 0.0
          %v2049 = vmax.f32 %v1921, 0.0
          %v2050 = vmax.f32 %v1922, 0.0
          %v2051 = vmax.f32 %v1923, 0.0
          %v2052 = vmax.f32 %v1924, 0.0
          %v2053 = vmax.f32 %v1925, 0.0
          %v2054 = vmax.f32 %v1926, 0.0
          %v2055 = vmax.f32 %v1927, 0.0
          %v2056 = vmax.f32 %v1928, 0.0
          %v2057 = vmax.f32 %v1929, 0.0
          %v2058 = vmax.f32 %v1930, 0.0
          %v2059 = vmax.f32 %v1931, 0.0
          %v2060 = vmax.f32 %v1932, 0.0
          %v2061 = vmax.f32 %v1933, 0.0
          %v2062 = vmax.f32 %v1934, 0.0
          %v2063 = vmax.f32 %v1935, 0.0
          %v2064 = vmax.f32 %v1936, 0.0
          %v2065 = vmax.f32 %v1937, 0.0
          %v2066 = vmax.f32 %v1938, 0.0
          %v2067 = vmax.f32 %v1939, 0.0
          %v2068 = vmax.f32 %v1940, 0.0
          %v2069 = vmax.f32 %v1941, 0.0
          %v2070 = vmax.f32 %v1942, 0.0
          %v2071 = vmax.f32 %v1943, 0.0
          %v2072 = vmax.f32 %v1944, 0.0
          %v2073 = vmax.f32 %v1945, 0.0
          %v2074 = vmax.f32 %v1946, 0.0
          %v2075 = vmax.f32 %v1947, 0.0
          %v2076 = vmax.f32 %v1948, 0.0
          %v2077 = vmax.f32 %v1949, 0.0
          %v2078 = vmax.f32 %v1950, 0.0
          %v2079 = vmax.f32 %v1951, 0.0
          %v2080 = vmax.f32 %v1952, 0.0
          %v2081 = vmax.f32 %v1953, 0.0
          %v2082 = vmax.f32 %v1954, 0.0
          %v2083 = vmax.f32 %v1955, 0.0
          %v2084 = vmax.f32 %v1956, 0.0
          %v2085 = vmax.f32 %v1957, 0.0
          %v2086 = vmax.f32 %v1958, 0.0
          %v2087 = vmax.f32 %v1959, 0.0
          %v2088 = vmax.f32 %v1960, 0.0
          %v2089 = vmax.f32 %v1961, 0.0
          %v2090 = vmax.f32 %v1962, 0.0
          %v2091 = vmax.f32 %v1963, 0.0
          %v2092 = vmax.f32 %v1964, 0.0
          %v2093 = vpack.c.bf16 %v1965, %v1965
          %v2094 = vpack.c.bf16 %v1966, %v1966
          %v2095 = vpack.c.bf16 %v1967, %v1967
          %v2096 = vpack.c.bf16 %v1968, %v1968
          %v2097 = vpack.c.bf16 %v1969, %v1969
          %v2098 = vpack.c.bf16 %v1970, %v1970
          %v2099 = vpack.c.bf16 %v1971, %v1971
          %v2100 = vpack.c.bf16 %v1972, %v1972
          %v2101 = vpack.c.bf16 %v1973, %v1973
          %v2102 = vpack.c.bf16 %v1974, %v1974
          %v2103 = vpack.c.bf16 %v1975, %v1975
          %v2104 = vpack.c.bf16 %v1976, %v1976
          %v2105 = vpack.c.bf16 %v1977, %v1977
          %v2106 = vpack.c.bf16 %v1978, %v1978
          %v2107 = vpack.c.bf16 %v1979, %v1979
          %v2108 = vpack.c.bf16 %v1980, %v1980
          %v2109 = vpack.c.bf16 %v1981, %v1981
          %v2110 = vpack.c.bf16 %v1982, %v1982
          %v2111 = vpack.c.bf16 %v1983, %v1983
          %v2112 = vpack.c.bf16 %v1984, %v1984
          %v2113 = vpack.c.bf16 %v1985, %v1985
          %v2114 = vpack.c.bf16 %v1986, %v1986
          %v2115 = vpack.c.bf16 %v1987, %v1987
          %v2116 = vpack.c.bf16 %v1988, %v1988
          %v2117 = vpack.c.bf16 %v1989, %v1989
          %v2118 = vpack.c.bf16 %v1990, %v1990
          %v2119 = vpack.c.bf16 %v1991, %v1991
          %v2120 = vpack.c.bf16 %v1992, %v1992
          %v2121 = vpack.c.bf16 %v1993, %v1993
          %v2122 = vpack.c.bf16 %v1994, %v1994
          %v2123 = vpack.c.bf16 %v1995, %v1995
          %v2124 = vpack.c.bf16 %v1996, %v1996
          %v2125 = vpack.c.bf16 %v1997, %v1997
          %v2126 = vpack.c.bf16 %v1998, %v1998
          %v2127 = vpack.c.bf16 %v1999, %v1999
          %v2128 = vpack.c.bf16 %v2000, %v2000
          %v2129 = vpack.c.bf16 %v2001, %v2001
          %v2130 = vpack.c.bf16 %v2002, %v2002
          %v2131 = vpack.c.bf16 %v2003, %v2003
          %v2132 = vpack.c.bf16 %v2004, %v2004
          %v2133 = vpack.c.bf16 %v2005, %v2005
          %v2134 = vpack.c.bf16 %v2006, %v2006
          %v2135 = vpack.c.bf16 %v2007, %v2007
          %v2136 = vpack.c.bf16 %v2008, %v2008
          %v2137 = vpack.c.bf16 %v2009, %v2009
          %v2138 = vpack.c.bf16 %v2010, %v2010
          %v2139 = vpack.c.bf16 %v2011, %v2011
          %v2140 = vpack.c.bf16 %v2012, %v2012
          %v2141 = vpack.c.bf16 %v2013, %v2013
          %v2142 = vpack.c.bf16 %v2014, %v2014
          %v2143 = vpack.c.bf16 %v2015, %v2015
          %v2144 = vpack.c.bf16 %v2016, %v2016
          %v2145 = vpack.c.bf16 %v2017, %v2017
          %v2146 = vpack.c.bf16 %v2018, %v2018
          %v2147 = vpack.c.bf16 %v2019, %v2019
          %v2148 = vpack.c.bf16 %v2020, %v2020
          %v2149 = vpack.c.bf16 %v2021, %v2021
          %v2150 = vpack.c.bf16 %v2022, %v2022
          %v2151 = vpack.c.bf16 %v2023, %v2023
          %v2152 = vpack.c.bf16 %v2024, %v2024
          %v2153 = vpack.c.bf16 %v2025, %v2025
          %v2154 = vpack.c.bf16 %v2026, %v2026
          %v2155 = vpack.c.bf16 %v2027, %v2027
          %v2156 = vpack.c.bf16 %v2028, %v2028
          %v2157 = vpack.c.bf16 %v2029, %v2029
          %v2158 = vpack.c.bf16 %v2030, %v2030
          %v2159 = vpack.c.bf16 %v2031, %v2031
          %v2160 = vpack.c.bf16 %v2032, %v2032
          %v2161 = vpack.c.bf16 %v2033, %v2033
          %v2162 = vpack.c.bf16 %v2034, %v2034
          %v2163 = vpack.c.bf16 %v2035, %v2035
          %v2164 = vpack.c.bf16 %v2036, %v2036
          %v2165 = vpack.c.bf16 %v2037, %v2037
          %v2166 = vpack.c.bf16 %v2038, %v2038
          %v2167 = vpack.c.bf16 %v2039, %v2039
          %v2168 = vpack.c.bf16 %v2040, %v2040
          %v2169 = vpack.c.bf16 %v2041, %v2041
          %v2170 = vpack.c.bf16 %v2042, %v2042
          %v2171 = vpack.c.bf16 %v2043, %v2043
          %v2172 = vpack.c.bf16 %v2044, %v2044
          %v2173 = vpack.c.bf16 %v2045, %v2045
          %v2174 = vpack.c.bf16 %v2046, %v2046
          %v2175 = vpack.c.bf16 %v2047, %v2047
          %v2176 = vpack.c.bf16 %v2048, %v2048
          %v2177 = vpack.c.bf16 %v2049, %v2049
          %v2178 = vpack.c.bf16 %v2050, %v2050
          %v2179 = vpack.c.bf16 %v2051, %v2051
          %v2180 = vpack.c.bf16 %v2052, %v2052
          %v2181 = vpack.c.bf16 %v2053, %v2053
          %v2182 = vpack.c.bf16 %v2054, %v2054
          %v2183 = vpack.c.bf16 %v2055, %v2055
          %v2184 = vpack.c.bf16 %v2056, %v2056
          %v2185 = vpack.c.bf16 %v2057, %v2057
          %v2186 = vpack.c.bf16 %v2058, %v2058
          %v2187 = vpack.c.bf16 %v2059, %v2059
          %v2188 = vpack.c.bf16 %v2060, %v2060
          %v2189 = vpack.c.bf16 %v2061, %v2061
          %v2190 = vpack.c.bf16 %v2062, %v2062
          %v2191 = vpack.c.bf16 %v2063, %v2063
          %v2192 = vpack.c.bf16 %v2064, %v2064
          %v2193 = vpack.c.bf16 %v2065, %v2065
          %v2194 = vpack.c.bf16 %v2066, %v2066
          %v2195 = vpack.c.bf16 %v2067, %v2067
          %v2196 = vpack.c.bf16 %v2068, %v2068
          %v2197 = vpack.c.bf16 %v2069, %v2069
          %v2198 = vpack.c.bf16 %v2070, %v2070
          %v2199 = vpack.c.bf16 %v2071, %v2071
          %v2200 = vpack.c.bf16 %v2072, %v2072
          %v2201 = vpack.c.bf16 %v2073, %v2073
          %v2202 = vpack.c.bf16 %v2074, %v2074
          %v2203 = vpack.c.bf16 %v2075, %v2075
          %v2204 = vpack.c.bf16 %v2076, %v2076
          %v2205 = vpack.c.bf16 %v2077, %v2077
          %v2206 = vpack.c.bf16 %v2078, %v2078
          %v2207 = vpack.c.bf16 %v2079, %v2079
          %v2208 = vpack.c.bf16 %v2080, %v2080
          %v2209 = vpack.c.bf16 %v2081, %v2081
          %v2210 = vpack.c.bf16 %v2082, %v2082
          %v2211 = vpack.c.bf16 %v2083, %v2083
          %v2212 = vpack.c.bf16 %v2084, %v2084
          %v2213 = vpack.c.bf16 %v2085, %v2085
          %v2214 = vpack.c.bf16 %v2086, %v2086
          %v2215 = vpack.c.bf16 %v2087, %v2087
          %v2216 = vpack.c.bf16 %v2088, %v2088
          %v2217 = vpack.c.bf16 %v2089, %v2089
          %v2218 = vpack.c.bf16 %v2090, %v2090
          %v2219 = vpack.c.bf16 %v2091, %v2091
          %v2220 = vpack.c.bf16 %v2092, %v2092
          %vm2221 = vcmask 519168
          %2222 = vst.msk [vmem:[%s277] sm:$0xf] %vm2221, %v2093
          %2223 = vst.msk [vmem:[%s277 + $0x4] sm:$0xf] %vm2221, %v2094
          %2224 = vst.msk [vmem:[%s277 + $0x8] sm:$0xf] %vm2221, %v2095
          %2225 = vst.msk [vmem:[%s277 + $0xc] sm:$0xf] %vm2221, %v2096
          %2226 = vst.msk [vmem:[%s277 + $0x10] sm:$0xf] %vm2221, %v2097
          %2227 = vst.msk [vmem:[%s277 + $0x14] sm:$0xf] %vm2221, %v2098
          %2228 = vst.msk [vmem:[%s277 + $0x18] sm:$0xf] %vm2221, %v2099
          %2229 = vst.msk [vmem:[%s277 + $0x1c] sm:$0xf] %vm2221, %v2100
          %2230 = vst.msk [vmem:[%s277 + $0x20] sm:$0xf] %vm2221, %v2101
          %2231 = vst.msk [vmem:[%s277 + $0x24] sm:$0xf] %vm2221, %v2102
          %2232 = vst.msk [vmem:[%s277 + $0x28] sm:$0xf] %vm2221, %v2103
          %2233 = vst.msk [vmem:[%s277 + $0x2c] sm:$0xf] %vm2221, %v2104
          %2234 = vst.msk [vmem:[%s277 + $0x30] sm:$0xf] %vm2221, %v2105
          %2235 = vst.msk [vmem:[%s277 + $0x34] sm:$0xf] %vm2221, %v2106
          %2236 = vst.msk [vmem:[%s277 + $0x38] sm:$0xf] %vm2221, %v2107
          %2237 = vst.msk [vmem:[%s277 + $0x3c] sm:$0xf] %vm2221, %v2108
          %2238 = vst.msk [vmem:[%s277 + $0x40] sm:$0xf] %vm2221, %v2109
          %2239 = vst.msk [vmem:[%s277 + $0x44] sm:$0xf] %vm2221, %v2110
          %2240 = vst.msk [vmem:[%s277 + $0x48] sm:$0xf] %vm2221, %v2111
          %2241 = vst.msk [vmem:[%s277 + $0x4c] sm:$0xf] %vm2221, %v2112
          %2242 = vst.msk [vmem:[%s277 + $0x50] sm:$0xf] %vm2221, %v2113
          %2243 = vst.msk [vmem:[%s277 + $0x54] sm:$0xf] %vm2221, %v2114
          %2244 = vst.msk [vmem:[%s277 + $0x58] sm:$0xf] %vm2221, %v2115
          %2245 = vst.msk [vmem:[%s277 + $0x5c] sm:$0xf] %vm2221, %v2116
          %2246 = vst.msk [vmem:[%s277 + $0x60] sm:$0xf] %vm2221, %v2117
          %2247 = vst.msk [vmem:[%s277 + $0x64] sm:$0xf] %vm2221, %v2118
          %2248 = vst.msk [vmem:[%s277 + $0x68] sm:$0xf] %vm2221, %v2119
          %2249 = vst.msk [vmem:[%s277 + $0x6c] sm:$0xf] %vm2221, %v2120
          %2250 = vst.msk [vmem:[%s277 + $0x70] sm:$0xf] %vm2221, %v2121
          %2251 = vst.msk [vmem:[%s277 + $0x74] sm:$0xf] %vm2221, %v2122
          %2252 = vst.msk [vmem:[%s277 + $0x78] sm:$0xf] %vm2221, %v2123
          %2253 = vst.msk [vmem:[%s277 + $0x7c] sm:$0xf] %vm2221, %v2124
          %2254 = vst.msk [vmem:[%s277 + $0x80] sm:$0xf] %vm2221, %v2125
          %2255 = vst.msk [vmem:[%s277 + $0x84] sm:$0xf] %vm2221, %v2126
          %2256 = vst.msk [vmem:[%s277 + $0x88] sm:$0xf] %vm2221, %v2127
          %2257 = vst.msk [vmem:[%s277 + $0x8c] sm:$0xf] %vm2221, %v2128
          %2258 = vst.msk [vmem:[%s277 + $0x90] sm:$0xf] %vm2221, %v2129
          %2259 = vst.msk [vmem:[%s277 + $0x94] sm:$0xf] %vm2221, %v2130
          %2260 = vst.msk [vmem:[%s277 + $0x98] sm:$0xf] %vm2221, %v2131
          %2261 = vst.msk [vmem:[%s277 + $0x9c] sm:$0xf] %vm2221, %v2132
          %2262 = vst.msk [vmem:[%s277 + $0xa0] sm:$0xf] %vm2221, %v2133
          %2263 = vst.msk [vmem:[%s277 + $0xa4] sm:$0xf] %vm2221, %v2134
          %2264 = vst.msk [vmem:[%s277 + $0xa8] sm:$0xf] %vm2221, %v2135
          %2265 = vst.msk [vmem:[%s277 + $0xac] sm:$0xf] %vm2221, %v2136
          %2266 = vst.msk [vmem:[%s277 + $0xb0] sm:$0xf] %vm2221, %v2137
          %2267 = vst.msk [vmem:[%s277 + $0xb4] sm:$0xf] %vm2221, %v2138
          %2268 = vst.msk [vmem:[%s277 + $0xb8] sm:$0xf] %vm2221, %v2139
          %2269 = vst.msk [vmem:[%s277 + $0xbc] sm:$0xf] %vm2221, %v2140
          %2270 = vst.msk [vmem:[%s277 + $0xc0] sm:$0xf] %vm2221, %v2141
          %2271 = vst.msk [vmem:[%s277 + $0xc4] sm:$0xf] %vm2221, %v2142
          %2272 = vst.msk [vmem:[%s277 + $0xc8] sm:$0xf] %vm2221, %v2143
          %2273 = vst.msk [vmem:[%s277 + $0xcc] sm:$0xf] %vm2221, %v2144
          %2274 = vst.msk [vmem:[%s277 + $0xd0] sm:$0xf] %vm2221, %v2145
          %2275 = vst.msk [vmem:[%s277 + $0xd4] sm:$0xf] %vm2221, %v2146
          %2276 = vst.msk [vmem:[%s277 + $0xd8] sm:$0xf] %vm2221, %v2147
          %2277 = vst.msk [vmem:[%s277 + $0xdc] sm:$0xf] %vm2221, %v2148
          %2278 = vst.msk [vmem:[%s277 + $0xe0] sm:$0xf] %vm2221, %v2149
          %2279 = vst.msk [vmem:[%s277 + $0xe4] sm:$0xf] %vm2221, %v2150
          %2280 = vst.msk [vmem:[%s277 + $0xe8] sm:$0xf] %vm2221, %v2151
          %2281 = vst.msk [vmem:[%s277 + $0xec] sm:$0xf] %vm2221, %v2152
          %2282 = vst.msk [vmem:[%s277 + $0xf0] sm:$0xf] %vm2221, %v2153
          %2283 = vst.msk [vmem:[%s277 + $0xf4] sm:$0xf] %vm2221, %v2154
          %2284 = vst.msk [vmem:[%s277 + $0xf8] sm:$0xf] %vm2221, %v2155
          %2285 = vst.msk [vmem:[%s277 + $0xfc] sm:$0xf] %vm2221, %v2156
          %2286 = vst.msk [vmem:[%s277 + $0x100] sm:$0xf] %vm2221, %v2157
          %2287 = vst.msk [vmem:[%s277 + $0x104] sm:$0xf] %vm2221, %v2158
          %2288 = vst.msk [vmem:[%s277 + $0x108] sm:$0xf] %vm2221, %v2159
          %2289 = vst.msk [vmem:[%s277 + $0x10c] sm:$0xf] %vm2221, %v2160
          %2290 = vst.msk [vmem:[%s277 + $0x110] sm:$0xf] %vm2221, %v2161
          %2291 = vst.msk [vmem:[%s277 + $0x114] sm:$0xf] %vm2221, %v2162
          %2292 = vst.msk [vmem:[%s277 + $0x118] sm:$0xf] %vm2221, %v2163
          %2293 = vst.msk [vmem:[%s277 + $0x11c] sm:$0xf] %vm2221, %v2164
          %2294 = vst.msk [vmem:[%s277 + $0x120] sm:$0xf] %vm2221, %v2165
          %2295 = vst.msk [vmem:[%s277 + $0x124] sm:$0xf] %vm2221, %v2166
          %2296 = vst.msk [vmem:[%s277 + $0x128] sm:$0xf] %vm2221, %v2167
          %2297 = vst.msk [vmem:[%s277 + $0x12c] sm:$0xf] %vm2221, %v2168
          %2298 = vst.msk [vmem:[%s277 + $0x130] sm:$0xf] %vm2221, %v2169
          %2299 = vst.msk [vmem:[%s277 + $0x134] sm:$0xf] %vm2221, %v2170
          %2300 = vst.msk [vmem:[%s277 + $0x138] sm:$0xf] %vm2221, %v2171
          %2301 = vst.msk [vmem:[%s277 + $0x13c] sm:$0xf] %vm2221, %v2172
          %2302 = vst.msk [vmem:[%s277 + $0x140] sm:$0xf] %vm2221, %v2173
          %2303 = vst.msk [vmem:[%s277 + $0x144] sm:$0xf] %vm2221, %v2174
          %2304 = vst.msk [vmem:[%s277 + $0x148] sm:$0xf] %vm2221, %v2175
          %2305 = vst.msk [vmem:[%s277 + $0x14c] sm:$0xf] %vm2221, %v2176
          %2306 = vst.msk [vmem:[%s277 + $0x150] sm:$0xf] %vm2221, %v2177
          %2307 = vst.msk [vmem:[%s277 + $0x154] sm:$0xf] %vm2221, %v2178
          %2308 = vst.msk [vmem:[%s277 + $0x158] sm:$0xf] %vm2221, %v2179
          %2309 = vst.msk [vmem:[%s277 + $0x15c] sm:$0xf] %vm2221, %v2180
          %2310 = vst.msk [vmem:[%s277 + $0x160] sm:$0xf] %vm2221, %v2181
          %2311 = vst.msk [vmem:[%s277 + $0x164] sm:$0xf] %vm2221, %v2182
          %2312 = vst.msk [vmem:[%s277 + $0x168] sm:$0xf] %vm2221, %v2183
          %2313 = vst.msk [vmem:[%s277 + $0x16c] sm:$0xf] %vm2221, %v2184
          %2314 = vst.msk [vmem:[%s277 + $0x170] sm:$0xf] %vm2221, %v2185
          %2315 = vst.msk [vmem:[%s277 + $0x174] sm:$0xf] %vm2221, %v2186
          %2316 = vst.msk [vmem:[%s277 + $0x178] sm:$0xf] %vm2221, %v2187
          %2317 = vst.msk [vmem:[%s277 + $0x17c] sm:$0xf] %vm2221, %v2188
          %2318 = vst.msk [vmem:[%s277 + $0x180] sm:$0xf] %vm2221, %v2189
          %2319 = vst.msk [vmem:[%s277 + $0x184] sm:$0xf] %vm2221, %v2190
          %2320 = vst.msk [vmem:[%s277 + $0x188] sm:$0xf] %vm2221, %v2191
          %2321 = vst.msk [vmem:[%s277 + $0x18c] sm:$0xf] %vm2221, %v2192
          %2322 = vst.msk [vmem:[%s277 + $0x190] sm:$0xf] %vm2221, %v2193
          %2323 = vst.msk [vmem:[%s277 + $0x194] sm:$0xf] %vm2221, %v2194
          %2324 = vst.msk [vmem:[%s277 + $0x198] sm:$0xf] %vm2221, %v2195
          %2325 = vst.msk [vmem:[%s277 + $0x19c] sm:$0xf] %vm2221, %v2196
          %2326 = vst.msk [vmem:[%s277 + $0x1a0] sm:$0xf] %vm2221, %v2197
          %2327 = vst.msk [vmem:[%s277 + $0x1a4] sm:$0xf] %vm2221, %v2198
          %2328 = vst.msk [vmem:[%s277 + $0x1a8] sm:$0xf] %vm2221, %v2199
          %2329 = vst.msk [vmem:[%s277 + $0x1ac] sm:$0xf] %vm2221, %v2200
          %2330 = vst.msk [vmem:[%s277 + $0x1b0] sm:$0xf] %vm2221, %v2201
          %2331 = vst.msk [vmem:[%s277 + $0x1b4] sm:$0xf] %vm2221, %v2202
          %2332 = vst.msk [vmem:[%s277 + $0x1b8] sm:$0xf] %vm2221, %v2203
          %2333 = vst.msk [vmem:[%s277 + $0x1bc] sm:$0xf] %vm2221, %v2204
          %2334 = vst.msk [vmem:[%s277 + $0x1c0] sm:$0xf] %vm2221, %v2205
          %2335 = vst.msk [vmem:[%s277 + $0x1c4] sm:$0xf] %vm2221, %v2206
          %2336 = vst.msk [vmem:[%s277 + $0x1c8] sm:$0xf] %vm2221, %v2207
          %2337 = vst.msk [vmem:[%s277 + $0x1cc] sm:$0xf] %vm2221, %v2208
          %2338 = vst.msk [vmem:[%s277 + $0x1d0] sm:$0xf] %vm2221, %v2209
          %2339 = vst.msk [vmem:[%s277 + $0x1d4] sm:$0xf] %vm2221, %v2210
          %2340 = vst.msk [vmem:[%s277 + $0x1d8] sm:$0xf] %vm2221, %v2211
          %2341 = vst.msk [vmem:[%s277 + $0x1dc] sm:$0xf] %vm2221, %v2212
          %2342 = vst.msk [vmem:[%s277 + $0x1e0] sm:$0xf] %vm2221, %v2213
          %2343 = vst.msk [vmem:[%s277 + $0x1e4] sm:$0xf] %vm2221, %v2214
          %2344 = vst.msk [vmem:[%s277 + $0x1e8] sm:$0xf] %vm2221, %v2215
          %2345 = vst.msk [vmem:[%s277 + $0x1ec] sm:$0xf] %vm2221, %v2216
          %2346 = vst.msk [vmem:[%s277 + $0x1f0] sm:$0xf] %vm2221, %v2217
          %2347 = vst.msk [vmem:[%s277 + $0x1f4] sm:$0xf] %vm2221, %v2218
          %2348 = vst.msk [vmem:[%s277 + $0x1f8] sm:$0xf] %vm2221, %v2219
          %2349 = vst.msk [vmem:[%s277 + $0x1fc] sm:$0xf] %vm2221, %v2220
        $region48: #{tpu_custom_call.1} parent=31 // pred_fallthru
          _
        %s2350 = smul.u32 128, %s23
        %p2351 = scmp.lt.s32.totalorder %s2350, 8319
        %s2352 = scalar_select %p2351, %s2350, 8319
        %p2353 = scmp.lt.s32.totalorder %s24, 0
        %s2354 = scalar_select %p2353, %s24, 0
        %s2355 = sadd.s32 %s2354, %s2352
        %s2356 = smul.addr %s2355, 4
        %s2357 = scalar_lea.vmem %s3, %s2356
        // Predicated region
        $region49: #{tpu_custom_call.1} parent=31 // pred_check
          %p2358 = pneg %p139
        $region50: #{tpu_custom_call.1} parent=31 // pred_check_branch
          %2360 = sbr.rel (%p2358) target = $region52
        $region51: #{tpu_custom_call.1} parent=31 // pred_region
          %s2361 = smul.u32 128, %s23
        $region52: #{tpu_custom_call.1} parent=31 // pred_fallthru
          _
      $region32: #{tpu_custom_call.1} parent=5 // pred_fallthru
        _
      %p2362 = scmp.le.s32.totalorder 2, %s13
      // Predicated region
      $region53: #{tpu_custom_call.1} parent=5 // pred_check
        %p2363 = pneg %p2362
      $region54: #{tpu_custom_call.1} parent=5 // pred_check_branch
        %2365 = sbr.rel (%p2363) target = $region56
      $region55: #{tpu_custom_call.1} parent=5 // pred_region
        %s2366 = ssub.s32 %s13, 2
        // Predicated region
        $region57: #{tpu_custom_call.1} parent=55 // pred_check
          %p2367 = pneg %p145
        $region58: #{tpu_custom_call.1} parent=55 // pred_check_branch
          %2369 = sbr.rel (%p2367) target = $region60
        $region59: #{tpu_custom_call.1} parent=55 // pred_region
          %s2370 = smul.u32 128, %s26
          %p2371 = scmp.lt.s32.totalorder %s2370, 8319
          %s2372 = scalar_select %p2371, %s2370, 8319
          %p2373 = scmp.lt.s32.totalorder %s27, 0
          %s2374 = scalar_select %p2373, %s27, 0
          %s2375 = sadd.s32 %s2374, %s2372
          %s2376 = smul.addr %s2375, 4
          %s2377 = scalar_lea.vmem %s3, %s2376
        $region60: #{tpu_custom_call.1} parent=55 // pred_fallthru
          _
      $region56: #{tpu_custom_call.1} parent=5 // pred_fallthru
        _
    $region6: #{tpu_custom_call.1} parent=1 // loop_footer
      %s17 = sadd.s32 1, %s13
    $region7: #{tpu_custom_call.1} parent=1 // loop_footer_branch
      %12 = sbr.rel target = $region3
    $region8: #{tpu_custom_call.1} parent=1 // loop_exit
      _
    %2378 = vsyncpa [#allocation4], 1
    %s2379 = scalar_lea.sflag [#allocation4], 1
    %2380 = vsyncpa %s2379, 1
    %2381 = vsyncpa [#allocation6], 1

</llo_original>
